<compile_context>
chip_gen: v7x
topology: tpu7x:2x2x1
jax: 0.10.0
libtpu: 0.0.40
codegen_flags: <defaults>
</compile_context>

<pallas_src>
import functools

import jax
import jax.numpy as jnp
from jax.experimental import pallas as pl
from jax.experimental.pallas import tpu as pltpu

# ----------------------------- configuration --------------------------------
RAW_DIM = 3 + 3 + 4            # xyz + dxyz + ppf = 10
RAW_PAD = 16                   # zero-padded input channels (sublane aligned)
FEATURE_DIM = 32               # "feature_dim" of the module
FD = FEATURE_DIM               # prepool hidden = feature_dim*2 // 2
FD2 = FEATURE_DIM * 2          # prepool output / postpool input
WPAD = 64                      # padded channel width carried through the kernel
NUM_GROUPS = 8
GN_EPS = 1e-5
NORM_EPS = 1e-12

B = 2
N_POINTS = 64
N_SAMPLE = 8
RADIUS = 0.3

# per-layer static config: (cin, cout, has_group_norm_relu)
_LAYER_CFG = (
    (RAW_DIM, FD, True),    # prepool conv 1   (Conv2d 1x1)
    (FD, FD, True),         # prepool conv 2
    (FD, FD2, True),        # prepool conv 3
    (FD2, FD2, True),       # postpool conv 1  (Conv1d 1x1)
    (FD2, FD, True),        # postpool conv 2
    (FD, FD, False),        # postpool conv 3 (no GN / ReLU)
)


# ------------------------------ Pallas kernel --------------------------------
def _gn_relu(h, bias, gamma, beta, ga, batch, rows_per_sample):
    """GroupNorm(8) + ReLU on conv output `h` (conv bias NOT yet applied).

    h:     (batch*rows_per_sample, C) f32, channel-padded to C=WPAD.
    bias/gamma/beta: (1, C) f32 (zero on padded channels; gamma zero there).
    ga:    (C, C) group-average matrix (1/cpg on same-group valid entries).

    The conv bias is folded analytically into the per-group moments, then the
    whole normalization collapses to y = max(h*scale + shift, 0) -- only
    3 elementwise passes over the big activation tensor.  Matches PyTorch
    Conv(+bias) -> GroupNorm(8) -> ReLU up to rounding.
    """
    c = h.shape[-1]
    x3 = h.reshape(batch, rows_per_sample, c)          # free leading-dim split
    mean_c = jnp.mean(x3, axis=1)                      # (B, C) per-channel mean
    sq_c = jnp.mean(x3 * x3, axis=1)                   # (B, C) per-channel E[x^2]
    # fold the conv bias into the moments (exact): E[x+b] , E[(x+b)^2]
    mean_t = mean_c + bias
    sq_t = sq_c + (2.0 * bias) * mean_c + bias * bias
    # per-group moments via one tiny matmul each (MXU, essentially free)
    gmean = jnp.dot(mean_t, ga, preferred_element_type=jnp.float32)   # (B, C)
    gvar = jnp.dot(sq_t, ga, preferred_element_type=jnp.float32) - gmean * gmean
    inv = jax.lax.rsqrt(jnp.maximum(gvar, 0.0) + GN_EPS)              # (B, C)
    scale = inv * gamma                                               # (B, C)
    shift = (bias - gmean) * scale + beta                             # (B, C)
    y3 = jnp.maximum(x3 * scale[:, None, :] + shift[:, None, :], 0.0)
    return y3.reshape(h.shape)


def _feat_kernel(fused_ref, w0_ref, wr_ref, v_ref, ga_ref, out_ref,
                 *, batch, n_points, nsample):
    rows_pre = n_points * nsample          # rows per sample before pooling

    ga32 = ga_ref[0]                       # group-average matrix, 32 valid ch
    ga64 = ga_ref[1]                       # group-average matrix, 64 valid ch

    def layer_params(layer):
        bias = v_ref[layer, 0:1, :]        # (1, WPAD)
        gamma = v_ref[layer, 1:2, :]
        beta = v_ref[layer, 2:3, :]
        ga = ga32 if _LAYER_CFG[layer][1] == FD else ga64
        return bias, gamma, beta, ga

    # ---- prepool: Conv2d(1x1) -> GN(8) -> ReLU, x3 ----
    h = jnp.dot(fused_ref[...], w0_ref[...],
                preferred_element_type=jnp.float32)     # (B*N*ns, WPAD) f32
    h = _gn_relu(h, *layer_params(0), batch, rows_pre)
    for layer in (1, 2):
        h = jnp.dot(h.astype(jnp.bfloat16), wr_ref[layer - 1],
                    preferred_element_type=jnp.float32)
        h = _gn_relu(h, *layer_params(layer), batch, rows_pre)

    # ---- max pool over neighbors (free leading-dim reshape, sublane reduce) --
    p = jnp.max(h.reshape(batch * n_points, nsample, WPAD), axis=1)   # (B*N, WPAD)

    # ---- postpool: Conv1d(1x1) -> GN(8) -> ReLU, x2, then Conv1d ----
    for layer in (3, 4):
        p = jnp.dot(p.astype(jnp.bfloat16), wr_ref[layer - 1],
                    preferred_element_type=jnp.float32)
        p = _gn_relu(p, *layer_params(layer), batch, n_points)
    p = jnp.dot(p.astype(jnp.bfloat16), wr_ref[4],
                preferred_element_type=jnp.float32) + v_ref[5, 0:1, :]

    # ---- per-point L2 normalization (rsqrt + eps -> EUP, no NaN on zero) ----
    sq = jnp.sum(p * p, axis=-1, keepdims=True)         # padded channels are 0
    out = p * jax.lax.rsqrt(sq + NORM_EPS)
    out_ref[...] = out[:, :FD].reshape(batch, n_points, FD)


def feat_extraction_pallas(fused, w0, w_rest, v_slab, ga_slab,
                           *, batch, n_points, nsample):
    """fused: (batch*n_points*nsample, RAW_PAD) bf16, row = (b*N + p)*ns + s.
    Returns (batch, n_points, FD) f32.  Single gridless invocation: all
    operands are whole-array resident in VMEM, no pipelining/grid overhead."""
    kernel = functools.partial(_feat_kernel, batch=batch,
                               n_points=n_points, nsample=nsample)
    vmem_spec = pl.BlockSpec(memory_space=pltpu.MemorySpace.VMEM)
    return pl.pallas_call(
        kernel,
        out_shape=jax.ShapeDtypeStruct((batch, n_points, FD), jnp.float32),
        in_specs=[vmem_spec] * 5,
        out_specs=vmem_spec,
    )(fused, w0, w_rest, v_slab, ga_slab)


# --------------------- plain-JAX glue: feature construction ------------------
def _angle(v1, v2):
    cross = jnp.cross(v1, v2)
    cross_norm = jnp.linalg.norm(cross, axis=-1)
    dot = jnp.sum(v1 * v2, axis=-1)
    return jnp.arctan2(cross_norm, dot)


def sample_and_group_multi(radius, nsample, xyz, normals):
    """npoint = -1 (all points are centers).  Grouping done in plain JAX.
    # TODO(synk): query_ball_point (index-order ball query) approximated by
    # kNN with out-of-radius neighbors replaced by the nearest point (self)."""
    sqd = jnp.sum((xyz[:, :, None, :] - xyz[:, None, :, :]) ** 2, axis=-1)  # (B,N,N)
    neg_d, idx = jax.lax.top_k(-sqd, nsample)                               # (B,N,ns)
    within = (-neg_d) <= radius * radius
    idx = jnp.where(within, idx, idx[:, :, :1])

    gather = jax.vmap(lambda pts, ind: pts[ind])
    grouped_xyz = gather(xyz, idx)          # (B, N, ns, 3)
    grouped_nrm = gather(normals, idx)      # (B, N, ns, 3)

    d = grouped_xyz - xyz[:, :, None, :]    # dxyz
    nr = normals[:, :, None, :]
    nr_d = _angle(nr, d)
    ni_d = _angle(grouped_nrm, d)
    nr_ni = _angle(nr, grouped_nrm)
    d_norm = jnp.linalg.norm(d, axis=-1)
    ppf = jnp.stack([nr_d, ni_d, nr_ni, d_norm], axis=-1)   # (B, N, ns, 4)

    return {"xyz": xyz, "dxyz": d, "ppf": ppf}


def forward(xyz, normals, params):
    feats = sample_and_group_multi(RADIUS, N_SAMPLE, xyz, normals)
    b, n, _ = xyz.shape
    xyz_e = jnp.broadcast_to(feats["xyz"][:, :, None, :], (b, n, N_SAMPLE, 3))
    fused = jnp.concatenate([xyz_e, feats["dxyz"], feats["ppf"]], axis=-1)  # (B,N,ns,10)
    # zero-pad channels 10 -> 16 (sublane-tile aligned K for the first matmul)
    fused = jnp.pad(fused, ((0, 0), (0, 0), (0, 0), (0, RAW_PAD - RAW_DIM)))
    # point-major flattening (row = (b*N + point)*nsample + neighbor)
    fused = fused.reshape(b * n * N_SAMPLE, RAW_PAD).astype(jnp.bfloat16)
    w0, w_rest, v_slab, ga_slab = params
    return feat_extraction_pallas(fused, w0, w_rest, v_slab, ga_slab,
                                  batch=b, n_points=n, nsample=N_SAMPLE)


# ------------------------------ parameter init --------------------------------
def _make_group_avg(c):
    """(c, c) matrix with 1/cpg on same-group entries (precomputed on host)."""
    cpg = c // NUM_GROUPS
    gi = jnp.arange(c)[:, None] // cpg
    gj = jnp.arange(c)[None, :] // cpg
    return jnp.where(gi == gj, 1.0 / cpg, 0.0).astype(jnp.float32)


def init_params(key):
    """Packed parameters:
       w0      (RAW_PAD, WPAD) bf16 : layer-0 weight, zero-padded (16 x 64)
       w_rest  (5, WPAD, WPAD) bf16 : layers 1..5 weights, zero-padded (64 x 64)
       v_slab  (6, 3, WPAD) f32     : [bias; gamma; beta] per layer (zero/one pad)
       ga_slab (2, WPAD, WPAD) f32  : GroupNorm group-average matrices (C=32, 64)
    """
    dims = [(cin, cout) for (cin, cout, _) in _LAYER_CFG]
    ks = jax.random.split(key, len(dims))

    w0 = jnp.zeros((RAW_PAD, WPAD), jnp.float32)
    w_rest = jnp.zeros((5, WPAD, WPAD), jnp.float32)
    v_slab = jnp.zeros((6, 3, WPAD), jnp.float32)
    for l, (cin, cout) in enumerate(dims):
        kw, kb = jax.random.split(ks[l])
        w = 0.1 * jax.random.normal(kw, (cin, cout), jnp.float32)
        bias = 0.01 * jax.random.normal(kb, (cout,), jnp.float32)
        if l == 0:
            w0 = w0.at[:cin, :cout].set(w)
        else:
            w_rest = w_rest.at[l - 1, :cin, :cout].set(w)
        v_slab = v_slab.at[l, 0, :cout].set(bias)     # conv bias
        v_slab = v_slab.at[l, 1, :cout].set(1.0)      # GN gamma (pad stays 0)
        # GN beta stays 0

    ga_slab = jnp.zeros((2, WPAD, WPAD), jnp.float32)
    ga_slab = ga_slab.at[0, :FD, :FD].set(_make_group_avg(FD))
    ga_slab = ga_slab.at[1, :FD2, :FD2].set(_make_group_avg(FD2))
    return (w0.astype(jnp.bfloat16), w_rest.astype(jnp.bfloat16), v_slab, ga_slab)


# ----------------------------------- main -------------------------------------
if __name__ == "__main__":
    key = jax.random.PRNGKey(0)
    k_xyz, k_nrm, k_par = jax.random.split(key, 3)

    xyz = jax.random.uniform(k_xyz, (B, N_POINTS, 3), jnp.float32)
    normals = jax.random.normal(k_nrm, (B, N_POINTS, 3), jnp.float32)
    normals = normals / jnp.linalg.norm(normals, axis=-1, keepdims=True)

    params = init_params(k_par)

    out = jax.jit(forward)(xyz, normals, params)
    out = jax.block_until_ready(out)
    assert out.shape == (B, N_POINTS, FEATURE_DIM)
    assert bool(jnp.all(jnp.isfinite(out)))
    print("KERNEL_OK")
</pallas_src>

<mosaic_0001>
module attributes {stable_mosaic.version = 11 : i64} {
  func.func @_feat_kernel(%arg0: memref<1024x16xbf16, #tpu.memory_space<vmem>>, %arg1: memref<16x64xbf16, #tpu.memory_space<vmem>>, %arg2: memref<5x64x64xbf16, #tpu.memory_space<vmem>>, %arg3: memref<6x3x64xf32, #tpu.memory_space<vmem>>, %arg4: memref<2x64x64xf32, #tpu.memory_space<vmem>>, %arg5: memref<2x64x32xf32, #tpu.memory_space<vmem>>) attributes {dimension_semantics = [], scalar_prefetch = 0 : i64, scratch_operands = 0 : i64, tpu.core_type = #tpu.core_type<tc>} {
    %c0 = arith.constant 0 : index
    %c0_0 = arith.constant 0 : index
    %c0_1 = arith.constant 0 : index
    %0 = vector.load %arg4[%c0, %c0_0, %c0_1] : memref<2x64x64xf32, #tpu.memory_space<vmem>>, vector<1x64x64xf32>
    %1 = vector.shape_cast %0 : vector<1x64x64xf32> to vector<64x64xf32>
    %c1 = arith.constant 1 : index
    %c0_2 = arith.constant 0 : index
    %c0_3 = arith.constant 0 : index
    %2 = vector.load %arg4[%c1, %c0_2, %c0_3] : memref<2x64x64xf32, #tpu.memory_space<vmem>>, vector<1x64x64xf32>
    %3 = vector.shape_cast %2 : vector<1x64x64xf32> to vector<64x64xf32>
    %c0_4 = arith.constant 0 : index
    %c0_5 = arith.constant 0 : index
    %4 = vector.load %arg0[%c0_4, %c0_5] : memref<1024x16xbf16, #tpu.memory_space<vmem>>, vector<1024x16xbf16>
    %c0_6 = arith.constant 0 : index
    %c0_7 = arith.constant 0 : index
    %5 = vector.load %arg1[%c0_6, %c0_7] : memref<16x64xbf16, #tpu.memory_space<vmem>>, vector<16x64xbf16>
    %cst = arith.constant dense<0.000000e+00> : vector<1024x64xf32>
    %6 = tpu.matmul %4, %5, %cst {dimension_numbers = #tpu.dot_dimension_numbers<[1], [0], [0], [1], [0, 0, 1, 1], [], []>} : vector<1024x16xbf16>, vector<16x64xbf16>, vector<1024x64xf32> -> vector<1024x64xf32>
    %c0_8 = arith.constant 0 : index
    %c0_9 = arith.constant 0 : index
    %c0_10 = arith.constant 0 : index
    %7 = vector.load %arg3[%c0_8, %c0_9, %c0_10] : memref<6x3x64xf32, #tpu.memory_space<vmem>>, vector<1x1x64xf32>
    %8 = vector.shape_cast %7 : vector<1x1x64xf32> to vector<1x64xf32>
    %c0_11 = arith.constant 0 : index
    %c1_12 = arith.constant 1 : index
    %c0_13 = arith.constant 0 : index
    %9 = vector.load %arg3[%c0_11, %c1_12, %c0_13] : memref<6x3x64xf32, #tpu.memory_space<vmem>>, vector<1x1x64xf32>
    %10 = vector.shape_cast %9 : vector<1x1x64xf32> to vector<1x64xf32>
    %c0_14 = arith.constant 0 : index
    %c2 = arith.constant 2 : index
    %c0_15 = arith.constant 0 : index
    %11 = vector.load %arg3[%c0_14, %c2, %c0_15] : memref<6x3x64xf32, #tpu.memory_space<vmem>>, vector<1x1x64xf32>
    %12 = vector.shape_cast %11 : vector<1x1x64xf32> to vector<1x64xf32>
    %13 = vector.shape_cast %6 : vector<1024x64xf32> to vector<2x512x64xf32>
    %cst_16 = arith.constant dense<0.000000e+00> : vector<2x64xf32>
    %14 = vector.multi_reduction <add>, %13, %cst_16 [1] : vector<2x512x64xf32> to vector<2x64xf32>
    %cst_17 = arith.constant 5.120000e+02 : f32
    %15 = vector.broadcast %cst_17 : f32 to vector<2x64xf32>
    %16 = arith.divf %14, %15 : vector<2x64xf32>
    %17 = arith.mulf %13, %13 : vector<2x512x64xf32>
    %cst_18 = arith.constant dense<0.000000e+00> : vector<2x64xf32>
    %18 = vector.multi_reduction <add>, %17, %cst_18 [1] : vector<2x512x64xf32> to vector<2x64xf32>
    %cst_19 = arith.constant 5.120000e+02 : f32
    %19 = vector.broadcast %cst_19 : f32 to vector<2x64xf32>
    %20 = arith.divf %18, %19 : vector<2x64xf32>
    %21 = vector.broadcast %8 : vector<1x64xf32> to vector<2x64xf32>
    %22 = arith.addf %16, %21 : vector<2x64xf32>
    %cst_20 = arith.constant 2.000000e+00 : f32
    %23 = vector.broadcast %cst_20 : f32 to vector<1x64xf32>
    %24 = arith.mulf %23, %8 : vector<1x64xf32>
    %25 = vector.broadcast %24 : vector<1x64xf32> to vector<2x64xf32>
    %26 = arith.mulf %25, %16 : vector<2x64xf32>
    %27 = arith.addf %20, %26 : vector<2x64xf32>
    %28 = arith.mulf %8, %8 : vector<1x64xf32>
    %29 = vector.broadcast %28 : vector<1x64xf32> to vector<2x64xf32>
    %30 = arith.addf %27, %29 : vector<2x64xf32>
    %cst_21 = arith.constant dense<0.000000e+00> : vector<2x64xf32>
    %31 = tpu.matmul %22, %1, %cst_21 {dimension_numbers = #tpu.dot_dimension_numbers<[1], [0], [0], [1], [0, 0, 1, 1], [], []>} : vector<2x64xf32>, vector<64x64xf32>, vector<2x64xf32> -> vector<2x64xf32>
    %cst_22 = arith.constant dense<0.000000e+00> : vector<2x64xf32>
    %32 = tpu.matmul %30, %1, %cst_22 {dimension_numbers = #tpu.dot_dimension_numbers<[1], [0], [0], [1], [0, 0, 1, 1], [], []>} : vector<2x64xf32>, vector<64x64xf32>, vector<2x64xf32> -> vector<2x64xf32>
    %33 = arith.mulf %31, %31 : vector<2x64xf32>
    %34 = arith.subf %32, %33 : vector<2x64xf32>
    %cst_23 = arith.constant 0.000000e+00 : f32
    %35 = vector.broadcast %cst_23 : f32 to vector<2x64xf32>
    %36 = arith.maximumf %34, %35 : vector<2x64xf32>
    %cst_24 = arith.constant 9.99999974E-6 : f32
    %37 = vector.broadcast %cst_24 : f32 to vector<2x64xf32>
    %38 = arith.addf %36, %37 : vector<2x64xf32>
    %39 = math.rsqrt %38 : vector<2x64xf32>
    %40 = vector.broadcast %10 : vector<1x64xf32> to vector<2x64xf32>
    %41 = arith.mulf %39, %40 : vector<2x64xf32>
    %42 = vector.broadcast %8 : vector<1x64xf32> to vector<2x64xf32>
    %43 = arith.subf %42, %31 : vector<2x64xf32>
    %44 = arith.mulf %43, %41 : vector<2x64xf32>
    %45 = vector.broadcast %12 : vector<1x64xf32> to vector<2x64xf32>
    %46 = arith.addf %44, %45 : vector<2x64xf32>
    %47 = vector.shape_cast %41 : vector<2x64xf32> to vector<2x1x64xf32>
    %48 = vector.broadcast %47 : vector<2x1x64xf32> to vector<2x512x64xf32>
    %49 = arith.mulf %13, %48 : vector<2x512x64xf32>
    %50 = vector.shape_cast %46 : vector<2x64xf32> to vector<2x1x64xf32>
    %51 = vector.broadcast %50 : vector<2x1x64xf32> to vector<2x512x64xf32>
    %52 = arith.addf %49, %51 : vector<2x512x64xf32>
    %cst_25 = arith.constant 0.000000e+00 : f32
    %53 = vector.broadcast %cst_25 : f32 to vector<2x512x64xf32>
    %54 = arith.maximumf %52, %53 : vector<2x512x64xf32>
    %55 = vector.shape_cast %54 : vector<2x512x64xf32> to vector<1024x64xf32>
    %56 = arith.truncf %55 : vector<1024x64xf32> to vector<1024x64xbf16>
    %c0_26 = arith.constant 0 : index
    %c0_27 = arith.constant 0 : index
    %c0_28 = arith.constant 0 : index
    %57 = vector.load %arg2[%c0_26, %c0_27, %c0_28] : memref<5x64x64xbf16, #tpu.memory_space<vmem>>, vector<1x64x64xbf16>
    %58 = vector.shape_cast %57 : vector<1x64x64xbf16> to vector<64x64xbf16>
    %cst_29 = arith.constant dense<0.000000e+00> : vector<1024x64xf32>
    %59 = tpu.matmul %56, %58, %cst_29 {dimension_numbers = #tpu.dot_dimension_numbers<[1], [0], [0], [1], [0, 0, 1, 1], [], []>} : vector<1024x64xbf16>, vector<64x64xbf16>, vector<1024x64xf32> -> vector<1024x64xf32>
    %c1_30 = arith.constant 1 : index
    %c0_31 = arith.constant 0 : index
    %c0_32 = arith.constant 0 : index
    %60 = vector.load %arg3[%c1_30, %c0_31, %c0_32] : memref<6x3x64xf32, #tpu.memory_space<vmem>>, vector<1x1x64xf32>
    %61 = vector.shape_cast %60 : vector<1x1x64xf32> to vector<1x64xf32>
    %c1_33 = arith.constant 1 : index
    %c1_34 = arith.constant 1 : index
    %c0_35 = arith.constant 0 : index
    %62 = vector.load %arg3[%c1_33, %c1_34, %c0_35] : memref<6x3x64xf32, #tpu.memory_space<vmem>>, vector<1x1x64xf32>
    %63 = vector.shape_cast %62 : vector<1x1x64xf32> to vector<1x64xf32>
    %c1_36 = arith.constant 1 : index
    %c2_37 = arith.constant 2 : index
    %c0_38 = arith.constant 0 : index
    %64 = vector.load %arg3[%c1_36, %c2_37, %c0_38] : memref<6x3x64xf32, #tpu.memory_space<vmem>>, vector<1x1x64xf32>
    %65 = vector.shape_cast %64 : vector<1x1x64xf32> to vector<1x64xf32>
    %66 = vector.shape_cast %59 : vector<1024x64xf32> to vector<2x512x64xf32>
    %cst_39 = arith.constant dense<0.000000e+00> : vector<2x64xf32>
    %67 = vector.multi_reduction <add>, %66, %cst_39 [1] : vector<2x512x64xf32> to vector<2x64xf32>
    %cst_40 = arith.constant 5.120000e+02 : f32
    %68 = vector.broadcast %cst_40 : f32 to vector<2x64xf32>
    %69 = arith.divf %67, %68 : vector<2x64xf32>
    %70 = arith.mulf %66, %66 : vector<2x512x64xf32>
    %cst_41 = arith.constant dense<0.000000e+00> : vector<2x64xf32>
    %71 = vector.multi_reduction <add>, %70, %cst_41 [1] : vector<2x512x64xf32> to vector<2x64xf32>
    %cst_42 = arith.constant 5.120000e+02 : f32
    %72 = vector.broadcast %cst_42 : f32 to vector<2x64xf32>
    %73 = arith.divf %71, %72 : vector<2x64xf32>
    %74 = vector.broadcast %61 : vector<1x64xf32> to vector<2x64xf32>
    %75 = arith.addf %69, %74 : vector<2x64xf32>
    %cst_43 = arith.constant 2.000000e+00 : f32
    %76 = vector.broadcast %cst_43 : f32 to vector<1x64xf32>
    %77 = arith.mulf %76, %61 : vector<1x64xf32>
    %78 = vector.broadcast %77 : vector<1x64xf32> to vector<2x64xf32>
    %79 = arith.mulf %78, %69 : vector<2x64xf32>
    %80 = arith.addf %73, %79 : vector<2x64xf32>
    %81 = arith.mulf %61, %61 : vector<1x64xf32>
    %82 = vector.broadcast %81 : vector<1x64xf32> to vector<2x64xf32>
    %83 = arith.addf %80, %82 : vector<2x64xf32>
    %cst_44 = arith.constant dense<0.000000e+00> : vector<2x64xf32>
    %84 = tpu.matmul %75, %1, %cst_44 {dimension_numbers = #tpu.dot_dimension_numbers<[1], [0], [0], [1], [0, 0, 1, 1], [], []>} : vector<2x64xf32>, vector<64x64xf32>, vector<2x64xf32> -> vector<2x64xf32>
    %cst_45 = arith.constant dense<0.000000e+00> : vector<2x64xf32>
    %85 = tpu.matmul %83, %1, %cst_45 {dimension_numbers = #tpu.dot_dimension_numbers<[1], [0], [0], [1], [0, 0, 1, 1], [], []>} : vector<2x64xf32>, vector<64x64xf32>, vector<2x64xf32> -> vector<2x64xf32>
    %86 = arith.mulf %84, %84 : vector<2x64xf32>
    %87 = arith.subf %85, %86 : vector<2x64xf32>
    %cst_46 = arith.constant 0.000000e+00 : f32
    %88 = vector.broadcast %cst_46 : f32 to vector<2x64xf32>
    %89 = arith.maximumf %87, %88 : vector<2x64xf32>
    %cst_47 = arith.constant 9.99999974E-6 : f32
    %90 = vector.broadcast %cst_47 : f32 to vector<2x64xf32>
    %91 = arith.addf %89, %90 : vector<2x64xf32>
    %92 = math.rsqrt %91 : vector<2x64xf32>
    %93 = vector.broadcast %63 : vector<1x64xf32> to vector<2x64xf32>
    %94 = arith.mulf %92, %93 : vector<2x64xf32>
    %95 = vector.broadcast %61 : vector<1x64xf32> to vector<2x64xf32>
    %96 = arith.subf %95, %84 : vector<2x64xf32>
    %97 = arith.mulf %96, %94 : vector<2x64xf32>
    %98 = vector.broadcast %65 : vector<1x64xf32> to vector<2x64xf32>
    %99 = arith.addf %97, %98 : vector<2x64xf32>
    %100 = vector.shape_cast %94 : vector<2x64xf32> to vector<2x1x64xf32>
    %101 = vector.broadcast %100 : vector<2x1x64xf32> to vector<2x512x64xf32>
    %102 = arith.mulf %66, %101 : vector<2x512x64xf32>
    %103 = vector.shape_cast %99 : vector<2x64xf32> to vector<2x1x64xf32>
    %104 = vector.broadcast %103 : vector<2x1x64xf32> to vector<2x512x64xf32>
    %105 = arith.addf %102, %104 : vector<2x512x64xf32>
    %cst_48 = arith.constant 0.000000e+00 : f32
    %106 = vector.broadcast %cst_48 : f32 to vector<2x512x64xf32>
    %107 = arith.maximumf %105, %106 : vector<2x512x64xf32>
    %108 = vector.shape_cast %107 : vector<2x512x64xf32> to vector<1024x64xf32>
    %109 = arith.truncf %108 : vector<1024x64xf32> to vector<1024x64xbf16>
    %c1_49 = arith.constant 1 : index
    %c0_50 = arith.constant 0 : index
    %c0_51 = arith.constant 0 : index
    %110 = vector.load %arg2[%c1_49, %c0_50, %c0_51] : memref<5x64x64xbf16, #tpu.memory_space<vmem>>, vector<1x64x64xbf16>
    %111 = vector.shape_cast %110 : vector<1x64x64xbf16> to vector<64x64xbf16>
    %cst_52 = arith.constant dense<0.000000e+00> : vector<1024x64xf32>
    %112 = tpu.matmul %109, %111, %cst_52 {dimension_numbers = #tpu.dot_dimension_numbers<[1], [0], [0], [1], [0, 0, 1, 1], [], []>} : vector<1024x64xbf16>, vector<64x64xbf16>, vector<1024x64xf32> -> vector<1024x64xf32>
    %c2_53 = arith.constant 2 : index
    %c0_54 = arith.constant 0 : index
    %c0_55 = arith.constant 0 : index
    %113 = vector.load %arg3[%c2_53, %c0_54, %c0_55] : memref<6x3x64xf32, #tpu.memory_space<vmem>>, vector<1x1x64xf32>
    %114 = vector.shape_cast %113 : vector<1x1x64xf32> to vector<1x64xf32>
    %c2_56 = arith.constant 2 : index
    %c1_57 = arith.constant 1 : index
    %c0_58 = arith.constant 0 : index
    %115 = vector.load %arg3[%c2_56, %c1_57, %c0_58] : memref<6x3x64xf32, #tpu.memory_space<vmem>>, vector<1x1x64xf32>
    %116 = vector.shape_cast %115 : vector<1x1x64xf32> to vector<1x64xf32>
    %c2_59 = arith.constant 2 : index
    %c2_60 = arith.constant 2 : index
    %c0_61 = arith.constant 0 : index
    %117 = vector.load %arg3[%c2_59, %c2_60, %c0_61] : memref<6x3x64xf32, #tpu.memory_space<vmem>>, vector<1x1x64xf32>
    %118 = vector.shape_cast %117 : vector<1x1x64xf32> to vector<1x64xf32>
    %119 = vector.shape_cast %112 : vector<1024x64xf32> to vector<2x512x64xf32>
    %cst_62 = arith.constant dense<0.000000e+00> : vector<2x64xf32>
    %120 = vector.multi_reduction <add>, %119, %cst_62 [1] : vector<2x512x64xf32> to vector<2x64xf32>
    %cst_63 = arith.constant 5.120000e+02 : f32
    %121 = vector.broadcast %cst_63 : f32 to vector<2x64xf32>
    %122 = arith.divf %120, %121 : vector<2x64xf32>
    %123 = arith.mulf %119, %119 : vector<2x512x64xf32>
    %cst_64 = arith.constant dense<0.000000e+00> : vector<2x64xf32>
    %124 = vector.multi_reduction <add>, %123, %cst_64 [1] : vector<2x512x64xf32> to vector<2x64xf32>
    %cst_65 = arith.constant 5.120000e+02 : f32
    %125 = vector.broadcast %cst_65 : f32 to vector<2x64xf32>
    %126 = arith.divf %124, %125 : vector<2x64xf32>
    %127 = vector.broadcast %114 : vector<1x64xf32> to vector<2x64xf32>
    %128 = arith.addf %122, %127 : vector<2x64xf32>
    %cst_66 = arith.constant 2.000000e+00 : f32
    %129 = vector.broadcast %cst_66 : f32 to vector<1x64xf32>
    %130 = arith.mulf %129, %114 : vector<1x64xf32>
    %131 = vector.broadcast %130 : vector<1x64xf32> to vector<2x64xf32>
    %132 = arith.mulf %131, %122 : vector<2x64xf32>
    %133 = arith.addf %126, %132 : vector<2x64xf32>
    %134 = arith.mulf %114, %114 : vector<1x64xf32>
    %135 = vector.broadcast %134 : vector<1x64xf32> to vector<2x64xf32>
    %136 = arith.addf %133, %135 : vector<2x64xf32>
    %cst_67 = arith.constant dense<0.000000e+00> : vector<2x64xf32>
    %137 = tpu.matmul %128, %3, %cst_67 {dimension_numbers = #tpu.dot_dimension_numbers<[1], [0], [0], [1], [0, 0, 1, 1], [], []>} : vector<2x64xf32>, vector<64x64xf32>, vector<2x64xf32> -> vector<2x64xf32>
    %cst_68 = arith.constant dense<0.000000e+00> : vector<2x64xf32>
    %138 = tpu.matmul %136, %3, %cst_68 {dimension_numbers = #tpu.dot_dimension_numbers<[1], [0], [0], [1], [0, 0, 1, 1], [], []>} : vector<2x64xf32>, vector<64x64xf32>, vector<2x64xf32> -> vector<2x64xf32>
    %139 = arith.mulf %137, %137 : vector<2x64xf32>
    %140 = arith.subf %138, %139 : vector<2x64xf32>
    %cst_69 = arith.constant 0.000000e+00 : f32
    %141 = vector.broadcast %cst_69 : f32 to vector<2x64xf32>
    %142 = arith.maximumf %140, %141 : vector<2x64xf32>
    %cst_70 = arith.constant 9.99999974E-6 : f32
    %143 = vector.broadcast %cst_70 : f32 to vector<2x64xf32>
    %144 = arith.addf %142, %143 : vector<2x64xf32>
    %145 = math.rsqrt %144 : vector<2x64xf32>
    %146 = vector.broadcast %116 : vector<1x64xf32> to vector<2x64xf32>
    %147 = arith.mulf %145, %146 : vector<2x64xf32>
    %148 = vector.broadcast %114 : vector<1x64xf32> to vector<2x64xf32>
    %149 = arith.subf %148, %137 : vector<2x64xf32>
    %150 = arith.mulf %149, %147 : vector<2x64xf32>
    %151 = vector.broadcast %118 : vector<1x64xf32> to vector<2x64xf32>
    %152 = arith.addf %150, %151 : vector<2x64xf32>
    %153 = vector.shape_cast %147 : vector<2x64xf32> to vector<2x1x64xf32>
    %154 = vector.broadcast %153 : vector<2x1x64xf32> to vector<2x512x64xf32>
    %155 = arith.mulf %119, %154 : vector<2x512x64xf32>
    %156 = vector.shape_cast %152 : vector<2x64xf32> to vector<2x1x64xf32>
    %157 = vector.broadcast %156 : vector<2x1x64xf32> to vector<2x512x64xf32>
    %158 = arith.addf %155, %157 : vector<2x512x64xf32>
    %cst_71 = arith.constant 0.000000e+00 : f32
    %159 = vector.broadcast %cst_71 : f32 to vector<2x512x64xf32>
    %160 = arith.maximumf %158, %159 : vector<2x512x64xf32>
    %161 = vector.shape_cast %160 : vector<2x512x64xf32> to vector<1024x64xf32>
    %162 = vector.shape_cast %161 : vector<1024x64xf32> to vector<128x8x64xf32>
    %cst_72 = arith.constant dense<0xFF800000> : vector<128x64xf32>
    %163 = vector.multi_reduction <maximumf>, %162, %cst_72 [1] : vector<128x8x64xf32> to vector<128x64xf32>
    %164 = arith.truncf %163 : vector<128x64xf32> to vector<128x64xbf16>
    %c2_73 = arith.constant 2 : index
    %c0_74 = arith.constant 0 : index
    %c0_75 = arith.constant 0 : index
    %165 = vector.load %arg2[%c2_73, %c0_74, %c0_75] : memref<5x64x64xbf16, #tpu.memory_space<vmem>>, vector<1x64x64xbf16>
    %166 = vector.shape_cast %165 : vector<1x64x64xbf16> to vector<64x64xbf16>
    %cst_76 = arith.constant dense<0.000000e+00> : vector<128x64xf32>
    %167 = tpu.matmul %164, %166, %cst_76 {dimension_numbers = #tpu.dot_dimension_numbers<[1], [0], [0], [1], [0, 0, 1, 1], [], []>} : vector<128x64xbf16>, vector<64x64xbf16>, vector<128x64xf32> -> vector<128x64xf32>
    %c3 = arith.constant 3 : index
    %c0_77 = arith.constant 0 : index
    %c0_78 = arith.constant 0 : index
    %168 = vector.load %arg3[%c3, %c0_77, %c0_78] : memref<6x3x64xf32, #tpu.memory_space<vmem>>, vector<1x1x64xf32>
    %169 = vector.shape_cast %168 : vector<1x1x64xf32> to vector<1x64xf32>
    %c3_79 = arith.constant 3 : index
    %c1_80 = arith.constant 1 : index
    %c0_81 = arith.constant 0 : index
    %170 = vector.load %arg3[%c3_79, %c1_80, %c0_81] : memref<6x3x64xf32, #tpu.memory_space<vmem>>, vector<1x1x64xf32>
    %171 = vector.shape_cast %170 : vector<1x1x64xf32> to vector<1x64xf32>
    %c3_82 = arith.constant 3 : index
    %c2_83 = arith.constant 2 : index
    %c0_84 = arith.constant 0 : index
    %172 = vector.load %arg3[%c3_82, %c2_83, %c0_84] : memref<6x3x64xf32, #tpu.memory_space<vmem>>, vector<1x1x64xf32>
    %173 = vector.shape_cast %172 : vector<1x1x64xf32> to vector<1x64xf32>
    %174 = vector.shape_cast %167 : vector<128x64xf32> to vector<2x64x64xf32>
    %cst_85 = arith.constant dense<0.000000e+00> : vector<2x64xf32>
    %175 = vector.multi_reduction <add>, %174, %cst_85 [1] : vector<2x64x64xf32> to vector<2x64xf32>
    %cst_86 = arith.constant 6.400000e+01 : f32
    %176 = vector.broadcast %cst_86 : f32 to vector<2x64xf32>
    %177 = arith.divf %175, %176 : vector<2x64xf32>
    %178 = arith.mulf %174, %174 : vector<2x64x64xf32>
    %cst_87 = arith.constant dense<0.000000e+00> : vector<2x64xf32>
    %179 = vector.multi_reduction <add>, %178, %cst_87 [1] : vector<2x64x64xf32> to vector<2x64xf32>
    %cst_88 = arith.constant 6.400000e+01 : f32
    %180 = vector.broadcast %cst_88 : f32 to vector<2x64xf32>
    %181 = arith.divf %179, %180 : vector<2x64xf32>
    %182 = vector.broadcast %169 : vector<1x64xf32> to vector<2x64xf32>
    %183 = arith.addf %177, %182 : vector<2x64xf32>
    %cst_89 = arith.constant 2.000000e+00 : f32
    %184 = vector.broadcast %cst_89 : f32 to vector<1x64xf32>
    %185 = arith.mulf %184, %169 : vector<1x64xf32>
    %186 = vector.broadcast %185 : vector<1x64xf32> to vector<2x64xf32>
    %187 = arith.mulf %186, %177 : vector<2x64xf32>
    %188 = arith.addf %181, %187 : vector<2x64xf32>
    %189 = arith.mulf %169, %169 : vector<1x64xf32>
    %190 = vector.broadcast %189 : vector<1x64xf32> to vector<2x64xf32>
    %191 = arith.addf %188, %190 : vector<2x64xf32>
    %cst_90 = arith.constant dense<0.000000e+00> : vector<2x64xf32>
    %192 = tpu.matmul %183, %3, %cst_90 {dimension_numbers = #tpu.dot_dimension_numbers<[1], [0], [0], [1], [0, 0, 1, 1], [], []>} : vector<2x64xf32>, vector<64x64xf32>, vector<2x64xf32> -> vector<2x64xf32>
    %cst_91 = arith.constant dense<0.000000e+00> : vector<2x64xf32>
    %193 = tpu.matmul %191, %3, %cst_91 {dimension_numbers = #tpu.dot_dimension_numbers<[1], [0], [0], [1], [0, 0, 1, 1], [], []>} : vector<2x64xf32>, vector<64x64xf32>, vector<2x64xf32> -> vector<2x64xf32>
    %194 = arith.mulf %192, %192 : vector<2x64xf32>
    %195 = arith.subf %193, %194 : vector<2x64xf32>
    %cst_92 = arith.constant 0.000000e+00 : f32
    %196 = vector.broadcast %cst_92 : f32 to vector<2x64xf32>
    %197 = arith.maximumf %195, %196 : vector<2x64xf32>
    %cst_93 = arith.constant 9.99999974E-6 : f32
    %198 = vector.broadcast %cst_93 : f32 to vector<2x64xf32>
    %199 = arith.addf %197, %198 : vector<2x64xf32>
    %200 = math.rsqrt %199 : vector<2x64xf32>
    %201 = vector.broadcast %171 : vector<1x64xf32> to vector<2x64xf32>
    %202 = arith.mulf %200, %201 : vector<2x64xf32>
    %203 = vector.broadcast %169 : vector<1x64xf32> to vector<2x64xf32>
    %204 = arith.subf %203, %192 : vector<2x64xf32>
    %205 = arith.mulf %204, %202 : vector<2x64xf32>
    %206 = vector.broadcast %173 : vector<1x64xf32> to vector<2x64xf32>
    %207 = arith.addf %205, %206 : vector<2x64xf32>
    %208 = vector.shape_cast %202 : vector<2x64xf32> to vector<2x1x64xf32>
    %209 = vector.broadcast %208 : vector<2x1x64xf32> to vector<2x64x64xf32>
    %210 = arith.mulf %174, %209 : vector<2x64x64xf32>
    %211 = vector.shape_cast %207 : vector<2x64xf32> to vector<2x1x64xf32>
    %212 = vector.broadcast %211 : vector<2x1x64xf32> to vector<2x64x64xf32>
    %213 = arith.addf %210, %212 : vector<2x64x64xf32>
    %cst_94 = arith.constant 0.000000e+00 : f32
    %214 = vector.broadcast %cst_94 : f32 to vector<2x64x64xf32>
    %215 = arith.maximumf %213, %214 : vector<2x64x64xf32>
    %216 = vector.shape_cast %215 : vector<2x64x64xf32> to vector<128x64xf32>
    %217 = arith.truncf %216 : vector<128x64xf32> to vector<128x64xbf16>
    %c3_95 = arith.constant 3 : index
    %c0_96 = arith.constant 0 : index
    %c0_97 = arith.constant 0 : index
    %218 = vector.load %arg2[%c3_95, %c0_96, %c0_97] : memref<5x64x64xbf16, #tpu.memory_space<vmem>>, vector<1x64x64xbf16>
    %219 = vector.shape_cast %218 : vector<1x64x64xbf16> to vector<64x64xbf16>
    %cst_98 = arith.constant dense<0.000000e+00> : vector<128x64xf32>
    %220 = tpu.matmul %217, %219, %cst_98 {dimension_numbers = #tpu.dot_dimension_numbers<[1], [0], [0], [1], [0, 0, 1, 1], [], []>} : vector<128x64xbf16>, vector<64x64xbf16>, vector<128x64xf32> -> vector<128x64xf32>
    %c4 = arith.constant 4 : index
    %c0_99 = arith.constant 0 : index
    %c0_100 = arith.constant 0 : index
    %221 = vector.load %arg3[%c4, %c0_99, %c0_100] : memref<6x3x64xf32, #tpu.memory_space<vmem>>, vector<1x1x64xf32>
    %222 = vector.shape_cast %221 : vector<1x1x64xf32> to vector<1x64xf32>
    %c4_101 = arith.constant 4 : index
    %c1_102 = arith.constant 1 : index
    %c0_103 = arith.constant 0 : index
    %223 = vector.load %arg3[%c4_101, %c1_102, %c0_103] : memref<6x3x64xf32, #tpu.memory_space<vmem>>, vector<1x1x64xf32>
    %224 = vector.shape_cast %223 : vector<1x1x64xf32> to vector<1x64xf32>
    %c4_104 = arith.constant 4 : index
    %c2_105 = arith.constant 2 : index
    %c0_106 = arith.constant 0 : index
    %225 = vector.load %arg3[%c4_104, %c2_105, %c0_106] : memref<6x3x64xf32, #tpu.memory_space<vmem>>, vector<1x1x64xf32>
    %226 = vector.shape_cast %225 : vector<1x1x64xf32> to vector<1x64xf32>
    %227 = vector.shape_cast %220 : vector<128x64xf32> to vector<2x64x64xf32>
    %cst_107 = arith.constant dense<0.000000e+00> : vector<2x64xf32>
    %228 = vector.multi_reduction <add>, %227, %cst_107 [1] : vector<2x64x64xf32> to vector<2x64xf32>
    %cst_108 = arith.constant 6.400000e+01 : f32
    %229 = vector.broadcast %cst_108 : f32 to vector<2x64xf32>
    %230 = arith.divf %228, %229 : vector<2x64xf32>
    %231 = arith.mulf %227, %227 : vector<2x64x64xf32>
    %cst_109 = arith.constant dense<0.000000e+00> : vector<2x64xf32>
    %232 = vector.multi_reduction <add>, %231, %cst_109 [1] : vector<2x64x64xf32> to vector<2x64xf32>
    %cst_110 = arith.constant 6.400000e+01 : f32
    %233 = vector.broadcast %cst_110 : f32 to vector<2x64xf32>
    %234 = arith.divf %232, %233 : vector<2x64xf32>
    %235 = vector.broadcast %222 : vector<1x64xf32> to vector<2x64xf32>
    %236 = arith.addf %230, %235 : vector<2x64xf32>
    %cst_111 = arith.constant 2.000000e+00 : f32
    %237 = vector.broadcast %cst_111 : f32 to vector<1x64xf32>
    %238 = arith.mulf %237, %222 : vector<1x64xf32>
    %239 = vector.broadcast %238 : vector<1x64xf32> to vector<2x64xf32>
    %240 = arith.mulf %239, %230 : vector<2x64xf32>
    %241 = arith.addf %234, %240 : vector<2x64xf32>
    %242 = arith.mulf %222, %222 : vector<1x64xf32>
    %243 = vector.broadcast %242 : vector<1x64xf32> to vector<2x64xf32>
    %244 = arith.addf %241, %243 : vector<2x64xf32>
    %cst_112 = arith.constant dense<0.000000e+00> : vector<2x64xf32>
    %245 = tpu.matmul %236, %1, %cst_112 {dimension_numbers = #tpu.dot_dimension_numbers<[1], [0], [0], [1], [0, 0, 1, 1], [], []>} : vector<2x64xf32>, vector<64x64xf32>, vector<2x64xf32> -> vector<2x64xf32>
    %cst_113 = arith.constant dense<0.000000e+00> : vector<2x64xf32>
    %246 = tpu.matmul %244, %1, %cst_113 {dimension_numbers = #tpu.dot_dimension_numbers<[1], [0], [0], [1], [0, 0, 1, 1], [], []>} : vector<2x64xf32>, vector<64x64xf32>, vector<2x64xf32> -> vector<2x64xf32>
    %247 = arith.mulf %245, %245 : vector<2x64xf32>
    %248 = arith.subf %246, %247 : vector<2x64xf32>
    %cst_114 = arith.constant 0.000000e+00 : f32
    %249 = vector.broadcast %cst_114 : f32 to vector<2x64xf32>
    %250 = arith.maximumf %248, %249 : vector<2x64xf32>
    %cst_115 = arith.constant 9.99999974E-6 : f32
    %251 = vector.broadcast %cst_115 : f32 to vector<2x64xf32>
    %252 = arith.addf %250, %251 : vector<2x64xf32>
    %253 = math.rsqrt %252 : vector<2x64xf32>
    %254 = vector.broadcast %224 : vector<1x64xf32> to vector<2x64xf32>
    %255 = arith.mulf %253, %254 : vector<2x64xf32>
    %256 = vector.broadcast %222 : vector<1x64xf32> to vector<2x64xf32>
    %257 = arith.subf %256, %245 : vector<2x64xf32>
    %258 = arith.mulf %257, %255 : vector<2x64xf32>
    %259 = vector.broadcast %226 : vector<1x64xf32> to vector<2x64xf32>
    %260 = arith.addf %258, %259 : vector<2x64xf32>
    %261 = vector.shape_cast %255 : vector<2x64xf32> to vector<2x1x64xf32>
    %262 = vector.broadcast %261 : vector<2x1x64xf32> to vector<2x64x64xf32>
    %263 = arith.mulf %227, %262 : vector<2x64x64xf32>
    %264 = vector.shape_cast %260 : vector<2x64xf32> to vector<2x1x64xf32>
    %265 = vector.broadcast %264 : vector<2x1x64xf32> to vector<2x64x64xf32>
    %266 = arith.addf %263, %265 : vector<2x64x64xf32>
    %cst_116 = arith.constant 0.000000e+00 : f32
    %267 = vector.broadcast %cst_116 : f32 to vector<2x64x64xf32>
    %268 = arith.maximumf %266, %267 : vector<2x64x64xf32>
    %269 = vector.shape_cast %268 : vector<2x64x64xf32> to vector<128x64xf32>
    %270 = arith.truncf %269 : vector<128x64xf32> to vector<128x64xbf16>
    %c4_117 = arith.constant 4 : index
    %c0_118 = arith.constant 0 : index
    %c0_119 = arith.constant 0 : index
    %271 = vector.load %arg2[%c4_117, %c0_118, %c0_119] : memref<5x64x64xbf16, #tpu.memory_space<vmem>>, vector<1x64x64xbf16>
    %272 = vector.shape_cast %271 : vector<1x64x64xbf16> to vector<64x64xbf16>
    %cst_120 = arith.constant dense<0.000000e+00> : vector<128x64xf32>
    %273 = tpu.matmul %270, %272, %cst_120 {dimension_numbers = #tpu.dot_dimension_numbers<[1], [0], [0], [1], [0, 0, 1, 1], [], []>} : vector<128x64xbf16>, vector<64x64xbf16>, vector<128x64xf32> -> vector<128x64xf32>
    %c5 = arith.constant 5 : index
    %c0_121 = arith.constant 0 : index
    %c0_122 = arith.constant 0 : index
    %274 = vector.load %arg3[%c5, %c0_121, %c0_122] : memref<6x3x64xf32, #tpu.memory_space<vmem>>, vector<1x1x64xf32>
    %275 = vector.shape_cast %274 : vector<1x1x64xf32> to vector<1x64xf32>
    %276 = vector.broadcast %275 : vector<1x64xf32> to vector<128x64xf32>
    %277 = arith.addf %273, %276 : vector<128x64xf32>
    %278 = arith.mulf %277, %277 : vector<128x64xf32>
    %cst_123 = arith.constant dense<0.000000e+00> : vector<128xf32>
    %279 = vector.multi_reduction <add>, %278, %cst_123 [1] : vector<128x64xf32> to vector<128xf32>
    %280 = vector.shape_cast %279 : vector<128xf32> to vector<128x1xf32>
    %cst_124 = arith.constant 9.99999996E-13 : f32
    %281 = vector.broadcast %cst_124 : f32 to vector<128x1xf32>
    %282 = arith.addf %280, %281 : vector<128x1xf32>
    %283 = math.rsqrt %282 : vector<128x1xf32>
    %284 = vector.broadcast %283 : vector<128x1xf32> to vector<128x64xf32>
    %285 = arith.mulf %277, %284 : vector<128x64xf32>
    %286 = vector.extract_strided_slice %285 {offsets = [0, 0], sizes = [128, 32], strides = [1, 1]} : vector<128x64xf32> to vector<128x32xf32>
    %287 = vector.shape_cast %286 : vector<128x32xf32> to vector<2x64x32xf32>
    %c0_125 = arith.constant 0 : index
    %c0_126 = arith.constant 0 : index
    %c0_127 = arith.constant 0 : index
    %288 = vector.load %arg5[%c0_125, %c0_126, %c0_127] : memref<2x64x32xf32, #tpu.memory_space<vmem>>, vector<2x64x32xf32>
    tpu.vector_store %arg5[%c0_125, %c0_126, %c0_127], %287 {strides = array<i32>} : memref<2x64x32xf32, #tpu.memory_space<vmem>>, vector<2x64x32xf32>,
    return
  }
}

</mosaic_0001>

<llo_original>
// kernel: neg.2
$region0: #{neg.2}
  #allocation0 [shape = 's32[1]{0}', space=sflag, size = 0x4, scoped, tag = 'scoped memory for neg.2']
  %s0 = inlined_call_operand.vmem [shape: f32[2,64,64], index: 0, kind: input, shape index: {}]
  %s1 = inlined_call_operand.vmem [shape: f32[2,64,64], index: 1, kind: output, shape index: {}]
  %v2 = vld [vmem:[%s0] sm:$0xff]
  %3 = xla_tuple %v2
  %4 = xla_tuple %3
  %v5 = vxor.u32 %v2, 2147483648
  %6 = xla_tuple %v5
  %7 = vst [vmem:[%s1] sm:$0xff] %v5
  %s8 = scalar_lea.vmem %s0, 64
  %v9 = vld [vmem:[%s8] sm:$0xff]
  %10 = xla_tuple %v9
  %11 = xla_tuple %10
  %v12 = vxor.u32 %v9, 2147483648
  %13 = xla_tuple %v12
  %s14 = scalar_lea.vmem %s1, 64
  %15 = vst [vmem:[%s14] sm:$0xff] %v12
  %s16 = scalar_lea.vmem %s0, 8
  %v17 = vld [vmem:[%s16] sm:$0xff]
  %18 = xla_tuple %v17
  %19 = xla_tuple %18
  %v20 = vxor.u32 %v17, 2147483648
  %21 = xla_tuple %v20
  %s22 = scalar_lea.vmem %s1, 8
  %23 = vst [vmem:[%s22] sm:$0xff] %v20
  %s24 = scalar_lea.vmem %s0, 72
  %v25 = vld [vmem:[%s24] sm:$0xff]
  %26 = xla_tuple %v25
  %27 = xla_tuple %26
  %v28 = vxor.u32 %v25, 2147483648
  %29 = xla_tuple %v28
  %s30 = scalar_lea.vmem %s1, 72
  %31 = vst [vmem:[%s30] sm:$0xff] %v28
  %s32 = scalar_lea.vmem %s0, 16
  %v33 = vld [vmem:[%s32] sm:$0xff]
  %34 = xla_tuple %v33
  %35 = xla_tuple %34
  %v36 = vxor.u32 %v33, 2147483648
  %37 = xla_tuple %v36
  %s38 = scalar_lea.vmem %s1, 16
  %39 = vst [vmem:[%s38] sm:$0xff] %v36
  %s40 = scalar_lea.vmem %s0, 80
  %v41 = vld [vmem:[%s40] sm:$0xff]
  %42 = xla_tuple %v41
  %43 = xla_tuple %42
  %v44 = vxor.u32 %v41, 2147483648
  %45 = xla_tuple %v44
  %s46 = scalar_lea.vmem %s1, 80
  %47 = vst [vmem:[%s46] sm:$0xff] %v44
  %s48 = scalar_lea.vmem %s0, 24
  %v49 = vld [vmem:[%s48] sm:$0xff]
  %50 = xla_tuple %v49
  %51 = xla_tuple %50
  %v52 = vxor.u32 %v49, 2147483648
  %53 = xla_tuple %v52
  %s54 = scalar_lea.vmem %s1, 24
  %55 = vst [vmem:[%s54] sm:$0xff] %v52
  %s56 = scalar_lea.vmem %s0, 88
  %v57 = vld [vmem:[%s56] sm:$0xff]
  %58 = xla_tuple %v57
  %59 = xla_tuple %58
  %v60 = vxor.u32 %v57, 2147483648
  %61 = xla_tuple %v60
  %s62 = scalar_lea.vmem %s1, 88
  %63 = vst [vmem:[%s62] sm:$0xff] %v60
  %s64 = scalar_lea.vmem %s0, 32
  %v65 = vld [vmem:[%s64] sm:$0xff]
  %66 = xla_tuple %v65
  %67 = xla_tuple %66
  %v68 = vxor.u32 %v65, 2147483648
  %69 = xla_tuple %v68
  %s70 = scalar_lea.vmem %s1, 32
  %71 = vst [vmem:[%s70] sm:$0xff] %v68
  %s72 = scalar_lea.vmem %s0, 96
  %v73 = vld [vmem:[%s72] sm:$0xff]
  %74 = xla_tuple %v73
  %75 = xla_tuple %74
  %v76 = vxor.u32 %v73, 2147483648
  %77 = xla_tuple %v76
  %s78 = scalar_lea.vmem %s1, 96
  %79 = vst [vmem:[%s78] sm:$0xff] %v76
  %s80 = scalar_lea.vmem %s0, 40
  %v81 = vld [vmem:[%s80] sm:$0xff]
  %82 = xla_tuple %v81
  %83 = xla_tuple %82
  %v84 = vxor.u32 %v81, 2147483648
  %85 = xla_tuple %v84
  %s86 = scalar_lea.vmem %s1, 40
  %87 = vst [vmem:[%s86] sm:$0xff] %v84
  %s88 = scalar_lea.vmem %s0, 104
  %v89 = vld [vmem:[%s88] sm:$0xff]
  %90 = xla_tuple %v89
  %91 = xla_tuple %90
  %v92 = vxor.u32 %v89, 2147483648
  %93 = xla_tuple %v92
  %s94 = scalar_lea.vmem %s1, 104
  %95 = vst [vmem:[%s94] sm:$0xff] %v92
  %s96 = scalar_lea.vmem %s0, 48
  %v97 = vld [vmem:[%s96] sm:$0xff]
  %98 = xla_tuple %v97
  %99 = xla_tuple %98
  %v100 = vxor.u32 %v97, 2147483648
  %101 = xla_tuple %v100
  %s102 = scalar_lea.vmem %s1, 48
  %103 = vst [vmem:[%s102] sm:$0xff] %v100
  %s104 = scalar_lea.vmem %s0, 112
  %v105 = vld [vmem:[%s104] sm:$0xff]
  %106 = xla_tuple %v105
  %107 = xla_tuple %106
  %v108 = vxor.u32 %v105, 2147483648
  %109 = xla_tuple %v108
  %s110 = scalar_lea.vmem %s1, 112
  %111 = vst [vmem:[%s110] sm:$0xff] %v108
  %s112 = scalar_lea.vmem %s0, 56
  %v113 = vld [vmem:[%s112] sm:$0xff]
  %114 = xla_tuple %v113
  %115 = xla_tuple %114
  %v116 = vxor.u32 %v113, 2147483648
  %117 = xla_tuple %v116
  %s118 = scalar_lea.vmem %s1, 56
  %119 = vst [vmem:[%s118] sm:$0xff] %v116
  %s120 = scalar_lea.vmem %s0, 120
  %v121 = vld [vmem:[%s120] sm:$0xff]
  %122 = xla_tuple %v121
  %123 = xla_tuple %122
  %v124 = vxor.u32 %v121, 2147483648
  %125 = xla_tuple %v124
  %s126 = scalar_lea.vmem %s1, 120
  %127 = vst [vmem:[%s126] sm:$0xff] %v124

// kernel: forward.1
$region0: #{forward.1}
  #allocation0 [shape = 'u32[]', space=smem, size = 0x4, offset = 0x4, fixed_abs, tag = 'smem constant byte address 0x4 - core index']
  #allocation1 [shape = 'u32[144,128]{1,0:T(1,128)}', space=vmem, size = 0x12000, scoped, tag = 'internal scratch']
  %s0 = inlined_call_operand.vmem [shape: bf16[1024,16], index: 0, kind: input, shape index: {}]
  %s1 = inlined_call_operand.vmem [shape: bf16[16,64], index: 1, kind: input, shape index: {}]
  %s2 = inlined_call_operand.vmem [shape: bf16[5,64,64], index: 2, kind: input, shape index: {}]
  %s3 = inlined_call_operand.vmem [shape: f32[6,3,64], index: 3, kind: input, shape index: {}]
  %s4 = inlined_call_operand.vmem [shape: f32[2,64,64], index: 4, kind: input, shape index: {}]
  %s5 = inlined_call_operand.vmem [shape: f32[2,64,32], index: 5, kind: output, shape index: {}]
  %s6 = sld [smem:[#allocation0]]
  $region30: #{forward.1} parent=0
    _
  %s8 = ssub.s32 1, %s6
  %s9 = scalar_select 0, %s8, %s6
  // Predicated region
  $region2: #{forward.1} parent=0 // pred_check
    _
  $region3: #{forward.1} parent=0 // pred_check_branch
    %11 = sbr.rel (0) target = $region5
  $region4: #{forward.1} parent=0 // pred_region
    _
  $region5: #{forward.1} parent=0 // pred_fallthru
    _
  // Predicated region
  $region6: #{forward.1} parent=0 // pred_check
    _
  $region7: #{forward.1} parent=0 // pred_check_branch
    %13 = sbr.rel (0) target = $region9
  $region8: #{forward.1} parent=0 // pred_region
    _
  $region9: #{forward.1} parent=0 // pred_fallthru
    _
  // Predicated region
  $region10: #{forward.1} parent=0 // pred_check
    _
  $region11: #{forward.1} parent=0 // pred_check_branch
    %15 = sbr.rel (0) target = $region13
  $region12: #{forward.1} parent=0 // pred_region
    _
  $region13: #{forward.1} parent=0 // pred_fallthru
    _
  // Predicated region
  $region14: #{forward.1} parent=0 // pred_check
    _
  $region15: #{forward.1} parent=0 // pred_check_branch
    %17 = sbr.rel (0) target = $region17
  $region16: #{forward.1} parent=0 // pred_region
    _
  $region17: #{forward.1} parent=0 // pred_fallthru
    _
  // Predicated region
  $region18: #{forward.1} parent=0 // pred_check
    _
  $region19: #{forward.1} parent=0 // pred_check_branch
    %19 = sbr.rel (0) target = $region21
  $region20: #{forward.1} parent=0 // pred_region
    _
  $region21: #{forward.1} parent=0 // pred_fallthru
    _
  %v21 = vld [vmem:[%s4] sm:$0xff]
  %v22 = vld [vmem:[%s4 + $0x8] sm:$0xff]
  %v23 = vld [vmem:[%s4 + $0x10] sm:$0xff]
  %v24 = vld [vmem:[%s4 + $0x18] sm:$0xff]
  %v25 = vld [vmem:[%s4 + $0x20] sm:$0xff]
  %v26 = vld [vmem:[%s4 + $0x28] sm:$0xff]
  %v27 = vld [vmem:[%s4 + $0x30] sm:$0xff]
  %v28 = vld [vmem:[%s4 + $0x38] sm:$0xff]
  %s29 = scalar_lea.vmem %s4, 64
  %v30 = vld [vmem:[%s29] sm:$0xff]
  %v31 = vld [vmem:[%s29 + $0x8] sm:$0xff]
  %v32 = vld [vmem:[%s29 + $0x10] sm:$0xff]
  %v33 = vld [vmem:[%s29 + $0x18] sm:$0xff]
  %v34 = vld [vmem:[%s29 + $0x20] sm:$0xff]
  %v35 = vld [vmem:[%s29 + $0x28] sm:$0xff]
  %v36 = vld [vmem:[%s29 + $0x30] sm:$0xff]
  %v37 = vld [vmem:[%s29 + $0x38] sm:$0xff]
  %v38 = vld [vmem:[%s0] sm:$0xf]
  %v39 = vld [vmem:[%s0 + $0x4] sm:$0xf]
  %v40 = vld [vmem:[%s0 + $0x8] sm:$0xf]
  %v41 = vld [vmem:[%s0 + $0xc] sm:$0xf]
  %v42 = vld [vmem:[%s0 + $0x10] sm:$0xf]
  %v43 = vld [vmem:[%s0 + $0x14] sm:$0xf]
  %v44 = vld [vmem:[%s0 + $0x18] sm:$0xf]
  %v45 = vld [vmem:[%s0 + $0x1c] sm:$0xf]
  %v46 = vld [vmem:[%s0 + $0x20] sm:$0xf]
  %v47 = vld [vmem:[%s0 + $0x24] sm:$0xf]
  %v48 = vld [vmem:[%s0 + $0x28] sm:$0xf]
  %v49 = vld [vmem:[%s0 + $0x2c] sm:$0xf]
  %v50 = vld [vmem:[%s0 + $0x30] sm:$0xf]
  %v51 = vld [vmem:[%s0 + $0x34] sm:$0xf]
  %v52 = vld [vmem:[%s0 + $0x38] sm:$0xf]
  %v53 = vld [vmem:[%s0 + $0x3c] sm:$0xf]
  %v54 = vld [vmem:[%s0 + $0x40] sm:$0xf]
  %v55 = vld [vmem:[%s0 + $0x44] sm:$0xf]
  %v56 = vld [vmem:[%s0 + $0x48] sm:$0xf]
  %v57 = vld [vmem:[%s0 + $0x4c] sm:$0xf]
  %v58 = vld [vmem:[%s0 + $0x50] sm:$0xf]
  %v59 = vld [vmem:[%s0 + $0x54] sm:$0xf]
  %v60 = vld [vmem:[%s0 + $0x58] sm:$0xf]
  %v61 = vld [vmem:[%s0 + $0x5c] sm:$0xf]
  %v62 = vld [vmem:[%s0 + $0x60] sm:$0xf]
  %v63 = vld [vmem:[%s0 + $0x64] sm:$0xf]
  %v64 = vld [vmem:[%s0 + $0x68] sm:$0xf]
  %v65 = vld [vmem:[%s0 + $0x6c] sm:$0xf]
  %v66 = vld [vmem:[%s0 + $0x70] sm:$0xf]
  %v67 = vld [vmem:[%s0 + $0x74] sm:$0xf]
  %v68 = vld [vmem:[%s0 + $0x78] sm:$0xf]
  %v69 = vld [vmem:[%s0 + $0x7c] sm:$0xf]
  %v70 = vld [vmem:[%s0 + $0x80] sm:$0xf]
  %v71 = vld [vmem:[%s0 + $0x84] sm:$0xf]
  %v72 = vld [vmem:[%s0 + $0x88] sm:$0xf]
  %v73 = vld [vmem:[%s0 + $0x8c] sm:$0xf]
  %v74 = vld [vmem:[%s0 + $0x90] sm:$0xf]
  %v75 = vld [vmem:[%s0 + $0x94] sm:$0xf]
  %v76 = vld [vmem:[%s0 + $0x98] sm:$0xf]
  %v77 = vld [vmem:[%s0 + $0x9c] sm:$0xf]
  %v78 = vld [vmem:[%s0 + $0xa0] sm:$0xf]
  %v79 = vld [vmem:[%s0 + $0xa4] sm:$0xf]
  %v80 = vld [vmem:[%s0 + $0xa8] sm:$0xf]
  %v81 = vld [vmem:[%s0 + $0xac] sm:$0xf]
  %v82 = vld [vmem:[%s0 + $0xb0] sm:$0xf]
  %v83 = vld [vmem:[%s0 + $0xb4] sm:$0xf]
  %v84 = vld [vmem:[%s0 + $0xb8] sm:$0xf]
  %v85 = vld [vmem:[%s0 + $0xbc] sm:$0xf]
  %v86 = vld [vmem:[%s0 + $0xc0] sm:$0xf]
  %v87 = vld [vmem:[%s0 + $0xc4] sm:$0xf]
  %v88 = vld [vmem:[%s0 + $0xc8] sm:$0xf]
  %v89 = vld [vmem:[%s0 + $0xcc] sm:$0xf]
  %v90 = vld [vmem:[%s0 + $0xd0] sm:$0xf]
  %v91 = vld [vmem:[%s0 + $0xd4] sm:$0xf]
  %v92 = vld [vmem:[%s0 + $0xd8] sm:$0xf]
  %v93 = vld [vmem:[%s0 + $0xdc] sm:$0xf]
  %v94 = vld [vmem:[%s0 + $0xe0] sm:$0xf]
  %v95 = vld [vmem:[%s0 + $0xe4] sm:$0xf]
  %v96 = vld [vmem:[%s0 + $0xe8] sm:$0xf]
  %v97 = vld [vmem:[%s0 + $0xec] sm:$0xf]
  %v98 = vld [vmem:[%s0 + $0xf0] sm:$0xf]
  %v99 = vld [vmem:[%s0 + $0xf4] sm:$0xf]
  %v100 = vld [vmem:[%s0 + $0xf8] sm:$0xf]
  %v101 = vld [vmem:[%s0 + $0xfc] sm:$0xf]
  %v102 = vld [vmem:[%s0 + $0x100] sm:$0xf]
  %v103 = vld [vmem:[%s0 + $0x104] sm:$0xf]
  %v104 = vld [vmem:[%s0 + $0x108] sm:$0xf]
  %v105 = vld [vmem:[%s0 + $0x10c] sm:$0xf]
  %v106 = vld [vmem:[%s0 + $0x110] sm:$0xf]
  %v107 = vld [vmem:[%s0 + $0x114] sm:$0xf]
  %v108 = vld [vmem:[%s0 + $0x118] sm:$0xf]
  %v109 = vld [vmem:[%s0 + $0x11c] sm:$0xf]
  %v110 = vld [vmem:[%s0 + $0x120] sm:$0xf]
  %v111 = vld [vmem:[%s0 + $0x124] sm:$0xf]
  %v112 = vld [vmem:[%s0 + $0x128] sm:$0xf]
  %v113 = vld [vmem:[%s0 + $0x12c] sm:$0xf]
  %v114 = vld [vmem:[%s0 + $0x130] sm:$0xf]
  %v115 = vld [vmem:[%s0 + $0x134] sm:$0xf]
  %v116 = vld [vmem:[%s0 + $0x138] sm:$0xf]
  %v117 = vld [vmem:[%s0 + $0x13c] sm:$0xf]
  %v118 = vld [vmem:[%s0 + $0x140] sm:$0xf]
  %v119 = vld [vmem:[%s0 + $0x144] sm:$0xf]
  %v120 = vld [vmem:[%s0 + $0x148] sm:$0xf]
  %v121 = vld [vmem:[%s0 + $0x14c] sm:$0xf]
  %v122 = vld [vmem:[%s0 + $0x150] sm:$0xf]
  %v123 = vld [vmem:[%s0 + $0x154] sm:$0xf]
  %v124 = vld [vmem:[%s0 + $0x158] sm:$0xf]
  %v125 = vld [vmem:[%s0 + $0x15c] sm:$0xf]
  %v126 = vld [vmem:[%s0 + $0x160] sm:$0xf]
  %v127 = vld [vmem:[%s0 + $0x164] sm:$0xf]
  %v128 = vld [vmem:[%s0 + $0x168] sm:$0xf]
  %v129 = vld [vmem:[%s0 + $0x16c] sm:$0xf]
  %v130 = vld [vmem:[%s0 + $0x170] sm:$0xf]
  %v131 = vld [vmem:[%s0 + $0x174] sm:$0xf]
  %v132 = vld [vmem:[%s0 + $0x178] sm:$0xf]
  %v133 = vld [vmem:[%s0 + $0x17c] sm:$0xf]
  %v134 = vld [vmem:[%s0 + $0x180] sm:$0xf]
  %v135 = vld [vmem:[%s0 + $0x184] sm:$0xf]
  %v136 = vld [vmem:[%s0 + $0x188] sm:$0xf]
  %v137 = vld [vmem:[%s0 + $0x18c] sm:$0xf]
  %v138 = vld [vmem:[%s0 + $0x190] sm:$0xf]
  %v139 = vld [vmem:[%s0 + $0x194] sm:$0xf]
  %v140 = vld [vmem:[%s0 + $0x198] sm:$0xf]
  %v141 = vld [vmem:[%s0 + $0x19c] sm:$0xf]
  %v142 = vld [vmem:[%s0 + $0x1a0] sm:$0xf]
  %v143 = vld [vmem:[%s0 + $0x1a4] sm:$0xf]
  %v144 = vld [vmem:[%s0 + $0x1a8] sm:$0xf]
  %v145 = vld [vmem:[%s0 + $0x1ac] sm:$0xf]
  %v146 = vld [vmem:[%s0 + $0x1b0] sm:$0xf]
  %v147 = vld [vmem:[%s0 + $0x1b4] sm:$0xf]
  %v148 = vld [vmem:[%s0 + $0x1b8] sm:$0xf]
  %v149 = vld [vmem:[%s0 + $0x1bc] sm:$0xf]
  %v150 = vld [vmem:[%s0 + $0x1c0] sm:$0xf]
  %v151 = vld [vmem:[%s0 + $0x1c4] sm:$0xf]
  %v152 = vld [vmem:[%s0 + $0x1c8] sm:$0xf]
  %v153 = vld [vmem:[%s0 + $0x1cc] sm:$0xf]
  %v154 = vld [vmem:[%s0 + $0x1d0] sm:$0xf]
  %v155 = vld [vmem:[%s0 + $0x1d4] sm:$0xf]
  %v156 = vld [vmem:[%s0 + $0x1d8] sm:$0xf]
  %v157 = vld [vmem:[%s0 + $0x1dc] sm:$0xf]
  %v158 = vld [vmem:[%s0 + $0x1e0] sm:$0xf]
  %v159 = vld [vmem:[%s0 + $0x1e4] sm:$0xf]
  %v160 = vld [vmem:[%s0 + $0x1e8] sm:$0xf]
  %v161 = vld [vmem:[%s0 + $0x1ec] sm:$0xf]
  %v162 = vld [vmem:[%s0 + $0x1f0] sm:$0xf]
  %v163 = vld [vmem:[%s0 + $0x1f4] sm:$0xf]
  %v164 = vld [vmem:[%s0 + $0x1f8] sm:$0xf]
  %v165 = vld [vmem:[%s0 + $0x1fc] sm:$0xf]
  %v166 = vld [vmem:[%s1] sm:$0xf]
  %v167 = vld [vmem:[%s1 + $0x4] sm:$0xf]
  %v296 = vunpack.c.l.b16 %v38
  %v297 = vunpack.c.l.b16 %v39
  %v298 = vunpack.c.l.b16 %v40
  %v299 = vunpack.c.l.b16 %v41
  %v300 = vunpack.c.l.b16 %v42
  %v301 = vunpack.c.l.b16 %v43
  %v302 = vunpack.c.l.b16 %v44
  %v303 = vunpack.c.l.b16 %v45
  %v304 = vunpack.c.l.b16 %v46
  %v305 = vunpack.c.l.b16 %v47
  %v306 = vunpack.c.l.b16 %v48
  %v307 = vunpack.c.l.b16 %v49
  %v308 = vunpack.c.l.b16 %v50
  %v309 = vunpack.c.l.b16 %v51
  %v310 = vunpack.c.l.b16 %v52
  %v311 = vunpack.c.l.b16 %v53
  %v312 = vunpack.c.l.b16 %v54
  %v313 = vunpack.c.l.b16 %v55
  %v314 = vunpack.c.l.b16 %v56
  %v315 = vunpack.c.l.b16 %v57
  %v316 = vunpack.c.l.b16 %v58
  %v317 = vunpack.c.l.b16 %v59
  %v318 = vunpack.c.l.b16 %v60
  %v319 = vunpack.c.l.b16 %v61
  %v320 = vunpack.c.l.b16 %v62
  %v321 = vunpack.c.l.b16 %v63
  %v322 = vunpack.c.l.b16 %v64
  %v323 = vunpack.c.l.b16 %v65
  %v324 = vunpack.c.l.b16 %v66
  %v325 = vunpack.c.l.b16 %v67
  %v326 = vunpack.c.l.b16 %v68
  %v327 = vunpack.c.l.b16 %v69
  %v328 = vunpack.c.l.b16 %v70
  %v329 = vunpack.c.l.b16 %v71
  %v330 = vunpack.c.l.b16 %v72
  %v331 = vunpack.c.l.b16 %v73
  %v332 = vunpack.c.l.b16 %v74
  %v333 = vunpack.c.l.b16 %v75
  %v334 = vunpack.c.l.b16 %v76
  %v335 = vunpack.c.l.b16 %v77
  %v336 = vunpack.c.l.b16 %v78
  %v337 = vunpack.c.l.b16 %v79
  %v338 = vunpack.c.l.b16 %v80
  %v339 = vunpack.c.l.b16 %v81
  %v340 = vunpack.c.l.b16 %v82
  %v341 = vunpack.c.l.b16 %v83
  %v342 = vunpack.c.l.b16 %v84
  %v343 = vunpack.c.l.b16 %v85
  %v344 = vunpack.c.l.b16 %v86
  %v345 = vunpack.c.l.b16 %v87
  %v346 = vunpack.c.l.b16 %v88
  %v347 = vunpack.c.l.b16 %v89
  %v348 = vunpack.c.l.b16 %v90
  %v349 = vunpack.c.l.b16 %v91
  %v350 = vunpack.c.l.b16 %v92
  %v351 = vunpack.c.l.b16 %v93
  %v352 = vunpack.c.l.b16 %v94
  %v353 = vunpack.c.l.b16 %v95
  %v354 = vunpack.c.l.b16 %v96
  %v355 = vunpack.c.l.b16 %v97
  %v356 = vunpack.c.l.b16 %v98
  %v357 = vunpack.c.l.b16 %v99
  %v358 = vunpack.c.l.b16 %v100
  %v359 = vunpack.c.l.b16 %v101
  %v360 = vunpack.c.l.b16 %v102
  %v361 = vunpack.c.l.b16 %v103
  %v362 = vunpack.c.l.b16 %v104
  %v363 = vunpack.c.l.b16 %v105
  %v364 = vunpack.c.l.b16 %v106
  %v365 = vunpack.c.l.b16 %v107
  %v366 = vunpack.c.l.b16 %v108
  %v367 = vunpack.c.l.b16 %v109
  %v368 = vunpack.c.l.b16 %v110
  %v369 = vunpack.c.l.b16 %v111
  %v370 = vunpack.c.l.b16 %v112
  %v371 = vunpack.c.l.b16 %v113
  %v372 = vunpack.c.l.b16 %v114
  %v373 = vunpack.c.l.b16 %v115
  %v374 = vunpack.c.l.b16 %v116
  %v375 = vunpack.c.l.b16 %v117
  %v376 = vunpack.c.l.b16 %v118
  %v377 = vunpack.c.l.b16 %v119
  %v378 = vunpack.c.l.b16 %v120
  %v379 = vunpack.c.l.b16 %v121
  %v380 = vunpack.c.l.b16 %v122
  %v381 = vunpack.c.l.b16 %v123
  %v382 = vunpack.c.l.b16 %v124
  %v383 = vunpack.c.l.b16 %v125
  %v384 = vunpack.c.l.b16 %v126
  %v385 = vunpack.c.l.b16 %v127
  %v386 = vunpack.c.l.b16 %v128
  %v387 = vunpack.c.l.b16 %v129
  %v388 = vunpack.c.l.b16 %v130
  %v389 = vunpack.c.l.b16 %v131
  %v390 = vunpack.c.l.b16 %v132
  %v391 = vunpack.c.l.b16 %v133
  %v392 = vunpack.c.l.b16 %v134
  %v393 = vunpack.c.l.b16 %v135
  %v394 = vunpack.c.l.b16 %v136
  %v395 = vunpack.c.l.b16 %v137
  %v396 = vunpack.c.l.b16 %v138
  %v397 = vunpack.c.l.b16 %v139
  %v398 = vunpack.c.l.b16 %v140
  %v399 = vunpack.c.l.b16 %v141
  %v400 = vunpack.c.l.b16 %v142
  %v401 = vunpack.c.l.b16 %v143
  %v402 = vunpack.c.l.b16 %v144
  %v403 = vunpack.c.l.b16 %v145
  %v404 = vunpack.c.l.b16 %v146
  %v405 = vunpack.c.l.b16 %v147
  %v406 = vunpack.c.l.b16 %v148
  %v407 = vunpack.c.l.b16 %v149
  %v408 = vunpack.c.l.b16 %v150
  %v409 = vunpack.c.l.b16 %v151
  %v410 = vunpack.c.l.b16 %v152
  %v411 = vunpack.c.l.b16 %v153
  %v412 = vunpack.c.l.b16 %v154
  %v413 = vunpack.c.l.b16 %v155
  %v414 = vunpack.c.l.b16 %v156
  %v415 = vunpack.c.l.b16 %v157
  %v416 = vunpack.c.l.b16 %v158
  %v417 = vunpack.c.l.b16 %v159
  %v418 = vunpack.c.l.b16 %v160
  %v419 = vunpack.c.l.b16 %v161
  %v420 = vunpack.c.l.b16 %v162
  %v421 = vunpack.c.l.b16 %v163
  %v422 = vunpack.c.l.b16 %v164
  %v423 = vunpack.c.l.b16 %v165
  %v424 = vpack.c.b16 %v297, %v296
  %v425 = vpack.c.b16 %v299, %v298
  %v426 = vpack.c.b16 %v301, %v300
  %v427 = vpack.c.b16 %v303, %v302
  %v428 = vpack.c.b16 %v305, %v304
  %v429 = vpack.c.b16 %v307, %v306
  %v430 = vpack.c.b16 %v309, %v308
  %v431 = vpack.c.b16 %v311, %v310
  %v432 = vpack.c.b16 %v313, %v312
  %v433 = vpack.c.b16 %v315, %v314
  %v434 = vpack.c.b16 %v317, %v316
  %v435 = vpack.c.b16 %v319, %v318
  %v436 = vpack.c.b16 %v321, %v320
  %v437 = vpack.c.b16 %v323, %v322
  %v438 = vpack.c.b16 %v325, %v324
  %v439 = vpack.c.b16 %v327, %v326
  %v440 = vpack.c.b16 %v329, %v328
  %v441 = vpack.c.b16 %v331, %v330
  %v442 = vpack.c.b16 %v333, %v332
  %v443 = vpack.c.b16 %v335, %v334
  %v444 = vpack.c.b16 %v337, %v336
  %v445 = vpack.c.b16 %v339, %v338
  %v446 = vpack.c.b16 %v341, %v340
  %v447 = vpack.c.b16 %v343, %v342
  %v448 = vpack.c.b16 %v345, %v344
  %v449 = vpack.c.b16 %v347, %v346
  %v450 = vpack.c.b16 %v349, %v348
  %v451 = vpack.c.b16 %v351, %v350
  %v452 = vpack.c.b16 %v353, %v352
  %v453 = vpack.c.b16 %v355, %v354
  %v454 = vpack.c.b16 %v357, %v356
  %v455 = vpack.c.b16 %v359, %v358
  %v456 = vpack.c.b16 %v361, %v360
  %v457 = vpack.c.b16 %v363, %v362
  %v458 = vpack.c.b16 %v365, %v364
  %v459 = vpack.c.b16 %v367, %v366
  %v460 = vpack.c.b16 %v369, %v368
  %v461 = vpack.c.b16 %v371, %v370
  %v462 = vpack.c.b16 %v373, %v372
  %v463 = vpack.c.b16 %v375, %v374
  %v464 = vpack.c.b16 %v377, %v376
  %v465 = vpack.c.b16 %v379, %v378
  %v466 = vpack.c.b16 %v381, %v380
  %v467 = vpack.c.b16 %v383, %v382
  %v468 = vpack.c.b16 %v385, %v384
  %v469 = vpack.c.b16 %v387, %v386
  %v470 = vpack.c.b16 %v389, %v388
  %v471 = vpack.c.b16 %v391, %v390
  %v472 = vpack.c.b16 %v393, %v392
  %v473 = vpack.c.b16 %v395, %v394
  %v474 = vpack.c.b16 %v397, %v396
  %v475 = vpack.c.b16 %v399, %v398
  %v476 = vpack.c.b16 %v401, %v400
  %v477 = vpack.c.b16 %v403, %v402
  %v478 = vpack.c.b16 %v405, %v404
  %v479 = vpack.c.b16 %v407, %v406
  %v480 = vpack.c.b16 %v409, %v408
  %v481 = vpack.c.b16 %v411, %v410
  %v482 = vpack.c.b16 %v413, %v412
  %v483 = vpack.c.b16 %v415, %v414
  %v484 = vpack.c.b16 %v417, %v416
  %v485 = vpack.c.b16 %v419, %v418
  %v486 = vpack.c.b16 %v421, %v420
  %v487 = vpack.c.b16 %v423, %v422
  %v490 = vunpack.c.l.b16 %v166
  %v491 = vunpack.c.l.b16 %v167
  %v492 = vpack.c.b16 %v491, %v490
  %vm494 = vcmask 130048
  %v496 = vsel %vm494, %v424, 0
  %v499 = vsel %vm494, %v425, 0
  %v502 = vsel %vm494, %v426, 0
  %v505 = vsel %vm494, %v427, 0
  %v508 = vsel %vm494, %v428, 0
  %v511 = vsel %vm494, %v429, 0
  %v514 = vsel %vm494, %v430, 0
  %v517 = vsel %vm494, %v431, 0
  %v520 = vsel %vm494, %v432, 0
  %v523 = vsel %vm494, %v433, 0
  %v526 = vsel %vm494, %v434, 0
  %v529 = vsel %vm494, %v435, 0
  %v532 = vsel %vm494, %v436, 0
  %v535 = vsel %vm494, %v437, 0
  %v538 = vsel %vm494, %v438, 0
  %v541 = vsel %vm494, %v439, 0
  %v544 = vsel %vm494, %v440, 0
  %v547 = vsel %vm494, %v441, 0
  %v550 = vsel %vm494, %v442, 0
  %v553 = vsel %vm494, %v443, 0
  %v556 = vsel %vm494, %v444, 0
  %v559 = vsel %vm494, %v445, 0
  %v562 = vsel %vm494, %v446, 0
  %v565 = vsel %vm494, %v447, 0
  %v568 = vsel %vm494, %v448, 0
  %v571 = vsel %vm494, %v449, 0
  %v574 = vsel %vm494, %v450, 0
  %v577 = vsel %vm494, %v451, 0
  %v580 = vsel %vm494, %v452, 0
  %v583 = vsel %vm494, %v453, 0
  %v586 = vsel %vm494, %v454, 0
  %v589 = vsel %vm494, %v455, 0
  %v592 = vsel %vm494, %v456, 0
  %v595 = vsel %vm494, %v457, 0
  %v598 = vsel %vm494, %v458, 0
  %v601 = vsel %vm494, %v459, 0
  %v604 = vsel %vm494, %v460, 0
  %v607 = vsel %vm494, %v461, 0
  %v610 = vsel %vm494, %v462, 0
  %v613 = vsel %vm494, %v463, 0
  %v616 = vsel %vm494, %v464, 0
  %v619 = vsel %vm494, %v465, 0
  %v622 = vsel %vm494, %v466, 0
  %v625 = vsel %vm494, %v467, 0
  %v628 = vsel %vm494, %v468, 0
  %v631 = vsel %vm494, %v469, 0
  %v634 = vsel %vm494, %v470, 0
  %v637 = vsel %vm494, %v471, 0
  %v640 = vsel %vm494, %v472, 0
  %v643 = vsel %vm494, %v473, 0
  %v646 = vsel %vm494, %v474, 0
  %v649 = vsel %vm494, %v475, 0
  %v652 = vsel %vm494, %v476, 0
  %v655 = vsel %vm494, %v477, 0
  %v658 = vsel %vm494, %v478, 0
  %v661 = vsel %vm494, %v479, 0
  %v664 = vsel %vm494, %v480, 0
  %v667 = vsel %vm494, %v481, 0
  %v670 = vsel %vm494, %v482, 0
  %v673 = vsel %vm494, %v483, 0
  %v676 = vsel %vm494, %v484, 0
  %v679 = vsel %vm494, %v485, 0
  %v682 = vsel %vm494, %v486, 0
  %v685 = vsel %vm494, %v487, 0
  %687 = vmatprep.subr.bf16.mxu0 0
  %688 = vmatpush1.bf16.msra.mxu0 %v492
  %689 = vmatprep.subr.bf16.mxu0 0
  %690 = vmatpush1.bf16.msra.mxu0 0
  %691 = vmatprep.subr.bf16.mxu0 0
  %692 = vmatpush1.bf16.msra.mxu0 0
  %693 = vmatprep.subr.bf16.mxu0 0
  %694 = vmatpush1.bf16.msra.mxu0 0
  %695 = vmatprep.subr.bf16.mxu0 0
  %696 = vmatpush1.bf16.msra.mxu0 0
  %697 = vmatprep.subr.bf16.mxu0 0
  %698 = vmatpush1.bf16.msra.mxu0 0
  %699 = vmatprep.subr.bf16.mxu0 0
  %700 = vmatpush1.bf16.msra.mxu0 0
  %701 = vmatprep.subr.bf16.mxu0 0
  %702 = vmatpush1.bf16.msra.mxu0 0
  %703 = vmatprep.subr.bf16.mxu0 0
  %704 = vmatpush1.bf16.msra.mxu0 0
  %705 = vmatprep.subr.bf16.mxu0 0
  %706 = vmatpush1.bf16.msra.mxu0 0
  %707 = vmatprep.subr.bf16.mxu0 0
  %708 = vmatpush1.bf16.msra.mxu0 0
  %709 = vmatprep.subr.bf16.mxu0 0
  %710 = vmatpush1.bf16.msra.mxu0 0
  %711 = vmatprep.subr.bf16.mxu0 0
  %712 = vmatpush1.bf16.msra.mxu0 0
  %713 = vmatprep.subr.bf16.mxu0 0
  %714 = vmatpush1.bf16.msra.mxu0 0
  %715 = vmatprep.subr.bf16.mxu0 0
  %716 = vmatpush1.bf16.msra.mxu0 0
  %717 = vmatprep.subr.bf16.mxu0 0
  %718 = vmatpush1.bf16.msra.mxu0 0
  %719 = vmatprep.mubr.bf16.mxu0 0
  %720 = vmatmul.mubr.bf16.gmra.mrb[0].mxu0 %v496
  %v721 = vpop.f32.mrb[0].mxu0
  %v722 = vadd.f32 0.0, %v721
  %v723 = vpop.f32.mrb[0].mxu0
  %v724 = vpop.f32.mrb[0].mxu0
  %v725 = vadd.f32 0.0, %v724
  %v726 = vpop.f32.mrb[0].mxu0
  %727 = vmatprep.mubr.bf16.mxu0 0
  %728 = vmatmul.mubr.bf16.gmra.mrb[0].mxu0 %v499
  %v729 = vpop.f32.mrb[0].mxu0
  %v730 = vadd.f32 0.0, %v729
  %v731 = vpop.f32.mrb[0].mxu0
  %v732 = vpop.f32.mrb[0].mxu0
  %v733 = vadd.f32 0.0, %v732
  %v734 = vpop.f32.mrb[0].mxu0
  %735 = vmatprep.mubr.bf16.mxu0 0
  %736 = vmatmul.mubr.bf16.gmra.mrb[0].mxu0 %v502
  %v737 = vpop.f32.mrb[0].mxu0
  %v738 = vadd.f32 0.0, %v737
  %v739 = vpop.f32.mrb[0].mxu0
  %v740 = vpop.f32.mrb[0].mxu0
  %v741 = vadd.f32 0.0, %v740
  %v742 = vpop.f32.mrb[0].mxu0
  %743 = vmatprep.mubr.bf16.mxu0 0
  %744 = vmatmul.mubr.bf16.gmra.mrb[0].mxu0 %v505
  %v745 = vpop.f32.mrb[0].mxu0
  %v746 = vadd.f32 0.0, %v745
  %v747 = vpop.f32.mrb[0].mxu0
  %v748 = vpop.f32.mrb[0].mxu0
  %v749 = vadd.f32 0.0, %v748
  %v750 = vpop.f32.mrb[0].mxu0
  %751 = vmatprep.mubr.bf16.mxu0 0
  %752 = vmatmul.mubr.bf16.gmra.mrb[0].mxu0 %v508
  %v753 = vpop.f32.mrb[0].mxu0
  %v754 = vadd.f32 0.0, %v753
  %v755 = vpop.f32.mrb[0].mxu0
  %v756 = vpop.f32.mrb[0].mxu0
  %v757 = vadd.f32 0.0, %v756
  %v758 = vpop.f32.mrb[0].mxu0
  %759 = vmatprep.mubr.bf16.mxu0 0
  %760 = vmatmul.mubr.bf16.gmra.mrb[0].mxu0 %v511
  %v761 = vpop.f32.mrb[0].mxu0
  %v762 = vadd.f32 0.0, %v761
  %v763 = vpop.f32.mrb[0].mxu0
  %v764 = vpop.f32.mrb[0].mxu0
  %v765 = vadd.f32 0.0, %v764
  %v766 = vpop.f32.mrb[0].mxu0
  %767 = vmatprep.mubr.bf16.mxu0 0
  %768 = vmatmul.mubr.bf16.gmra.mrb[0].mxu0 %v514
  %v769 = vpop.f32.mrb[0].mxu0
  %v770 = vadd.f32 0.0, %v769
  %v771 = vpop.f32.mrb[0].mxu0
  %v772 = vpop.f32.mrb[0].mxu0
  %v773 = vadd.f32 0.0, %v772
  %v774 = vpop.f32.mrb[0].mxu0
  %775 = vmatprep.mubr.bf16.mxu0 0
  %776 = vmatmul.mubr.bf16.gmra.mrb[0].mxu0 %v517
  %v777 = vpop.f32.mrb[0].mxu0
  %v778 = vadd.f32 0.0, %v777
  %v779 = vpop.f32.mrb[0].mxu0
  %v780 = vpop.f32.mrb[0].mxu0
  %v781 = vadd.f32 0.0, %v780
  %v782 = vpop.f32.mrb[0].mxu0
  %783 = vmatprep.mubr.bf16.mxu0 0
  %784 = vmatmul.mubr.bf16.gmra.mrb[0].mxu0 %v520
  %v785 = vpop.f32.mrb[0].mxu0
  %v786 = vadd.f32 0.0, %v785
  %v787 = vpop.f32.mrb[0].mxu0
  %v788 = vpop.f32.mrb[0].mxu0
  %v789 = vadd.f32 0.0, %v788
  %v790 = vpop.f32.mrb[0].mxu0
  %791 = vmatprep.mubr.bf16.mxu0 0
  %792 = vmatmul.mubr.bf16.gmra.mrb[0].mxu0 %v523
  %v793 = vpop.f32.mrb[0].mxu0
  %v794 = vadd.f32 0.0, %v793
  %v795 = vpop.f32.mrb[0].mxu0
  %v796 = vpop.f32.mrb[0].mxu0
  %v797 = vadd.f32 0.0, %v796
  %v798 = vpop.f32.mrb[0].mxu0
  %799 = vmatprep.mubr.bf16.mxu0 0
  %800 = vmatmul.mubr.bf16.gmra.mrb[0].mxu0 %v526
  %v801 = vpop.f32.mrb[0].mxu0
  %v802 = vadd.f32 0.0, %v801
  %v803 = vpop.f32.mrb[0].mxu0
  %v804 = vpop.f32.mrb[0].mxu0
  %v805 = vadd.f32 0.0, %v804
  %v806 = vpop.f32.mrb[0].mxu0
  %807 = vmatprep.mubr.bf16.mxu0 0
  %808 = vmatmul.mubr.bf16.gmra.mrb[0].mxu0 %v529
  %v809 = vpop.f32.mrb[0].mxu0
  %v810 = vadd.f32 0.0, %v809
  %v811 = vpop.f32.mrb[0].mxu0
  %v812 = vpop.f32.mrb[0].mxu0
  %v813 = vadd.f32 0.0, %v812
  %v814 = vpop.f32.mrb[0].mxu0
  %815 = vmatprep.mubr.bf16.mxu0 0
  %816 = vmatmul.mubr.bf16.gmra.mrb[0].mxu0 %v532
  %v817 = vpop.f32.mrb[0].mxu0
  %v818 = vadd.f32 0.0, %v817
  %v819 = vpop.f32.mrb[0].mxu0
  %v820 = vpop.f32.mrb[0].mxu0
  %v821 = vadd.f32 0.0, %v820
  %v822 = vpop.f32.mrb[0].mxu0
  %823 = vmatprep.mubr.bf16.mxu0 0
  %824 = vmatmul.mubr.bf16.gmra.mrb[0].mxu0 %v535
  %v825 = vpop.f32.mrb[0].mxu0
  %v826 = vadd.f32 0.0, %v825
  %v827 = vpop.f32.mrb[0].mxu0
  %v828 = vpop.f32.mrb[0].mxu0
  %v829 = vadd.f32 0.0, %v828
  %v830 = vpop.f32.mrb[0].mxu0
  %831 = vmatprep.mubr.bf16.mxu0 0
  %832 = vmatmul.mubr.bf16.gmra.mrb[0].mxu0 %v538
  %v833 = vpop.f32.mrb[0].mxu0
  %v834 = vadd.f32 0.0, %v833
  %v835 = vpop.f32.mrb[0].mxu0
  %v836 = vpop.f32.mrb[0].mxu0
  %v837 = vadd.f32 0.0, %v836
  %v838 = vpop.f32.mrb[0].mxu0
  %839 = vmatprep.mubr.bf16.mxu0 0
  %840 = vmatmul.mubr.bf16.gmra.mrb[0].mxu0 %v541
  %v841 = vpop.f32.mrb[0].mxu0
  %v842 = vadd.f32 0.0, %v841
  %v843 = vpop.f32.mrb[0].mxu0
  %v844 = vpop.f32.mrb[0].mxu0
  %v845 = vadd.f32 0.0, %v844
  %v846 = vpop.f32.mrb[0].mxu0
  %847 = vmatprep.mubr.bf16.mxu0 0
  %848 = vmatmul.mubr.bf16.gmra.mrb[0].mxu0 %v544
  %v849 = vpop.f32.mrb[0].mxu0
  %v850 = vadd.f32 0.0, %v849
  %v851 = vpop.f32.mrb[0].mxu0
  %v852 = vpop.f32.mrb[0].mxu0
  %v853 = vadd.f32 0.0, %v852
  %v854 = vpop.f32.mrb[0].mxu0
  %855 = vmatprep.mubr.bf16.mxu0 0
  %856 = vmatmul.mubr.bf16.gmra.mrb[0].mxu0 %v547
  %v857 = vpop.f32.mrb[0].mxu0
  %v858 = vadd.f32 0.0, %v857
  %v859 = vpop.f32.mrb[0].mxu0
  %v860 = vpop.f32.mrb[0].mxu0
  %v861 = vadd.f32 0.0, %v860
  %v862 = vpop.f32.mrb[0].mxu0
  %863 = vmatprep.mubr.bf16.mxu0 0
  %864 = vmatmul.mubr.bf16.gmra.mrb[0].mxu0 %v550
  %v865 = vpop.f32.mrb[0].mxu0
  %v866 = vadd.f32 0.0, %v865
  %v867 = vpop.f32.mrb[0].mxu0
  %v868 = vpop.f32.mrb[0].mxu0
  %v869 = vadd.f32 0.0, %v868
  %v870 = vpop.f32.mrb[0].mxu0
  %871 = vmatprep.mubr.bf16.mxu0 0
  %872 = vmatmul.mubr.bf16.gmra.mrb[0].mxu0 %v553
  %v873 = vpop.f32.mrb[0].mxu0
  %v874 = vadd.f32 0.0, %v873
  %v875 = vpop.f32.mrb[0].mxu0
  %v876 = vpop.f32.mrb[0].mxu0
  %v877 = vadd.f32 0.0, %v876
  %v878 = vpop.f32.mrb[0].mxu0
  %879 = vmatprep.mubr.bf16.mxu0 0
  %880 = vmatmul.mubr.bf16.gmra.mrb[0].mxu0 %v556
  %v881 = vpop.f32.mrb[0].mxu0
  %v882 = vadd.f32 0.0, %v881
  %v883 = vpop.f32.mrb[0].mxu0
  %v884 = vpop.f32.mrb[0].mxu0
  %v885 = vadd.f32 0.0, %v884
  %v886 = vpop.f32.mrb[0].mxu0
  %887 = vmatprep.mubr.bf16.mxu0 0
  %888 = vmatmul.mubr.bf16.gmra.mrb[0].mxu0 %v559
  %v889 = vpop.f32.mrb[0].mxu0
  %v890 = vadd.f32 0.0, %v889
  %v891 = vpop.f32.mrb[0].mxu0
  %v892 = vpop.f32.mrb[0].mxu0
  %v893 = vadd.f32 0.0, %v892
  %v894 = vpop.f32.mrb[0].mxu0
  %895 = vmatprep.mubr.bf16.mxu0 0
  %896 = vmatmul.mubr.bf16.gmra.mrb[0].mxu0 %v562
  %v897 = vpop.f32.mrb[0].mxu0
  %v898 = vadd.f32 0.0, %v897
  %v899 = vpop.f32.mrb[0].mxu0
  %v900 = vpop.f32.mrb[0].mxu0
  %v901 = vadd.f32 0.0, %v900
  %v902 = vpop.f32.mrb[0].mxu0
  %903 = vmatprep.mubr.bf16.mxu0 0
  %904 = vmatmul.mubr.bf16.gmra.mrb[0].mxu0 %v565
  %v905 = vpop.f32.mrb[0].mxu0
  %v906 = vadd.f32 0.0, %v905
  %v907 = vpop.f32.mrb[0].mxu0
  %v908 = vpop.f32.mrb[0].mxu0
  %v909 = vadd.f32 0.0, %v908
  %v910 = vpop.f32.mrb[0].mxu0
  %911 = vmatprep.mubr.bf16.mxu0 0
  %912 = vmatmul.mubr.bf16.gmra.mrb[0].mxu0 %v568
  %v913 = vpop.f32.mrb[0].mxu0
  %v914 = vadd.f32 0.0, %v913
  %v915 = vpop.f32.mrb[0].mxu0
  %v916 = vpop.f32.mrb[0].mxu0
  %v917 = vadd.f32 0.0, %v916
  %v918 = vpop.f32.mrb[0].mxu0
  %919 = vmatprep.mubr.bf16.mxu0 0
  %920 = vmatmul.mubr.bf16.gmra.mrb[0].mxu0 %v571
  %v921 = vpop.f32.mrb[0].mxu0
  %v922 = vadd.f32 0.0, %v921
  %v923 = vpop.f32.mrb[0].mxu0
  %v924 = vpop.f32.mrb[0].mxu0
  %v925 = vadd.f32 0.0, %v924
  %v926 = vpop.f32.mrb[0].mxu0
  %927 = vmatprep.mubr.bf16.mxu0 0
  %928 = vmatmul.mubr.bf16.gmra.mrb[0].mxu0 %v574
  %v929 = vpop.f32.mrb[0].mxu0
  %v930 = vadd.f32 0.0, %v929
  %v931 = vpop.f32.mrb[0].mxu0
  %v932 = vpop.f32.mrb[0].mxu0
  %v933 = vadd.f32 0.0, %v932
  %v934 = vpop.f32.mrb[0].mxu0
  %935 = vmatprep.mubr.bf16.mxu0 0
  %936 = vmatmul.mubr.bf16.gmra.mrb[0].mxu0 %v577
  %v937 = vpop.f32.mrb[0].mxu0
  %v938 = vadd.f32 0.0, %v937
  %v939 = vpop.f32.mrb[0].mxu0
  %v940 = vpop.f32.mrb[0].mxu0
  %v941 = vadd.f32 0.0, %v940
  %v942 = vpop.f32.mrb[0].mxu0
  %943 = vmatprep.mubr.bf16.mxu0 0
  %944 = vmatmul.mubr.bf16.gmra.mrb[0].mxu0 %v580
  %v945 = vpop.f32.mrb[0].mxu0
  %v946 = vadd.f32 0.0, %v945
  %v947 = vpop.f32.mrb[0].mxu0
  %v948 = vpop.f32.mrb[0].mxu0
  %v949 = vadd.f32 0.0, %v948
  %v950 = vpop.f32.mrb[0].mxu0
  %951 = vmatprep.mubr.bf16.mxu0 0
  %952 = vmatmul.mubr.bf16.gmra.mrb[0].mxu0 %v583
  %v953 = vpop.f32.mrb[0].mxu0
  %v954 = vadd.f32 0.0, %v953
  %v955 = vpop.f32.mrb[0].mxu0
  %v956 = vpop.f32.mrb[0].mxu0
  %v957 = vadd.f32 0.0, %v956
  %v958 = vpop.f32.mrb[0].mxu0
  %959 = vmatprep.mubr.bf16.mxu0 0
  %960 = vmatmul.mubr.bf16.gmra.mrb[0].mxu0 %v586
  %v961 = vpop.f32.mrb[0].mxu0
  %v962 = vadd.f32 0.0, %v961
  %v963 = vpop.f32.mrb[0].mxu0
  %v964 = vpop.f32.mrb[0].mxu0
  %v965 = vadd.f32 0.0, %v964
  %v966 = vpop.f32.mrb[0].mxu0
  %967 = vmatprep.mubr.bf16.mxu0 0
  %968 = vmatmul.mubr.bf16.gmra.mrb[0].mxu0 %v589
  %v969 = vpop.f32.mrb[0].mxu0
  %v970 = vadd.f32 0.0, %v969
  %v971 = vpop.f32.mrb[0].mxu0
  %v972 = vpop.f32.mrb[0].mxu0
  %v973 = vadd.f32 0.0, %v972
  %v974 = vpop.f32.mrb[0].mxu0
  %975 = vmatprep.mubr.bf16.mxu0 0
  %976 = vmatmul.mubr.bf16.gmra.mrb[0].mxu0 %v592
  %v977 = vpop.f32.mrb[0].mxu0
  %v978 = vadd.f32 0.0, %v977
  %v979 = vpop.f32.mrb[0].mxu0
  %v980 = vpop.f32.mrb[0].mxu0
  %v981 = vadd.f32 0.0, %v980
  %v982 = vpop.f32.mrb[0].mxu0
  %983 = vmatprep.mubr.bf16.mxu0 0
  %984 = vmatmul.mubr.bf16.gmra.mrb[0].mxu0 %v595
  %v985 = vpop.f32.mrb[0].mxu0
  %v986 = vadd.f32 0.0, %v985
  %v987 = vpop.f32.mrb[0].mxu0
  %v988 = vpop.f32.mrb[0].mxu0
  %v989 = vadd.f32 0.0, %v988
  %v990 = vpop.f32.mrb[0].mxu0
  %991 = vmatprep.mubr.bf16.mxu0 0
  %992 = vmatmul.mubr.bf16.gmra.mrb[0].mxu0 %v598
  %v993 = vpop.f32.mrb[0].mxu0
  %v994 = vadd.f32 0.0, %v993
  %v995 = vpop.f32.mrb[0].mxu0
  %v996 = vpop.f32.mrb[0].mxu0
  %v997 = vadd.f32 0.0, %v996
  %v998 = vpop.f32.mrb[0].mxu0
  %999 = vmatprep.mubr.bf16.mxu0 0
  %1000 = vmatmul.mubr.bf16.gmra.mrb[0].mxu0 %v601
  %v1001 = vpop.f32.mrb[0].mxu0
  %v1002 = vadd.f32 0.0, %v1001
  %v1003 = vpop.f32.mrb[0].mxu0
  %v1004 = vpop.f32.mrb[0].mxu0
  %v1005 = vadd.f32 0.0, %v1004
  %v1006 = vpop.f32.mrb[0].mxu0
  %1007 = vmatprep.mubr.bf16.mxu0 0
  %1008 = vmatmul.mubr.bf16.gmra.mrb[0].mxu0 %v604
  %v1009 = vpop.f32.mrb[0].mxu0
  %v1010 = vadd.f32 0.0, %v1009
  %v1011 = vpop.f32.mrb[0].mxu0
  %v1012 = vpop.f32.mrb[0].mxu0
  %v1013 = vadd.f32 0.0, %v1012
  %v1014 = vpop.f32.mrb[0].mxu0
  %1015 = vmatprep.mubr.bf16.mxu0 0
  %1016 = vmatmul.mubr.bf16.gmra.mrb[0].mxu0 %v607
  %v1017 = vpop.f32.mrb[0].mxu0
  %v1018 = vadd.f32 0.0, %v1017
  %v1019 = vpop.f32.mrb[0].mxu0
  %v1020 = vpop.f32.mrb[0].mxu0
  %v1021 = vadd.f32 0.0, %v1020
  %v1022 = vpop.f32.mrb[0].mxu0
  %1023 = vmatprep.mubr.bf16.mxu0 0
  %1024 = vmatmul.mubr.bf16.gmra.mrb[0].mxu0 %v610
  %v1025 = vpop.f32.mrb[0].mxu0
  %v1026 = vadd.f32 0.0, %v1025
  %v1027 = vpop.f32.mrb[0].mxu0
  %v1028 = vpop.f32.mrb[0].mxu0
  %v1029 = vadd.f32 0.0, %v1028
  %v1030 = vpop.f32.mrb[0].mxu0
  %1031 = vmatprep.mubr.bf16.mxu0 0
  %1032 = vmatmul.mubr.bf16.gmra.mrb[0].mxu0 %v613
  %v1033 = vpop.f32.mrb[0].mxu0
  %v1034 = vadd.f32 0.0, %v1033
  %v1035 = vpop.f32.mrb[0].mxu0
  %v1036 = vpop.f32.mrb[0].mxu0
  %v1037 = vadd.f32 0.0, %v1036
  %v1038 = vpop.f32.mrb[0].mxu0
  %1039 = vmatprep.mubr.bf16.mxu0 0
  %1040 = vmatmul.mubr.bf16.gmra.mrb[0].mxu0 %v616
  %v1041 = vpop.f32.mrb[0].mxu0
  %v1042 = vadd.f32 0.0, %v1041
  %v1043 = vpop.f32.mrb[0].mxu0
  %v1044 = vpop.f32.mrb[0].mxu0
  %v1045 = vadd.f32 0.0, %v1044
  %v1046 = vpop.f32.mrb[0].mxu0
  %1047 = vmatprep.mubr.bf16.mxu0 0
  %1048 = vmatmul.mubr.bf16.gmra.mrb[0].mxu0 %v619
  %v1049 = vpop.f32.mrb[0].mxu0
  %v1050 = vadd.f32 0.0, %v1049
  %v1051 = vpop.f32.mrb[0].mxu0
  %v1052 = vpop.f32.mrb[0].mxu0
  %v1053 = vadd.f32 0.0, %v1052
  %v1054 = vpop.f32.mrb[0].mxu0
  %1055 = vmatprep.mubr.bf16.mxu0 0
  %1056 = vmatmul.mubr.bf16.gmra.mrb[0].mxu0 %v622
  %v1057 = vpop.f32.mrb[0].mxu0
  %v1058 = vadd.f32 0.0, %v1057
  %v1059 = vpop.f32.mrb[0].mxu0
  %v1060 = vpop.f32.mrb[0].mxu0
  %v1061 = vadd.f32 0.0, %v1060
  %v1062 = vpop.f32.mrb[0].mxu0
  %1063 = vmatprep.mubr.bf16.mxu0 0
  %1064 = vmatmul.mubr.bf16.gmra.mrb[0].mxu0 %v625
  %v1065 = vpop.f32.mrb[0].mxu0
  %v1066 = vadd.f32 0.0, %v1065
  %v1067 = vpop.f32.mrb[0].mxu0
  %v1068 = vpop.f32.mrb[0].mxu0
  %v1069 = vadd.f32 0.0, %v1068
  %v1070 = vpop.f32.mrb[0].mxu0
  %1071 = vmatprep.mubr.bf16.mxu0 0
  %1072 = vmatmul.mubr.bf16.gmra.mrb[0].mxu0 %v628
  %v1073 = vpop.f32.mrb[0].mxu0
  %v1074 = vadd.f32 0.0, %v1073
  %v1075 = vpop.f32.mrb[0].mxu0
  %v1076 = vpop.f32.mrb[0].mxu0
  %v1077 = vadd.f32 0.0, %v1076
  %v1078 = vpop.f32.mrb[0].mxu0
  %1079 = vmatprep.mubr.bf16.mxu0 0
  %1080 = vmatmul.mubr.bf16.gmra.mrb[0].mxu0 %v631
  %v1081 = vpop.f32.mrb[0].mxu0
  %v1082 = vadd.f32 0.0, %v1081
  %v1083 = vpop.f32.mrb[0].mxu0
  %v1084 = vpop.f32.mrb[0].mxu0
  %v1085 = vadd.f32 0.0, %v1084
  %v1086 = vpop.f32.mrb[0].mxu0
  %1087 = vmatprep.mubr.bf16.mxu0 0
  %1088 = vmatmul.mubr.bf16.gmra.mrb[0].mxu0 %v634
  %v1089 = vpop.f32.mrb[0].mxu0
  %v1090 = vadd.f32 0.0, %v1089
  %v1091 = vpop.f32.mrb[0].mxu0
  %v1092 = vpop.f32.mrb[0].mxu0
  %v1093 = vadd.f32 0.0, %v1092
  %v1094 = vpop.f32.mrb[0].mxu0
  %1095 = vmatprep.mubr.bf16.mxu0 0
  %1096 = vmatmul.mubr.bf16.gmra.mrb[0].mxu0 %v637
  %v1097 = vpop.f32.mrb[0].mxu0
  %v1098 = vadd.f32 0.0, %v1097
  %v1099 = vpop.f32.mrb[0].mxu0
  %v1100 = vpop.f32.mrb[0].mxu0
  %v1101 = vadd.f32 0.0, %v1100
  %v1102 = vpop.f32.mrb[0].mxu0
  %1103 = vmatprep.mubr.bf16.mxu0 0
  %1104 = vmatmul.mubr.bf16.gmra.mrb[0].mxu0 %v640
  %v1105 = vpop.f32.mrb[0].mxu0
  %v1106 = vadd.f32 0.0, %v1105
  %v1107 = vpop.f32.mrb[0].mxu0
  %v1108 = vpop.f32.mrb[0].mxu0
  %v1109 = vadd.f32 0.0, %v1108
  %v1110 = vpop.f32.mrb[0].mxu0
  %1111 = vmatprep.mubr.bf16.mxu0 0
  %1112 = vmatmul.mubr.bf16.gmra.mrb[0].mxu0 %v643
  %v1113 = vpop.f32.mrb[0].mxu0
  %v1114 = vadd.f32 0.0, %v1113
  %v1115 = vpop.f32.mrb[0].mxu0
  %v1116 = vpop.f32.mrb[0].mxu0
  %v1117 = vadd.f32 0.0, %v1116
  %v1118 = vpop.f32.mrb[0].mxu0
  %1119 = vmatprep.mubr.bf16.mxu0 0
  %1120 = vmatmul.mubr.bf16.gmra.mrb[0].mxu0 %v646
  %v1121 = vpop.f32.mrb[0].mxu0
  %v1122 = vadd.f32 0.0, %v1121
  %v1123 = vpop.f32.mrb[0].mxu0
  %v1124 = vpop.f32.mrb[0].mxu0
  %v1125 = vadd.f32 0.0, %v1124
  %v1126 = vpop.f32.mrb[0].mxu0
  %1127 = vmatprep.mubr.bf16.mxu0 0
  %1128 = vmatmul.mubr.bf16.gmra.mrb[0].mxu0 %v649
  %v1129 = vpop.f32.mrb[0].mxu0
  %v1130 = vadd.f32 0.0, %v1129
  %v1131 = vpop.f32.mrb[0].mxu0
  %v1132 = vpop.f32.mrb[0].mxu0
  %v1133 = vadd.f32 0.0, %v1132
  %v1134 = vpop.f32.mrb[0].mxu0
  %1135 = vmatprep.mubr.bf16.mxu0 0
  %1136 = vmatmul.mubr.bf16.gmra.mrb[0].mxu0 %v652
  %v1137 = vpop.f32.mrb[0].mxu0
  %v1138 = vadd.f32 0.0, %v1137
  %v1139 = vpop.f32.mrb[0].mxu0
  %v1140 = vpop.f32.mrb[0].mxu0
  %v1141 = vadd.f32 0.0, %v1140
  %v1142 = vpop.f32.mrb[0].mxu0
  %1143 = vmatprep.mubr.bf16.mxu0 0
  %1144 = vmatmul.mubr.bf16.gmra.mrb[0].mxu0 %v655
  %v1145 = vpop.f32.mrb[0].mxu0
  %v1146 = vadd.f32 0.0, %v1145
  %v1147 = vpop.f32.mrb[0].mxu0
  %v1148 = vpop.f32.mrb[0].mxu0
  %v1149 = vadd.f32 0.0, %v1148
  %v1150 = vpop.f32.mrb[0].mxu0
  %1151 = vmatprep.mubr.bf16.mxu0 0
  %1152 = vmatmul.mubr.bf16.gmra.mrb[0].mxu0 %v658
  %v1153 = vpop.f32.mrb[0].mxu0
  %v1154 = vadd.f32 0.0, %v1153
  %v1155 = vpop.f32.mrb[0].mxu0
  %v1156 = vpop.f32.mrb[0].mxu0
  %v1157 = vadd.f32 0.0, %v1156
  %v1158 = vpop.f32.mrb[0].mxu0
  %1159 = vmatprep.mubr.bf16.mxu0 0
  %1160 = vmatmul.mubr.bf16.gmra.mrb[0].mxu0 %v661
  %v1161 = vpop.f32.mrb[0].mxu0
  %v1162 = vadd.f32 0.0, %v1161
  %v1163 = vpop.f32.mrb[0].mxu0
  %v1164 = vpop.f32.mrb[0].mxu0
  %v1165 = vadd.f32 0.0, %v1164
  %v1166 = vpop.f32.mrb[0].mxu0
  %1167 = vmatprep.mubr.bf16.mxu0 0
  %1168 = vmatmul.mubr.bf16.gmra.mrb[0].mxu0 %v664
  %v1169 = vpop.f32.mrb[0].mxu0
  %v1170 = vadd.f32 0.0, %v1169
  %v1171 = vpop.f32.mrb[0].mxu0
  %v1172 = vpop.f32.mrb[0].mxu0
  %v1173 = vadd.f32 0.0, %v1172
  %v1174 = vpop.f32.mrb[0].mxu0
  %1175 = vmatprep.mubr.bf16.mxu0 0
  %1176 = vmatmul.mubr.bf16.gmra.mrb[0].mxu0 %v667
  %v1177 = vpop.f32.mrb[0].mxu0
  %v1178 = vadd.f32 0.0, %v1177
  %v1179 = vpop.f32.mrb[0].mxu0
  %v1180 = vpop.f32.mrb[0].mxu0
  %v1181 = vadd.f32 0.0, %v1180
  %v1182 = vpop.f32.mrb[0].mxu0
  %1183 = vmatprep.mubr.bf16.mxu0 0
  %1184 = vmatmul.mubr.bf16.gmra.mrb[0].mxu0 %v670
  %v1185 = vpop.f32.mrb[0].mxu0
  %v1186 = vadd.f32 0.0, %v1185
  %v1187 = vpop.f32.mrb[0].mxu0
  %v1188 = vpop.f32.mrb[0].mxu0
  %v1189 = vadd.f32 0.0, %v1188
  %v1190 = vpop.f32.mrb[0].mxu0
  %1191 = vmatprep.mubr.bf16.mxu0 0
  %1192 = vmatmul.mubr.bf16.gmra.mrb[0].mxu0 %v673
  %v1193 = vpop.f32.mrb[0].mxu0
  %v1194 = vadd.f32 0.0, %v1193
  %v1195 = vpop.f32.mrb[0].mxu0
  %v1196 = vpop.f32.mrb[0].mxu0
  %v1197 = vadd.f32 0.0, %v1196
  %v1198 = vpop.f32.mrb[0].mxu0
  %1199 = vmatprep.mubr.bf16.mxu0 0
  %1200 = vmatmul.mubr.bf16.gmra.mrb[0].mxu0 %v676
  %v1201 = vpop.f32.mrb[0].mxu0
  %v1202 = vadd.f32 0.0, %v1201
  %v1203 = vpop.f32.mrb[0].mxu0
  %v1204 = vpop.f32.mrb[0].mxu0
  %v1205 = vadd.f32 0.0, %v1204
  %v1206 = vpop.f32.mrb[0].mxu0
  %1207 = vmatprep.mubr.bf16.mxu0 0
  %1208 = vmatmul.mubr.bf16.gmra.mrb[0].mxu0 %v679
  %v1209 = vpop.f32.mrb[0].mxu0
  %v1210 = vadd.f32 0.0, %v1209
  %v1211 = vpop.f32.mrb[0].mxu0
  %v1212 = vpop.f32.mrb[0].mxu0
  %v1213 = vadd.f32 0.0, %v1212
  %v1214 = vpop.f32.mrb[0].mxu0
  %1215 = vmatprep.mubr.bf16.mxu0 0
  %1216 = vmatmul.mubr.bf16.gmra.mrb[0].mxu0 %v682
  %v1217 = vpop.f32.mrb[0].mxu0
  %v1218 = vadd.f32 0.0, %v1217
  %v1219 = vpop.f32.mrb[0].mxu0
  %v1220 = vpop.f32.mrb[0].mxu0
  %v1221 = vadd.f32 0.0, %v1220
  %v1222 = vpop.f32.mrb[0].mxu0
  %1223 = vmatprep.mubr.bf16.mxu0 0
  %1224 = vmatmul.mubr.bf16.gmra.mrb[0].mxu0 %v685
  %v1225 = vpop.f32.mrb[0].mxu0
  %v1226 = vadd.f32 0.0, %v1225
  %v1227 = vpop.f32.mrb[0].mxu0
  %v1228 = vpop.f32.mrb[0].mxu0
  %v1229 = vadd.f32 0.0, %v1228
  %v1230 = vpop.f32.mrb[0].mxu0
  %1231 = vdwg.mxu0
  %v1232 = vld [vmem:[%s3] sm:$0x1]
  %v1233 = vld [vmem:[%s3 + $0x1] sm:$0x1]
  %v1234 = vld [vmem:[%s3 + $0x2] sm:$0x1]
  %vm1235 = vcmask 523264
  %v1236 = vsel %vm1235, %v722, 0.0
  %v1237 = vsel %vm1235, %v725, 0.0
  %v1238 = vadd.f32 %v1236, %v1237
  %v1239 = vsel %vm1235, %v730, 0.0
  %v1240 = vadd.f32 %v1238, %v1239
  %v1241 = vsel %vm1235, %v733, 0.0
  %v1242 = vadd.f32 %v1240, %v1241
  %v1243 = vsel %vm1235, %v738, 0.0
  %v1244 = vadd.f32 %v1242, %v1243
  %v1245 = vsel %vm1235, %v741, 0.0
  %v1246 = vadd.f32 %v1244, %v1245
  %v1247 = vsel %vm1235, %v746, 0.0
  %v1248 = vadd.f32 %v1246, %v1247
  %v1249 = vsel %vm1235, %v749, 0.0
  %v1250 = vadd.f32 %v1248, %v1249
  %v1251 = vsel %vm1235, %v754, 0.0
  %v1252 = vadd.f32 %v1250, %v1251
  %v1253 = vsel %vm1235, %v757, 0.0
  %v1254 = vadd.f32 %v1252, %v1253
  %v1255 = vsel %vm1235, %v762, 0.0
  %v1256 = vadd.f32 %v1254, %v1255
  %v1257 = vsel %vm1235, %v765, 0.0
  %v1258 = vadd.f32 %v1256, %v1257
  %v1259 = vsel %vm1235, %v770, 0.0
  %v1260 = vadd.f32 %v1258, %v1259
  %v1261 = vsel %vm1235, %v773, 0.0
  %v1262 = vadd.f32 %v1260, %v1261
  %v1263 = vsel %vm1235, %v778, 0.0
  %v1264 = vadd.f32 %v1262, %v1263
  %v1265 = vsel %vm1235, %v781, 0.0
  %v1266 = vadd.f32 %v1264, %v1265
  %v1267 = vsel %vm1235, %v786, 0.0
  %v1268 = vadd.f32 %v1266, %v1267
  %v1269 = vsel %vm1235, %v789, 0.0
  %v1270 = vadd.f32 %v1268, %v1269
  %v1271 = vsel %vm1235, %v794, 0.0
  %v1272 = vadd.f32 %v1270, %v1271
  %v1273 = vsel %vm1235, %v797, 0.0
  %v1274 = vadd.f32 %v1272, %v1273
  %v1275 = vsel %vm1235, %v802, 0.0
  %v1276 = vadd.f32 %v1274, %v1275
  %v1277 = vsel %vm1235, %v805, 0.0
  %v1278 = vadd.f32 %v1276, %v1277
  %v1279 = vsel %vm1235, %v810, 0.0
  %v1280 = vadd.f32 %v1278, %v1279
  %v1281 = vsel %vm1235, %v813, 0.0
  %v1282 = vadd.f32 %v1280, %v1281
  %v1283 = vsel %vm1235, %v818, 0.0
  %v1284 = vadd.f32 %v1282, %v1283
  %v1285 = vsel %vm1235, %v821, 0.0
  %v1286 = vadd.f32 %v1284, %v1285
  %v1287 = vsel %vm1235, %v826, 0.0
  %v1288 = vadd.f32 %v1286, %v1287
  %v1289 = vsel %vm1235, %v829, 0.0
  %v1290 = vadd.f32 %v1288, %v1289
  %v1291 = vsel %vm1235, %v834, 0.0
  %v1292 = vadd.f32 %v1290, %v1291
  %v1293 = vsel %vm1235, %v837, 0.0
  %v1294 = vadd.f32 %v1292, %v1293
  %v1295 = vsel %vm1235, %v842, 0.0
  %v1296 = vadd.f32 %v1294, %v1295
  %v1297 = vsel %vm1235, %v845, 0.0
  %v1298 = vadd.f32 %v1296, %v1297
  %v1299 = vsel %vm1235, %v850, 0.0
  %v1300 = vadd.f32 %v1298, %v1299
  %v1301 = vsel %vm1235, %v853, 0.0
  %v1302 = vadd.f32 %v1300, %v1301
  %v1303 = vsel %vm1235, %v858, 0.0
  %v1304 = vadd.f32 %v1302, %v1303
  %v1305 = vsel %vm1235, %v861, 0.0
  %v1306 = vadd.f32 %v1304, %v1305
  %v1307 = vsel %vm1235, %v866, 0.0
  %v1308 = vadd.f32 %v1306, %v1307
  %v1309 = vsel %vm1235, %v869, 0.0
  %v1310 = vadd.f32 %v1308, %v1309
  %v1311 = vsel %vm1235, %v874, 0.0
  %v1312 = vadd.f32 %v1310, %v1311
  %v1313 = vsel %vm1235, %v877, 0.0
  %v1314 = vadd.f32 %v1312, %v1313
  %v1315 = vsel %vm1235, %v882, 0.0
  %v1316 = vadd.f32 %v1314, %v1315
  %v1317 = vsel %vm1235, %v885, 0.0
  %v1318 = vadd.f32 %v1316, %v1317
  %v1319 = vsel %vm1235, %v890, 0.0
  %v1320 = vadd.f32 %v1318, %v1319
  %v1321 = vsel %vm1235, %v893, 0.0
  %v1322 = vadd.f32 %v1320, %v1321
  %v1323 = vsel %vm1235, %v898, 0.0
  %v1324 = vadd.f32 %v1322, %v1323
  %v1325 = vsel %vm1235, %v901, 0.0
  %v1326 = vadd.f32 %v1324, %v1325
  %v1327 = vsel %vm1235, %v906, 0.0
  %v1328 = vadd.f32 %v1326, %v1327
  %v1329 = vsel %vm1235, %v909, 0.0
  %v1330 = vadd.f32 %v1328, %v1329
  %v1331 = vsel %vm1235, %v914, 0.0
  %v1332 = vadd.f32 %v1330, %v1331
  %v1333 = vsel %vm1235, %v917, 0.0
  %v1334 = vadd.f32 %v1332, %v1333
  %v1335 = vsel %vm1235, %v922, 0.0
  %v1336 = vadd.f32 %v1334, %v1335
  %v1337 = vsel %vm1235, %v925, 0.0
  %v1338 = vadd.f32 %v1336, %v1337
  %v1339 = vsel %vm1235, %v930, 0.0
  %v1340 = vadd.f32 %v1338, %v1339
  %v1341 = vsel %vm1235, %v933, 0.0
  %v1342 = vadd.f32 %v1340, %v1341
  %v1343 = vsel %vm1235, %v938, 0.0
  %v1344 = vadd.f32 %v1342, %v1343
  %v1345 = vsel %vm1235, %v941, 0.0
  %v1346 = vadd.f32 %v1344, %v1345
  %v1347 = vsel %vm1235, %v946, 0.0
  %v1348 = vadd.f32 %v1346, %v1347
  %v1349 = vsel %vm1235, %v949, 0.0
  %v1350 = vadd.f32 %v1348, %v1349
  %v1351 = vsel %vm1235, %v954, 0.0
  %v1352 = vadd.f32 %v1350, %v1351
  %v1353 = vsel %vm1235, %v957, 0.0
  %v1354 = vadd.f32 %v1352, %v1353
  %v1355 = vsel %vm1235, %v962, 0.0
  %v1356 = vadd.f32 %v1354, %v1355
  %v1357 = vsel %vm1235, %v965, 0.0
  %v1358 = vadd.f32 %v1356, %v1357
  %v1359 = vsel %vm1235, %v970, 0.0
  %v1360 = vadd.f32 %v1358, %v1359
  %v1361 = vsel %vm1235, %v973, 0.0
  %v1362 = vadd.f32 %v1360, %v1361
  %v1363 = vrot.slane %v1362, 4
  %v1364 = vadd.f32 %v1362, %v1363
  %v1365 = vrot.slane %v1364, 2
  %v1366 = vadd.f32 %v1364, %v1365
  %v1367 = vrot.slane %v1366, 1
  %v1368 = vadd.f32 %v1366, %v1367
  %v1369 = vsel %vm1235, %v978, 0.0
  %v1370 = vsel %vm1235, %v981, 0.0
  %v1371 = vadd.f32 %v1369, %v1370
  %v1372 = vsel %vm1235, %v986, 0.0
  %v1373 = vadd.f32 %v1371, %v1372
  %v1374 = vsel %vm1235, %v989, 0.0
  %v1375 = vadd.f32 %v1373, %v1374
  %v1376 = vsel %vm1235, %v994, 0.0
  %v1377 = vadd.f32 %v1375, %v1376
  %v1378 = vsel %vm1235, %v997, 0.0
  %v1379 = vadd.f32 %v1377, %v1378
  %v1380 = vsel %vm1235, %v1002, 0.0
  %v1381 = vadd.f32 %v1379, %v1380
  %v1382 = vsel %vm1235, %v1005, 0.0
  %v1383 = vadd.f32 %v1381, %v1382
  %v1384 = vsel %vm1235, %v1010, 0.0
  %v1385 = vadd.f32 %v1383, %v1384
  %v1386 = vsel %vm1235, %v1013, 0.0
  %v1387 = vadd.f32 %v1385, %v1386
  %v1388 = vsel %vm1235, %v1018, 0.0
  %v1389 = vadd.f32 %v1387, %v1388
  %v1390 = vsel %vm1235, %v1021, 0.0
  %v1391 = vadd.f32 %v1389, %v1390
  %v1392 = vsel %vm1235, %v1026, 0.0
  %v1393 = vadd.f32 %v1391, %v1392
  %v1394 = vsel %vm1235, %v1029, 0.0
  %v1395 = vadd.f32 %v1393, %v1394
  %v1396 = vsel %vm1235, %v1034, 0.0
  %v1397 = vadd.f32 %v1395, %v1396
  %v1398 = vsel %vm1235, %v1037, 0.0
  %v1399 = vadd.f32 %v1397, %v1398
  %v1400 = vsel %vm1235, %v1042, 0.0
  %v1401 = vadd.f32 %v1399, %v1400
  %v1402 = vsel %vm1235, %v1045, 0.0
  %v1403 = vadd.f32 %v1401, %v1402
  %v1404 = vsel %vm1235, %v1050, 0.0
  %v1405 = vadd.f32 %v1403, %v1404
  %v1406 = vsel %vm1235, %v1053, 0.0
  %v1407 = vadd.f32 %v1405, %v1406
  %v1408 = vsel %vm1235, %v1058, 0.0
  %v1409 = vadd.f32 %v1407, %v1408
  %v1410 = vsel %vm1235, %v1061, 0.0
  %v1411 = vadd.f32 %v1409, %v1410
  %v1412 = vsel %vm1235, %v1066, 0.0
  %v1413 = vadd.f32 %v1411, %v1412
  %v1414 = vsel %vm1235, %v1069, 0.0
  %v1415 = vadd.f32 %v1413, %v1414
  %v1416 = vsel %vm1235, %v1074, 0.0
  %v1417 = vadd.f32 %v1415, %v1416
  %v1418 = vsel %vm1235, %v1077, 0.0
  %v1419 = vadd.f32 %v1417, %v1418
  %v1420 = vsel %vm1235, %v1082, 0.0
  %v1421 = vadd.f32 %v1419, %v1420
  %v1422 = vsel %vm1235, %v1085, 0.0
  %v1423 = vadd.f32 %v1421, %v1422
  %v1424 = vsel %vm1235, %v1090, 0.0
  %v1425 = vadd.f32 %v1423, %v1424
  %v1426 = vsel %vm1235, %v1093, 0.0
  %v1427 = vadd.f32 %v1425, %v1426
  %v1428 = vsel %vm1235, %v1098, 0.0
  %v1429 = vadd.f32 %v1427, %v1428
  %v1430 = vsel %vm1235, %v1101, 0.0
  %v1431 = vadd.f32 %v1429, %v1430
  %v1432 = vsel %vm1235, %v1106, 0.0
  %v1433 = vadd.f32 %v1431, %v1432
  %v1434 = vsel %vm1235, %v1109, 0.0
  %v1435 = vadd.f32 %v1433, %v1434
  %v1436 = vsel %vm1235, %v1114, 0.0
  %v1437 = vadd.f32 %v1435, %v1436
  %v1438 = vsel %vm1235, %v1117, 0.0
  %v1439 = vadd.f32 %v1437, %v1438
  %v1440 = vsel %vm1235, %v1122, 0.0
  %v1441 = vadd.f32 %v1439, %v1440
  %v1442 = vsel %vm1235, %v1125, 0.0
  %v1443 = vadd.f32 %v1441, %v1442
  %v1444 = vsel %vm1235, %v1130, 0.0
  %v1445 = vadd.f32 %v1443, %v1444
  %v1446 = vsel %vm1235, %v1133, 0.0
  %v1447 = vadd.f32 %v1445, %v1446
  %v1448 = vsel %vm1235, %v1138, 0.0
  %v1449 = vadd.f32 %v1447, %v1448
  %v1450 = vsel %vm1235, %v1141, 0.0
  %v1451 = vadd.f32 %v1449, %v1450
  %v1452 = vsel %vm1235, %v1146, 0.0
  %v1453 = vadd.f32 %v1451, %v1452
  %v1454 = vsel %vm1235, %v1149, 0.0
  %v1455 = vadd.f32 %v1453, %v1454
  %v1456 = vsel %vm1235, %v1154, 0.0
  %v1457 = vadd.f32 %v1455, %v1456
  %v1458 = vsel %vm1235, %v1157, 0.0
  %v1459 = vadd.f32 %v1457, %v1458
  %v1460 = vsel %vm1235, %v1162, 0.0
  %v1461 = vadd.f32 %v1459, %v1460
  %v1462 = vsel %vm1235, %v1165, 0.0
  %v1463 = vadd.f32 %v1461, %v1462
  %v1464 = vsel %vm1235, %v1170, 0.0
  %v1465 = vadd.f32 %v1463, %v1464
  %v1466 = vsel %vm1235, %v1173, 0.0
  %v1467 = vadd.f32 %v1465, %v1466
  %v1468 = vsel %vm1235, %v1178, 0.0
  %v1469 = vadd.f32 %v1467, %v1468
  %v1470 = vsel %vm1235, %v1181, 0.0
  %v1471 = vadd.f32 %v1469, %v1470
  %v1472 = vsel %vm1235, %v1186, 0.0
  %v1473 = vadd.f32 %v1471, %v1472
  %v1474 = vsel %vm1235, %v1189, 0.0
  %v1475 = vadd.f32 %v1473, %v1474
  %v1476 = vsel %vm1235, %v1194, 0.0
  %v1477 = vadd.f32 %v1475, %v1476
  %v1478 = vsel %vm1235, %v1197, 0.0
  %v1479 = vadd.f32 %v1477, %v1478
  %v1480 = vsel %vm1235, %v1202, 0.0
  %v1481 = vadd.f32 %v1479, %v1480
  %v1482 = vsel %vm1235, %v1205, 0.0
  %v1483 = vadd.f32 %v1481, %v1482
  %v1484 = vsel %vm1235, %v1210, 0.0
  %v1485 = vadd.f32 %v1483, %v1484
  %v1486 = vsel %vm1235, %v1213, 0.0
  %v1487 = vadd.f32 %v1485, %v1486
  %v1488 = vsel %vm1235, %v1218, 0.0
  %v1489 = vadd.f32 %v1487, %v1488
  %v1490 = vsel %vm1235, %v1221, 0.0
  %v1491 = vadd.f32 %v1489, %v1490
  %v1492 = vsel %vm1235, %v1226, 0.0
  %v1493 = vadd.f32 %v1491, %v1492
  %v1494 = vsel %vm1235, %v1229, 0.0
  %v1495 = vadd.f32 %v1493, %v1494
  %v1496 = vrot.slane %v1495, 4
  %v1497 = vadd.f32 %v1495, %v1496
  %v1498 = vrot.slane %v1497, 2
  %v1499 = vadd.f32 %v1497, %v1498
  %v1500 = vrot.slane %v1499, 1
  %v1501 = vadd.f32 %v1499, %v1500
  %v1502 = vrcp.pop 512.0
  %v1503 = vmul.f32 %v1368, %v1502
  %v1504 = vmul.f32 %v1501, %v1502
  %v1505 = vmul.f32 %v722, %v722
  %v1506 = vmul.f32 %v725, %v725
  %v1507 = vmul.f32 %v730, %v730
  %v1508 = vmul.f32 %v733, %v733
  %v1509 = vmul.f32 %v738, %v738
  %v1510 = vmul.f32 %v741, %v741
  %v1511 = vmul.f32 %v746, %v746
  %v1512 = vmul.f32 %v749, %v749
  %v1513 = vmul.f32 %v754, %v754
  %v1514 = vmul.f32 %v757, %v757
  %v1515 = vmul.f32 %v762, %v762
  %v1516 = vmul.f32 %v765, %v765
  %v1517 = vmul.f32 %v770, %v770
  %v1518 = vmul.f32 %v773, %v773
  %v1519 = vmul.f32 %v778, %v778
  %v1520 = vmul.f32 %v781, %v781
  %v1521 = vmul.f32 %v786, %v786
  %v1522 = vmul.f32 %v789, %v789
  %v1523 = vmul.f32 %v794, %v794
  %v1524 = vmul.f32 %v797, %v797
  %v1525 = vmul.f32 %v802, %v802
  %v1526 = vmul.f32 %v805, %v805
  %v1527 = vmul.f32 %v810, %v810
  %v1528 = vmul.f32 %v813, %v813
  %v1529 = vmul.f32 %v818, %v818
  %v1530 = vmul.f32 %v821, %v821
  %v1531 = vmul.f32 %v826, %v826
  %v1532 = vmul.f32 %v829, %v829
  %v1533 = vmul.f32 %v834, %v834
  %v1534 = vmul.f32 %v837, %v837
  %v1535 = vmul.f32 %v842, %v842
  %v1536 = vmul.f32 %v845, %v845
  %v1537 = vmul.f32 %v850, %v850
  %v1538 = vmul.f32 %v853, %v853
  %v1539 = vmul.f32 %v858, %v858
  %v1540 = vmul.f32 %v861, %v861
  %v1541 = vmul.f32 %v866, %v866
  %v1542 = vmul.f32 %v869, %v869
  %v1543 = vmul.f32 %v874, %v874
  %v1544 = vmul.f32 %v877, %v877
  %v1545 = vmul.f32 %v882, %v882
  %v1546 = vmul.f32 %v885, %v885
  %v1547 = vmul.f32 %v890, %v890
  %v1548 = vmul.f32 %v893, %v893
  %v1549 = vmul.f32 %v898, %v898
  %v1550 = vmul.f32 %v901, %v901
  %v1551 = vmul.f32 %v906, %v906
  %v1552 = vmul.f32 %v909, %v909
  %v1553 = vmul.f32 %v914, %v914
  %v1554 = vmul.f32 %v917, %v917
  %v1555 = vmul.f32 %v922, %v922
  %v1556 = vmul.f32 %v925, %v925
  %v1557 = vmul.f32 %v930, %v930
  %v1558 = vmul.f32 %v933, %v933
  %v1559 = vmul.f32 %v938, %v938
  %v1560 = vmul.f32 %v941, %v941
  %v1561 = vmul.f32 %v946, %v946
  %v1562 = vmul.f32 %v949, %v949
  %v1563 = vmul.f32 %v954, %v954
  %v1564 = vmul.f32 %v957, %v957
  %v1565 = vmul.f32 %v962, %v962
  %v1566 = vmul.f32 %v965, %v965
  %v1567 = vmul.f32 %v970, %v970
  %v1568 = vmul.f32 %v973, %v973
  %v1569 = vmul.f32 %v978, %v978
  %v1570 = vmul.f32 %v981, %v981
  %v1571 = vmul.f32 %v986, %v986
  %v1572 = vmul.f32 %v989, %v989
  %v1573 = vmul.f32 %v994, %v994
  %v1574 = vmul.f32 %v997, %v997
  %v1575 = vmul.f32 %v1002, %v1002
  %v1576 = vmul.f32 %v1005, %v1005
  %v1577 = vmul.f32 %v1010, %v1010
  %v1578 = vmul.f32 %v1013, %v1013
  %v1579 = vmul.f32 %v1018, %v1018
  %v1580 = vmul.f32 %v1021, %v1021
  %v1581 = vmul.f32 %v1026, %v1026
  %v1582 = vmul.f32 %v1029, %v1029
  %v1583 = vmul.f32 %v1034, %v1034
  %v1584 = vmul.f32 %v1037, %v1037
  %v1585 = vmul.f32 %v1042, %v1042
  %v1586 = vmul.f32 %v1045, %v1045
  %v1587 = vmul.f32 %v1050, %v1050
  %v1588 = vmul.f32 %v1053, %v1053
  %v1589 = vmul.f32 %v1058, %v1058
  %v1590 = vmul.f32 %v1061, %v1061
  %v1591 = vmul.f32 %v1066, %v1066
  %v1592 = vmul.f32 %v1069, %v1069
  %v1593 = vmul.f32 %v1074, %v1074
  %v1594 = vmul.f32 %v1077, %v1077
  %v1595 = vmul.f32 %v1082, %v1082
  %v1596 = vmul.f32 %v1085, %v1085
  %v1597 = vmul.f32 %v1090, %v1090
  %v1598 = vmul.f32 %v1093, %v1093
  %v1599 = vmul.f32 %v1098, %v1098
  %v1600 = vmul.f32 %v1101, %v1101
  %v1601 = vmul.f32 %v1106, %v1106
  %v1602 = vmul.f32 %v1109, %v1109
  %v1603 = vmul.f32 %v1114, %v1114
  %v1604 = vmul.f32 %v1117, %v1117
  %v1605 = vmul.f32 %v1122, %v1122
  %v1606 = vmul.f32 %v1125, %v1125
  %v1607 = vmul.f32 %v1130, %v1130
  %v1608 = vmul.f32 %v1133, %v1133
  %v1609 = vmul.f32 %v1138, %v1138
  %v1610 = vmul.f32 %v1141, %v1141
  %v1611 = vmul.f32 %v1146, %v1146
  %v1612 = vmul.f32 %v1149, %v1149
  %v1613 = vmul.f32 %v1154, %v1154
  %v1614 = vmul.f32 %v1157, %v1157
  %v1615 = vmul.f32 %v1162, %v1162
  %v1616 = vmul.f32 %v1165, %v1165
  %v1617 = vmul.f32 %v1170, %v1170
  %v1618 = vmul.f32 %v1173, %v1173
  %v1619 = vmul.f32 %v1178, %v1178
  %v1620 = vmul.f32 %v1181, %v1181
  %v1621 = vmul.f32 %v1186, %v1186
  %v1622 = vmul.f32 %v1189, %v1189
  %v1623 = vmul.f32 %v1194, %v1194
  %v1624 = vmul.f32 %v1197, %v1197
  %v1625 = vmul.f32 %v1202, %v1202
  %v1626 = vmul.f32 %v1205, %v1205
  %v1627 = vmul.f32 %v1210, %v1210
  %v1628 = vmul.f32 %v1213, %v1213
  %v1629 = vmul.f32 %v1218, %v1218
  %v1630 = vmul.f32 %v1221, %v1221
  %v1631 = vmul.f32 %v1226, %v1226
  %v1632 = vmul.f32 %v1229, %v1229
  %v1633 = vsel %vm1235, %v1505, 0.0
  %v1634 = vsel %vm1235, %v1506, 0.0
  %v1635 = vadd.f32 %v1633, %v1634
  %v1636 = vsel %vm1235, %v1507, 0.0
  %v1637 = vadd.f32 %v1635, %v1636
  %v1638 = vsel %vm1235, %v1508, 0.0
  %v1639 = vadd.f32 %v1637, %v1638
  %v1640 = vsel %vm1235, %v1509, 0.0
  %v1641 = vadd.f32 %v1639, %v1640
  %v1642 = vsel %vm1235, %v1510, 0.0
  %v1643 = vadd.f32 %v1641, %v1642
  %v1644 = vsel %vm1235, %v1511, 0.0
  %v1645 = vadd.f32 %v1643, %v1644
  %v1646 = vsel %vm1235, %v1512, 0.0
  %v1647 = vadd.f32 %v1645, %v1646
  %v1648 = vsel %vm1235, %v1513, 0.0
  %v1649 = vadd.f32 %v1647, %v1648
  %v1650 = vsel %vm1235, %v1514, 0.0
  %v1651 = vadd.f32 %v1649, %v1650
  %v1652 = vsel %vm1235, %v1515, 0.0
  %v1653 = vadd.f32 %v1651, %v1652
  %v1654 = vsel %vm1235, %v1516, 0.0
  %v1655 = vadd.f32 %v1653, %v1654
  %v1656 = vsel %vm1235, %v1517, 0.0
  %v1657 = vadd.f32 %v1655, %v1656
  %v1658 = vsel %vm1235, %v1518, 0.0
  %v1659 = vadd.f32 %v1657, %v1658
  %v1660 = vsel %vm1235, %v1519, 0.0
  %v1661 = vadd.f32 %v1659, %v1660
  %v1662 = vsel %vm1235, %v1520, 0.0
  %v1663 = vadd.f32 %v1661, %v1662
  %v1664 = vsel %vm1235, %v1521, 0.0
  %v1665 = vadd.f32 %v1663, %v1664
  %v1666 = vsel %vm1235, %v1522, 0.0
  %v1667 = vadd.f32 %v1665, %v1666
  %v1668 = vsel %vm1235, %v1523, 0.0
  %v1669 = vadd.f32 %v1667, %v1668
  %v1670 = vsel %vm1235, %v1524, 0.0
  %v1671 = vadd.f32 %v1669, %v1670
  %v1672 = vsel %vm1235, %v1525, 0.0
  %v1673 = vadd.f32 %v1671, %v1672
  %v1674 = vsel %vm1235, %v1526, 0.0
  %v1675 = vadd.f32 %v1673, %v1674
  %v1676 = vsel %vm1235, %v1527, 0.0
  %v1677 = vadd.f32 %v1675, %v1676
  %v1678 = vsel %vm1235, %v1528, 0.0
  %v1679 = vadd.f32 %v1677, %v1678
  %v1680 = vsel %vm1235, %v1529, 0.0
  %v1681 = vadd.f32 %v1679, %v1680
  %v1682 = vsel %vm1235, %v1530, 0.0
  %v1683 = vadd.f32 %v1681, %v1682
  %v1684 = vsel %vm1235, %v1531, 0.0
  %v1685 = vadd.f32 %v1683, %v1684
  %v1686 = vsel %vm1235, %v1532, 0.0
  %v1687 = vadd.f32 %v1685, %v1686
  %v1688 = vsel %vm1235, %v1533, 0.0
  %v1689 = vadd.f32 %v1687, %v1688
  %v1690 = vsel %vm1235, %v1534, 0.0
  %v1691 = vadd.f32 %v1689, %v1690
  %v1692 = vsel %vm1235, %v1535, 0.0
  %v1693 = vadd.f32 %v1691, %v1692
  %v1694 = vsel %vm1235, %v1536, 0.0
  %v1695 = vadd.f32 %v1693, %v1694
  %v1696 = vsel %vm1235, %v1537, 0.0
  %v1697 = vadd.f32 %v1695, %v1696
  %v1698 = vsel %vm1235, %v1538, 0.0
  %v1699 = vadd.f32 %v1697, %v1698
  %v1700 = vsel %vm1235, %v1539, 0.0
  %v1701 = vadd.f32 %v1699, %v1700
  %v1702 = vsel %vm1235, %v1540, 0.0
  %v1703 = vadd.f32 %v1701, %v1702
  %v1704 = vsel %vm1235, %v1541, 0.0
  %v1705 = vadd.f32 %v1703, %v1704
  %v1706 = vsel %vm1235, %v1542, 0.0
  %v1707 = vadd.f32 %v1705, %v1706
  %v1708 = vsel %vm1235, %v1543, 0.0
  %v1709 = vadd.f32 %v1707, %v1708
  %v1710 = vsel %vm1235, %v1544, 0.0
  %v1711 = vadd.f32 %v1709, %v1710
  %v1712 = vsel %vm1235, %v1545, 0.0
  %v1713 = vadd.f32 %v1711, %v1712
  %v1714 = vsel %vm1235, %v1546, 0.0
  %v1715 = vadd.f32 %v1713, %v1714
  %v1716 = vsel %vm1235, %v1547, 0.0
  %v1717 = vadd.f32 %v1715, %v1716
  %v1718 = vsel %vm1235, %v1548, 0.0
  %v1719 = vadd.f32 %v1717, %v1718
  %v1720 = vsel %vm1235, %v1549, 0.0
  %v1721 = vadd.f32 %v1719, %v1720
  %v1722 = vsel %vm1235, %v1550, 0.0
  %v1723 = vadd.f32 %v1721, %v1722
  %v1724 = vsel %vm1235, %v1551, 0.0
  %v1725 = vadd.f32 %v1723, %v1724
  %v1726 = vsel %vm1235, %v1552, 0.0
  %v1727 = vadd.f32 %v1725, %v1726
  %v1728 = vsel %vm1235, %v1553, 0.0
  %v1729 = vadd.f32 %v1727, %v1728
  %v1730 = vsel %vm1235, %v1554, 0.0
  %v1731 = vadd.f32 %v1729, %v1730
  %v1732 = vsel %vm1235, %v1555, 0.0
  %v1733 = vadd.f32 %v1731, %v1732
  %v1734 = vsel %vm1235, %v1556, 0.0
  %v1735 = vadd.f32 %v1733, %v1734
  %v1736 = vsel %vm1235, %v1557, 0.0
  %v1737 = vadd.f32 %v1735, %v1736
  %v1738 = vsel %vm1235, %v1558, 0.0
  %v1739 = vadd.f32 %v1737, %v1738
  %v1740 = vsel %vm1235, %v1559, 0.0
  %v1741 = vadd.f32 %v1739, %v1740
  %v1742 = vsel %vm1235, %v1560, 0.0
  %v1743 = vadd.f32 %v1741, %v1742
  %v1744 = vsel %vm1235, %v1561, 0.0
  %v1745 = vadd.f32 %v1743, %v1744
  %v1746 = vsel %vm1235, %v1562, 0.0
  %v1747 = vadd.f32 %v1745, %v1746
  %v1748 = vsel %vm1235, %v1563, 0.0
  %v1749 = vadd.f32 %v1747, %v1748
  %v1750 = vsel %vm1235, %v1564, 0.0
  %v1751 = vadd.f32 %v1749, %v1750
  %v1752 = vsel %vm1235, %v1565, 0.0
  %v1753 = vadd.f32 %v1751, %v1752
  %v1754 = vsel %vm1235, %v1566, 0.0
  %v1755 = vadd.f32 %v1753, %v1754
  %v1756 = vsel %vm1235, %v1567, 0.0
  %v1757 = vadd.f32 %v1755, %v1756
  %v1758 = vsel %vm1235, %v1568, 0.0
  %v1759 = vadd.f32 %v1757, %v1758
  %v1760 = vrot.slane %v1759, 4
  %v1761 = vadd.f32 %v1759, %v1760
  %v1762 = vrot.slane %v1761, 2
  %v1763 = vadd.f32 %v1761, %v1762
  %v1764 = vrot.slane %v1763, 1
  %v1765 = vadd.f32 %v1763, %v1764
  %v1766 = vsel %vm1235, %v1569, 0.0
  %v1767 = vsel %vm1235, %v1570, 0.0
  %v1768 = vadd.f32 %v1766, %v1767
  %v1769 = vsel %vm1235, %v1571, 0.0
  %v1770 = vadd.f32 %v1768, %v1769
  %v1771 = vsel %vm1235, %v1572, 0.0
  %v1772 = vadd.f32 %v1770, %v1771
  %v1773 = vsel %vm1235, %v1573, 0.0
  %v1774 = vadd.f32 %v1772, %v1773
  %v1775 = vsel %vm1235, %v1574, 0.0
  %v1776 = vadd.f32 %v1774, %v1775
  %v1777 = vsel %vm1235, %v1575, 0.0
  %v1778 = vadd.f32 %v1776, %v1777
  %v1779 = vsel %vm1235, %v1576, 0.0
  %v1780 = vadd.f32 %v1778, %v1779
  %v1781 = vsel %vm1235, %v1577, 0.0
  %v1782 = vadd.f32 %v1780, %v1781
  %v1783 = vsel %vm1235, %v1578, 0.0
  %v1784 = vadd.f32 %v1782, %v1783
  %v1785 = vsel %vm1235, %v1579, 0.0
  %v1786 = vadd.f32 %v1784, %v1785
  %v1787 = vsel %vm1235, %v1580, 0.0
  %v1788 = vadd.f32 %v1786, %v1787
  %v1789 = vsel %vm1235, %v1581, 0.0
  %v1790 = vadd.f32 %v1788, %v1789
  %v1791 = vsel %vm1235, %v1582, 0.0
  %v1792 = vadd.f32 %v1790, %v1791
  %v1793 = vsel %vm1235, %v1583, 0.0
  %v1794 = vadd.f32 %v1792, %v1793
  %v1795 = vsel %vm1235, %v1584, 0.0
  %v1796 = vadd.f32 %v1794, %v1795
  %v1797 = vsel %vm1235, %v1585, 0.0
  %v1798 = vadd.f32 %v1796, %v1797
  %v1799 = vsel %vm1235, %v1586, 0.0
  %v1800 = vadd.f32 %v1798, %v1799
  %v1801 = vsel %vm1235, %v1587, 0.0
  %v1802 = vadd.f32 %v1800, %v1801
  %v1803 = vsel %vm1235, %v1588, 0.0
  %v1804 = vadd.f32 %v1802, %v1803
  %v1805 = vsel %vm1235, %v1589, 0.0
  %v1806 = vadd.f32 %v1804, %v1805
  %v1807 = vsel %vm1235, %v1590, 0.0
  %v1808 = vadd.f32 %v1806, %v1807
  %v1809 = vsel %vm1235, %v1591, 0.0
  %v1810 = vadd.f32 %v1808, %v1809
  %v1811 = vsel %vm1235, %v1592, 0.0
  %v1812 = vadd.f32 %v1810, %v1811
  %v1813 = vsel %vm1235, %v1593, 0.0
  %v1814 = vadd.f32 %v1812, %v1813
  %v1815 = vsel %vm1235, %v1594, 0.0
  %v1816 = vadd.f32 %v1814, %v1815
  %v1817 = vsel %vm1235, %v1595, 0.0
  %v1818 = vadd.f32 %v1816, %v1817
  %v1819 = vsel %vm1235, %v1596, 0.0
  %v1820 = vadd.f32 %v1818, %v1819
  %v1821 = vsel %vm1235, %v1597, 0.0
  %v1822 = vadd.f32 %v1820, %v1821
  %v1823 = vsel %vm1235, %v1598, 0.0
  %v1824 = vadd.f32 %v1822, %v1823
  %v1825 = vsel %vm1235, %v1599, 0.0
  %v1826 = vadd.f32 %v1824, %v1825
  %v1827 = vsel %vm1235, %v1600, 0.0
  %v1828 = vadd.f32 %v1826, %v1827
  %v1829 = vsel %vm1235, %v1601, 0.0
  %v1830 = vadd.f32 %v1828, %v1829
  %v1831 = vsel %vm1235, %v1602, 0.0
  %v1832 = vadd.f32 %v1830, %v1831
  %v1833 = vsel %vm1235, %v1603, 0.0
  %v1834 = vadd.f32 %v1832, %v1833
  %v1835 = vsel %vm1235, %v1604, 0.0
  %v1836 = vadd.f32 %v1834, %v1835
  %v1837 = vsel %vm1235, %v1605, 0.0
  %v1838 = vadd.f32 %v1836, %v1837
  %v1839 = vsel %vm1235, %v1606, 0.0
  %v1840 = vadd.f32 %v1838, %v1839
  %v1841 = vsel %vm1235, %v1607, 0.0
  %v1842 = vadd.f32 %v1840, %v1841
  %v1843 = vsel %vm1235, %v1608, 0.0
  %v1844 = vadd.f32 %v1842, %v1843
  %v1845 = vsel %vm1235, %v1609, 0.0
  %v1846 = vadd.f32 %v1844, %v1845
  %v1847 = vsel %vm1235, %v1610, 0.0
  %v1848 = vadd.f32 %v1846, %v1847
  %v1849 = vsel %vm1235, %v1611, 0.0
  %v1850 = vadd.f32 %v1848, %v1849
  %v1851 = vsel %vm1235, %v1612, 0.0
  %v1852 = vadd.f32 %v1850, %v1851
  %v1853 = vsel %vm1235, %v1613, 0.0
  %v1854 = vadd.f32 %v1852, %v1853
  %v1855 = vsel %vm1235, %v1614, 0.0
  %v1856 = vadd.f32 %v1854, %v1855
  %v1857 = vsel %vm1235, %v1615, 0.0
  %v1858 = vadd.f32 %v1856, %v1857
  %v1859 = vsel %vm1235, %v1616, 0.0
  %v1860 = vadd.f32 %v1858, %v1859
  %v1861 = vsel %vm1235, %v1617, 0.0
  %v1862 = vadd.f32 %v1860, %v1861
  %v1863 = vsel %vm1235, %v1618, 0.0
  %v1864 = vadd.f32 %v1862, %v1863
  %v1865 = vsel %vm1235, %v1619, 0.0
  %v1866 = vadd.f32 %v1864, %v1865
  %v1867 = vsel %vm1235, %v1620, 0.0
  %v1868 = vadd.f32 %v1866, %v1867
  %v1869 = vsel %vm1235, %v1621, 0.0
  %v1870 = vadd.f32 %v1868, %v1869
  %v1871 = vsel %vm1235, %v1622, 0.0
  %v1872 = vadd.f32 %v1870, %v1871
  %v1873 = vsel %vm1235, %v1623, 0.0
  %v1874 = vadd.f32 %v1872, %v1873
  %v1875 = vsel %vm1235, %v1624, 0.0
  %v1876 = vadd.f32 %v1874, %v1875
  %v1877 = vsel %vm1235, %v1625, 0.0
  %v1878 = vadd.f32 %v1876, %v1877
  %v1879 = vsel %vm1235, %v1626, 0.0
  %v1880 = vadd.f32 %v1878, %v1879
  %v1881 = vsel %vm1235, %v1627, 0.0
  %v1882 = vadd.f32 %v1880, %v1881
  %v1883 = vsel %vm1235, %v1628, 0.0
  %v1884 = vadd.f32 %v1882, %v1883
  %v1885 = vsel %vm1235, %v1629, 0.0
  %v1886 = vadd.f32 %v1884, %v1885
  %v1887 = vsel %vm1235, %v1630, 0.0
  %v1888 = vadd.f32 %v1886, %v1887
  %v1889 = vsel %vm1235, %v1631, 0.0
  %v1890 = vadd.f32 %v1888, %v1889
  %v1891 = vsel %vm1235, %v1632, 0.0
  %v1892 = vadd.f32 %v1890, %v1891
  %v1893 = vrot.slane %v1892, 4
  %v1894 = vadd.f32 %v1892, %v1893
  %v1895 = vrot.slane %v1894, 2
  %v1896 = vadd.f32 %v1894, %v1895
  %v1897 = vrot.slane %v1896, 1
  %v1898 = vadd.f32 %v1896, %v1897
  %v1899 = vmul.f32 %v1765, %v1502
  %v1900 = vmul.f32 %v1898, %v1502
  %v1901 = vlaneseq
  %v1902 = vshrl.u32 %v1901, 7
  %v1903 = vsub.s32 0, %v1902
  %v1904 = vrot.slane %v1232, %v1903
  %v1905 = vadd.f32 %v1503, %v1904
  %v1906 = vadd.f32 %v1504, %v1904
  %v1907 = vmul.f32 %v1232, 2.0
  %v1908 = vlaneseq
  %v1909 = vshrl.u32 %v1908, 7
  %v1910 = vsub.s32 0, %v1909
  %v1911 = vrot.slane %v1907, %v1910
  %vm1914 = vcmask 1041409
  %v1915 = vsel %vm1914, %v1504, %v1503
  %v1917 = vmul.f32 %v1911, %v1915
  %v1919 = vrot.slane %v1917, 1
  %v1922 = vadd.f32 %v1899, %v1917
  %v1923 = vadd.f32 %v1900, %v1919
  %v1924 = vmul.f32 %v1232, %v1232
  %v1925 = vlaneseq
  %v1926 = vshrl.u32 %v1925, 7
  %v1927 = vsub.s32 0, %v1926
  %v1928 = vrot.slane %v1924, %v1927
  %v1929 = vadd.f32 %v1922, %v1928
  %v1930 = vadd.f32 %v1923, %v1928
  %v1933 = vrot.slane %v1906, 7
  %v1934 = vsel %vm1914, %v1933, %v1905
  %v1935 = vsel %vm1235, %v1934, 0
  %1937 = vmatprep.subr.mxu0 0.0
  %1938 = vmatpush1.msra.mxu0 %v21
  %1939 = vmatprep.subr.mxu0 0.0
  %1940 = vmatpush1.msra.mxu0 %v22
  %1941 = vmatprep.subr.mxu0 0.0
  %1942 = vmatpush1.msra.mxu0 %v23
  %1943 = vmatprep.subr.mxu0 0.0
  %1944 = vmatpush1.msra.mxu0 %v24
  %1945 = vmatprep.subr.mxu0 0.0
  %1946 = vmatpush1.msra.mxu0 %v25
  %1947 = vmatprep.subr.mxu0 0.0
  %1948 = vmatpush1.msra.mxu0 %v26
  %1949 = vmatprep.subr.mxu0 0.0
  %1950 = vmatpush1.msra.mxu0 %v27
  %1951 = vmatprep.subr.mxu0 0.0
  %1952 = vmatpush1.msra.mxu0 %v28
  %1953 = vmatprep.subr.mxu0 0.0
  %1954 = vmatpush1.msra.mxu0 0.0
  %1955 = vmatprep.subr.mxu0 0.0
  %1956 = vmatpush1.msra.mxu0 0.0
  %1957 = vmatprep.subr.mxu0 0.0
  %1958 = vmatpush1.msra.mxu0 0.0
  %1959 = vmatprep.subr.mxu0 0.0
  %1960 = vmatpush1.msra.mxu0 0.0
  %1961 = vmatprep.subr.mxu0 0.0
  %1962 = vmatpush1.msra.mxu0 0.0
  %1963 = vmatprep.subr.mxu0 0.0
  %1964 = vmatpush1.msra.mxu0 0.0
  %1965 = vmatprep.subr.mxu0 0.0
  %1966 = vmatpush1.msra.mxu0 0.0
  %1967 = vmatprep.subr.mxu0 0.0
  %1968 = vmatpush1.msra.mxu0 0.0
  %1969 = vmatprep.subr.mxu0 0.0
  %1970 = vmatpush1.msra.mxu0 0.0
  %1971 = vmatprep.subr.mxu0 0.0
  %1972 = vmatpush1.msra.mxu0 0.0
  %1973 = vmatprep.subr.mxu0 0.0
  %1974 = vmatpush1.msra.mxu0 0.0
  %1975 = vmatprep.subr.mxu0 0.0
  %1976 = vmatpush1.msra.mxu0 0.0
  %1977 = vmatprep.subr.mxu0 0.0
  %1978 = vmatpush1.msra.mxu0 0.0
  %1979 = vmatprep.subr.mxu0 0.0
  %1980 = vmatpush1.msra.mxu0 0.0
  %1981 = vmatprep.subr.mxu0 0.0
  %1982 = vmatpush1.msra.mxu0 0.0
  %1983 = vmatprep.subr.mxu0 0.0
  %1984 = vmatpush1.msra.mxu0 0.0
  %1985 = vmatprep.subr.mxu0 0.0
  %1986 = vmatpush1.msra.mxu0 0.0
  %1987 = vmatprep.subr.mxu0 0.0
  %1988 = vmatpush1.msra.mxu0 0.0
  %1989 = vmatprep.subr.mxu0 0.0
  %1990 = vmatpush1.msra.mxu0 0.0
  %1991 = vmatprep.subr.mxu0 0.0
  %1992 = vmatpush1.msra.mxu0 0.0
  %1993 = vmatprep.subr.mxu0 0.0
  %1994 = vmatpush1.msra.mxu0 0.0
  %1995 = vmatprep.subr.mxu0 0.0
  %1996 = vmatpush1.msra.mxu0 0.0
  %1997 = vmatprep.subr.mxu0 0.0
  %1998 = vmatpush1.msra.mxu0 0.0
  %1999 = vmatprep.subr.mxu0 0.0
  %2000 = vmatpush1.msra.mxu0 0.0
  %2001 = vmatprep.mubr.f32.mxu0 0.0
  %2002 = vmatmul.mubr.f32.gmra.mrb[0].mxu0 %v1935
  %v2003 = vpop.f32.mrb[0].mxu0
  %v2004 = vadd.f32 0.0, %v2003
  %v2005 = vpop.f32.mrb[0].mxu0
  %2006 = vdwg.mxu0
  %v2009 = vrot.slane %v1930, 7
  %v2010 = vsel %vm1914, %v2009, %v1929
  %v2011 = vsel %vm1235, %v2010, 0
  %2013 = vmatprep.subr.mxu0 0.0
  %2014 = vmatpush1.msra.mxu0 %v21
  %2015 = vmatprep.subr.mxu0 0.0
  %2016 = vmatpush1.msra.mxu0 %v22
  %2017 = vmatprep.subr.mxu0 0.0
  %2018 = vmatpush1.msra.mxu0 %v23
  %2019 = vmatprep.subr.mxu0 0.0
  %2020 = vmatpush1.msra.mxu0 %v24
  %2021 = vmatprep.subr.mxu0 0.0
  %2022 = vmatpush1.msra.mxu0 %v25
  %2023 = vmatprep.subr.mxu0 0.0
  %2024 = vmatpush1.msra.mxu0 %v26
  %2025 = vmatprep.subr.mxu0 0.0
  %2026 = vmatpush1.msra.mxu0 %v27
  %2027 = vmatprep.subr.mxu0 0.0
  %2028 = vmatpush1.msra.mxu0 %v28
  %2029 = vmatprep.subr.mxu0 0.0
  %2030 = vmatpush1.msra.mxu0 0.0
  %2031 = vmatprep.subr.mxu0 0.0
  %2032 = vmatpush1.msra.mxu0 0.0
  %2033 = vmatprep.subr.mxu0 0.0
  %2034 = vmatpush1.msra.mxu0 0.0
  %2035 = vmatprep.subr.mxu0 0.0
  %2036 = vmatpush1.msra.mxu0 0.0
  %2037 = vmatprep.subr.mxu0 0.0
  %2038 = vmatpush1.msra.mxu0 0.0
  %2039 = vmatprep.subr.mxu0 0.0
  %2040 = vmatpush1.msra.mxu0 0.0
  %2041 = vmatprep.subr.mxu0 0.0
  %2042 = vmatpush1.msra.mxu0 0.0
  %2043 = vmatprep.subr.mxu0 0.0
  %2044 = vmatpush1.msra.mxu0 0.0
  %2045 = vmatprep.subr.mxu0 0.0
  %2046 = vmatpush1.msra.mxu0 0.0
  %2047 = vmatprep.subr.mxu0 0.0
  %2048 = vmatpush1.msra.mxu0 0.0
  %2049 = vmatprep.subr.mxu0 0.0
  %2050 = vmatpush1.msra.mxu0 0.0
  %2051 = vmatprep.subr.mxu0 0.0
  %2052 = vmatpush1.msra.mxu0 0.0
  %2053 = vmatprep.subr.mxu0 0.0
  %2054 = vmatpush1.msra.mxu0 0.0
  %2055 = vmatprep.subr.mxu0 0.0
  %2056 = vmatpush1.msra.mxu0 0.0
  %2057 = vmatprep.subr.mxu0 0.0
  %2058 = vmatpush1.msra.mxu0 0.0
  %2059 = vmatprep.subr.mxu0 0.0
  %2060 = vmatpush1.msra.mxu0 0.0
  %2061 = vmatprep.subr.mxu0 0.0
  %2062 = vmatpush1.msra.mxu0 0.0
  %2063 = vmatprep.subr.mxu0 0.0
  %2064 = vmatpush1.msra.mxu0 0.0
  %2065 = vmatprep.subr.mxu0 0.0
  %2066 = vmatpush1.msra.mxu0 0.0
  %2067 = vmatprep.subr.mxu0 0.0
  %2068 = vmatpush1.msra.mxu0 0.0
  %2069 = vmatprep.subr.mxu0 0.0
  %2070 = vmatpush1.msra.mxu0 0.0
  %2071 = vmatprep.subr.mxu0 0.0
  %2072 = vmatpush1.msra.mxu0 0.0
  %2073 = vmatprep.subr.mxu0 0.0
  %2074 = vmatpush1.msra.mxu0 0.0
  %2075 = vmatprep.subr.mxu0 0.0
  %2076 = vmatpush1.msra.mxu0 0.0
  %2077 = vmatprep.mubr.f32.mxu0 0.0
  %2078 = vmatmul.mubr.f32.gmra.mrb[0].mxu0 %v2011
  %v2079 = vpop.f32.mrb[0].mxu0
  %v2080 = vadd.f32 0.0, %v2079
  %v2081 = vpop.f32.mrb[0].mxu0
  %2082 = vdwg.mxu0
  %v2083 = vmul.f32 %v2004, %v2004
  %v2084 = vsub.f32 %v2080, %v2083
  %v2085 = vmax.f32 %v2084, 0.0
  %v2086 = vadd.f32 %v2085, 1e-05
  %v2087 = vrsqrt.pop %v2086
  %v2088 = vlaneseq
  %v2089 = vshrl.u32 %v2088, 7
  %v2090 = vsub.s32 0, %v2089
  %v2091 = vrot.slane %v1233, %v2090
  %v2092 = vmul.f32 %v2087, %v2091
  %v2093 = vsub.f32 %v1904, %v2004
  %v2094 = vmul.f32 %v2093, %v2092
  %v2095 = vlaneseq
  %v2096 = vshrl.u32 %v2095, 7
  %v2097 = vsub.s32 0, %v2096
  %v2098 = vrot.slane %v1234, %v2097
  %v2099 = vadd.f32 %v2094, %v2098
  %v2102 = vunpack.c.l.s4 1966171168
  %v2103 = vunpack.c.0.s8 %v2102
  %v2104 = vlaneseq
  %v2105 = vshrl.u32 %v2104, 7
  %v2106 = vsub.s32 %v2103, %v2105
  %v2107 = vrot.slane %v2092, %v2106
  %v2108 = vcombine.high %v2107, %v2107
  %v2110 = vunpack.c.l.s4 1966171168
  %v2111 = vunpack.c.0.s8 %v2110
  %v2112 = vlaneseq
  %v2113 = vshrl.u32 %v2112, 7
  %v2114 = vsub.s32 %v2111, %v2113
  %v2115 = vrot.slane %v2107, %v2114
  %v2117 = vunpack.c.l.s4 1966171168
  %v2118 = vunpack.c.0.s8 %v2117
  %v2119 = vlaneseq
  %v2120 = vshrl.u32 %v2119, 7
  %v2121 = vsub.s32 %v2118, %v2120
  %v2122 = vrot.slane %v2108, %v2121
  %v2123 = vlaneseq
  %v2124 = vshrl.u32 %v2123, 7
  %v2125 = vsub.s32 0, %v2124
  %v2126 = vrot.slane %v2115, %v2125
  %v2127 = vlaneseq
  %v2128 = vshrl.u32 %v2127, 7
  %v2129 = vsub.s32 0, %v2128
  %v2130 = vrot.slane %v2122, %v2129
  %v2133 = vmul.f32 %v722, %v2126
  %v2134 = vmul.f32 %v725, %v2126
  %v2135 = vmul.f32 %v730, %v2126
  %v2136 = vmul.f32 %v733, %v2126
  %v2137 = vmul.f32 %v738, %v2126
  %v2138 = vmul.f32 %v741, %v2126
  %v2139 = vmul.f32 %v746, %v2126
  %v2140 = vmul.f32 %v749, %v2126
  %v2141 = vmul.f32 %v754, %v2126
  %v2142 = vmul.f32 %v757, %v2126
  %v2143 = vmul.f32 %v762, %v2126
  %v2144 = vmul.f32 %v765, %v2126
  %v2145 = vmul.f32 %v770, %v2126
  %v2146 = vmul.f32 %v773, %v2126
  %v2147 = vmul.f32 %v778, %v2126
  %v2148 = vmul.f32 %v781, %v2126
  %v2149 = vmul.f32 %v786, %v2126
  %v2150 = vmul.f32 %v789, %v2126
  %v2151 = vmul.f32 %v794, %v2126
  %v2152 = vmul.f32 %v797, %v2126
  %v2153 = vmul.f32 %v802, %v2126
  %v2154 = vmul.f32 %v805, %v2126
  %v2155 = vmul.f32 %v810, %v2126
  %v2156 = vmul.f32 %v813, %v2126
  %v2157 = vmul.f32 %v818, %v2126
  %v2158 = vmul.f32 %v821, %v2126
  %v2159 = vmul.f32 %v826, %v2126
  %v2160 = vmul.f32 %v829, %v2126
  %v2161 = vmul.f32 %v834, %v2126
  %v2162 = vmul.f32 %v837, %v2126
  %v2163 = vmul.f32 %v842, %v2126
  %v2164 = vmul.f32 %v845, %v2126
  %v2165 = vmul.f32 %v850, %v2126
  %v2166 = vmul.f32 %v853, %v2126
  %v2167 = vmul.f32 %v858, %v2126
  %v2168 = vmul.f32 %v861, %v2126
  %v2169 = vmul.f32 %v866, %v2126
  %v2170 = vmul.f32 %v869, %v2126
  %v2171 = vmul.f32 %v874, %v2126
  %v2172 = vmul.f32 %v877, %v2126
  %v2173 = vmul.f32 %v882, %v2126
  %v2174 = vmul.f32 %v885, %v2126
  %v2175 = vmul.f32 %v890, %v2126
  %v2176 = vmul.f32 %v893, %v2126
  %v2177 = vmul.f32 %v898, %v2126
  %v2178 = vmul.f32 %v901, %v2126
  %v2179 = vmul.f32 %v906, %v2126
  %v2180 = vmul.f32 %v909, %v2126
  %v2181 = vmul.f32 %v914, %v2126
  %v2182 = vmul.f32 %v917, %v2126
  %v2183 = vmul.f32 %v922, %v2126
  %v2184 = vmul.f32 %v925, %v2126
  %v2185 = vmul.f32 %v930, %v2126
  %v2186 = vmul.f32 %v933, %v2126
  %v2187 = vmul.f32 %v938, %v2126
  %v2188 = vmul.f32 %v941, %v2126
  %v2189 = vmul.f32 %v946, %v2126
  %v2190 = vmul.f32 %v949, %v2126
  %v2191 = vmul.f32 %v954, %v2126
  %v2192 = vmul.f32 %v957, %v2126
  %v2193 = vmul.f32 %v962, %v2126
  %v2194 = vmul.f32 %v965, %v2126
  %v2195 = vmul.f32 %v970, %v2126
  %v2196 = vmul.f32 %v973, %v2126
  %v2197 = vmul.f32 %v978, %v2130
  %v2198 = vmul.f32 %v981, %v2130
  %v2199 = vmul.f32 %v986, %v2130
  %v2200 = vmul.f32 %v989, %v2130
  %v2201 = vmul.f32 %v994, %v2130
  %v2202 = vmul.f32 %v997, %v2130
  %v2203 = vmul.f32 %v1002, %v2130
  %v2204 = vmul.f32 %v1005, %v2130
  %v2205 = vmul.f32 %v1010, %v2130
  %v2206 = vmul.f32 %v1013, %v2130
  %v2207 = vmul.f32 %v1018, %v2130
  %v2208 = vmul.f32 %v1021, %v2130
  %v2209 = vmul.f32 %v1026, %v2130
  %v2210 = vmul.f32 %v1029, %v2130
  %v2211 = vmul.f32 %v1034, %v2130
  %v2212 = vmul.f32 %v1037, %v2130
  %v2213 = vmul.f32 %v1042, %v2130
  %v2214 = vmul.f32 %v1045, %v2130
  %v2215 = vmul.f32 %v1050, %v2130
  %v2216 = vmul.f32 %v1053, %v2130
  %v2217 = vmul.f32 %v1058, %v2130
  %v2218 = vmul.f32 %v1061, %v2130
  %v2219 = vmul.f32 %v1066, %v2130
  %v2220 = vmul.f32 %v1069, %v2130
  %v2221 = vmul.f32 %v1074, %v2130
  %v2222 = vmul.f32 %v1077, %v2130
  %v2223 = vmul.f32 %v1082, %v2130
  %v2224 = vmul.f32 %v1085, %v2130
  %v2225 = vmul.f32 %v1090, %v2130
  %v2226 = vmul.f32 %v1093, %v2130
  %v2227 = vmul.f32 %v1098, %v2130
  %v2228 = vmul.f32 %v1101, %v2130
  %v2229 = vmul.f32 %v1106, %v2130
  %v2230 = vmul.f32 %v1109, %v2130
  %v2231 = vmul.f32 %v1114, %v2130
  %v2232 = vmul.f32 %v1117, %v2130
  %v2233 = vmul.f32 %v1122, %v2130
  %v2234 = vmul.f32 %v1125, %v2130
  %v2235 = vmul.f32 %v1130, %v2130
  %v2236 = vmul.f32 %v1133, %v2130
  %v2237 = vmul.f32 %v1138, %v2130
  %v2238 = vmul.f32 %v1141, %v2130
  %v2239 = vmul.f32 %v1146, %v2130
  %v2240 = vmul.f32 %v1149, %v2130
  %v2241 = vmul.f32 %v1154, %v2130
  %v2242 = vmul.f32 %v1157, %v2130
  %v2243 = vmul.f32 %v1162, %v2130
  %v2244 = vmul.f32 %v1165, %v2130
  %v2245 = vmul.f32 %v1170, %v2130
  %v2246 = vmul.f32 %v1173, %v2130
  %v2247 = vmul.f32 %v1178, %v2130
  %v2248 = vmul.f32 %v1181, %v2130
  %v2249 = vmul.f32 %v1186, %v2130
  %v2250 = vmul.f32 %v1189, %v2130
  %v2251 = vmul.f32 %v1194, %v2130
  %v2252 = vmul.f32 %v1197, %v2130
  %v2253 = vmul.f32 %v1202, %v2130
  %v2254 = vmul.f32 %v1205, %v2130
  %v2255 = vmul.f32 %v1210, %v2130
  %v2256 = vmul.f32 %v1213, %v2130
  %v2257 = vmul.f32 %v1218, %v2130
  %v2258 = vmul.f32 %v1221, %v2130
  %v2259 = vmul.f32 %v1226, %v2130
  %v2260 = vmul.f32 %v1229, %v2130
  %v2263 = vunpack.c.l.s4 1966171168
  %v2264 = vunpack.c.0.s8 %v2263
  %v2265 = vlaneseq
  %v2266 = vshrl.u32 %v2265, 7
  %v2267 = vsub.s32 %v2264, %v2266
  %v2268 = vrot.slane %v2099, %v2267
  %v2269 = vcombine.high %v2268, %v2268
  %v2271 = vunpack.c.l.s4 1966171168
  %v2272 = vunpack.c.0.s8 %v2271
  %v2273 = vlaneseq
  %v2274 = vshrl.u32 %v2273, 7
  %v2275 = vsub.s32 %v2272, %v2274
  %v2276 = vrot.slane %v2268, %v2275
  %v2278 = vunpack.c.l.s4 1966171168
  %v2279 = vunpack.c.0.s8 %v2278
  %v2280 = vlaneseq
  %v2281 = vshrl.u32 %v2280, 7
  %v2282 = vsub.s32 %v2279, %v2281
  %v2283 = vrot.slane %v2269, %v2282
  %v2284 = vlaneseq
  %v2285 = vshrl.u32 %v2284, 7
  %v2286 = vsub.s32 0, %v2285
  %v2287 = vrot.slane %v2276, %v2286
  %v2288 = vlaneseq
  %v2289 = vshrl.u32 %v2288, 7
  %v2290 = vsub.s32 0, %v2289
  %v2291 = vrot.slane %v2283, %v2290
  %v2294 = vadd.f32 %v2133, %v2287
  %v2295 = vadd.f32 %v2134, %v2287
  %v2296 = vadd.f32 %v2135, %v2287
  %v2297 = vadd.f32 %v2136, %v2287
  %v2298 = vadd.f32 %v2137, %v2287
  %v2299 = vadd.f32 %v2138, %v2287
  %v2300 = vadd.f32 %v2139, %v2287
  %v2301 = vadd.f32 %v2140, %v2287
  %v2302 = vadd.f32 %v2141, %v2287
  %v2303 = vadd.f32 %v2142, %v2287
  %v2304 = vadd.f32 %v2143, %v2287
  %v2305 = vadd.f32 %v2144, %v2287
  %v2306 = vadd.f32 %v2145, %v2287
  %v2307 = vadd.f32 %v2146, %v2287
  %v2308 = vadd.f32 %v2147, %v2287
  %v2309 = vadd.f32 %v2148, %v2287
  %v2310 = vadd.f32 %v2149, %v2287
  %v2311 = vadd.f32 %v2150, %v2287
  %v2312 = vadd.f32 %v2151, %v2287
  %v2313 = vadd.f32 %v2152, %v2287
  %v2314 = vadd.f32 %v2153, %v2287
  %v2315 = vadd.f32 %v2154, %v2287
  %v2316 = vadd.f32 %v2155, %v2287
  %v2317 = vadd.f32 %v2156, %v2287
  %v2318 = vadd.f32 %v2157, %v2287
  %v2319 = vadd.f32 %v2158, %v2287
  %v2320 = vadd.f32 %v2159, %v2287
  %v2321 = vadd.f32 %v2160, %v2287
  %v2322 = vadd.f32 %v2161, %v2287
  %v2323 = vadd.f32 %v2162, %v2287
  %v2324 = vadd.f32 %v2163, %v2287
  %v2325 = vadd.f32 %v2164, %v2287
  %v2326 = vadd.f32 %v2165, %v2287
  %v2327 = vadd.f32 %v2166, %v2287
  %v2328 = vadd.f32 %v2167, %v2287
  %v2329 = vadd.f32 %v2168, %v2287
  %v2330 = vadd.f32 %v2169, %v2287
  %v2331 = vadd.f32 %v2170, %v2287
  %v2332 = vadd.f32 %v2171, %v2287
  %v2333 = vadd.f32 %v2172, %v2287
  %v2334 = vadd.f32 %v2173, %v2287
  %v2335 = vadd.f32 %v2174, %v2287
  %v2336 = vadd.f32 %v2175, %v2287
  %v2337 = vadd.f32 %v2176, %v2287
  %v2338 = vadd.f32 %v2177, %v2287
  %v2339 = vadd.f32 %v2178, %v2287
  %v2340 = vadd.f32 %v2179, %v2287
  %v2341 = vadd.f32 %v2180, %v2287
  %v2342 = vadd.f32 %v2181, %v2287
  %v2343 = vadd.f32 %v2182, %v2287
  %v2344 = vadd.f32 %v2183, %v2287
  %v2345 = vadd.f32 %v2184, %v2287
  %v2346 = vadd.f32 %v2185, %v2287
  %v2347 = vadd.f32 %v2186, %v2287
  %v2348 = vadd.f32 %v2187, %v2287
  %v2349 = vadd.f32 %v2188, %v2287
  %v2350 = vadd.f32 %v2189, %v2287
  %v2351 = vadd.f32 %v2190, %v2287
  %v2352 = vadd.f32 %v2191, %v2287
  %v2353 = vadd.f32 %v2192, %v2287
  %v2354 = vadd.f32 %v2193, %v2287
  %v2355 = vadd.f32 %v2194, %v2287
  %v2356 = vadd.f32 %v2195, %v2287
  %v2357 = vadd.f32 %v2196, %v2287
  %v2358 = vadd.f32 %v2197, %v2291
  %v2359 = vadd.f32 %v2198, %v2291
  %v2360 = vadd.f32 %v2199, %v2291
  %v2361 = vadd.f32 %v2200, %v2291
  %v2362 = vadd.f32 %v2201, %v2291
  %v2363 = vadd.f32 %v2202, %v2291
  %v2364 = vadd.f32 %v2203, %v2291
  %v2365 = vadd.f32 %v2204, %v2291
  %v2366 = vadd.f32 %v2205, %v2291
  %v2367 = vadd.f32 %v2206, %v2291
  %v2368 = vadd.f32 %v2207, %v2291
  %v2369 = vadd.f32 %v2208, %v2291
  %v2370 = vadd.f32 %v2209, %v2291
  %v2371 = vadd.f32 %v2210, %v2291
  %v2372 = vadd.f32 %v2211, %v2291
  %v2373 = vadd.f32 %v2212, %v2291
  %v2374 = vadd.f32 %v2213, %v2291
  %v2375 = vadd.f32 %v2214, %v2291
  %v2376 = vadd.f32 %v2215, %v2291
  %v2377 = vadd.f32 %v2216, %v2291
  %v2378 = vadd.f32 %v2217, %v2291
  %v2379 = vadd.f32 %v2218, %v2291
  %v2380 = vadd.f32 %v2219, %v2291
  %v2381 = vadd.f32 %v2220, %v2291
  %v2382 = vadd.f32 %v2221, %v2291
  %v2383 = vadd.f32 %v2222, %v2291
  %v2384 = vadd.f32 %v2223, %v2291
  %v2385 = vadd.f32 %v2224, %v2291
  %v2386 = vadd.f32 %v2225, %v2291
  %v2387 = vadd.f32 %v2226, %v2291
  %v2388 = vadd.f32 %v2227, %v2291
  %v2389 = vadd.f32 %v2228, %v2291
  %v2390 = vadd.f32 %v2229, %v2291
  %v2391 = vadd.f32 %v2230, %v2291
  %v2392 = vadd.f32 %v2231, %v2291
  %v2393 = vadd.f32 %v2232, %v2291
  %v2394 = vadd.f32 %v2233, %v2291
  %v2395 = vadd.f32 %v2234, %v2291
  %v2396 = vadd.f32 %v2235, %v2291
  %v2397 = vadd.f32 %v2236, %v2291
  %v2398 = vadd.f32 %v2237, %v2291
  %v2399 = vadd.f32 %v2238, %v2291
  %v2400 = vadd.f32 %v2239, %v2291
  %v2401 = vadd.f32 %v2240, %v2291
  %v2402 = vadd.f32 %v2241, %v2291
  %v2403 = vadd.f32 %v2242, %v2291
  %v2404 = vadd.f32 %v2243, %v2291
  %v2405 = vadd.f32 %v2244, %v2291
  %v2406 = vadd.f32 %v2245, %v2291
  %v2407 = vadd.f32 %v2246, %v2291
  %v2408 = vadd.f32 %v2247, %v2291
  %v2409 = vadd.f32 %v2248, %v2291
  %v2410 = vadd.f32 %v2249, %v2291
  %v2411 = vadd.f32 %v2250, %v2291
  %v2412 = vadd.f32 %v2251, %v2291
  %v2413 = vadd.f32 %v2252, %v2291
  %v2414 = vadd.f32 %v2253, %v2291
  %v2415 = vadd.f32 %v2254, %v2291
  %v2416 = vadd.f32 %v2255, %v2291
  %v2417 = vadd.f32 %v2256, %v2291
  %v2418 = vadd.f32 %v2257, %v2291
  %v2419 = vadd.f32 %v2258, %v2291
  %v2420 = vadd.f32 %v2259, %v2291
  %v2421 = vadd.f32 %v2260, %v2291
  %v2422 = vmax.f32 %v2294, 0.0
  %v2423 = vmax.f32 %v2295, 0.0
  %v2424 = vmax.f32 %v2296, 0.0
  %v2425 = vmax.f32 %v2297, 0.0
  %v2426 = vmax.f32 %v2298, 0.0
  %v2427 = vmax.f32 %v2299, 0.0
  %v2428 = vmax.f32 %v2300, 0.0
  %v2429 = vmax.f32 %v2301, 0.0
  %v2430 = vmax.f32 %v2302, 0.0
  %v2431 = vmax.f32 %v2303, 0.0
  %v2432 = vmax.f32 %v2304, 0.0
  %v2433 = vmax.f32 %v2305, 0.0
  %v2434 = vmax.f32 %v2306, 0.0
  %v2435 = vmax.f32 %v2307, 0.0
  %v2436 = vmax.f32 %v2308, 0.0
  %v2437 = vmax.f32 %v2309, 0.0
  %v2438 = vmax.f32 %v2310, 0.0
  %v2439 = vmax.f32 %v2311, 0.0
  %v2440 = vmax.f32 %v2312, 0.0
  %v2441 = vmax.f32 %v2313, 0.0
  %v2442 = vmax.f32 %v2314, 0.0
  %v2443 = vmax.f32 %v2315, 0.0
  %v2444 = vmax.f32 %v2316, 0.0
  %v2445 = vmax.f32 %v2317, 0.0
  %v2446 = vmax.f32 %v2318, 0.0
  %v2447 = vmax.f32 %v2319, 0.0
  %v2448 = vmax.f32 %v2320, 0.0
  %v2449 = vmax.f32 %v2321, 0.0
  %v2450 = vmax.f32 %v2322, 0.0
  %v2451 = vmax.f32 %v2323, 0.0
  %v2452 = vmax.f32 %v2324, 0.0
  %v2453 = vmax.f32 %v2325, 0.0
  %v2454 = vmax.f32 %v2326, 0.0
  %v2455 = vmax.f32 %v2327, 0.0
  %v2456 = vmax.f32 %v2328, 0.0
  %v2457 = vmax.f32 %v2329, 0.0
  %v2458 = vmax.f32 %v2330, 0.0
  %v2459 = vmax.f32 %v2331, 0.0
  %v2460 = vmax.f32 %v2332, 0.0
  %v2461 = vmax.f32 %v2333, 0.0
  %v2462 = vmax.f32 %v2334, 0.0
  %v2463 = vmax.f32 %v2335, 0.0
  %v2464 = vmax.f32 %v2336, 0.0
  %v2465 = vmax.f32 %v2337, 0.0
  %v2466 = vmax.f32 %v2338, 0.0
  %v2467 = vmax.f32 %v2339, 0.0
  %v2468 = vmax.f32 %v2340, 0.0
  %v2469 = vmax.f32 %v2341, 0.0
  %v2470 = vmax.f32 %v2342, 0.0
  %v2471 = vmax.f32 %v2343, 0.0
  %v2472 = vmax.f32 %v2344, 0.0
  %v2473 = vmax.f32 %v2345, 0.0
  %v2474 = vmax.f32 %v2346, 0.0
  %v2475 = vmax.f32 %v2347, 0.0
  %v2476 = vmax.f32 %v2348, 0.0
  %v2477 = vmax.f32 %v2349, 0.0
  %v2478 = vmax.f32 %v2350, 0.0
  %v2479 = vmax.f32 %v2351, 0.0
  %v2480 = vmax.f32 %v2352, 0.0
  %v2481 = vmax.f32 %v2353, 0.0
  %v2482 = vmax.f32 %v2354, 0.0
  %v2483 = vmax.f32 %v2355, 0.0
  %v2484 = vmax.f32 %v2356, 0.0
  %v2485 = vmax.f32 %v2357, 0.0
  %v2486 = vmax.f32 %v2358, 0.0
  %v2487 = vmax.f32 %v2359, 0.0
  %v2488 = vmax.f32 %v2360, 0.0
  %v2489 = vmax.f32 %v2361, 0.0
  %v2490 = vmax.f32 %v2362, 0.0
  %v2491 = vmax.f32 %v2363, 0.0
  %v2492 = vmax.f32 %v2364, 0.0
  %v2493 = vmax.f32 %v2365, 0.0
  %v2494 = vmax.f32 %v2366, 0.0
  %v2495 = vmax.f32 %v2367, 0.0
  %v2496 = vmax.f32 %v2368, 0.0
  %v2497 = vmax.f32 %v2369, 0.0
  %v2498 = vmax.f32 %v2370, 0.0
  %v2499 = vmax.f32 %v2371, 0.0
  %v2500 = vmax.f32 %v2372, 0.0
  %v2501 = vmax.f32 %v2373, 0.0
  %v2502 = vmax.f32 %v2374, 0.0
  %v2503 = vmax.f32 %v2375, 0.0
  %v2504 = vmax.f32 %v2376, 0.0
  %v2505 = vmax.f32 %v2377, 0.0
  %v2506 = vmax.f32 %v2378, 0.0
  %v2507 = vmax.f32 %v2379, 0.0
  %v2508 = vmax.f32 %v2380, 0.0
  %v2509 = vmax.f32 %v2381, 0.0
  %v2510 = vmax.f32 %v2382, 0.0
  %v2511 = vmax.f32 %v2383, 0.0
  %v2512 = vmax.f32 %v2384, 0.0
  %v2513 = vmax.f32 %v2385, 0.0
  %v2514 = vmax.f32 %v2386, 0.0
  %v2515 = vmax.f32 %v2387, 0.0
  %v2516 = vmax.f32 %v2388, 0.0
  %v2517 = vmax.f32 %v2389, 0.0
  %v2518 = vmax.f32 %v2390, 0.0
  %v2519 = vmax.f32 %v2391, 0.0
  %v2520 = vmax.f32 %v2392, 0.0
  %v2521 = vmax.f32 %v2393, 0.0
  %v2522 = vmax.f32 %v2394, 0.0
  %v2523 = vmax.f32 %v2395, 0.0
  %v2524 = vmax.f32 %v2396, 0.0
  %v2525 = vmax.f32 %v2397, 0.0
  %v2526 = vmax.f32 %v2398, 0.0
  %v2527 = vmax.f32 %v2399, 0.0
  %v2528 = vmax.f32 %v2400, 0.0
  %v2529 = vmax.f32 %v2401, 0.0
  %v2530 = vmax.f32 %v2402, 0.0
  %v2531 = vmax.f32 %v2403, 0.0
  %v2532 = vmax.f32 %v2404, 0.0
  %v2533 = vmax.f32 %v2405, 0.0
  %v2534 = vmax.f32 %v2406, 0.0
  %v2535 = vmax.f32 %v2407, 0.0
  %v2536 = vmax.f32 %v2408, 0.0
  %v2537 = vmax.f32 %v2409, 0.0
  %v2538 = vmax.f32 %v2410, 0.0
  %v2539 = vmax.f32 %v2411, 0.0
  %v2540 = vmax.f32 %v2412, 0.0
  %v2541 = vmax.f32 %v2413, 0.0
  %v2542 = vmax.f32 %v2414, 0.0
  %v2543 = vmax.f32 %v2415, 0.0
  %v2544 = vmax.f32 %v2416, 0.0
  %v2545 = vmax.f32 %v2417, 0.0
  %v2546 = vmax.f32 %v2418, 0.0
  %v2547 = vmax.f32 %v2419, 0.0
  %v2548 = vmax.f32 %v2420, 0.0
  %v2549 = vmax.f32 %v2421, 0.0
  %v2550 = vpack.c.bf16 %v2423, %v2422
  %v2551 = vpack.c.bf16 %v2425, %v2424
  %v2552 = vpack.c.bf16 %v2427, %v2426
  %v2553 = vpack.c.bf16 %v2429, %v2428
  %v2554 = vpack.c.bf16 %v2431, %v2430
  %v2555 = vpack.c.bf16 %v2433, %v2432
  %v2556 = vpack.c.bf16 %v2435, %v2434
  %v2557 = vpack.c.bf16 %v2437, %v2436
  %v2558 = vpack.c.bf16 %v2439, %v2438
  %v2559 = vpack.c.bf16 %v2441, %v2440
  %v2560 = vpack.c.bf16 %v2443, %v2442
  %v2561 = vpack.c.bf16 %v2445, %v2444
  %v2562 = vpack.c.bf16 %v2447, %v2446
  %v2563 = vpack.c.bf16 %v2449, %v2448
  %v2564 = vpack.c.bf16 %v2451, %v2450
  %v2565 = vpack.c.bf16 %v2453, %v2452
  %v2566 = vpack.c.bf16 %v2455, %v2454
  %v2567 = vpack.c.bf16 %v2457, %v2456
  %v2568 = vpack.c.bf16 %v2459, %v2458
  %v2569 = vpack.c.bf16 %v2461, %v2460
  %v2570 = vpack.c.bf16 %v2463, %v2462
  %v2571 = vpack.c.bf16 %v2465, %v2464
  %v2572 = vpack.c.bf16 %v2467, %v2466
  %v2573 = vpack.c.bf16 %v2469, %v2468
  %v2574 = vpack.c.bf16 %v2471, %v2470
  %v2575 = vpack.c.bf16 %v2473, %v2472
  %v2576 = vpack.c.bf16 %v2475, %v2474
  %v2577 = vpack.c.bf16 %v2477, %v2476
  %v2578 = vpack.c.bf16 %v2479, %v2478
  %v2579 = vpack.c.bf16 %v2481, %v2480
  %v2580 = vpack.c.bf16 %v2483, %v2482
  %v2581 = vpack.c.bf16 %v2485, %v2484
  %v2582 = vpack.c.bf16 %v2487, %v2486
  %v2583 = vpack.c.bf16 %v2489, %v2488
  %v2584 = vpack.c.bf16 %v2491, %v2490
  %v2585 = vpack.c.bf16 %v2493, %v2492
  %v2586 = vpack.c.bf16 %v2495, %v2494
  %v2587 = vpack.c.bf16 %v2497, %v2496
  %v2588 = vpack.c.bf16 %v2499, %v2498
  %v2589 = vpack.c.bf16 %v2501, %v2500
  %v2590 = vpack.c.bf16 %v2503, %v2502
  %v2591 = vpack.c.bf16 %v2505, %v2504
  %v2592 = vpack.c.bf16 %v2507, %v2506
  %v2593 = vpack.c.bf16 %v2509, %v2508
  %v2594 = vpack.c.bf16 %v2511, %v2510
  %v2595 = vpack.c.bf16 %v2513, %v2512
  %v2596 = vpack.c.bf16 %v2515, %v2514
  %v2597 = vpack.c.bf16 %v2517, %v2516
  %v2598 = vpack.c.bf16 %v2519, %v2518
  %v2599 = vpack.c.bf16 %v2521, %v2520
  %v2600 = vpack.c.bf16 %v2523, %v2522
  %v2601 = vpack.c.bf16 %v2525, %v2524
  %v2602 = vpack.c.bf16 %v2527, %v2526
  %v2603 = vpack.c.bf16 %v2529, %v2528
  %v2604 = vpack.c.bf16 %v2531, %v2530
  %v2605 = vpack.c.bf16 %v2533, %v2532
  %v2606 = vpack.c.bf16 %v2535, %v2534
  %v2607 = vpack.c.bf16 %v2537, %v2536
  %v2608 = vpack.c.bf16 %v2539, %v2538
  %v2609 = vpack.c.bf16 %v2541, %v2540
  %v2610 = vpack.c.bf16 %v2543, %v2542
  %v2611 = vpack.c.bf16 %v2545, %v2544
  %v2612 = vpack.c.bf16 %v2547, %v2546
  %v2613 = vpack.c.bf16 %v2549, %v2548
  %v2614 = vld [vmem:[%s2] sm:$0xf]
  %v2615 = vld [vmem:[%s2 + $0x4] sm:$0xf]
  %v2616 = vld [vmem:[%s2 + $0x8] sm:$0xf]
  %v2617 = vld [vmem:[%s2 + $0xc] sm:$0xf]
  %v2618 = vld [vmem:[%s2 + $0x10] sm:$0xf]
  %v2619 = vld [vmem:[%s2 + $0x14] sm:$0xf]
  %v2620 = vld [vmem:[%s2 + $0x18] sm:$0xf]
  %v2621 = vld [vmem:[%s2 + $0x1c] sm:$0xf]
  %v2630 = vunpack.c.l.b16 %v2614
  %v2631 = vunpack.c.l.b16 %v2615
  %v2632 = vunpack.c.l.b16 %v2616
  %v2633 = vunpack.c.l.b16 %v2617
  %v2634 = vunpack.c.l.b16 %v2618
  %v2635 = vunpack.c.l.b16 %v2619
  %v2636 = vunpack.c.l.b16 %v2620
  %v2637 = vunpack.c.l.b16 %v2621
  %v2638 = vpack.c.b16 %v2631, %v2630
  %v2639 = vpack.c.b16 %v2633, %v2632
  %v2640 = vpack.c.b16 %v2635, %v2634
  %v2641 = vpack.c.b16 %v2637, %v2636
  %v2647 = vsel %vm1235, %v2550, 0
  %v2650 = vsel %vm1235, %v2551, 0
  %v2653 = vsel %vm1235, %v2552, 0
  %v2656 = vsel %vm1235, %v2553, 0
  %v2659 = vsel %vm1235, %v2554, 0
  %v2662 = vsel %vm1235, %v2555, 0
  %v2665 = vsel %vm1235, %v2556, 0
  %v2668 = vsel %vm1235, %v2557, 0
  %v2671 = vsel %vm1235, %v2558, 0
  %v2674 = vsel %vm1235, %v2559, 0
  %v2677 = vsel %vm1235, %v2560, 0
  %v2680 = vsel %vm1235, %v2561, 0
  %v2683 = vsel %vm1235, %v2562, 0
  %v2686 = vsel %vm1235, %v2563, 0
  %v2689 = vsel %vm1235, %v2564, 0
  %v2692 = vsel %vm1235, %v2565, 0
  %v2695 = vsel %vm1235, %v2566, 0
  %v2698 = vsel %vm1235, %v2567, 0
  %v2701 = vsel %vm1235, %v2568, 0
  %v2704 = vsel %vm1235, %v2569, 0
  %v2707 = vsel %vm1235, %v2570, 0
  %v2710 = vsel %vm1235, %v2571, 0
  %v2713 = vsel %vm1235, %v2572, 0
  %v2716 = vsel %vm1235, %v2573, 0
  %v2719 = vsel %vm1235, %v2574, 0
  %v2722 = vsel %vm1235, %v2575, 0
  %v2725 = vsel %vm1235, %v2576, 0
  %v2728 = vsel %vm1235, %v2577, 0
  %v2731 = vsel %vm1235, %v2578, 0
  %v2734 = vsel %vm1235, %v2579, 0
  %v2737 = vsel %vm1235, %v2580, 0
  %v2740 = vsel %vm1235, %v2581, 0
  %v2743 = vsel %vm1235, %v2582, 0
  %v2746 = vsel %vm1235, %v2583, 0
  %v2749 = vsel %vm1235, %v2584, 0
  %v2752 = vsel %vm1235, %v2585, 0
  %v2755 = vsel %vm1235, %v2586, 0
  %v2758 = vsel %vm1235, %v2587, 0
  %v2761 = vsel %vm1235, %v2588, 0
  %v2764 = vsel %vm1235, %v2589, 0
  %v2767 = vsel %vm1235, %v2590, 0
  %v2770 = vsel %vm1235, %v2591, 0
  %v2773 = vsel %vm1235, %v2592, 0
  %v2776 = vsel %vm1235, %v2593, 0
  %v2779 = vsel %vm1235, %v2594, 0
  %v2782 = vsel %vm1235, %v2595, 0
  %v2785 = vsel %vm1235, %v2596, 0
  %v2788 = vsel %vm1235, %v2597, 0
  %v2791 = vsel %vm1235, %v2598, 0
  %v2794 = vsel %vm1235, %v2599, 0
  %v2797 = vsel %vm1235, %v2600, 0
  %v2800 = vsel %vm1235, %v2601, 0
  %v2803 = vsel %vm1235, %v2602, 0
  %v2806 = vsel %vm1235, %v2603, 0
  %v2809 = vsel %vm1235, %v2604, 0
  %v2812 = vsel %vm1235, %v2605, 0
  %v2815 = vsel %vm1235, %v2606, 0
  %v2818 = vsel %vm1235, %v2607, 0
  %v2821 = vsel %vm1235, %v2608, 0
  %v2824 = vsel %vm1235, %v2609, 0
  %v2827 = vsel %vm1235, %v2610, 0
  %v2830 = vsel %vm1235, %v2611, 0
  %v2833 = vsel %vm1235, %v2612, 0
  %v2836 = vsel %vm1235, %v2613, 0
  %2838 = vmatprep.subr.bf16.mxu0 0
  %2839 = vmatpush1.bf16.msra.mxu0 %v2638
  %2840 = vmatprep.subr.bf16.mxu0 0
  %2841 = vmatpush1.bf16.msra.mxu0 %v2639
  %2842 = vmatprep.subr.bf16.mxu0 0
  %2843 = vmatpush1.bf16.msra.mxu0 %v2640
  %2844 = vmatprep.subr.bf16.mxu0 0
  %2845 = vmatpush1.bf16.msra.mxu0 %v2641
  %2846 = vmatprep.subr.bf16.mxu0 0
  %2847 = vmatpush1.bf16.msra.mxu0 0
  %2848 = vmatprep.subr.bf16.mxu0 0
  %2849 = vmatpush1.bf16.msra.mxu0 0
  %2850 = vmatprep.subr.bf16.mxu0 0
  %2851 = vmatpush1.bf16.msra.mxu0 0
  %2852 = vmatprep.subr.bf16.mxu0 0
  %2853 = vmatpush1.bf16.msra.mxu0 0
  %2854 = vmatprep.subr.bf16.mxu0 0
  %2855 = vmatpush1.bf16.msra.mxu0 0
  %2856 = vmatprep.subr.bf16.mxu0 0
  %2857 = vmatpush1.bf16.msra.mxu0 0
  %2858 = vmatprep.subr.bf16.mxu0 0
  %2859 = vmatpush1.bf16.msra.mxu0 0
  %2860 = vmatprep.subr.bf16.mxu0 0
  %2861 = vmatpush1.bf16.msra.mxu0 0
  %2862 = vmatprep.subr.bf16.mxu0 0
  %2863 = vmatpush1.bf16.msra.mxu0 0
  %2864 = vmatprep.subr.bf16.mxu0 0
  %2865 = vmatpush1.bf16.msra.mxu0 0
  %2866 = vmatprep.subr.bf16.mxu0 0
  %2867 = vmatpush1.bf16.msra.mxu0 0
  %2868 = vmatprep.subr.bf16.mxu0 0
  %2869 = vmatpush1.bf16.msra.mxu0 0
  %2870 = vmatprep.mubr.bf16.mxu0 0
  %2871 = vmatmul.mubr.bf16.gmra.mrb[0].mxu0 %v2647
  %v2872 = vpop.f32.mrb[0].mxu0
  %v2873 = vadd.f32 0.0, %v2872
  %v2874 = vpop.f32.mrb[0].mxu0
  %v2875 = vpop.f32.mrb[0].mxu0
  %v2876 = vadd.f32 0.0, %v2875
  %v2877 = vpop.f32.mrb[0].mxu0
  %2878 = vmatprep.mubr.bf16.mxu0 0
  %2879 = vmatmul.mubr.bf16.gmra.mrb[0].mxu0 %v2650
  %v2880 = vpop.f32.mrb[0].mxu0
  %v2881 = vadd.f32 0.0, %v2880
  %v2882 = vpop.f32.mrb[0].mxu0
  %v2883 = vpop.f32.mrb[0].mxu0
  %v2884 = vadd.f32 0.0, %v2883
  %v2885 = vpop.f32.mrb[0].mxu0
  %2886 = vmatprep.mubr.bf16.mxu0 0
  %2887 = vmatmul.mubr.bf16.gmra.mrb[0].mxu0 %v2653
  %v2888 = vpop.f32.mrb[0].mxu0
  %v2889 = vadd.f32 0.0, %v2888
  %v2890 = vpop.f32.mrb[0].mxu0
  %v2891 = vpop.f32.mrb[0].mxu0
  %v2892 = vadd.f32 0.0, %v2891
  %v2893 = vpop.f32.mrb[0].mxu0
  %2894 = vmatprep.mubr.bf16.mxu0 0
  %2895 = vmatmul.mubr.bf16.gmra.mrb[0].mxu0 %v2656
  %v2896 = vpop.f32.mrb[0].mxu0
  %v2897 = vadd.f32 0.0, %v2896
  %v2898 = vpop.f32.mrb[0].mxu0
  %v2899 = vpop.f32.mrb[0].mxu0
  %v2900 = vadd.f32 0.0, %v2899
  %v2901 = vpop.f32.mrb[0].mxu0
  %2902 = vmatprep.mubr.bf16.mxu0 0
  %2903 = vmatmul.mubr.bf16.gmra.mrb[0].mxu0 %v2659
  %v2904 = vpop.f32.mrb[0].mxu0
  %v2905 = vadd.f32 0.0, %v2904
  %v2906 = vpop.f32.mrb[0].mxu0
  %v2907 = vpop.f32.mrb[0].mxu0
  %v2908 = vadd.f32 0.0, %v2907
  %v2909 = vpop.f32.mrb[0].mxu0
  %2910 = vmatprep.mubr.bf16.mxu0 0
  %2911 = vmatmul.mubr.bf16.gmra.mrb[0].mxu0 %v2662
  %v2912 = vpop.f32.mrb[0].mxu0
  %v2913 = vadd.f32 0.0, %v2912
  %v2914 = vpop.f32.mrb[0].mxu0
  %v2915 = vpop.f32.mrb[0].mxu0
  %v2916 = vadd.f32 0.0, %v2915
  %v2917 = vpop.f32.mrb[0].mxu0
  %2918 = vmatprep.mubr.bf16.mxu0 0
  %2919 = vmatmul.mubr.bf16.gmra.mrb[0].mxu0 %v2665
  %v2920 = vpop.f32.mrb[0].mxu0
  %v2921 = vadd.f32 0.0, %v2920
  %v2922 = vpop.f32.mrb[0].mxu0
  %v2923 = vpop.f32.mrb[0].mxu0
  %v2924 = vadd.f32 0.0, %v2923
  %v2925 = vpop.f32.mrb[0].mxu0
  %2926 = vmatprep.mubr.bf16.mxu0 0
  %2927 = vmatmul.mubr.bf16.gmra.mrb[0].mxu0 %v2668
  %v2928 = vpop.f32.mrb[0].mxu0
  %v2929 = vadd.f32 0.0, %v2928
  %v2930 = vpop.f32.mrb[0].mxu0
  %v2931 = vpop.f32.mrb[0].mxu0
  %v2932 = vadd.f32 0.0, %v2931
  %v2933 = vpop.f32.mrb[0].mxu0
  %2934 = vmatprep.mubr.bf16.mxu0 0
  %2935 = vmatmul.mubr.bf16.gmra.mrb[0].mxu0 %v2671
  %v2936 = vpop.f32.mrb[0].mxu0
  %v2937 = vadd.f32 0.0, %v2936
  %v2938 = vpop.f32.mrb[0].mxu0
  %v2939 = vpop.f32.mrb[0].mxu0
  %v2940 = vadd.f32 0.0, %v2939
  %v2941 = vpop.f32.mrb[0].mxu0
  %2942 = vmatprep.mubr.bf16.mxu0 0
  %2943 = vmatmul.mubr.bf16.gmra.mrb[0].mxu0 %v2674
  %v2944 = vpop.f32.mrb[0].mxu0
  %v2945 = vadd.f32 0.0, %v2944
  %v2946 = vpop.f32.mrb[0].mxu0
  %v2947 = vpop.f32.mrb[0].mxu0
  %v2948 = vadd.f32 0.0, %v2947
  %v2949 = vpop.f32.mrb[0].mxu0
  %2950 = vmatprep.mubr.bf16.mxu0 0
  %2951 = vmatmul.mubr.bf16.gmra.mrb[0].mxu0 %v2677
  %v2952 = vpop.f32.mrb[0].mxu0
  %v2953 = vadd.f32 0.0, %v2952
  %v2954 = vpop.f32.mrb[0].mxu0
  %v2955 = vpop.f32.mrb[0].mxu0
  %v2956 = vadd.f32 0.0, %v2955
  %v2957 = vpop.f32.mrb[0].mxu0
  %2958 = vmatprep.mubr.bf16.mxu0 0
  %2959 = vmatmul.mubr.bf16.gmra.mrb[0].mxu0 %v2680
  %v2960 = vpop.f32.mrb[0].mxu0
  %v2961 = vadd.f32 0.0, %v2960
  %v2962 = vpop.f32.mrb[0].mxu0
  %v2963 = vpop.f32.mrb[0].mxu0
  %v2964 = vadd.f32 0.0, %v2963
  %v2965 = vpop.f32.mrb[0].mxu0
  %2966 = vmatprep.mubr.bf16.mxu0 0
  %2967 = vmatmul.mubr.bf16.gmra.mrb[0].mxu0 %v2683
  %v2968 = vpop.f32.mrb[0].mxu0
  %v2969 = vadd.f32 0.0, %v2968
  %v2970 = vpop.f32.mrb[0].mxu0
  %v2971 = vpop.f32.mrb[0].mxu0
  %v2972 = vadd.f32 0.0, %v2971
  %v2973 = vpop.f32.mrb[0].mxu0
  %2974 = vmatprep.mubr.bf16.mxu0 0
  %2975 = vmatmul.mubr.bf16.gmra.mrb[0].mxu0 %v2686
  %v2976 = vpop.f32.mrb[0].mxu0
  %v2977 = vadd.f32 0.0, %v2976
  %v2978 = vpop.f32.mrb[0].mxu0
  %v2979 = vpop.f32.mrb[0].mxu0
  %v2980 = vadd.f32 0.0, %v2979
  %v2981 = vpop.f32.mrb[0].mxu0
  %2982 = vmatprep.mubr.bf16.mxu0 0
  %2983 = vmatmul.mubr.bf16.gmra.mrb[0].mxu0 %v2689
  %v2984 = vpop.f32.mrb[0].mxu0
  %v2985 = vadd.f32 0.0, %v2984
  %v2986 = vpop.f32.mrb[0].mxu0
  %v2987 = vpop.f32.mrb[0].mxu0
  %v2988 = vadd.f32 0.0, %v2987
  %v2989 = vpop.f32.mrb[0].mxu0
  %2990 = vmatprep.mubr.bf16.mxu0 0
  %2991 = vmatmul.mubr.bf16.gmra.mrb[0].mxu0 %v2692
  %v2992 = vpop.f32.mrb[0].mxu0
  %v2993 = vadd.f32 0.0, %v2992
  %v2994 = vpop.f32.mrb[0].mxu0
  %v2995 = vpop.f32.mrb[0].mxu0
  %v2996 = vadd.f32 0.0, %v2995
  %v2997 = vpop.f32.mrb[0].mxu0
  %2998 = vmatprep.mubr.bf16.mxu0 0
  %2999 = vmatmul.mubr.bf16.gmra.mrb[0].mxu0 %v2695
  %v3000 = vpop.f32.mrb[0].mxu0
  %v3001 = vadd.f32 0.0, %v3000
  %v3002 = vpop.f32.mrb[0].mxu0
  %v3003 = vpop.f32.mrb[0].mxu0
  %v3004 = vadd.f32 0.0, %v3003
  %v3005 = vpop.f32.mrb[0].mxu0
  %3006 = vmatprep.mubr.bf16.mxu0 0
  %3007 = vmatmul.mubr.bf16.gmra.mrb[0].mxu0 %v2698
  %v3008 = vpop.f32.mrb[0].mxu0
  %v3009 = vadd.f32 0.0, %v3008
  %v3010 = vpop.f32.mrb[0].mxu0
  %v3011 = vpop.f32.mrb[0].mxu0
  %v3012 = vadd.f32 0.0, %v3011
  %v3013 = vpop.f32.mrb[0].mxu0
  %3014 = vmatprep.mubr.bf16.mxu0 0
  %3015 = vmatmul.mubr.bf16.gmra.mrb[0].mxu0 %v2701
  %v3016 = vpop.f32.mrb[0].mxu0
  %v3017 = vadd.f32 0.0, %v3016
  %v3018 = vpop.f32.mrb[0].mxu0
  %v3019 = vpop.f32.mrb[0].mxu0
  %v3020 = vadd.f32 0.0, %v3019
  %v3021 = vpop.f32.mrb[0].mxu0
  %3022 = vmatprep.mubr.bf16.mxu0 0
  %3023 = vmatmul.mubr.bf16.gmra.mrb[0].mxu0 %v2704
  %v3024 = vpop.f32.mrb[0].mxu0
  %v3025 = vadd.f32 0.0, %v3024
  %v3026 = vpop.f32.mrb[0].mxu0
  %v3027 = vpop.f32.mrb[0].mxu0
  %v3028 = vadd.f32 0.0, %v3027
  %v3029 = vpop.f32.mrb[0].mxu0
  %3030 = vmatprep.mubr.bf16.mxu0 0
  %3031 = vmatmul.mubr.bf16.gmra.mrb[0].mxu0 %v2707
  %v3032 = vpop.f32.mrb[0].mxu0
  %v3033 = vadd.f32 0.0, %v3032
  %v3034 = vpop.f32.mrb[0].mxu0
  %v3035 = vpop.f32.mrb[0].mxu0
  %v3036 = vadd.f32 0.0, %v3035
  %v3037 = vpop.f32.mrb[0].mxu0
  %3038 = vmatprep.mubr.bf16.mxu0 0
  %3039 = vmatmul.mubr.bf16.gmra.mrb[0].mxu0 %v2710
  %v3040 = vpop.f32.mrb[0].mxu0
  %v3041 = vadd.f32 0.0, %v3040
  %v3042 = vpop.f32.mrb[0].mxu0
  %v3043 = vpop.f32.mrb[0].mxu0
  %v3044 = vadd.f32 0.0, %v3043
  %v3045 = vpop.f32.mrb[0].mxu0
  %3046 = vmatprep.mubr.bf16.mxu0 0
  %3047 = vmatmul.mubr.bf16.gmra.mrb[0].mxu0 %v2713
  %v3048 = vpop.f32.mrb[0].mxu0
  %v3049 = vadd.f32 0.0, %v3048
  %v3050 = vpop.f32.mrb[0].mxu0
  %v3051 = vpop.f32.mrb[0].mxu0
  %v3052 = vadd.f32 0.0, %v3051
  %v3053 = vpop.f32.mrb[0].mxu0
  %3054 = vmatprep.mubr.bf16.mxu0 0
  %3055 = vmatmul.mubr.bf16.gmra.mrb[0].mxu0 %v2716
  %v3056 = vpop.f32.mrb[0].mxu0
  %v3057 = vadd.f32 0.0, %v3056
  %v3058 = vpop.f32.mrb[0].mxu0
  %v3059 = vpop.f32.mrb[0].mxu0
  %v3060 = vadd.f32 0.0, %v3059
  %v3061 = vpop.f32.mrb[0].mxu0
  %3062 = vmatprep.mubr.bf16.mxu0 0
  %3063 = vmatmul.mubr.bf16.gmra.mrb[0].mxu0 %v2719
  %v3064 = vpop.f32.mrb[0].mxu0
  %v3065 = vadd.f32 0.0, %v3064
  %v3066 = vpop.f32.mrb[0].mxu0
  %v3067 = vpop.f32.mrb[0].mxu0
  %v3068 = vadd.f32 0.0, %v3067
  %v3069 = vpop.f32.mrb[0].mxu0
  %3070 = vmatprep.mubr.bf16.mxu0 0
  %3071 = vmatmul.mubr.bf16.gmra.mrb[0].mxu0 %v2722
  %v3072 = vpop.f32.mrb[0].mxu0
  %v3073 = vadd.f32 0.0, %v3072
  %v3074 = vpop.f32.mrb[0].mxu0
  %v3075 = vpop.f32.mrb[0].mxu0
  %v3076 = vadd.f32 0.0, %v3075
  %v3077 = vpop.f32.mrb[0].mxu0
  %3078 = vmatprep.mubr.bf16.mxu0 0
  %3079 = vmatmul.mubr.bf16.gmra.mrb[0].mxu0 %v2725
  %v3080 = vpop.f32.mrb[0].mxu0
  %v3081 = vadd.f32 0.0, %v3080
  %v3082 = vpop.f32.mrb[0].mxu0
  %v3083 = vpop.f32.mrb[0].mxu0
  %v3084 = vadd.f32 0.0, %v3083
  %v3085 = vpop.f32.mrb[0].mxu0
  %3086 = vmatprep.mubr.bf16.mxu0 0
  %3087 = vmatmul.mubr.bf16.gmra.mrb[0].mxu0 %v2728
  %v3088 = vpop.f32.mrb[0].mxu0
  %v3089 = vadd.f32 0.0, %v3088
  %v3090 = vpop.f32.mrb[0].mxu0
  %v3091 = vpop.f32.mrb[0].mxu0
  %v3092 = vadd.f32 0.0, %v3091
  %v3093 = vpop.f32.mrb[0].mxu0
  %3094 = vmatprep.mubr.bf16.mxu0 0
  %3095 = vmatmul.mubr.bf16.gmra.mrb[0].mxu0 %v2731
  %v3096 = vpop.f32.mrb[0].mxu0
  %v3097 = vadd.f32 0.0, %v3096
  %v3098 = vpop.f32.mrb[0].mxu0
  %v3099 = vpop.f32.mrb[0].mxu0
  %v3100 = vadd.f32 0.0, %v3099
  %v3101 = vpop.f32.mrb[0].mxu0
  %3102 = vmatprep.mubr.bf16.mxu0 0
  %3103 = vmatmul.mubr.bf16.gmra.mrb[0].mxu0 %v2734
  %v3104 = vpop.f32.mrb[0].mxu0
  %v3105 = vadd.f32 0.0, %v3104
  %v3106 = vpop.f32.mrb[0].mxu0
  %v3107 = vpop.f32.mrb[0].mxu0
  %v3108 = vadd.f32 0.0, %v3107
  %v3109 = vpop.f32.mrb[0].mxu0
  %3110 = vmatprep.mubr.bf16.mxu0 0
  %3111 = vmatmul.mubr.bf16.gmra.mrb[0].mxu0 %v2737
  %v3112 = vpop.f32.mrb[0].mxu0
  %v3113 = vadd.f32 0.0, %v3112
  %v3114 = vpop.f32.mrb[0].mxu0
  %v3115 = vpop.f32.mrb[0].mxu0
  %v3116 = vadd.f32 0.0, %v3115
  %v3117 = vpop.f32.mrb[0].mxu0
  %3118 = vmatprep.mubr.bf16.mxu0 0
  %3119 = vmatmul.mubr.bf16.gmra.mrb[0].mxu0 %v2740
  %v3120 = vpop.f32.mrb[0].mxu0
  %v3121 = vadd.f32 0.0, %v3120
  %v3122 = vpop.f32.mrb[0].mxu0
  %v3123 = vpop.f32.mrb[0].mxu0
  %v3124 = vadd.f32 0.0, %v3123
  %v3125 = vpop.f32.mrb[0].mxu0
  %3126 = vmatprep.mubr.bf16.mxu0 0
  %3127 = vmatmul.mubr.bf16.gmra.mrb[0].mxu0 %v2743
  %v3128 = vpop.f32.mrb[0].mxu0
  %v3129 = vadd.f32 0.0, %v3128
  %v3130 = vpop.f32.mrb[0].mxu0
  %v3131 = vpop.f32.mrb[0].mxu0
  %v3132 = vadd.f32 0.0, %v3131
  %v3133 = vpop.f32.mrb[0].mxu0
  %3134 = vmatprep.mubr.bf16.mxu0 0
  %3135 = vmatmul.mubr.bf16.gmra.mrb[0].mxu0 %v2746
  %v3136 = vpop.f32.mrb[0].mxu0
  %v3137 = vadd.f32 0.0, %v3136
  %v3138 = vpop.f32.mrb[0].mxu0
  %v3139 = vpop.f32.mrb[0].mxu0
  %v3140 = vadd.f32 0.0, %v3139
  %v3141 = vpop.f32.mrb[0].mxu0
  %3142 = vmatprep.mubr.bf16.mxu0 0
  %3143 = vmatmul.mubr.bf16.gmra.mrb[0].mxu0 %v2749
  %v3144 = vpop.f32.mrb[0].mxu0
  %v3145 = vadd.f32 0.0, %v3144
  %v3146 = vpop.f32.mrb[0].mxu0
  %v3147 = vpop.f32.mrb[0].mxu0
  %v3148 = vadd.f32 0.0, %v3147
  %v3149 = vpop.f32.mrb[0].mxu0
  %3150 = vmatprep.mubr.bf16.mxu0 0
  %3151 = vmatmul.mubr.bf16.gmra.mrb[0].mxu0 %v2752
  %v3152 = vpop.f32.mrb[0].mxu0
  %v3153 = vadd.f32 0.0, %v3152
  %v3154 = vpop.f32.mrb[0].mxu0
  %v3155 = vpop.f32.mrb[0].mxu0
  %v3156 = vadd.f32 0.0, %v3155
  %v3157 = vpop.f32.mrb[0].mxu0
  %3158 = vmatprep.mubr.bf16.mxu0 0
  %3159 = vmatmul.mubr.bf16.gmra.mrb[0].mxu0 %v2755
  %v3160 = vpop.f32.mrb[0].mxu0
  %v3161 = vadd.f32 0.0, %v3160
  %v3162 = vpop.f32.mrb[0].mxu0
  %v3163 = vpop.f32.mrb[0].mxu0
  %v3164 = vadd.f32 0.0, %v3163
  %v3165 = vpop.f32.mrb[0].mxu0
  %3166 = vmatprep.mubr.bf16.mxu0 0
  %3167 = vmatmul.mubr.bf16.gmra.mrb[0].mxu0 %v2758
  %v3168 = vpop.f32.mrb[0].mxu0
  %v3169 = vadd.f32 0.0, %v3168
  %v3170 = vpop.f32.mrb[0].mxu0
  %v3171 = vpop.f32.mrb[0].mxu0
  %v3172 = vadd.f32 0.0, %v3171
  %v3173 = vpop.f32.mrb[0].mxu0
  %3174 = vmatprep.mubr.bf16.mxu0 0
  %3175 = vmatmul.mubr.bf16.gmra.mrb[0].mxu0 %v2761
  %v3176 = vpop.f32.mrb[0].mxu0
  %v3177 = vadd.f32 0.0, %v3176
  %v3178 = vpop.f32.mrb[0].mxu0
  %v3179 = vpop.f32.mrb[0].mxu0
  %v3180 = vadd.f32 0.0, %v3179
  %v3181 = vpop.f32.mrb[0].mxu0
  %3182 = vmatprep.mubr.bf16.mxu0 0
  %3183 = vmatmul.mubr.bf16.gmra.mrb[0].mxu0 %v2764
  %v3184 = vpop.f32.mrb[0].mxu0
  %v3185 = vadd.f32 0.0, %v3184
  %v3186 = vpop.f32.mrb[0].mxu0
  %v3187 = vpop.f32.mrb[0].mxu0
  %v3188 = vadd.f32 0.0, %v3187
  %v3189 = vpop.f32.mrb[0].mxu0
  %3190 = vmatprep.mubr.bf16.mxu0 0
  %3191 = vmatmul.mubr.bf16.gmra.mrb[0].mxu0 %v2767
  %v3192 = vpop.f32.mrb[0].mxu0
  %v3193 = vadd.f32 0.0, %v3192
  %v3194 = vpop.f32.mrb[0].mxu0
  %v3195 = vpop.f32.mrb[0].mxu0
  %v3196 = vadd.f32 0.0, %v3195
  %v3197 = vpop.f32.mrb[0].mxu0
  %3198 = vmatprep.mubr.bf16.mxu0 0
  %3199 = vmatmul.mubr.bf16.gmra.mrb[0].mxu0 %v2770
  %v3200 = vpop.f32.mrb[0].mxu0
  %v3201 = vadd.f32 0.0, %v3200
  %v3202 = vpop.f32.mrb[0].mxu0
  %v3203 = vpop.f32.mrb[0].mxu0
  %v3204 = vadd.f32 0.0, %v3203
  %v3205 = vpop.f32.mrb[0].mxu0
  %3206 = vmatprep.mubr.bf16.mxu0 0
  %3207 = vmatmul.mubr.bf16.gmra.mrb[0].mxu0 %v2773
  %v3208 = vpop.f32.mrb[0].mxu0
  %v3209 = vadd.f32 0.0, %v3208
  %v3210 = vpop.f32.mrb[0].mxu0
  %v3211 = vpop.f32.mrb[0].mxu0
  %v3212 = vadd.f32 0.0, %v3211
  %v3213 = vpop.f32.mrb[0].mxu0
  %3214 = vmatprep.mubr.bf16.mxu0 0
  %3215 = vmatmul.mubr.bf16.gmra.mrb[0].mxu0 %v2776
  %v3216 = vpop.f32.mrb[0].mxu0
  %v3217 = vadd.f32 0.0, %v3216
  %v3218 = vpop.f32.mrb[0].mxu0
  %v3219 = vpop.f32.mrb[0].mxu0
  %v3220 = vadd.f32 0.0, %v3219
  %v3221 = vpop.f32.mrb[0].mxu0
  %3222 = vmatprep.mubr.bf16.mxu0 0
  %3223 = vmatmul.mubr.bf16.gmra.mrb[0].mxu0 %v2779
  %v3224 = vpop.f32.mrb[0].mxu0
  %v3225 = vadd.f32 0.0, %v3224
  %v3226 = vpop.f32.mrb[0].mxu0
  %v3227 = vpop.f32.mrb[0].mxu0
  %v3228 = vadd.f32 0.0, %v3227
  %v3229 = vpop.f32.mrb[0].mxu0
  %3230 = vmatprep.mubr.bf16.mxu0 0
  %3231 = vmatmul.mubr.bf16.gmra.mrb[0].mxu0 %v2782
  %v3232 = vpop.f32.mrb[0].mxu0
  %v3233 = vadd.f32 0.0, %v3232
  %v3234 = vpop.f32.mrb[0].mxu0
  %v3235 = vpop.f32.mrb[0].mxu0
  %v3236 = vadd.f32 0.0, %v3235
  %v3237 = vpop.f32.mrb[0].mxu0
  %3238 = vmatprep.mubr.bf16.mxu0 0
  %3239 = vmatmul.mubr.bf16.gmra.mrb[0].mxu0 %v2785
  %v3240 = vpop.f32.mrb[0].mxu0
  %v3241 = vadd.f32 0.0, %v3240
  %v3242 = vpop.f32.mrb[0].mxu0
  %v3243 = vpop.f32.mrb[0].mxu0
  %v3244 = vadd.f32 0.0, %v3243
  %v3245 = vpop.f32.mrb[0].mxu0
  %3246 = vmatprep.mubr.bf16.mxu0 0
  %3247 = vmatmul.mubr.bf16.gmra.mrb[0].mxu0 %v2788
  %v3248 = vpop.f32.mrb[0].mxu0
  %v3249 = vadd.f32 0.0, %v3248
  %v3250 = vpop.f32.mrb[0].mxu0
  %v3251 = vpop.f32.mrb[0].mxu0
  %v3252 = vadd.f32 0.0, %v3251
  %v3253 = vpop.f32.mrb[0].mxu0
  %3254 = vmatprep.mubr.bf16.mxu0 0
  %3255 = vmatmul.mubr.bf16.gmra.mrb[0].mxu0 %v2791
  %v3256 = vpop.f32.mrb[0].mxu0
  %v3257 = vadd.f32 0.0, %v3256
  %v3258 = vpop.f32.mrb[0].mxu0
  %v3259 = vpop.f32.mrb[0].mxu0
  %v3260 = vadd.f32 0.0, %v3259
  %v3261 = vpop.f32.mrb[0].mxu0
  %3262 = vmatprep.mubr.bf16.mxu0 0
  %3263 = vmatmul.mubr.bf16.gmra.mrb[0].mxu0 %v2794
  %v3264 = vpop.f32.mrb[0].mxu0
  %v3265 = vadd.f32 0.0, %v3264
  %v3266 = vpop.f32.mrb[0].mxu0
  %v3267 = vpop.f32.mrb[0].mxu0
  %v3268 = vadd.f32 0.0, %v3267
  %v3269 = vpop.f32.mrb[0].mxu0
  %3270 = vmatprep.mubr.bf16.mxu0 0
  %3271 = vmatmul.mubr.bf16.gmra.mrb[0].mxu0 %v2797
  %v3272 = vpop.f32.mrb[0].mxu0
  %v3273 = vadd.f32 0.0, %v3272
  %v3274 = vpop.f32.mrb[0].mxu0
  %v3275 = vpop.f32.mrb[0].mxu0
  %v3276 = vadd.f32 0.0, %v3275
  %v3277 = vpop.f32.mrb[0].mxu0
  %3278 = vmatprep.mubr.bf16.mxu0 0
  %3279 = vmatmul.mubr.bf16.gmra.mrb[0].mxu0 %v2800
  %v3280 = vpop.f32.mrb[0].mxu0
  %v3281 = vadd.f32 0.0, %v3280
  %v3282 = vpop.f32.mrb[0].mxu0
  %v3283 = vpop.f32.mrb[0].mxu0
  %v3284 = vadd.f32 0.0, %v3283
  %v3285 = vpop.f32.mrb[0].mxu0
  %3286 = vmatprep.mubr.bf16.mxu0 0
  %3287 = vmatmul.mubr.bf16.gmra.mrb[0].mxu0 %v2803
  %v3288 = vpop.f32.mrb[0].mxu0
  %v3289 = vadd.f32 0.0, %v3288
  %v3290 = vpop.f32.mrb[0].mxu0
  %v3291 = vpop.f32.mrb[0].mxu0
  %v3292 = vadd.f32 0.0, %v3291
  %v3293 = vpop.f32.mrb[0].mxu0
  %3294 = vmatprep.mubr.bf16.mxu0 0
  %3295 = vmatmul.mubr.bf16.gmra.mrb[0].mxu0 %v2806
  %v3296 = vpop.f32.mrb[0].mxu0
  %v3297 = vadd.f32 0.0, %v3296
  %v3298 = vpop.f32.mrb[0].mxu0
  %v3299 = vpop.f32.mrb[0].mxu0
  %v3300 = vadd.f32 0.0, %v3299
  %v3301 = vpop.f32.mrb[0].mxu0
  %3302 = vmatprep.mubr.bf16.mxu0 0
  %3303 = vmatmul.mubr.bf16.gmra.mrb[0].mxu0 %v2809
  %v3304 = vpop.f32.mrb[0].mxu0
  %v3305 = vadd.f32 0.0, %v3304
  %v3306 = vpop.f32.mrb[0].mxu0
  %v3307 = vpop.f32.mrb[0].mxu0
  %v3308 = vadd.f32 0.0, %v3307
  %v3309 = vpop.f32.mrb[0].mxu0
  %3310 = vmatprep.mubr.bf16.mxu0 0
  %3311 = vmatmul.mubr.bf16.gmra.mrb[0].mxu0 %v2812
  %v3312 = vpop.f32.mrb[0].mxu0
  %v3313 = vadd.f32 0.0, %v3312
  %v3314 = vpop.f32.mrb[0].mxu0
  %v3315 = vpop.f32.mrb[0].mxu0
  %v3316 = vadd.f32 0.0, %v3315
  %v3317 = vpop.f32.mrb[0].mxu0
  %3318 = vmatprep.mubr.bf16.mxu0 0
  %3319 = vmatmul.mubr.bf16.gmra.mrb[0].mxu0 %v2815
  %v3320 = vpop.f32.mrb[0].mxu0
  %v3321 = vadd.f32 0.0, %v3320
  %v3322 = vpop.f32.mrb[0].mxu0
  %v3323 = vpop.f32.mrb[0].mxu0
  %v3324 = vadd.f32 0.0, %v3323
  %v3325 = vpop.f32.mrb[0].mxu0
  %3326 = vmatprep.mubr.bf16.mxu0 0
  %3327 = vmatmul.mubr.bf16.gmra.mrb[0].mxu0 %v2818
  %v3328 = vpop.f32.mrb[0].mxu0
  %v3329 = vadd.f32 0.0, %v3328
  %v3330 = vpop.f32.mrb[0].mxu0
  %v3331 = vpop.f32.mrb[0].mxu0
  %v3332 = vadd.f32 0.0, %v3331
  %v3333 = vpop.f32.mrb[0].mxu0
  %3334 = vmatprep.mubr.bf16.mxu0 0
  %3335 = vmatmul.mubr.bf16.gmra.mrb[0].mxu0 %v2821
  %v3336 = vpop.f32.mrb[0].mxu0
  %v3337 = vadd.f32 0.0, %v3336
  %v3338 = vpop.f32.mrb[0].mxu0
  %v3339 = vpop.f32.mrb[0].mxu0
  %v3340 = vadd.f32 0.0, %v3339
  %v3341 = vpop.f32.mrb[0].mxu0
  %3342 = vmatprep.mubr.bf16.mxu0 0
  %3343 = vmatmul.mubr.bf16.gmra.mrb[0].mxu0 %v2824
  %v3344 = vpop.f32.mrb[0].mxu0
  %v3345 = vadd.f32 0.0, %v3344
  %v3346 = vpop.f32.mrb[0].mxu0
  %v3347 = vpop.f32.mrb[0].mxu0
  %v3348 = vadd.f32 0.0, %v3347
  %v3349 = vpop.f32.mrb[0].mxu0
  %3350 = vmatprep.mubr.bf16.mxu0 0
  %3351 = vmatmul.mubr.bf16.gmra.mrb[0].mxu0 %v2827
  %v3352 = vpop.f32.mrb[0].mxu0
  %v3353 = vadd.f32 0.0, %v3352
  %v3354 = vpop.f32.mrb[0].mxu0
  %v3355 = vpop.f32.mrb[0].mxu0
  %v3356 = vadd.f32 0.0, %v3355
  %v3357 = vpop.f32.mrb[0].mxu0
  %3358 = vmatprep.mubr.bf16.mxu0 0
  %3359 = vmatmul.mubr.bf16.gmra.mrb[0].mxu0 %v2830
  %v3360 = vpop.f32.mrb[0].mxu0
  %v3361 = vadd.f32 0.0, %v3360
  %v3362 = vpop.f32.mrb[0].mxu0
  %v3363 = vpop.f32.mrb[0].mxu0
  %v3364 = vadd.f32 0.0, %v3363
  %v3365 = vpop.f32.mrb[0].mxu0
  %3366 = vmatprep.mubr.bf16.mxu0 0
  %3367 = vmatmul.mubr.bf16.gmra.mrb[0].mxu0 %v2833
  %v3368 = vpop.f32.mrb[0].mxu0
  %v3369 = vadd.f32 0.0, %v3368
  %v3370 = vpop.f32.mrb[0].mxu0
  %v3371 = vpop.f32.mrb[0].mxu0
  %v3372 = vadd.f32 0.0, %v3371
  %v3373 = vpop.f32.mrb[0].mxu0
  %3374 = vmatprep.mubr.bf16.mxu0 0
  %3375 = vmatmul.mubr.bf16.gmra.mrb[0].mxu0 %v2836
  %v3376 = vpop.f32.mrb[0].mxu0
  %v3377 = vadd.f32 0.0, %v3376
  %v3378 = vpop.f32.mrb[0].mxu0
  %v3379 = vpop.f32.mrb[0].mxu0
  %v3380 = vadd.f32 0.0, %v3379
  %v3381 = vpop.f32.mrb[0].mxu0
  %3382 = vdwg.mxu0
  %s3383 = scalar_lea.vmem %s3, 4
  %v3384 = vld [vmem:[%s3383] sm:$0x1]
  %v3385 = vld [vmem:[%s3383 + $0x1] sm:$0x1]
  %v3386 = vld [vmem:[%s3383 + $0x2] sm:$0x1]
  %v3387 = vsel %vm1235, %v2873, 0.0
  %v3388 = vsel %vm1235, %v2876, 0.0
  %v3389 = vadd.f32 %v3387, %v3388
  %v3390 = vsel %vm1235, %v2881, 0.0
  %v3391 = vadd.f32 %v3389, %v3390
  %v3392 = vsel %vm1235, %v2884, 0.0
  %v3393 = vadd.f32 %v3391, %v3392
  %v3394 = vsel %vm1235, %v2889, 0.0
  %v3395 = vadd.f32 %v3393, %v3394
  %v3396 = vsel %vm1235, %v2892, 0.0
  %v3397 = vadd.f32 %v3395, %v3396
  %v3398 = vsel %vm1235, %v2897, 0.0
  %v3399 = vadd.f32 %v3397, %v3398
  %v3400 = vsel %vm1235, %v2900, 0.0
  %v3401 = vadd.f32 %v3399, %v3400
  %v3402 = vsel %vm1235, %v2905, 0.0
  %v3403 = vadd.f32 %v3401, %v3402
  %v3404 = vsel %vm1235, %v2908, 0.0
  %v3405 = vadd.f32 %v3403, %v3404
  %v3406 = vsel %vm1235, %v2913, 0.0
  %v3407 = vadd.f32 %v3405, %v3406
  %v3408 = vsel %vm1235, %v2916, 0.0
  %v3409 = vadd.f32 %v3407, %v3408
  %v3410 = vsel %vm1235, %v2921, 0.0
  %v3411 = vadd.f32 %v3409, %v3410
  %v3412 = vsel %vm1235, %v2924, 0.0
  %v3413 = vadd.f32 %v3411, %v3412
  %v3414 = vsel %vm1235, %v2929, 0.0
  %v3415 = vadd.f32 %v3413, %v3414
  %v3416 = vsel %vm1235, %v2932, 0.0
  %v3417 = vadd.f32 %v3415, %v3416
  %v3418 = vsel %vm1235, %v2937, 0.0
  %v3419 = vadd.f32 %v3417, %v3418
  %v3420 = vsel %vm1235, %v2940, 0.0
  %v3421 = vadd.f32 %v3419, %v3420
  %v3422 = vsel %vm1235, %v2945, 0.0
  %v3423 = vadd.f32 %v3421, %v3422
  %v3424 = vsel %vm1235, %v2948, 0.0
  %v3425 = vadd.f32 %v3423, %v3424
  %v3426 = vsel %vm1235, %v2953, 0.0
  %v3427 = vadd.f32 %v3425, %v3426
  %v3428 = vsel %vm1235, %v2956, 0.0
  %v3429 = vadd.f32 %v3427, %v3428
  %v3430 = vsel %vm1235, %v2961, 0.0
  %v3431 = vadd.f32 %v3429, %v3430
  %v3432 = vsel %vm1235, %v2964, 0.0
  %v3433 = vadd.f32 %v3431, %v3432
  %v3434 = vsel %vm1235, %v2969, 0.0
  %v3435 = vadd.f32 %v3433, %v3434
  %v3436 = vsel %vm1235, %v2972, 0.0
  %v3437 = vadd.f32 %v3435, %v3436
  %v3438 = vsel %vm1235, %v2977, 0.0
  %v3439 = vadd.f32 %v3437, %v3438
  %v3440 = vsel %vm1235, %v2980, 0.0
  %v3441 = vadd.f32 %v3439, %v3440
  %v3442 = vsel %vm1235, %v2985, 0.0
  %v3443 = vadd.f32 %v3441, %v3442
  %v3444 = vsel %vm1235, %v2988, 0.0
  %v3445 = vadd.f32 %v3443, %v3444
  %v3446 = vsel %vm1235, %v2993, 0.0
  %v3447 = vadd.f32 %v3445, %v3446
  %v3448 = vsel %vm1235, %v2996, 0.0
  %v3449 = vadd.f32 %v3447, %v3448
  %v3450 = vsel %vm1235, %v3001, 0.0
  %v3451 = vadd.f32 %v3449, %v3450
  %v3452 = vsel %vm1235, %v3004, 0.0
  %v3453 = vadd.f32 %v3451, %v3452
  %v3454 = vsel %vm1235, %v3009, 0.0
  %v3455 = vadd.f32 %v3453, %v3454
  %v3456 = vsel %vm1235, %v3012, 0.0
  %v3457 = vadd.f32 %v3455, %v3456
  %v3458 = vsel %vm1235, %v3017, 0.0
  %v3459 = vadd.f32 %v3457, %v3458
  %v3460 = vsel %vm1235, %v3020, 0.0
  %v3461 = vadd.f32 %v3459, %v3460
  %v3462 = vsel %vm1235, %v3025, 0.0
  %v3463 = vadd.f32 %v3461, %v3462
  %v3464 = vsel %vm1235, %v3028, 0.0
  %v3465 = vadd.f32 %v3463, %v3464
  %v3466 = vsel %vm1235, %v3033, 0.0
  %v3467 = vadd.f32 %v3465, %v3466
  %v3468 = vsel %vm1235, %v3036, 0.0
  %v3469 = vadd.f32 %v3467, %v3468
  %v3470 = vsel %vm1235, %v3041, 0.0
  %v3471 = vadd.f32 %v3469, %v3470
  %v3472 = vsel %vm1235, %v3044, 0.0
  %v3473 = vadd.f32 %v3471, %v3472
  %v3474 = vsel %vm1235, %v3049, 0.0
  %v3475 = vadd.f32 %v3473, %v3474
  %v3476 = vsel %vm1235, %v3052, 0.0
  %v3477 = vadd.f32 %v3475, %v3476
  %v3478 = vsel %vm1235, %v3057, 0.0
  %v3479 = vadd.f32 %v3477, %v3478
  %v3480 = vsel %vm1235, %v3060, 0.0
  %v3481 = vadd.f32 %v3479, %v3480
  %v3482 = vsel %vm1235, %v3065, 0.0
  %v3483 = vadd.f32 %v3481, %v3482
  %v3484 = vsel %vm1235, %v3068, 0.0
  %v3485 = vadd.f32 %v3483, %v3484
  %v3486 = vsel %vm1235, %v3073, 0.0
  %v3487 = vadd.f32 %v3485, %v3486
  %v3488 = vsel %vm1235, %v3076, 0.0
  %v3489 = vadd.f32 %v3487, %v3488
  %v3490 = vsel %vm1235, %v3081, 0.0
  %v3491 = vadd.f32 %v3489, %v3490
  %v3492 = vsel %vm1235, %v3084, 0.0
  %v3493 = vadd.f32 %v3491, %v3492
  %v3494 = vsel %vm1235, %v3089, 0.0
  %v3495 = vadd.f32 %v3493, %v3494
  %v3496 = vsel %vm1235, %v3092, 0.0
  %v3497 = vadd.f32 %v3495, %v3496
  %v3498 = vsel %vm1235, %v3097, 0.0
  %v3499 = vadd.f32 %v3497, %v3498
  %v3500 = vsel %vm1235, %v3100, 0.0
  %v3501 = vadd.f32 %v3499, %v3500
  %v3502 = vsel %vm1235, %v3105, 0.0
  %v3503 = vadd.f32 %v3501, %v3502
  %v3504 = vsel %vm1235, %v3108, 0.0
  %v3505 = vadd.f32 %v3503, %v3504
  %v3506 = vsel %vm1235, %v3113, 0.0
  %v3507 = vadd.f32 %v3505, %v3506
  %v3508 = vsel %vm1235, %v3116, 0.0
  %v3509 = vadd.f32 %v3507, %v3508
  %v3510 = vsel %vm1235, %v3121, 0.0
  %v3511 = vadd.f32 %v3509, %v3510
  %v3512 = vsel %vm1235, %v3124, 0.0
  %v3513 = vadd.f32 %v3511, %v3512
  %v3514 = vrot.slane %v3513, 4
  %v3515 = vadd.f32 %v3513, %v3514
  %v3516 = vrot.slane %v3515, 2
  %v3517 = vadd.f32 %v3515, %v3516
  %v3518 = vrot.slane %v3517, 1
  %v3519 = vadd.f32 %v3517, %v3518
  %v3520 = vsel %vm1235, %v3129, 0.0
  %v3521 = vsel %vm1235, %v3132, 0.0
  %v3522 = vadd.f32 %v3520, %v3521
  %v3523 = vsel %vm1235, %v3137, 0.0
  %v3524 = vadd.f32 %v3522, %v3523
  %v3525 = vsel %vm1235, %v3140, 0.0
  %v3526 = vadd.f32 %v3524, %v3525
  %v3527 = vsel %vm1235, %v3145, 0.0
  %v3528 = vadd.f32 %v3526, %v3527
  %v3529 = vsel %vm1235, %v3148, 0.0
  %v3530 = vadd.f32 %v3528, %v3529
  %v3531 = vsel %vm1235, %v3153, 0.0
  %v3532 = vadd.f32 %v3530, %v3531
  %v3533 = vsel %vm1235, %v3156, 0.0
  %v3534 = vadd.f32 %v3532, %v3533
  %v3535 = vsel %vm1235, %v3161, 0.0
  %v3536 = vadd.f32 %v3534, %v3535
  %v3537 = vsel %vm1235, %v3164, 0.0
  %v3538 = vadd.f32 %v3536, %v3537
  %v3539 = vsel %vm1235, %v3169, 0.0
  %v3540 = vadd.f32 %v3538, %v3539
  %v3541 = vsel %vm1235, %v3172, 0.0
  %v3542 = vadd.f32 %v3540, %v3541
  %v3543 = vsel %vm1235, %v3177, 0.0
  %v3544 = vadd.f32 %v3542, %v3543
  %v3545 = vsel %vm1235, %v3180, 0.0
  %v3546 = vadd.f32 %v3544, %v3545
  %v3547 = vsel %vm1235, %v3185, 0.0
  %v3548 = vadd.f32 %v3546, %v3547
  %v3549 = vsel %vm1235, %v3188, 0.0
  %v3550 = vadd.f32 %v3548, %v3549
  %v3551 = vsel %vm1235, %v3193, 0.0
  %v3552 = vadd.f32 %v3550, %v3551
  %v3553 = vsel %vm1235, %v3196, 0.0
  %v3554 = vadd.f32 %v3552, %v3553
  %v3555 = vsel %vm1235, %v3201, 0.0
  %v3556 = vadd.f32 %v3554, %v3555
  %v3557 = vsel %vm1235, %v3204, 0.0
  %v3558 = vadd.f32 %v3556, %v3557
  %v3559 = vsel %vm1235, %v3209, 0.0
  %v3560 = vadd.f32 %v3558, %v3559
  %v3561 = vsel %vm1235, %v3212, 0.0
  %v3562 = vadd.f32 %v3560, %v3561
  %v3563 = vsel %vm1235, %v3217, 0.0
  %v3564 = vadd.f32 %v3562, %v3563
  %v3565 = vsel %vm1235, %v3220, 0.0
  %v3566 = vadd.f32 %v3564, %v3565
  %v3567 = vsel %vm1235, %v3225, 0.0
  %v3568 = vadd.f32 %v3566, %v3567
  %v3569 = vsel %vm1235, %v3228, 0.0
  %v3570 = vadd.f32 %v3568, %v3569
  %v3571 = vsel %vm1235, %v3233, 0.0
  %v3572 = vadd.f32 %v3570, %v3571
  %v3573 = vsel %vm1235, %v3236, 0.0
  %v3574 = vadd.f32 %v3572, %v3573
  %v3575 = vsel %vm1235, %v3241, 0.0
  %v3576 = vadd.f32 %v3574, %v3575
  %v3577 = vsel %vm1235, %v3244, 0.0
  %v3578 = vadd.f32 %v3576, %v3577
  %v3579 = vsel %vm1235, %v3249, 0.0
  %v3580 = vadd.f32 %v3578, %v3579
  %v3581 = vsel %vm1235, %v3252, 0.0
  %v3582 = vadd.f32 %v3580, %v3581
  %v3583 = vsel %vm1235, %v3257, 0.0
  %v3584 = vadd.f32 %v3582, %v3583
  %v3585 = vsel %vm1235, %v3260, 0.0
  %v3586 = vadd.f32 %v3584, %v3585
  %v3587 = vsel %vm1235, %v3265, 0.0
  %v3588 = vadd.f32 %v3586, %v3587
  %v3589 = vsel %vm1235, %v3268, 0.0
  %v3590 = vadd.f32 %v3588, %v3589
  %v3591 = vsel %vm1235, %v3273, 0.0
  %v3592 = vadd.f32 %v3590, %v3591
  %v3593 = vsel %vm1235, %v3276, 0.0
  %v3594 = vadd.f32 %v3592, %v3593
  %v3595 = vsel %vm1235, %v3281, 0.0
  %v3596 = vadd.f32 %v3594, %v3595
  %v3597 = vsel %vm1235, %v3284, 0.0
  %v3598 = vadd.f32 %v3596, %v3597
  %v3599 = vsel %vm1235, %v3289, 0.0
  %v3600 = vadd.f32 %v3598, %v3599
  %v3601 = vsel %vm1235, %v3292, 0.0
  %v3602 = vadd.f32 %v3600, %v3601
  %v3603 = vsel %vm1235, %v3297, 0.0
  %v3604 = vadd.f32 %v3602, %v3603
  %v3605 = vsel %vm1235, %v3300, 0.0
  %v3606 = vadd.f32 %v3604, %v3605
  %v3607 = vsel %vm1235, %v3305, 0.0
  %v3608 = vadd.f32 %v3606, %v3607
  %v3609 = vsel %vm1235, %v3308, 0.0
  %v3610 = vadd.f32 %v3608, %v3609
  %v3611 = vsel %vm1235, %v3313, 0.0
  %v3612 = vadd.f32 %v3610, %v3611
  %v3613 = vsel %vm1235, %v3316, 0.0
  %v3614 = vadd.f32 %v3612, %v3613
  %v3615 = vsel %vm1235, %v3321, 0.0
  %v3616 = vadd.f32 %v3614, %v3615
  %v3617 = vsel %vm1235, %v3324, 0.0
  %v3618 = vadd.f32 %v3616, %v3617
  %v3619 = vsel %vm1235, %v3329, 0.0
  %v3620 = vadd.f32 %v3618, %v3619
  %v3621 = vsel %vm1235, %v3332, 0.0
  %v3622 = vadd.f32 %v3620, %v3621
  %v3623 = vsel %vm1235, %v3337, 0.0
  %v3624 = vadd.f32 %v3622, %v3623
  %v3625 = vsel %vm1235, %v3340, 0.0
  %v3626 = vadd.f32 %v3624, %v3625
  %v3627 = vsel %vm1235, %v3345, 0.0
  %v3628 = vadd.f32 %v3626, %v3627
  %v3629 = vsel %vm1235, %v3348, 0.0
  %v3630 = vadd.f32 %v3628, %v3629
  %v3631 = vsel %vm1235, %v3353, 0.0
  %v3632 = vadd.f32 %v3630, %v3631
  %v3633 = vsel %vm1235, %v3356, 0.0
  %v3634 = vadd.f32 %v3632, %v3633
  %v3635 = vsel %vm1235, %v3361, 0.0
  %v3636 = vadd.f32 %v3634, %v3635
  %v3637 = vsel %vm1235, %v3364, 0.0
  %v3638 = vadd.f32 %v3636, %v3637
  %v3639 = vsel %vm1235, %v3369, 0.0
  %v3640 = vadd.f32 %v3638, %v3639
  %v3641 = vsel %vm1235, %v3372, 0.0
  %v3642 = vadd.f32 %v3640, %v3641
  %v3643 = vsel %vm1235, %v3377, 0.0
  %v3644 = vadd.f32 %v3642, %v3643
  %v3645 = vsel %vm1235, %v3380, 0.0
  %v3646 = vadd.f32 %v3644, %v3645
  %v3647 = vrot.slane %v3646, 4
  %v3648 = vadd.f32 %v3646, %v3647
  %v3649 = vrot.slane %v3648, 2
  %v3650 = vadd.f32 %v3648, %v3649
  %v3651 = vrot.slane %v3650, 1
  %v3652 = vadd.f32 %v3650, %v3651
  %v3653 = vmul.f32 %v3519, %v1502
  %v3654 = vmul.f32 %v3652, %v1502
  %v3655 = vmul.f32 %v2873, %v2873
  %v3656 = vmul.f32 %v2876, %v2876
  %v3657 = vmul.f32 %v2881, %v2881
  %v3658 = vmul.f32 %v2884, %v2884
  %v3659 = vmul.f32 %v2889, %v2889
  %v3660 = vmul.f32 %v2892, %v2892
  %v3661 = vmul.f32 %v2897, %v2897
  %v3662 = vmul.f32 %v2900, %v2900
  %v3663 = vmul.f32 %v2905, %v2905
  %v3664 = vmul.f32 %v2908, %v2908
  %v3665 = vmul.f32 %v2913, %v2913
  %v3666 = vmul.f32 %v2916, %v2916
  %v3667 = vmul.f32 %v2921, %v2921
  %v3668 = vmul.f32 %v2924, %v2924
  %v3669 = vmul.f32 %v2929, %v2929
  %v3670 = vmul.f32 %v2932, %v2932
  %v3671 = vmul.f32 %v2937, %v2937
  %v3672 = vmul.f32 %v2940, %v2940
  %v3673 = vmul.f32 %v2945, %v2945
  %v3674 = vmul.f32 %v2948, %v2948
  %v3675 = vmul.f32 %v2953, %v2953
  %v3676 = vmul.f32 %v2956, %v2956
  %v3677 = vmul.f32 %v2961, %v2961
  %v3678 = vmul.f32 %v2964, %v2964
  %v3679 = vmul.f32 %v2969, %v2969
  %v3680 = vmul.f32 %v2972, %v2972
  %v3681 = vmul.f32 %v2977, %v2977
  %v3682 = vmul.f32 %v2980, %v2980
  %v3683 = vmul.f32 %v2985, %v2985
  %v3684 = vmul.f32 %v2988, %v2988
  %v3685 = vmul.f32 %v2993, %v2993
  %v3686 = vmul.f32 %v2996, %v2996
  %v3687 = vmul.f32 %v3001, %v3001
  %v3688 = vmul.f32 %v3004, %v3004
  %v3689 = vmul.f32 %v3009, %v3009
  %v3690 = vmul.f32 %v3012, %v3012
  %v3691 = vmul.f32 %v3017, %v3017
  %v3692 = vmul.f32 %v3020, %v3020
  %v3693 = vmul.f32 %v3025, %v3025
  %v3694 = vmul.f32 %v3028, %v3028
  %v3695 = vmul.f32 %v3033, %v3033
  %v3696 = vmul.f32 %v3036, %v3036
  %v3697 = vmul.f32 %v3041, %v3041
  %v3698 = vmul.f32 %v3044, %v3044
  %v3699 = vmul.f32 %v3049, %v3049
  %v3700 = vmul.f32 %v3052, %v3052
  %v3701 = vmul.f32 %v3057, %v3057
  %v3702 = vmul.f32 %v3060, %v3060
  %v3703 = vmul.f32 %v3065, %v3065
  %v3704 = vmul.f32 %v3068, %v3068
  %v3705 = vmul.f32 %v3073, %v3073
  %v3706 = vmul.f32 %v3076, %v3076
  %v3707 = vmul.f32 %v3081, %v3081
  %v3708 = vmul.f32 %v3084, %v3084
  %v3709 = vmul.f32 %v3089, %v3089
  %v3710 = vmul.f32 %v3092, %v3092
  %v3711 = vmul.f32 %v3097, %v3097
  %v3712 = vmul.f32 %v3100, %v3100
  %v3713 = vmul.f32 %v3105, %v3105
  %v3714 = vmul.f32 %v3108, %v3108
  %v3715 = vmul.f32 %v3113, %v3113
  %v3716 = vmul.f32 %v3116, %v3116
  %v3717 = vmul.f32 %v3121, %v3121
  %v3718 = vmul.f32 %v3124, %v3124
  %v3719 = vmul.f32 %v3129, %v3129
  %v3720 = vmul.f32 %v3132, %v3132
  %v3721 = vmul.f32 %v3137, %v3137
  %v3722 = vmul.f32 %v3140, %v3140
  %v3723 = vmul.f32 %v3145, %v3145
  %v3724 = vmul.f32 %v3148, %v3148
  %v3725 = vmul.f32 %v3153, %v3153
  %v3726 = vmul.f32 %v3156, %v3156
  %v3727 = vmul.f32 %v3161, %v3161
  %v3728 = vmul.f32 %v3164, %v3164
  %v3729 = vmul.f32 %v3169, %v3169
  %v3730 = vmul.f32 %v3172, %v3172
  %v3731 = vmul.f32 %v3177, %v3177
  %v3732 = vmul.f32 %v3180, %v3180
  %v3733 = vmul.f32 %v3185, %v3185
  %v3734 = vmul.f32 %v3188, %v3188
  %v3735 = vmul.f32 %v3193, %v3193
  %v3736 = vmul.f32 %v3196, %v3196
  %v3737 = vmul.f32 %v3201, %v3201
  %v3738 = vmul.f32 %v3204, %v3204
  %v3739 = vmul.f32 %v3209, %v3209
  %v3740 = vmul.f32 %v3212, %v3212
  %v3741 = vmul.f32 %v3217, %v3217
  %v3742 = vmul.f32 %v3220, %v3220
  %v3743 = vmul.f32 %v3225, %v3225
  %v3744 = vmul.f32 %v3228, %v3228
  %v3745 = vmul.f32 %v3233, %v3233
  %v3746 = vmul.f32 %v3236, %v3236
  %v3747 = vmul.f32 %v3241, %v3241
  %v3748 = vmul.f32 %v3244, %v3244
  %v3749 = vmul.f32 %v3249, %v3249
  %v3750 = vmul.f32 %v3252, %v3252
  %v3751 = vmul.f32 %v3257, %v3257
  %v3752 = vmul.f32 %v3260, %v3260
  %v3753 = vmul.f32 %v3265, %v3265
  %v3754 = vmul.f32 %v3268, %v3268
  %v3755 = vmul.f32 %v3273, %v3273
  %v3756 = vmul.f32 %v3276, %v3276
  %v3757 = vmul.f32 %v3281, %v3281
  %v3758 = vmul.f32 %v3284, %v3284
  %v3759 = vmul.f32 %v3289, %v3289
  %v3760 = vmul.f32 %v3292, %v3292
  %v3761 = vmul.f32 %v3297, %v3297
  %v3762 = vmul.f32 %v3300, %v3300
  %v3763 = vmul.f32 %v3305, %v3305
  %v3764 = vmul.f32 %v3308, %v3308
  %v3765 = vmul.f32 %v3313, %v3313
  %v3766 = vmul.f32 %v3316, %v3316
  %v3767 = vmul.f32 %v3321, %v3321
  %v3768 = vmul.f32 %v3324, %v3324
  %v3769 = vmul.f32 %v3329, %v3329
  %v3770 = vmul.f32 %v3332, %v3332
  %v3771 = vmul.f32 %v3337, %v3337
  %v3772 = vmul.f32 %v3340, %v3340
  %v3773 = vmul.f32 %v3345, %v3345
  %v3774 = vmul.f32 %v3348, %v3348
  %v3775 = vmul.f32 %v3353, %v3353
  %v3776 = vmul.f32 %v3356, %v3356
  %v3777 = vmul.f32 %v3361, %v3361
  %v3778 = vmul.f32 %v3364, %v3364
  %v3779 = vmul.f32 %v3369, %v3369
  %v3780 = vmul.f32 %v3372, %v3372
  %v3781 = vmul.f32 %v3377, %v3377
  %v3782 = vmul.f32 %v3380, %v3380
  %v3783 = vsel %vm1235, %v3655, 0.0
  %v3784 = vsel %vm1235, %v3656, 0.0
  %v3785 = vadd.f32 %v3783, %v3784
  %v3786 = vsel %vm1235, %v3657, 0.0
  %v3787 = vadd.f32 %v3785, %v3786
  %v3788 = vsel %vm1235, %v3658, 0.0
  %v3789 = vadd.f32 %v3787, %v3788
  %v3790 = vsel %vm1235, %v3659, 0.0
  %v3791 = vadd.f32 %v3789, %v3790
  %v3792 = vsel %vm1235, %v3660, 0.0
  %v3793 = vadd.f32 %v3791, %v3792
  %v3794 = vsel %vm1235, %v3661, 0.0
  %v3795 = vadd.f32 %v3793, %v3794
  %v3796 = vsel %vm1235, %v3662, 0.0
  %v3797 = vadd.f32 %v3795, %v3796
  %v3798 = vsel %vm1235, %v3663, 0.0
  %v3799 = vadd.f32 %v3797, %v3798
  %v3800 = vsel %vm1235, %v3664, 0.0
  %v3801 = vadd.f32 %v3799, %v3800
  %v3802 = vsel %vm1235, %v3665, 0.0
  %v3803 = vadd.f32 %v3801, %v3802
  %v3804 = vsel %vm1235, %v3666, 0.0
  %v3805 = vadd.f32 %v3803, %v3804
  %v3806 = vsel %vm1235, %v3667, 0.0
  %v3807 = vadd.f32 %v3805, %v3806
  %v3808 = vsel %vm1235, %v3668, 0.0
  %v3809 = vadd.f32 %v3807, %v3808
  %v3810 = vsel %vm1235, %v3669, 0.0
  %v3811 = vadd.f32 %v3809, %v3810
  %v3812 = vsel %vm1235, %v3670, 0.0
  %v3813 = vadd.f32 %v3811, %v3812
  %v3814 = vsel %vm1235, %v3671, 0.0
  %v3815 = vadd.f32 %v3813, %v3814
  %v3816 = vsel %vm1235, %v3672, 0.0
  %v3817 = vadd.f32 %v3815, %v3816
  %v3818 = vsel %vm1235, %v3673, 0.0
  %v3819 = vadd.f32 %v3817, %v3818
  %v3820 = vsel %vm1235, %v3674, 0.0
  %v3821 = vadd.f32 %v3819, %v3820
  %v3822 = vsel %vm1235, %v3675, 0.0
  %v3823 = vadd.f32 %v3821, %v3822
  %v3824 = vsel %vm1235, %v3676, 0.0
  %v3825 = vadd.f32 %v3823, %v3824
  %v3826 = vsel %vm1235, %v3677, 0.0
  %v3827 = vadd.f32 %v3825, %v3826
  %v3828 = vsel %vm1235, %v3678, 0.0
  %v3829 = vadd.f32 %v3827, %v3828
  %v3830 = vsel %vm1235, %v3679, 0.0
  %v3831 = vadd.f32 %v3829, %v3830
  %v3832 = vsel %vm1235, %v3680, 0.0
  %v3833 = vadd.f32 %v3831, %v3832
  %v3834 = vsel %vm1235, %v3681, 0.0
  %v3835 = vadd.f32 %v3833, %v3834
  %v3836 = vsel %vm1235, %v3682, 0.0
  %v3837 = vadd.f32 %v3835, %v3836
  %v3838 = vsel %vm1235, %v3683, 0.0
  %v3839 = vadd.f32 %v3837, %v3838
  %v3840 = vsel %vm1235, %v3684, 0.0
  %v3841 = vadd.f32 %v3839, %v3840
  %v3842 = vsel %vm1235, %v3685, 0.0
  %v3843 = vadd.f32 %v3841, %v3842
  %v3844 = vsel %vm1235, %v3686, 0.0
  %v3845 = vadd.f32 %v3843, %v3844
  %v3846 = vsel %vm1235, %v3687, 0.0
  %v3847 = vadd.f32 %v3845, %v3846
  %v3848 = vsel %vm1235, %v3688, 0.0
  %v3849 = vadd.f32 %v3847, %v3848
  %v3850 = vsel %vm1235, %v3689, 0.0
  %v3851 = vadd.f32 %v3849, %v3850
  %v3852 = vsel %vm1235, %v3690, 0.0
  %v3853 = vadd.f32 %v3851, %v3852
  %v3854 = vsel %vm1235, %v3691, 0.0
  %v3855 = vadd.f32 %v3853, %v3854
  %v3856 = vsel %vm1235, %v3692, 0.0
  %v3857 = vadd.f32 %v3855, %v3856
  %v3858 = vsel %vm1235, %v3693, 0.0
  %v3859 = vadd.f32 %v3857, %v3858
  %v3860 = vsel %vm1235, %v3694, 0.0
  %v3861 = vadd.f32 %v3859, %v3860
  %v3862 = vsel %vm1235, %v3695, 0.0
  %v3863 = vadd.f32 %v3861, %v3862
  %v3864 = vsel %vm1235, %v3696, 0.0
  %v3865 = vadd.f32 %v3863, %v3864
  %v3866 = vsel %vm1235, %v3697, 0.0
  %v3867 = vadd.f32 %v3865, %v3866
  %v3868 = vsel %vm1235, %v3698, 0.0
  %v3869 = vadd.f32 %v3867, %v3868
  %v3870 = vsel %vm1235, %v3699, 0.0
  %v3871 = vadd.f32 %v3869, %v3870
  %v3872 = vsel %vm1235, %v3700, 0.0
  %v3873 = vadd.f32 %v3871, %v3872
  %v3874 = vsel %vm1235, %v3701, 0.0
  %v3875 = vadd.f32 %v3873, %v3874
  %v3876 = vsel %vm1235, %v3702, 0.0
  %v3877 = vadd.f32 %v3875, %v3876
  %v3878 = vsel %vm1235, %v3703, 0.0
  %v3879 = vadd.f32 %v3877, %v3878
  %v3880 = vsel %vm1235, %v3704, 0.0
  %v3881 = vadd.f32 %v3879, %v3880
  %v3882 = vsel %vm1235, %v3705, 0.0
  %v3883 = vadd.f32 %v3881, %v3882
  %v3884 = vsel %vm1235, %v3706, 0.0
  %v3885 = vadd.f32 %v3883, %v3884
  %v3886 = vsel %vm1235, %v3707, 0.0
  %v3887 = vadd.f32 %v3885, %v3886
  %v3888 = vsel %vm1235, %v3708, 0.0
  %v3889 = vadd.f32 %v3887, %v3888
  %v3890 = vsel %vm1235, %v3709, 0.0
  %v3891 = vadd.f32 %v3889, %v3890
  %v3892 = vsel %vm1235, %v3710, 0.0
  %v3893 = vadd.f32 %v3891, %v3892
  %v3894 = vsel %vm1235, %v3711, 0.0
  %v3895 = vadd.f32 %v3893, %v3894
  %v3896 = vsel %vm1235, %v3712, 0.0
  %v3897 = vadd.f32 %v3895, %v3896
  %v3898 = vsel %vm1235, %v3713, 0.0
  %v3899 = vadd.f32 %v3897, %v3898
  %v3900 = vsel %vm1235, %v3714, 0.0
  %v3901 = vadd.f32 %v3899, %v3900
  %v3902 = vsel %vm1235, %v3715, 0.0
  %v3903 = vadd.f32 %v3901, %v3902
  %v3904 = vsel %vm1235, %v3716, 0.0
  %v3905 = vadd.f32 %v3903, %v3904
  %v3906 = vsel %vm1235, %v3717, 0.0
  %v3907 = vadd.f32 %v3905, %v3906
  %v3908 = vsel %vm1235, %v3718, 0.0
  %v3909 = vadd.f32 %v3907, %v3908
  %v3910 = vrot.slane %v3909, 4
  %v3911 = vadd.f32 %v3909, %v3910
  %v3912 = vrot.slane %v3911, 2
  %v3913 = vadd.f32 %v3911, %v3912
  %v3914 = vrot.slane %v3913, 1
  %v3915 = vadd.f32 %v3913, %v3914
  %v3916 = vsel %vm1235, %v3719, 0.0
  %v3917 = vsel %vm1235, %v3720, 0.0
  %v3918 = vadd.f32 %v3916, %v3917
  %v3919 = vsel %vm1235, %v3721, 0.0
  %v3920 = vadd.f32 %v3918, %v3919
  %v3921 = vsel %vm1235, %v3722, 0.0
  %v3922 = vadd.f32 %v3920, %v3921
  %v3923 = vsel %vm1235, %v3723, 0.0
  %v3924 = vadd.f32 %v3922, %v3923
  %v3925 = vsel %vm1235, %v3724, 0.0
  %v3926 = vadd.f32 %v3924, %v3925
  %v3927 = vsel %vm1235, %v3725, 0.0
  %v3928 = vadd.f32 %v3926, %v3927
  %v3929 = vsel %vm1235, %v3726, 0.0
  %v3930 = vadd.f32 %v3928, %v3929
  %v3931 = vsel %vm1235, %v3727, 0.0
  %v3932 = vadd.f32 %v3930, %v3931
  %v3933 = vsel %vm1235, %v3728, 0.0
  %v3934 = vadd.f32 %v3932, %v3933
  %v3935 = vsel %vm1235, %v3729, 0.0
  %v3936 = vadd.f32 %v3934, %v3935
  %v3937 = vsel %vm1235, %v3730, 0.0
  %v3938 = vadd.f32 %v3936, %v3937
  %v3939 = vsel %vm1235, %v3731, 0.0
  %v3940 = vadd.f32 %v3938, %v3939
  %v3941 = vsel %vm1235, %v3732, 0.0
  %v3942 = vadd.f32 %v3940, %v3941
  %v3943 = vsel %vm1235, %v3733, 0.0
  %v3944 = vadd.f32 %v3942, %v3943
  %v3945 = vsel %vm1235, %v3734, 0.0
  %v3946 = vadd.f32 %v3944, %v3945
  %v3947 = vsel %vm1235, %v3735, 0.0
  %v3948 = vadd.f32 %v3946, %v3947
  %v3949 = vsel %vm1235, %v3736, 0.0
  %v3950 = vadd.f32 %v3948, %v3949
  %v3951 = vsel %vm1235, %v3737, 0.0
  %v3952 = vadd.f32 %v3950, %v3951
  %v3953 = vsel %vm1235, %v3738, 0.0
  %v3954 = vadd.f32 %v3952, %v3953
  %v3955 = vsel %vm1235, %v3739, 0.0
  %v3956 = vadd.f32 %v3954, %v3955
  %v3957 = vsel %vm1235, %v3740, 0.0
  %v3958 = vadd.f32 %v3956, %v3957
  %v3959 = vsel %vm1235, %v3741, 0.0
  %v3960 = vadd.f32 %v3958, %v3959
  %v3961 = vsel %vm1235, %v3742, 0.0
  %v3962 = vadd.f32 %v3960, %v3961
  %v3963 = vsel %vm1235, %v3743, 0.0
  %v3964 = vadd.f32 %v3962, %v3963
  %v3965 = vsel %vm1235, %v3744, 0.0
  %v3966 = vadd.f32 %v3964, %v3965
  %v3967 = vsel %vm1235, %v3745, 0.0
  %v3968 = vadd.f32 %v3966, %v3967
  %v3969 = vsel %vm1235, %v3746, 0.0
  %v3970 = vadd.f32 %v3968, %v3969
  %v3971 = vsel %vm1235, %v3747, 0.0
  %v3972 = vadd.f32 %v3970, %v3971
  %v3973 = vsel %vm1235, %v3748, 0.0
  %v3974 = vadd.f32 %v3972, %v3973
  %v3975 = vsel %vm1235, %v3749, 0.0
  %v3976 = vadd.f32 %v3974, %v3975
  %v3977 = vsel %vm1235, %v3750, 0.0
  %v3978 = vadd.f32 %v3976, %v3977
  %v3979 = vsel %vm1235, %v3751, 0.0
  %v3980 = vadd.f32 %v3978, %v3979
  %v3981 = vsel %vm1235, %v3752, 0.0
  %v3982 = vadd.f32 %v3980, %v3981
  %v3983 = vsel %vm1235, %v3753, 0.0
  %v3984 = vadd.f32 %v3982, %v3983
  %v3985 = vsel %vm1235, %v3754, 0.0
  %v3986 = vadd.f32 %v3984, %v3985
  %v3987 = vsel %vm1235, %v3755, 0.0
  %v3988 = vadd.f32 %v3986, %v3987
  %v3989 = vsel %vm1235, %v3756, 0.0
  %v3990 = vadd.f32 %v3988, %v3989
  %v3991 = vsel %vm1235, %v3757, 0.0
  %v3992 = vadd.f32 %v3990, %v3991
  %v3993 = vsel %vm1235, %v3758, 0.0
  %v3994 = vadd.f32 %v3992, %v3993
  %v3995 = vsel %vm1235, %v3759, 0.0
  %v3996 = vadd.f32 %v3994, %v3995
  %v3997 = vsel %vm1235, %v3760, 0.0
  %v3998 = vadd.f32 %v3996, %v3997
  %v3999 = vsel %vm1235, %v3761, 0.0
  %v4000 = vadd.f32 %v3998, %v3999
  %v4001 = vsel %vm1235, %v3762, 0.0
  %v4002 = vadd.f32 %v4000, %v4001
  %v4003 = vsel %vm1235, %v3763, 0.0
  %v4004 = vadd.f32 %v4002, %v4003
  %v4005 = vsel %vm1235, %v3764, 0.0
  %v4006 = vadd.f32 %v4004, %v4005
  %v4007 = vsel %vm1235, %v3765, 0.0
  %v4008 = vadd.f32 %v4006, %v4007
  %v4009 = vsel %vm1235, %v3766, 0.0
  %v4010 = vadd.f32 %v4008, %v4009
  %v4011 = vsel %vm1235, %v3767, 0.0
  %v4012 = vadd.f32 %v4010, %v4011
  %v4013 = vsel %vm1235, %v3768, 0.0
  %v4014 = vadd.f32 %v4012, %v4013
  %v4015 = vsel %vm1235, %v3769, 0.0
  %v4016 = vadd.f32 %v4014, %v4015
  %v4017 = vsel %vm1235, %v3770, 0.0
  %v4018 = vadd.f32 %v4016, %v4017
  %v4019 = vsel %vm1235, %v3771, 0.0
  %v4020 = vadd.f32 %v4018, %v4019
  %v4021 = vsel %vm1235, %v3772, 0.0
  %v4022 = vadd.f32 %v4020, %v4021
  %v4023 = vsel %vm1235, %v3773, 0.0
  %v4024 = vadd.f32 %v4022, %v4023
  %v4025 = vsel %vm1235, %v3774, 0.0
  %v4026 = vadd.f32 %v4024, %v4025
  %v4027 = vsel %vm1235, %v3775, 0.0
  %v4028 = vadd.f32 %v4026, %v4027
  %v4029 = vsel %vm1235, %v3776, 0.0
  %v4030 = vadd.f32 %v4028, %v4029
  %v4031 = vsel %vm1235, %v3777, 0.0
  %v4032 = vadd.f32 %v4030, %v4031
  %v4033 = vsel %vm1235, %v3778, 0.0
  %v4034 = vadd.f32 %v4032, %v4033
  %v4035 = vsel %vm1235, %v3779, 0.0
  %v4036 = vadd.f32 %v4034, %v4035
  %v4037 = vsel %vm1235, %v3780, 0.0
  %v4038 = vadd.f32 %v4036, %v4037
  %v4039 = vsel %vm1235, %v3781, 0.0
  %v4040 = vadd.f32 %v4038, %v4039
  %v4041 = vsel %vm1235, %v3782, 0.0
  %v4042 = vadd.f32 %v4040, %v4041
  %v4043 = vrot.slane %v4042, 4
  %v4044 = vadd.f32 %v4042, %v4043
  %v4045 = vrot.slane %v4044, 2
  %v4046 = vadd.f32 %v4044, %v4045
  %v4047 = vrot.slane %v4046, 1
  %v4048 = vadd.f32 %v4046, %v4047
  %v4049 = vmul.f32 %v3915, %v1502
  %v4050 = vmul.f32 %v4048, %v1502
  %v4051 = vlaneseq
  %v4052 = vshrl.u32 %v4051, 7
  %v4053 = vsub.s32 0, %v4052
  %v4054 = vrot.slane %v3384, %v4053
  %v4055 = vadd.f32 %v3653, %v4054
  %v4056 = vadd.f32 %v3654, %v4054
  %v4057 = vmul.f32 %v3384, 2.0
  %v4058 = vlaneseq
  %v4059 = vshrl.u32 %v4058, 7
  %v4060 = vsub.s32 0, %v4059
  %v4061 = vrot.slane %v4057, %v4060
  %v4064 = vsel %vm1914, %v3654, %v3653
  %v4066 = vmul.f32 %v4061, %v4064
  %v4068 = vrot.slane %v4066, 1
  %v4071 = vadd.f32 %v4049, %v4066
  %v4072 = vadd.f32 %v4050, %v4068
  %v4073 = vmul.f32 %v3384, %v3384
  %v4074 = vlaneseq
  %v4075 = vshrl.u32 %v4074, 7
  %v4076 = vsub.s32 0, %v4075
  %v4077 = vrot.slane %v4073, %v4076
  %v4078 = vadd.f32 %v4071, %v4077
  %v4079 = vadd.f32 %v4072, %v4077
  %v4082 = vrot.slane %v4056, 7
  %v4083 = vsel %vm1914, %v4082, %v4055
  %v4084 = vsel %vm1235, %v4083, 0
  %4086 = vmatprep.subr.mxu0 0.0
  %4087 = vmatpush1.msra.mxu0 %v21
  %4088 = vmatprep.subr.mxu0 0.0
  %4089 = vmatpush1.msra.mxu0 %v22
  %4090 = vmatprep.subr.mxu0 0.0
  %4091 = vmatpush1.msra.mxu0 %v23
  %4092 = vmatprep.subr.mxu0 0.0
  %4093 = vmatpush1.msra.mxu0 %v24
  %4094 = vmatprep.subr.mxu0 0.0
  %4095 = vmatpush1.msra.mxu0 %v25
  %4096 = vmatprep.subr.mxu0 0.0
  %4097 = vmatpush1.msra.mxu0 %v26
  %4098 = vmatprep.subr.mxu0 0.0
  %4099 = vmatpush1.msra.mxu0 %v27
  %4100 = vmatprep.subr.mxu0 0.0
  %4101 = vmatpush1.msra.mxu0 %v28
  %4102 = vmatprep.subr.mxu0 0.0
  %4103 = vmatpush1.msra.mxu0 0.0
  %4104 = vmatprep.subr.mxu0 0.0
  %4105 = vmatpush1.msra.mxu0 0.0
  %4106 = vmatprep.subr.mxu0 0.0
  %4107 = vmatpush1.msra.mxu0 0.0
  %4108 = vmatprep.subr.mxu0 0.0
  %4109 = vmatpush1.msra.mxu0 0.0
  %4110 = vmatprep.subr.mxu0 0.0
  %4111 = vmatpush1.msra.mxu0 0.0
  %4112 = vmatprep.subr.mxu0 0.0
  %4113 = vmatpush1.msra.mxu0 0.0
  %4114 = vmatprep.subr.mxu0 0.0
  %4115 = vmatpush1.msra.mxu0 0.0
  %4116 = vmatprep.subr.mxu0 0.0
  %4117 = vmatpush1.msra.mxu0 0.0
  %4118 = vmatprep.subr.mxu0 0.0
  %4119 = vmatpush1.msra.mxu0 0.0
  %4120 = vmatprep.subr.mxu0 0.0
  %4121 = vmatpush1.msra.mxu0 0.0
  %4122 = vmatprep.subr.mxu0 0.0
  %4123 = vmatpush1.msra.mxu0 0.0
  %4124 = vmatprep.subr.mxu0 0.0
  %4125 = vmatpush1.msra.mxu0 0.0
  %4126 = vmatprep.subr.mxu0 0.0
  %4127 = vmatpush1.msra.mxu0 0.0
  %4128 = vmatprep.subr.mxu0 0.0
  %4129 = vmatpush1.msra.mxu0 0.0
  %4130 = vmatprep.subr.mxu0 0.0
  %4131 = vmatpush1.msra.mxu0 0.0
  %4132 = vmatprep.subr.mxu0 0.0
  %4133 = vmatpush1.msra.mxu0 0.0
  %4134 = vmatprep.subr.mxu0 0.0
  %4135 = vmatpush1.msra.mxu0 0.0
  %4136 = vmatprep.subr.mxu0 0.0
  %4137 = vmatpush1.msra.mxu0 0.0
  %4138 = vmatprep.subr.mxu0 0.0
  %4139 = vmatpush1.msra.mxu0 0.0
  %4140 = vmatprep.subr.mxu0 0.0
  %4141 = vmatpush1.msra.mxu0 0.0
  %4142 = vmatprep.subr.mxu0 0.0
  %4143 = vmatpush1.msra.mxu0 0.0
  %4144 = vmatprep.subr.mxu0 0.0
  %4145 = vmatpush1.msra.mxu0 0.0
  %4146 = vmatprep.subr.mxu0 0.0
  %4147 = vmatpush1.msra.mxu0 0.0
  %4148 = vmatprep.subr.mxu0 0.0
  %4149 = vmatpush1.msra.mxu0 0.0
  %4150 = vmatprep.mubr.f32.mxu0 0.0
  %4151 = vmatmul.mubr.f32.gmra.mrb[0].mxu0 %v4084
  %v4152 = vpop.f32.mrb[0].mxu0
  %v4153 = vadd.f32 0.0, %v4152
  %v4154 = vpop.f32.mrb[0].mxu0
  %4155 = vdwg.mxu0
  %v4158 = vrot.slane %v4079, 7
  %v4159 = vsel %vm1914, %v4158, %v4078
  %v4160 = vsel %vm1235, %v4159, 0
  %4162 = vmatprep.subr.mxu0 0.0
  %4163 = vmatpush1.msra.mxu0 %v21
  %4164 = vmatprep.subr.mxu0 0.0
  %4165 = vmatpush1.msra.mxu0 %v22
  %4166 = vmatprep.subr.mxu0 0.0
  %4167 = vmatpush1.msra.mxu0 %v23
  %4168 = vmatprep.subr.mxu0 0.0
  %4169 = vmatpush1.msra.mxu0 %v24
  %4170 = vmatprep.subr.mxu0 0.0
  %4171 = vmatpush1.msra.mxu0 %v25
  %4172 = vmatprep.subr.mxu0 0.0
  %4173 = vmatpush1.msra.mxu0 %v26
  %4174 = vmatprep.subr.mxu0 0.0
  %4175 = vmatpush1.msra.mxu0 %v27
  %4176 = vmatprep.subr.mxu0 0.0
  %4177 = vmatpush1.msra.mxu0 %v28
  %4178 = vmatprep.subr.mxu0 0.0
  %4179 = vmatpush1.msra.mxu0 0.0
  %4180 = vmatprep.subr.mxu0 0.0
  %4181 = vmatpush1.msra.mxu0 0.0
  %4182 = vmatprep.subr.mxu0 0.0
  %4183 = vmatpush1.msra.mxu0 0.0
  %4184 = vmatprep.subr.mxu0 0.0
  %4185 = vmatpush1.msra.mxu0 0.0
  %4186 = vmatprep.subr.mxu0 0.0
  %4187 = vmatpush1.msra.mxu0 0.0
  %4188 = vmatprep.subr.mxu0 0.0
  %4189 = vmatpush1.msra.mxu0 0.0
  %4190 = vmatprep.subr.mxu0 0.0
  %4191 = vmatpush1.msra.mxu0 0.0
  %4192 = vmatprep.subr.mxu0 0.0
  %4193 = vmatpush1.msra.mxu0 0.0
  %4194 = vmatprep.subr.mxu0 0.0
  %4195 = vmatpush1.msra.mxu0 0.0
  %4196 = vmatprep.subr.mxu0 0.0
  %4197 = vmatpush1.msra.mxu0 0.0
  %4198 = vmatprep.subr.mxu0 0.0
  %4199 = vmatpush1.msra.mxu0 0.0
  %4200 = vmatprep.subr.mxu0 0.0
  %4201 = vmatpush1.msra.mxu0 0.0
  %4202 = vmatprep.subr.mxu0 0.0
  %4203 = vmatpush1.msra.mxu0 0.0
  %4204 = vmatprep.subr.mxu0 0.0
  %4205 = vmatpush1.msra.mxu0 0.0
  %4206 = vmatprep.subr.mxu0 0.0
  %4207 = vmatpush1.msra.mxu0 0.0
  %4208 = vmatprep.subr.mxu0 0.0
  %4209 = vmatpush1.msra.mxu0 0.0
  %4210 = vmatprep.subr.mxu0 0.0
  %4211 = vmatpush1.msra.mxu0 0.0
  %4212 = vmatprep.subr.mxu0 0.0
  %4213 = vmatpush1.msra.mxu0 0.0
  %4214 = vmatprep.subr.mxu0 0.0
  %4215 = vmatpush1.msra.mxu0 0.0
  %4216 = vmatprep.subr.mxu0 0.0
  %4217 = vmatpush1.msra.mxu0 0.0
  %4218 = vmatprep.subr.mxu0 0.0
  %4219 = vmatpush1.msra.mxu0 0.0
  %4220 = vmatprep.subr.mxu0 0.0
  %4221 = vmatpush1.msra.mxu0 0.0
  %4222 = vmatprep.subr.mxu0 0.0
  %4223 = vmatpush1.msra.mxu0 0.0
  %4224 = vmatprep.subr.mxu0 0.0
  %4225 = vmatpush1.msra.mxu0 0.0
  %4226 = vmatprep.mubr.f32.mxu0 0.0
  %4227 = vmatmul.mubr.f32.gmra.mrb[0].mxu0 %v4160
  %v4228 = vpop.f32.mrb[0].mxu0
  %v4229 = vadd.f32 0.0, %v4228
  %v4230 = vpop.f32.mrb[0].mxu0
  %4231 = vdwg.mxu0
  %v4232 = vmul.f32 %v4153, %v4153
  %v4233 = vsub.f32 %v4229, %v4232
  %v4234 = vmax.f32 %v4233, 0.0
  %v4235 = vadd.f32 %v4234, 1e-05
  %v4236 = vrsqrt.pop %v4235
  %v4237 = vlaneseq
  %v4238 = vshrl.u32 %v4237, 7
  %v4239 = vsub.s32 0, %v4238
  %v4240 = vrot.slane %v3385, %v4239
  %v4241 = vmul.f32 %v4236, %v4240
  %v4242 = vsub.f32 %v4054, %v4153
  %v4243 = vmul.f32 %v4242, %v4241
  %v4244 = vlaneseq
  %v4245 = vshrl.u32 %v4244, 7
  %v4246 = vsub.s32 0, %v4245
  %v4247 = vrot.slane %v3386, %v4246
  %v4248 = vadd.f32 %v4243, %v4247
  %v4251 = vunpack.c.l.s4 1966171168
  %v4252 = vunpack.c.0.s8 %v4251
  %v4253 = vlaneseq
  %v4254 = vshrl.u32 %v4253, 7
  %v4255 = vsub.s32 %v4252, %v4254
  %v4256 = vrot.slane %v4241, %v4255
  %v4257 = vcombine.high %v4256, %v4256
  %v4259 = vunpack.c.l.s4 1966171168
  %v4260 = vunpack.c.0.s8 %v4259
  %v4261 = vlaneseq
  %v4262 = vshrl.u32 %v4261, 7
  %v4263 = vsub.s32 %v4260, %v4262
  %v4264 = vrot.slane %v4256, %v4263
  %v4266 = vunpack.c.l.s4 1966171168
  %v4267 = vunpack.c.0.s8 %v4266
  %v4268 = vlaneseq
  %v4269 = vshrl.u32 %v4268, 7
  %v4270 = vsub.s32 %v4267, %v4269
  %v4271 = vrot.slane %v4257, %v4270
  %v4272 = vlaneseq
  %v4273 = vshrl.u32 %v4272, 7
  %v4274 = vsub.s32 0, %v4273
  %v4275 = vrot.slane %v4264, %v4274
  %v4276 = vlaneseq
  %v4277 = vshrl.u32 %v4276, 7
  %v4278 = vsub.s32 0, %v4277
  %v4279 = vrot.slane %v4271, %v4278
  %v4282 = vmul.f32 %v2873, %v4275
  %v4283 = vmul.f32 %v2876, %v4275
  %v4284 = vmul.f32 %v2881, %v4275
  %v4285 = vmul.f32 %v2884, %v4275
  %v4286 = vmul.f32 %v2889, %v4275
  %v4287 = vmul.f32 %v2892, %v4275
  %v4288 = vmul.f32 %v2897, %v4275
  %v4289 = vmul.f32 %v2900, %v4275
  %v4290 = vmul.f32 %v2905, %v4275
  %v4291 = vmul.f32 %v2908, %v4275
  %v4292 = vmul.f32 %v2913, %v4275
  %v4293 = vmul.f32 %v2916, %v4275
  %v4294 = vmul.f32 %v2921, %v4275
  %v4295 = vmul.f32 %v2924, %v4275
  %v4296 = vmul.f32 %v2929, %v4275
  %v4297 = vmul.f32 %v2932, %v4275
  %v4298 = vmul.f32 %v2937, %v4275
  %v4299 = vmul.f32 %v2940, %v4275
  %v4300 = vmul.f32 %v2945, %v4275
  %v4301 = vmul.f32 %v2948, %v4275
  %v4302 = vmul.f32 %v2953, %v4275
  %v4303 = vmul.f32 %v2956, %v4275
  %v4304 = vmul.f32 %v2961, %v4275
  %v4305 = vmul.f32 %v2964, %v4275
  %v4306 = vmul.f32 %v2969, %v4275
  %v4307 = vmul.f32 %v2972, %v4275
  %v4308 = vmul.f32 %v2977, %v4275
  %v4309 = vmul.f32 %v2980, %v4275
  %v4310 = vmul.f32 %v2985, %v4275
  %v4311 = vmul.f32 %v2988, %v4275
  %v4312 = vmul.f32 %v2993, %v4275
  %v4313 = vmul.f32 %v2996, %v4275
  %v4314 = vmul.f32 %v3001, %v4275
  %v4315 = vmul.f32 %v3004, %v4275
  %v4316 = vmul.f32 %v3009, %v4275
  %v4317 = vmul.f32 %v3012, %v4275
  %v4318 = vmul.f32 %v3017, %v4275
  %v4319 = vmul.f32 %v3020, %v4275
  %v4320 = vmul.f32 %v3025, %v4275
  %v4321 = vmul.f32 %v3028, %v4275
  %v4322 = vmul.f32 %v3033, %v4275
  %v4323 = vmul.f32 %v3036, %v4275
  %v4324 = vmul.f32 %v3041, %v4275
  %v4325 = vmul.f32 %v3044, %v4275
  %v4326 = vmul.f32 %v3049, %v4275
  %v4327 = vmul.f32 %v3052, %v4275
  %v4328 = vmul.f32 %v3057, %v4275
  %v4329 = vmul.f32 %v3060, %v4275
  %v4330 = vmul.f32 %v3065, %v4275
  %v4331 = vmul.f32 %v3068, %v4275
  %v4332 = vmul.f32 %v3073, %v4275
  %v4333 = vmul.f32 %v3076, %v4275
  %v4334 = vmul.f32 %v3081, %v4275
  %v4335 = vmul.f32 %v3084, %v4275
  %v4336 = vmul.f32 %v3089, %v4275
  %v4337 = vmul.f32 %v3092, %v4275
  %v4338 = vmul.f32 %v3097, %v4275
  %v4339 = vmul.f32 %v3100, %v4275
  %v4340 = vmul.f32 %v3105, %v4275
  %v4341 = vmul.f32 %v3108, %v4275
  %v4342 = vmul.f32 %v3113, %v4275
  %v4343 = vmul.f32 %v3116, %v4275
  %v4344 = vmul.f32 %v3121, %v4275
  %v4345 = vmul.f32 %v3124, %v4275
  %v4346 = vmul.f32 %v3129, %v4279
  %v4347 = vmul.f32 %v3132, %v4279
  %v4348 = vmul.f32 %v3137, %v4279
  %v4349 = vmul.f32 %v3140, %v4279
  %v4350 = vmul.f32 %v3145, %v4279
  %v4351 = vmul.f32 %v3148, %v4279
  %v4352 = vmul.f32 %v3153, %v4279
  %v4353 = vmul.f32 %v3156, %v4279
  %v4354 = vmul.f32 %v3161, %v4279
  %v4355 = vmul.f32 %v3164, %v4279
  %v4356 = vmul.f32 %v3169, %v4279
  %v4357 = vmul.f32 %v3172, %v4279
  %v4358 = vmul.f32 %v3177, %v4279
  %v4359 = vmul.f32 %v3180, %v4279
  %v4360 = vmul.f32 %v3185, %v4279
  %v4361 = vmul.f32 %v3188, %v4279
  %v4362 = vmul.f32 %v3193, %v4279
  %v4363 = vmul.f32 %v3196, %v4279
  %v4364 = vmul.f32 %v3201, %v4279
  %v4365 = vmul.f32 %v3204, %v4279
  %v4366 = vmul.f32 %v3209, %v4279
  %v4367 = vmul.f32 %v3212, %v4279
  %v4368 = vmul.f32 %v3217, %v4279
  %v4369 = vmul.f32 %v3220, %v4279
  %v4370 = vmul.f32 %v3225, %v4279
  %v4371 = vmul.f32 %v3228, %v4279
  %v4372 = vmul.f32 %v3233, %v4279
  %v4373 = vmul.f32 %v3236, %v4279
  %v4374 = vmul.f32 %v3241, %v4279
  %v4375 = vmul.f32 %v3244, %v4279
  %v4376 = vmul.f32 %v3249, %v4279
  %v4377 = vmul.f32 %v3252, %v4279
  %v4378 = vmul.f32 %v3257, %v4279
  %v4379 = vmul.f32 %v3260, %v4279
  %v4380 = vmul.f32 %v3265, %v4279
  %v4381 = vmul.f32 %v3268, %v4279
  %v4382 = vmul.f32 %v3273, %v4279
  %v4383 = vmul.f32 %v3276, %v4279
  %v4384 = vmul.f32 %v3281, %v4279
  %v4385 = vmul.f32 %v3284, %v4279
  %v4386 = vmul.f32 %v3289, %v4279
  %v4387 = vmul.f32 %v3292, %v4279
  %v4388 = vmul.f32 %v3297, %v4279
  %v4389 = vmul.f32 %v3300, %v4279
  %v4390 = vmul.f32 %v3305, %v4279
  %v4391 = vmul.f32 %v3308, %v4279
  %v4392 = vmul.f32 %v3313, %v4279
  %v4393 = vmul.f32 %v3316, %v4279
  %v4394 = vmul.f32 %v3321, %v4279
  %v4395 = vmul.f32 %v3324, %v4279
  %v4396 = vmul.f32 %v3329, %v4279
  %v4397 = vmul.f32 %v3332, %v4279
  %v4398 = vmul.f32 %v3337, %v4279
  %v4399 = vmul.f32 %v3340, %v4279
  %v4400 = vmul.f32 %v3345, %v4279
  %v4401 = vmul.f32 %v3348, %v4279
  %v4402 = vmul.f32 %v3353, %v4279
  %v4403 = vmul.f32 %v3356, %v4279
  %v4404 = vmul.f32 %v3361, %v4279
  %v4405 = vmul.f32 %v3364, %v4279
  %v4406 = vmul.f32 %v3369, %v4279
  %v4407 = vmul.f32 %v3372, %v4279
  %v4408 = vmul.f32 %v3377, %v4279
  %v4409 = vmul.f32 %v3380, %v4279
  %v4412 = vunpack.c.l.s4 1966171168
  %v4413 = vunpack.c.0.s8 %v4412
  %v4414 = vlaneseq
  %v4415 = vshrl.u32 %v4414, 7
  %v4416 = vsub.s32 %v4413, %v4415
  %v4417 = vrot.slane %v4248, %v4416
  %v4418 = vcombine.high %v4417, %v4417
  %v4420 = vunpack.c.l.s4 1966171168
  %v4421 = vunpack.c.0.s8 %v4420
  %v4422 = vlaneseq
  %v4423 = vshrl.u32 %v4422, 7
  %v4424 = vsub.s32 %v4421, %v4423
  %v4425 = vrot.slane %v4417, %v4424
  %v4427 = vunpack.c.l.s4 1966171168
  %v4428 = vunpack.c.0.s8 %v4427
  %v4429 = vlaneseq
  %v4430 = vshrl.u32 %v4429, 7
  %v4431 = vsub.s32 %v4428, %v4430
  %v4432 = vrot.slane %v4418, %v4431
  %v4433 = vlaneseq
  %v4434 = vshrl.u32 %v4433, 7
  %v4435 = vsub.s32 0, %v4434
  %v4436 = vrot.slane %v4425, %v4435
  %v4437 = vlaneseq
  %v4438 = vshrl.u32 %v4437, 7
  %v4439 = vsub.s32 0, %v4438
  %v4440 = vrot.slane %v4432, %v4439
  %v4443 = vadd.f32 %v4282, %v4436
  %v4444 = vadd.f32 %v4283, %v4436
  %v4445 = vadd.f32 %v4284, %v4436
  %v4446 = vadd.f32 %v4285, %v4436
  %v4447 = vadd.f32 %v4286, %v4436
  %v4448 = vadd.f32 %v4287, %v4436
  %v4449 = vadd.f32 %v4288, %v4436
  %v4450 = vadd.f32 %v4289, %v4436
  %v4451 = vadd.f32 %v4290, %v4436
  %v4452 = vadd.f32 %v4291, %v4436
  %v4453 = vadd.f32 %v4292, %v4436
  %v4454 = vadd.f32 %v4293, %v4436
  %v4455 = vadd.f32 %v4294, %v4436
  %v4456 = vadd.f32 %v4295, %v4436
  %v4457 = vadd.f32 %v4296, %v4436
  %v4458 = vadd.f32 %v4297, %v4436
  %v4459 = vadd.f32 %v4298, %v4436
  %v4460 = vadd.f32 %v4299, %v4436
  %v4461 = vadd.f32 %v4300, %v4436
  %v4462 = vadd.f32 %v4301, %v4436
  %v4463 = vadd.f32 %v4302, %v4436
  %v4464 = vadd.f32 %v4303, %v4436
  %v4465 = vadd.f32 %v4304, %v4436
  %v4466 = vadd.f32 %v4305, %v4436
  %v4467 = vadd.f32 %v4306, %v4436
  %v4468 = vadd.f32 %v4307, %v4436
  %v4469 = vadd.f32 %v4308, %v4436
  %v4470 = vadd.f32 %v4309, %v4436
  %v4471 = vadd.f32 %v4310, %v4436
  %v4472 = vadd.f32 %v4311, %v4436
  %v4473 = vadd.f32 %v4312, %v4436
  %v4474 = vadd.f32 %v4313, %v4436
  %v4475 = vadd.f32 %v4314, %v4436
  %v4476 = vadd.f32 %v4315, %v4436
  %v4477 = vadd.f32 %v4316, %v4436
  %v4478 = vadd.f32 %v4317, %v4436
  %v4479 = vadd.f32 %v4318, %v4436
  %v4480 = vadd.f32 %v4319, %v4436
  %v4481 = vadd.f32 %v4320, %v4436
  %v4482 = vadd.f32 %v4321, %v4436
  %v4483 = vadd.f32 %v4322, %v4436
  %v4484 = vadd.f32 %v4323, %v4436
  %v4485 = vadd.f32 %v4324, %v4436
  %v4486 = vadd.f32 %v4325, %v4436
  %v4487 = vadd.f32 %v4326, %v4436
  %v4488 = vadd.f32 %v4327, %v4436
  %v4489 = vadd.f32 %v4328, %v4436
  %v4490 = vadd.f32 %v4329, %v4436
  %v4491 = vadd.f32 %v4330, %v4436
  %v4492 = vadd.f32 %v4331, %v4436
  %v4493 = vadd.f32 %v4332, %v4436
  %v4494 = vadd.f32 %v4333, %v4436
  %v4495 = vadd.f32 %v4334, %v4436
  %v4496 = vadd.f32 %v4335, %v4436
  %v4497 = vadd.f32 %v4336, %v4436
  %v4498 = vadd.f32 %v4337, %v4436
  %v4499 = vadd.f32 %v4338, %v4436
  %v4500 = vadd.f32 %v4339, %v4436
  %v4501 = vadd.f32 %v4340, %v4436
  %v4502 = vadd.f32 %v4341, %v4436
  %v4503 = vadd.f32 %v4342, %v4436
  %v4504 = vadd.f32 %v4343, %v4436
  %v4505 = vadd.f32 %v4344, %v4436
  %v4506 = vadd.f32 %v4345, %v4436
  %v4507 = vadd.f32 %v4346, %v4440
  %v4508 = vadd.f32 %v4347, %v4440
  %v4509 = vadd.f32 %v4348, %v4440
  %v4510 = vadd.f32 %v4349, %v4440
  %v4511 = vadd.f32 %v4350, %v4440
  %v4512 = vadd.f32 %v4351, %v4440
  %v4513 = vadd.f32 %v4352, %v4440
  %v4514 = vadd.f32 %v4353, %v4440
  %v4515 = vadd.f32 %v4354, %v4440
  %v4516 = vadd.f32 %v4355, %v4440
  %v4517 = vadd.f32 %v4356, %v4440
  %v4518 = vadd.f32 %v4357, %v4440
  %v4519 = vadd.f32 %v4358, %v4440
  %v4520 = vadd.f32 %v4359, %v4440
  %v4521 = vadd.f32 %v4360, %v4440
  %v4522 = vadd.f32 %v4361, %v4440
  %v4523 = vadd.f32 %v4362, %v4440
  %v4524 = vadd.f32 %v4363, %v4440
  %v4525 = vadd.f32 %v4364, %v4440
  %v4526 = vadd.f32 %v4365, %v4440
  %v4527 = vadd.f32 %v4366, %v4440
  %v4528 = vadd.f32 %v4367, %v4440
  %v4529 = vadd.f32 %v4368, %v4440
  %v4530 = vadd.f32 %v4369, %v4440
  %v4531 = vadd.f32 %v4370, %v4440
  %v4532 = vadd.f32 %v4371, %v4440
  %v4533 = vadd.f32 %v4372, %v4440
  %v4534 = vadd.f32 %v4373, %v4440
  %v4535 = vadd.f32 %v4374, %v4440
  %v4536 = vadd.f32 %v4375, %v4440
  %v4537 = vadd.f32 %v4376, %v4440
  %v4538 = vadd.f32 %v4377, %v4440
  %v4539 = vadd.f32 %v4378, %v4440
  %v4540 = vadd.f32 %v4379, %v4440
  %v4541 = vadd.f32 %v4380, %v4440
  %v4542 = vadd.f32 %v4381, %v4440
  %v4543 = vadd.f32 %v4382, %v4440
  %v4544 = vadd.f32 %v4383, %v4440
  %v4545 = vadd.f32 %v4384, %v4440
  %v4546 = vadd.f32 %v4385, %v4440
  %v4547 = vadd.f32 %v4386, %v4440
  %v4548 = vadd.f32 %v4387, %v4440
  %v4549 = vadd.f32 %v4388, %v4440
  %v4550 = vadd.f32 %v4389, %v4440
  %v4551 = vadd.f32 %v4390, %v4440
  %v4552 = vadd.f32 %v4391, %v4440
  %v4553 = vadd.f32 %v4392, %v4440
  %v4554 = vadd.f32 %v4393, %v4440
  %v4555 = vadd.f32 %v4394, %v4440
  %v4556 = vadd.f32 %v4395, %v4440
  %v4557 = vadd.f32 %v4396, %v4440
  %v4558 = vadd.f32 %v4397, %v4440
  %v4559 = vadd.f32 %v4398, %v4440
  %v4560 = vadd.f32 %v4399, %v4440
  %v4561 = vadd.f32 %v4400, %v4440
  %v4562 = vadd.f32 %v4401, %v4440
  %v4563 = vadd.f32 %v4402, %v4440
  %v4564 = vadd.f32 %v4403, %v4440
  %v4565 = vadd.f32 %v4404, %v4440
  %v4566 = vadd.f32 %v4405, %v4440
  %v4567 = vadd.f32 %v4406, %v4440
  %v4568 = vadd.f32 %v4407, %v4440
  %v4569 = vadd.f32 %v4408, %v4440
  %v4570 = vadd.f32 %v4409, %v4440
  %v4571 = vmax.f32 %v4443, 0.0
  %v4572 = vmax.f32 %v4444, 0.0
  %v4573 = vmax.f32 %v4445, 0.0
  %v4574 = vmax.f32 %v4446, 0.0
  %v4575 = vmax.f32 %v4447, 0.0
  %v4576 = vmax.f32 %v4448, 0.0
  %v4577 = vmax.f32 %v4449, 0.0
  %v4578 = vmax.f32 %v4450, 0.0
  %v4579 = vmax.f32 %v4451, 0.0
  %v4580 = vmax.f32 %v4452, 0.0
  %v4581 = vmax.f32 %v4453, 0.0
  %v4582 = vmax.f32 %v4454, 0.0
  %v4583 = vmax.f32 %v4455, 0.0
  %v4584 = vmax.f32 %v4456, 0.0
  %v4585 = vmax.f32 %v4457, 0.0
  %v4586 = vmax.f32 %v4458, 0.0
  %v4587 = vmax.f32 %v4459, 0.0
  %v4588 = vmax.f32 %v4460, 0.0
  %v4589 = vmax.f32 %v4461, 0.0
  %v4590 = vmax.f32 %v4462, 0.0
  %v4591 = vmax.f32 %v4463, 0.0
  %v4592 = vmax.f32 %v4464, 0.0
  %v4593 = vmax.f32 %v4465, 0.0
  %v4594 = vmax.f32 %v4466, 0.0
  %v4595 = vmax.f32 %v4467, 0.0
  %v4596 = vmax.f32 %v4468, 0.0
  %v4597 = vmax.f32 %v4469, 0.0
  %v4598 = vmax.f32 %v4470, 0.0
  %v4599 = vmax.f32 %v4471, 0.0
  %v4600 = vmax.f32 %v4472, 0.0
  %v4601 = vmax.f32 %v4473, 0.0
  %v4602 = vmax.f32 %v4474, 0.0
  %v4603 = vmax.f32 %v4475, 0.0
  %v4604 = vmax.f32 %v4476, 0.0
  %v4605 = vmax.f32 %v4477, 0.0
  %v4606 = vmax.f32 %v4478, 0.0
  %v4607 = vmax.f32 %v4479, 0.0
  %v4608 = vmax.f32 %v4480, 0.0
  %v4609 = vmax.f32 %v4481, 0.0
  %v4610 = vmax.f32 %v4482, 0.0
  %v4611 = vmax.f32 %v4483, 0.0
  %v4612 = vmax.f32 %v4484, 0.0
  %v4613 = vmax.f32 %v4485, 0.0
  %v4614 = vmax.f32 %v4486, 0.0
  %v4615 = vmax.f32 %v4487, 0.0
  %v4616 = vmax.f32 %v4488, 0.0
  %v4617 = vmax.f32 %v4489, 0.0
  %v4618 = vmax.f32 %v4490, 0.0
  %v4619 = vmax.f32 %v4491, 0.0
  %v4620 = vmax.f32 %v4492, 0.0
  %v4621 = vmax.f32 %v4493, 0.0
  %v4622 = vmax.f32 %v4494, 0.0
  %v4623 = vmax.f32 %v4495, 0.0
  %v4624 = vmax.f32 %v4496, 0.0
  %v4625 = vmax.f32 %v4497, 0.0
  %v4626 = vmax.f32 %v4498, 0.0
  %v4627 = vmax.f32 %v4499, 0.0
  %v4628 = vmax.f32 %v4500, 0.0
  %v4629 = vmax.f32 %v4501, 0.0
  %v4630 = vmax.f32 %v4502, 0.0
  %v4631 = vmax.f32 %v4503, 0.0
  %v4632 = vmax.f32 %v4504, 0.0
  %v4633 = vmax.f32 %v4505, 0.0
  %v4634 = vmax.f32 %v4506, 0.0
  %v4635 = vmax.f32 %v4507, 0.0
  %v4636 = vmax.f32 %v4508, 0.0
  %v4637 = vmax.f32 %v4509, 0.0
  %v4638 = vmax.f32 %v4510, 0.0
  %v4639 = vmax.f32 %v4511, 0.0
  %v4640 = vmax.f32 %v4512, 0.0
  %v4641 = vmax.f32 %v4513, 0.0
  %v4642 = vmax.f32 %v4514, 0.0
  %v4643 = vmax.f32 %v4515, 0.0
  %v4644 = vmax.f32 %v4516, 0.0
  %v4645 = vmax.f32 %v4517, 0.0
  %v4646 = vmax.f32 %v4518, 0.0
  %v4647 = vmax.f32 %v4519, 0.0
  %v4648 = vmax.f32 %v4520, 0.0
  %v4649 = vmax.f32 %v4521, 0.0
  %v4650 = vmax.f32 %v4522, 0.0
  %v4651 = vmax.f32 %v4523, 0.0
  %v4652 = vmax.f32 %v4524, 0.0
  %v4653 = vmax.f32 %v4525, 0.0
  %v4654 = vmax.f32 %v4526, 0.0
  %v4655 = vmax.f32 %v4527, 0.0
  %v4656 = vmax.f32 %v4528, 0.0
  %v4657 = vmax.f32 %v4529, 0.0
  %v4658 = vmax.f32 %v4530, 0.0
  %v4659 = vmax.f32 %v4531, 0.0
  %v4660 = vmax.f32 %v4532, 0.0
  %v4661 = vmax.f32 %v4533, 0.0
  %v4662 = vmax.f32 %v4534, 0.0
  %v4663 = vmax.f32 %v4535, 0.0
  %v4664 = vmax.f32 %v4536, 0.0
  %v4665 = vmax.f32 %v4537, 0.0
  %v4666 = vmax.f32 %v4538, 0.0
  %v4667 = vmax.f32 %v4539, 0.0
  %v4668 = vmax.f32 %v4540, 0.0
  %v4669 = vmax.f32 %v4541, 0.0
  %v4670 = vmax.f32 %v4542, 0.0
  %v4671 = vmax.f32 %v4543, 0.0
  %v4672 = vmax.f32 %v4544, 0.0
  %v4673 = vmax.f32 %v4545, 0.0
  %v4674 = vmax.f32 %v4546, 0.0
  %v4675 = vmax.f32 %v4547, 0.0
  %v4676 = vmax.f32 %v4548, 0.0
  %v4677 = vmax.f32 %v4549, 0.0
  %v4678 = vmax.f32 %v4550, 0.0
  %v4679 = vmax.f32 %v4551, 0.0
  %v4680 = vmax.f32 %v4552, 0.0
  %v4681 = vmax.f32 %v4553, 0.0
  %v4682 = vmax.f32 %v4554, 0.0
  %v4683 = vmax.f32 %v4555, 0.0
  %v4684 = vmax.f32 %v4556, 0.0
  %v4685 = vmax.f32 %v4557, 0.0
  %v4686 = vmax.f32 %v4558, 0.0
  %v4687 = vmax.f32 %v4559, 0.0
  %v4688 = vmax.f32 %v4560, 0.0
  %v4689 = vmax.f32 %v4561, 0.0
  %v4690 = vmax.f32 %v4562, 0.0
  %v4691 = vmax.f32 %v4563, 0.0
  %v4692 = vmax.f32 %v4564, 0.0
  %v4693 = vmax.f32 %v4565, 0.0
  %v4694 = vmax.f32 %v4566, 0.0
  %v4695 = vmax.f32 %v4567, 0.0
  %v4696 = vmax.f32 %v4568, 0.0
  %v4697 = vmax.f32 %v4569, 0.0
  %v4698 = vmax.f32 %v4570, 0.0
  %v4699 = vpack.c.bf16 %v4572, %v4571
  %v4700 = vpack.c.bf16 %v4574, %v4573
  %v4701 = vpack.c.bf16 %v4576, %v4575
  %v4702 = vpack.c.bf16 %v4578, %v4577
  %v4703 = vpack.c.bf16 %v4580, %v4579
  %v4704 = vpack.c.bf16 %v4582, %v4581
  %v4705 = vpack.c.bf16 %v4584, %v4583
  %v4706 = vpack.c.bf16 %v4586, %v4585
  %v4707 = vpack.c.bf16 %v4588, %v4587
  %v4708 = vpack.c.bf16 %v4590, %v4589
  %v4709 = vpack.c.bf16 %v4592, %v4591
  %v4710 = vpack.c.bf16 %v4594, %v4593
  %v4711 = vpack.c.bf16 %v4596, %v4595
  %v4712 = vpack.c.bf16 %v4598, %v4597
  %v4713 = vpack.c.bf16 %v4600, %v4599
  %v4714 = vpack.c.bf16 %v4602, %v4601
  %v4715 = vpack.c.bf16 %v4604, %v4603
  %v4716 = vpack.c.bf16 %v4606, %v4605
  %v4717 = vpack.c.bf16 %v4608, %v4607
  %v4718 = vpack.c.bf16 %v4610, %v4609
  %v4719 = vpack.c.bf16 %v4612, %v4611
  %v4720 = vpack.c.bf16 %v4614, %v4613
  %v4721 = vpack.c.bf16 %v4616, %v4615
  %v4722 = vpack.c.bf16 %v4618, %v4617
  %v4723 = vpack.c.bf16 %v4620, %v4619
  %v4724 = vpack.c.bf16 %v4622, %v4621
  %v4725 = vpack.c.bf16 %v4624, %v4623
  %v4726 = vpack.c.bf16 %v4626, %v4625
  %v4727 = vpack.c.bf16 %v4628, %v4627
  %v4728 = vpack.c.bf16 %v4630, %v4629
  %v4729 = vpack.c.bf16 %v4632, %v4631
  %v4730 = vpack.c.bf16 %v4634, %v4633
  %v4731 = vpack.c.bf16 %v4636, %v4635
  %v4732 = vpack.c.bf16 %v4638, %v4637
  %v4733 = vpack.c.bf16 %v4640, %v4639
  %v4734 = vpack.c.bf16 %v4642, %v4641
  %v4735 = vpack.c.bf16 %v4644, %v4643
  %v4736 = vpack.c.bf16 %v4646, %v4645
  %v4737 = vpack.c.bf16 %v4648, %v4647
  %v4738 = vpack.c.bf16 %v4650, %v4649
  %v4739 = vpack.c.bf16 %v4652, %v4651
  %v4740 = vpack.c.bf16 %v4654, %v4653
  %v4741 = vpack.c.bf16 %v4656, %v4655
  %v4742 = vpack.c.bf16 %v4658, %v4657
  %v4743 = vpack.c.bf16 %v4660, %v4659
  %v4744 = vpack.c.bf16 %v4662, %v4661
  %v4745 = vpack.c.bf16 %v4664, %v4663
  %v4746 = vpack.c.bf16 %v4666, %v4665
  %v4747 = vpack.c.bf16 %v4668, %v4667
  %v4748 = vpack.c.bf16 %v4670, %v4669
  %v4749 = vpack.c.bf16 %v4672, %v4671
  %v4750 = vpack.c.bf16 %v4674, %v4673
  %v4751 = vpack.c.bf16 %v4676, %v4675
  %v4752 = vpack.c.bf16 %v4678, %v4677
  %v4753 = vpack.c.bf16 %v4680, %v4679
  %v4754 = vpack.c.bf16 %v4682, %v4681
  %v4755 = vpack.c.bf16 %v4684, %v4683
  %v4756 = vpack.c.bf16 %v4686, %v4685
  %v4757 = vpack.c.bf16 %v4688, %v4687
  %v4758 = vpack.c.bf16 %v4690, %v4689
  %v4759 = vpack.c.bf16 %v4692, %v4691
  %v4760 = vpack.c.bf16 %v4694, %v4693
  %v4761 = vpack.c.bf16 %v4696, %v4695
  %v4762 = vpack.c.bf16 %v4698, %v4697
  %s4763 = scalar_lea.vmem %s2, 32
  %v4764 = vld [vmem:[%s4763] sm:$0xf]
  %v4765 = vld [vmem:[%s4763 + $0x4] sm:$0xf]
  %v4766 = vld [vmem:[%s4763 + $0x8] sm:$0xf]
  %v4767 = vld [vmem:[%s4763 + $0xc] sm:$0xf]
  %v4768 = vld [vmem:[%s4763 + $0x10] sm:$0xf]
  %v4769 = vld [vmem:[%s4763 + $0x14] sm:$0xf]
  %v4770 = vld [vmem:[%s4763 + $0x18] sm:$0xf]
  %v4771 = vld [vmem:[%s4763 + $0x1c] sm:$0xf]
  %v4780 = vunpack.c.l.b16 %v4764
  %v4781 = vunpack.c.l.b16 %v4765
  %v4782 = vunpack.c.l.b16 %v4766
  %v4783 = vunpack.c.l.b16 %v4767
  %v4784 = vunpack.c.l.b16 %v4768
  %v4785 = vunpack.c.l.b16 %v4769
  %v4786 = vunpack.c.l.b16 %v4770
  %v4787 = vunpack.c.l.b16 %v4771
  %v4788 = vpack.c.b16 %v4781, %v4780
  %v4789 = vpack.c.b16 %v4783, %v4782
  %v4790 = vpack.c.b16 %v4785, %v4784
  %v4791 = vpack.c.b16 %v4787, %v4786
  %v4797 = vsel %vm1235, %v4699, 0
  %v4800 = vsel %vm1235, %v4700, 0
  %v4803 = vsel %vm1235, %v4701, 0
  %v4806 = vsel %vm1235, %v4702, 0
  %v4809 = vsel %vm1235, %v4703, 0
  %v4812 = vsel %vm1235, %v4704, 0
  %v4815 = vsel %vm1235, %v4705, 0
  %v4818 = vsel %vm1235, %v4706, 0
  %v4821 = vsel %vm1235, %v4707, 0
  %v4824 = vsel %vm1235, %v4708, 0
  %v4827 = vsel %vm1235, %v4709, 0
  %v4830 = vsel %vm1235, %v4710, 0
  %v4833 = vsel %vm1235, %v4711, 0
  %v4836 = vsel %vm1235, %v4712, 0
  %v4839 = vsel %vm1235, %v4713, 0
  %v4842 = vsel %vm1235, %v4714, 0
  %v4845 = vsel %vm1235, %v4715, 0
  %v4848 = vsel %vm1235, %v4716, 0
  %v4851 = vsel %vm1235, %v4717, 0
  %v4854 = vsel %vm1235, %v4718, 0
  %v4857 = vsel %vm1235, %v4719, 0
  %v4860 = vsel %vm1235, %v4720, 0
  %v4863 = vsel %vm1235, %v4721, 0
  %v4866 = vsel %vm1235, %v4722, 0
  %v4869 = vsel %vm1235, %v4723, 0
  %v4872 = vsel %vm1235, %v4724, 0
  %v4875 = vsel %vm1235, %v4725, 0
  %v4878 = vsel %vm1235, %v4726, 0
  %v4881 = vsel %vm1235, %v4727, 0
  %v4884 = vsel %vm1235, %v4728, 0
  %v4887 = vsel %vm1235, %v4729, 0
  %v4890 = vsel %vm1235, %v4730, 0
  %v4893 = vsel %vm1235, %v4731, 0
  %v4896 = vsel %vm1235, %v4732, 0
  %v4899 = vsel %vm1235, %v4733, 0
  %v4902 = vsel %vm1235, %v4734, 0
  %v4905 = vsel %vm1235, %v4735, 0
  %v4908 = vsel %vm1235, %v4736, 0
  %v4911 = vsel %vm1235, %v4737, 0
  %v4914 = vsel %vm1235, %v4738, 0
  %v4917 = vsel %vm1235, %v4739, 0
  %v4920 = vsel %vm1235, %v4740, 0
  %v4923 = vsel %vm1235, %v4741, 0
  %v4926 = vsel %vm1235, %v4742, 0
  %v4929 = vsel %vm1235, %v4743, 0
  %v4932 = vsel %vm1235, %v4744, 0
  %v4935 = vsel %vm1235, %v4745, 0
  %v4938 = vsel %vm1235, %v4746, 0
  %v4941 = vsel %vm1235, %v4747, 0
  %v4944 = vsel %vm1235, %v4748, 0
  %v4947 = vsel %vm1235, %v4749, 0
  %v4950 = vsel %vm1235, %v4750, 0
  %v4953 = vsel %vm1235, %v4751, 0
  %v4956 = vsel %vm1235, %v4752, 0
  %v4959 = vsel %vm1235, %v4753, 0
  %v4962 = vsel %vm1235, %v4754, 0
  %v4965 = vsel %vm1235, %v4755, 0
  %v4968 = vsel %vm1235, %v4756, 0
  %v4971 = vsel %vm1235, %v4757, 0
  %v4974 = vsel %vm1235, %v4758, 0
  %v4977 = vsel %vm1235, %v4759, 0
  %v4980 = vsel %vm1235, %v4760, 0
  %v4983 = vsel %vm1235, %v4761, 0
  %v4986 = vsel %vm1235, %v4762, 0
  %4988 = vmatprep.subr.bf16.mxu0 0
  %4989 = vmatpush1.bf16.msra.mxu0 %v4788
  %4990 = vmatprep.subr.bf16.mxu0 0
  %4991 = vmatpush1.bf16.msra.mxu0 %v4789
  %4992 = vmatprep.subr.bf16.mxu0 0
  %4993 = vmatpush1.bf16.msra.mxu0 %v4790
  %4994 = vmatprep.subr.bf16.mxu0 0
  %4995 = vmatpush1.bf16.msra.mxu0 %v4791
  %4996 = vmatprep.subr.bf16.mxu0 0
  %4997 = vmatpush1.bf16.msra.mxu0 0
  %4998 = vmatprep.subr.bf16.mxu0 0
  %4999 = vmatpush1.bf16.msra.mxu0 0
  %5000 = vmatprep.subr.bf16.mxu0 0
  %5001 = vmatpush1.bf16.msra.mxu0 0
  %5002 = vmatprep.subr.bf16.mxu0 0
  %5003 = vmatpush1.bf16.msra.mxu0 0
  %5004 = vmatprep.subr.bf16.mxu0 0
  %5005 = vmatpush1.bf16.msra.mxu0 0
  %5006 = vmatprep.subr.bf16.mxu0 0
  %5007 = vmatpush1.bf16.msra.mxu0 0
  %5008 = vmatprep.subr.bf16.mxu0 0
  %5009 = vmatpush1.bf16.msra.mxu0 0
  %5010 = vmatprep.subr.bf16.mxu0 0
  %5011 = vmatpush1.bf16.msra.mxu0 0
  %5012 = vmatprep.subr.bf16.mxu0 0
  %5013 = vmatpush1.bf16.msra.mxu0 0
  %5014 = vmatprep.subr.bf16.mxu0 0
  %5015 = vmatpush1.bf16.msra.mxu0 0
  %5016 = vmatprep.subr.bf16.mxu0 0
  %5017 = vmatpush1.bf16.msra.mxu0 0
  %5018 = vmatprep.subr.bf16.mxu0 0
  %5019 = vmatpush1.bf16.msra.mxu0 0
  %5020 = vmatprep.mubr.bf16.mxu0 0
  %5021 = vmatmul.mubr.bf16.gmra.mrb[0].mxu0 %v4797
  %v5022 = vpop.f32.mrb[0].mxu0
  %v5023 = vadd.f32 0.0, %v5022
  %v5024 = vpop.f32.mrb[0].mxu0
  %v5025 = vpop.f32.mrb[0].mxu0
  %v5026 = vadd.f32 0.0, %v5025
  %v5027 = vpop.f32.mrb[0].mxu0
  %5028 = vmatprep.mubr.bf16.mxu0 0
  %5029 = vmatmul.mubr.bf16.gmra.mrb[0].mxu0 %v4800
  %v5030 = vpop.f32.mrb[0].mxu0
  %v5031 = vadd.f32 0.0, %v5030
  %v5032 = vpop.f32.mrb[0].mxu0
  %v5033 = vpop.f32.mrb[0].mxu0
  %v5034 = vadd.f32 0.0, %v5033
  %v5035 = vpop.f32.mrb[0].mxu0
  %5036 = vmatprep.mubr.bf16.mxu0 0
  %5037 = vmatmul.mubr.bf16.gmra.mrb[0].mxu0 %v4803
  %v5038 = vpop.f32.mrb[0].mxu0
  %v5039 = vadd.f32 0.0, %v5038
  %v5040 = vpop.f32.mrb[0].mxu0
  %v5041 = vpop.f32.mrb[0].mxu0
  %v5042 = vadd.f32 0.0, %v5041
  %v5043 = vpop.f32.mrb[0].mxu0
  %5044 = vmatprep.mubr.bf16.mxu0 0
  %5045 = vmatmul.mubr.bf16.gmra.mrb[0].mxu0 %v4806
  %v5046 = vpop.f32.mrb[0].mxu0
  %v5047 = vadd.f32 0.0, %v5046
  %v5048 = vpop.f32.mrb[0].mxu0
  %v5049 = vpop.f32.mrb[0].mxu0
  %v5050 = vadd.f32 0.0, %v5049
  %v5051 = vpop.f32.mrb[0].mxu0
  %5052 = vmatprep.mubr.bf16.mxu0 0
  %5053 = vmatmul.mubr.bf16.gmra.mrb[0].mxu0 %v4809
  %v5054 = vpop.f32.mrb[0].mxu0
  %v5055 = vadd.f32 0.0, %v5054
  %v5056 = vpop.f32.mrb[0].mxu0
  %v5057 = vpop.f32.mrb[0].mxu0
  %v5058 = vadd.f32 0.0, %v5057
  %v5059 = vpop.f32.mrb[0].mxu0
  %5060 = vmatprep.mubr.bf16.mxu0 0
  %5061 = vmatmul.mubr.bf16.gmra.mrb[0].mxu0 %v4812
  %v5062 = vpop.f32.mrb[0].mxu0
  %v5063 = vadd.f32 0.0, %v5062
  %v5064 = vpop.f32.mrb[0].mxu0
  %v5065 = vpop.f32.mrb[0].mxu0
  %v5066 = vadd.f32 0.0, %v5065
  %v5067 = vpop.f32.mrb[0].mxu0
  %5068 = vmatprep.mubr.bf16.mxu0 0
  %5069 = vmatmul.mubr.bf16.gmra.mrb[0].mxu0 %v4815
  %v5070 = vpop.f32.mrb[0].mxu0
  %v5071 = vadd.f32 0.0, %v5070
  %v5072 = vpop.f32.mrb[0].mxu0
  %v5073 = vpop.f32.mrb[0].mxu0
  %v5074 = vadd.f32 0.0, %v5073
  %v5075 = vpop.f32.mrb[0].mxu0
  %5076 = vmatprep.mubr.bf16.mxu0 0
  %5077 = vmatmul.mubr.bf16.gmra.mrb[0].mxu0 %v4818
  %v5078 = vpop.f32.mrb[0].mxu0
  %v5079 = vadd.f32 0.0, %v5078
  %v5080 = vpop.f32.mrb[0].mxu0
  %v5081 = vpop.f32.mrb[0].mxu0
  %v5082 = vadd.f32 0.0, %v5081
  %v5083 = vpop.f32.mrb[0].mxu0
  %5084 = vmatprep.mubr.bf16.mxu0 0
  %5085 = vmatmul.mubr.bf16.gmra.mrb[0].mxu0 %v4821
  %v5086 = vpop.f32.mrb[0].mxu0
  %v5087 = vadd.f32 0.0, %v5086
  %v5088 = vpop.f32.mrb[0].mxu0
  %v5089 = vpop.f32.mrb[0].mxu0
  %v5090 = vadd.f32 0.0, %v5089
  %v5091 = vpop.f32.mrb[0].mxu0
  %5092 = vmatprep.mubr.bf16.mxu0 0
  %5093 = vmatmul.mubr.bf16.gmra.mrb[0].mxu0 %v4824
  %v5094 = vpop.f32.mrb[0].mxu0
  %v5095 = vadd.f32 0.0, %v5094
  %v5096 = vpop.f32.mrb[0].mxu0
  %v5097 = vpop.f32.mrb[0].mxu0
  %v5098 = vadd.f32 0.0, %v5097
  %v5099 = vpop.f32.mrb[0].mxu0
  %5100 = vmatprep.mubr.bf16.mxu0 0
  %5101 = vmatmul.mubr.bf16.gmra.mrb[0].mxu0 %v4827
  %v5102 = vpop.f32.mrb[0].mxu0
  %v5103 = vadd.f32 0.0, %v5102
  %v5104 = vpop.f32.mrb[0].mxu0
  %v5105 = vpop.f32.mrb[0].mxu0
  %v5106 = vadd.f32 0.0, %v5105
  %v5107 = vpop.f32.mrb[0].mxu0
  %5108 = vmatprep.mubr.bf16.mxu0 0
  %5109 = vmatmul.mubr.bf16.gmra.mrb[0].mxu0 %v4830
  %v5110 = vpop.f32.mrb[0].mxu0
  %v5111 = vadd.f32 0.0, %v5110
  %v5112 = vpop.f32.mrb[0].mxu0
  %v5113 = vpop.f32.mrb[0].mxu0
  %v5114 = vadd.f32 0.0, %v5113
  %v5115 = vpop.f32.mrb[0].mxu0
  %5116 = vmatprep.mubr.bf16.mxu0 0
  %5117 = vmatmul.mubr.bf16.gmra.mrb[0].mxu0 %v4833
  %v5118 = vpop.f32.mrb[0].mxu0
  %v5119 = vadd.f32 0.0, %v5118
  %v5120 = vpop.f32.mrb[0].mxu0
  %v5121 = vpop.f32.mrb[0].mxu0
  %v5122 = vadd.f32 0.0, %v5121
  %v5123 = vpop.f32.mrb[0].mxu0
  %5124 = vmatprep.mubr.bf16.mxu0 0
  %5125 = vmatmul.mubr.bf16.gmra.mrb[0].mxu0 %v4836
  %v5126 = vpop.f32.mrb[0].mxu0
  %v5127 = vadd.f32 0.0, %v5126
  %v5128 = vpop.f32.mrb[0].mxu0
  %v5129 = vpop.f32.mrb[0].mxu0
  %v5130 = vadd.f32 0.0, %v5129
  %v5131 = vpop.f32.mrb[0].mxu0
  %5132 = vmatprep.mubr.bf16.mxu0 0
  %5133 = vmatmul.mubr.bf16.gmra.mrb[0].mxu0 %v4839
  %v5134 = vpop.f32.mrb[0].mxu0
  %v5135 = vadd.f32 0.0, %v5134
  %v5136 = vpop.f32.mrb[0].mxu0
  %v5137 = vpop.f32.mrb[0].mxu0
  %v5138 = vadd.f32 0.0, %v5137
  %v5139 = vpop.f32.mrb[0].mxu0
  %5140 = vmatprep.mubr.bf16.mxu0 0
  %5141 = vmatmul.mubr.bf16.gmra.mrb[0].mxu0 %v4842
  %v5142 = vpop.f32.mrb[0].mxu0
  %v5143 = vadd.f32 0.0, %v5142
  %v5144 = vpop.f32.mrb[0].mxu0
  %v5145 = vpop.f32.mrb[0].mxu0
  %v5146 = vadd.f32 0.0, %v5145
  %v5147 = vpop.f32.mrb[0].mxu0
  %5148 = vmatprep.mubr.bf16.mxu0 0
  %5149 = vmatmul.mubr.bf16.gmra.mrb[0].mxu0 %v4845
  %v5150 = vpop.f32.mrb[0].mxu0
  %v5151 = vadd.f32 0.0, %v5150
  %v5152 = vpop.f32.mrb[0].mxu0
  %v5153 = vpop.f32.mrb[0].mxu0
  %v5154 = vadd.f32 0.0, %v5153
  %v5155 = vpop.f32.mrb[0].mxu0
  %5156 = vmatprep.mubr.bf16.mxu0 0
  %5157 = vmatmul.mubr.bf16.gmra.mrb[0].mxu0 %v4848
  %v5158 = vpop.f32.mrb[0].mxu0
  %v5159 = vadd.f32 0.0, %v5158
  %v5160 = vpop.f32.mrb[0].mxu0
  %v5161 = vpop.f32.mrb[0].mxu0
  %v5162 = vadd.f32 0.0, %v5161
  %v5163 = vpop.f32.mrb[0].mxu0
  %5164 = vmatprep.mubr.bf16.mxu0 0
  %5165 = vmatmul.mubr.bf16.gmra.mrb[0].mxu0 %v4851
  %v5166 = vpop.f32.mrb[0].mxu0
  %v5167 = vadd.f32 0.0, %v5166
  %v5168 = vpop.f32.mrb[0].mxu0
  %v5169 = vpop.f32.mrb[0].mxu0
  %v5170 = vadd.f32 0.0, %v5169
  %v5171 = vpop.f32.mrb[0].mxu0
  %5172 = vmatprep.mubr.bf16.mxu0 0
  %5173 = vmatmul.mubr.bf16.gmra.mrb[0].mxu0 %v4854
  %v5174 = vpop.f32.mrb[0].mxu0
  %v5175 = vadd.f32 0.0, %v5174
  %v5176 = vpop.f32.mrb[0].mxu0
  %v5177 = vpop.f32.mrb[0].mxu0
  %v5178 = vadd.f32 0.0, %v5177
  %v5179 = vpop.f32.mrb[0].mxu0
  %5180 = vmatprep.mubr.bf16.mxu0 0
  %5181 = vmatmul.mubr.bf16.gmra.mrb[0].mxu0 %v4857
  %v5182 = vpop.f32.mrb[0].mxu0
  %v5183 = vadd.f32 0.0, %v5182
  %v5184 = vpop.f32.mrb[0].mxu0
  %v5185 = vpop.f32.mrb[0].mxu0
  %v5186 = vadd.f32 0.0, %v5185
  %v5187 = vpop.f32.mrb[0].mxu0
  %5188 = vmatprep.mubr.bf16.mxu0 0
  %5189 = vmatmul.mubr.bf16.gmra.mrb[0].mxu0 %v4860
  %v5190 = vpop.f32.mrb[0].mxu0
  %v5191 = vadd.f32 0.0, %v5190
  %v5192 = vpop.f32.mrb[0].mxu0
  %v5193 = vpop.f32.mrb[0].mxu0
  %v5194 = vadd.f32 0.0, %v5193
  %v5195 = vpop.f32.mrb[0].mxu0
  %5196 = vmatprep.mubr.bf16.mxu0 0
  %5197 = vmatmul.mubr.bf16.gmra.mrb[0].mxu0 %v4863
  %v5198 = vpop.f32.mrb[0].mxu0
  %v5199 = vadd.f32 0.0, %v5198
  %v5200 = vpop.f32.mrb[0].mxu0
  %v5201 = vpop.f32.mrb[0].mxu0
  %v5202 = vadd.f32 0.0, %v5201
  %v5203 = vpop.f32.mrb[0].mxu0
  %5204 = vmatprep.mubr.bf16.mxu0 0
  %5205 = vmatmul.mubr.bf16.gmra.mrb[0].mxu0 %v4866
  %v5206 = vpop.f32.mrb[0].mxu0
  %v5207 = vadd.f32 0.0, %v5206
  %v5208 = vpop.f32.mrb[0].mxu0
  %v5209 = vpop.f32.mrb[0].mxu0
  %v5210 = vadd.f32 0.0, %v5209
  %v5211 = vpop.f32.mrb[0].mxu0
  %5212 = vmatprep.mubr.bf16.mxu0 0
  %5213 = vmatmul.mubr.bf16.gmra.mrb[0].mxu0 %v4869
  %v5214 = vpop.f32.mrb[0].mxu0
  %v5215 = vadd.f32 0.0, %v5214
  %v5216 = vpop.f32.mrb[0].mxu0
  %v5217 = vpop.f32.mrb[0].mxu0
  %v5218 = vadd.f32 0.0, %v5217
  %v5219 = vpop.f32.mrb[0].mxu0
  %5220 = vmatprep.mubr.bf16.mxu0 0
  %5221 = vmatmul.mubr.bf16.gmra.mrb[0].mxu0 %v4872
  %v5222 = vpop.f32.mrb[0].mxu0
  %v5223 = vadd.f32 0.0, %v5222
  %v5224 = vpop.f32.mrb[0].mxu0
  %v5225 = vpop.f32.mrb[0].mxu0
  %v5226 = vadd.f32 0.0, %v5225
  %v5227 = vpop.f32.mrb[0].mxu0
  %5228 = vmatprep.mubr.bf16.mxu0 0
  %5229 = vmatmul.mubr.bf16.gmra.mrb[0].mxu0 %v4875
  %v5230 = vpop.f32.mrb[0].mxu0
  %v5231 = vadd.f32 0.0, %v5230
  %v5232 = vpop.f32.mrb[0].mxu0
  %v5233 = vpop.f32.mrb[0].mxu0
  %v5234 = vadd.f32 0.0, %v5233
  %v5235 = vpop.f32.mrb[0].mxu0
  %5236 = vmatprep.mubr.bf16.mxu0 0
  %5237 = vmatmul.mubr.bf16.gmra.mrb[0].mxu0 %v4878
  %v5238 = vpop.f32.mrb[0].mxu0
  %v5239 = vadd.f32 0.0, %v5238
  %v5240 = vpop.f32.mrb[0].mxu0
  %v5241 = vpop.f32.mrb[0].mxu0
  %v5242 = vadd.f32 0.0, %v5241
  %v5243 = vpop.f32.mrb[0].mxu0
  %5244 = vmatprep.mubr.bf16.mxu0 0
  %5245 = vmatmul.mubr.bf16.gmra.mrb[0].mxu0 %v4881
  %v5246 = vpop.f32.mrb[0].mxu0
  %v5247 = vadd.f32 0.0, %v5246
  %v5248 = vpop.f32.mrb[0].mxu0
  %v5249 = vpop.f32.mrb[0].mxu0
  %v5250 = vadd.f32 0.0, %v5249
  %v5251 = vpop.f32.mrb[0].mxu0
  %5252 = vmatprep.mubr.bf16.mxu0 0
  %5253 = vmatmul.mubr.bf16.gmra.mrb[0].mxu0 %v4884
  %v5254 = vpop.f32.mrb[0].mxu0
  %v5255 = vadd.f32 0.0, %v5254
  %v5256 = vpop.f32.mrb[0].mxu0
  %v5257 = vpop.f32.mrb[0].mxu0
  %v5258 = vadd.f32 0.0, %v5257
  %v5259 = vpop.f32.mrb[0].mxu0
  %5260 = vmatprep.mubr.bf16.mxu0 0
  %5261 = vmatmul.mubr.bf16.gmra.mrb[0].mxu0 %v4887
  %v5262 = vpop.f32.mrb[0].mxu0
  %v5263 = vadd.f32 0.0, %v5262
  %v5264 = vpop.f32.mrb[0].mxu0
  %v5265 = vpop.f32.mrb[0].mxu0
  %v5266 = vadd.f32 0.0, %v5265
  %v5267 = vpop.f32.mrb[0].mxu0
  %5268 = vmatprep.mubr.bf16.mxu0 0
  %5269 = vmatmul.mubr.bf16.gmra.mrb[0].mxu0 %v4890
  %v5270 = vpop.f32.mrb[0].mxu0
  %v5271 = vadd.f32 0.0, %v5270
  %v5272 = vpop.f32.mrb[0].mxu0
  %v5273 = vpop.f32.mrb[0].mxu0
  %v5274 = vadd.f32 0.0, %v5273
  %v5275 = vpop.f32.mrb[0].mxu0
  %5276 = vmatprep.mubr.bf16.mxu0 0
  %5277 = vmatmul.mubr.bf16.gmra.mrb[0].mxu0 %v4893
  %v5278 = vpop.f32.mrb[0].mxu0
  %v5279 = vadd.f32 0.0, %v5278
  %v5280 = vpop.f32.mrb[0].mxu0
  %v5281 = vpop.f32.mrb[0].mxu0
  %v5282 = vadd.f32 0.0, %v5281
  %v5283 = vpop.f32.mrb[0].mxu0
  %5284 = vmatprep.mubr.bf16.mxu0 0
  %5285 = vmatmul.mubr.bf16.gmra.mrb[0].mxu0 %v4896
  %v5286 = vpop.f32.mrb[0].mxu0
  %v5287 = vadd.f32 0.0, %v5286
  %v5288 = vpop.f32.mrb[0].mxu0
  %v5289 = vpop.f32.mrb[0].mxu0
  %v5290 = vadd.f32 0.0, %v5289
  %v5291 = vpop.f32.mrb[0].mxu0
  %5292 = vmatprep.mubr.bf16.mxu0 0
  %5293 = vmatmul.mubr.bf16.gmra.mrb[0].mxu0 %v4899
  %v5294 = vpop.f32.mrb[0].mxu0
  %v5295 = vadd.f32 0.0, %v5294
  %v5296 = vpop.f32.mrb[0].mxu0
  %v5297 = vpop.f32.mrb[0].mxu0
  %v5298 = vadd.f32 0.0, %v5297
  %v5299 = vpop.f32.mrb[0].mxu0
  %5300 = vmatprep.mubr.bf16.mxu0 0
  %5301 = vmatmul.mubr.bf16.gmra.mrb[0].mxu0 %v4902
  %v5302 = vpop.f32.mrb[0].mxu0
  %v5303 = vadd.f32 0.0, %v5302
  %v5304 = vpop.f32.mrb[0].mxu0
  %v5305 = vpop.f32.mrb[0].mxu0
  %v5306 = vadd.f32 0.0, %v5305
  %v5307 = vpop.f32.mrb[0].mxu0
  %5308 = vmatprep.mubr.bf16.mxu0 0
  %5309 = vmatmul.mubr.bf16.gmra.mrb[0].mxu0 %v4905
  %v5310 = vpop.f32.mrb[0].mxu0
  %v5311 = vadd.f32 0.0, %v5310
  %v5312 = vpop.f32.mrb[0].mxu0
  %v5313 = vpop.f32.mrb[0].mxu0
  %v5314 = vadd.f32 0.0, %v5313
  %v5315 = vpop.f32.mrb[0].mxu0
  %5316 = vmatprep.mubr.bf16.mxu0 0
  %5317 = vmatmul.mubr.bf16.gmra.mrb[0].mxu0 %v4908
  %v5318 = vpop.f32.mrb[0].mxu0
  %v5319 = vadd.f32 0.0, %v5318
  %v5320 = vpop.f32.mrb[0].mxu0
  %v5321 = vpop.f32.mrb[0].mxu0
  %v5322 = vadd.f32 0.0, %v5321
  %v5323 = vpop.f32.mrb[0].mxu0
  %5324 = vmatprep.mubr.bf16.mxu0 0
  %5325 = vmatmul.mubr.bf16.gmra.mrb[0].mxu0 %v4911
  %v5326 = vpop.f32.mrb[0].mxu0
  %v5327 = vadd.f32 0.0, %v5326
  %v5328 = vpop.f32.mrb[0].mxu0
  %v5329 = vpop.f32.mrb[0].mxu0
  %v5330 = vadd.f32 0.0, %v5329
  %v5331 = vpop.f32.mrb[0].mxu0
  %5332 = vmatprep.mubr.bf16.mxu0 0
  %5333 = vmatmul.mubr.bf16.gmra.mrb[0].mxu0 %v4914
  %v5334 = vpop.f32.mrb[0].mxu0
  %v5335 = vadd.f32 0.0, %v5334
  %v5336 = vpop.f32.mrb[0].mxu0
  %v5337 = vpop.f32.mrb[0].mxu0
  %v5338 = vadd.f32 0.0, %v5337
  %v5339 = vpop.f32.mrb[0].mxu0
  %5340 = vmatprep.mubr.bf16.mxu0 0
  %5341 = vmatmul.mubr.bf16.gmra.mrb[0].mxu0 %v4917
  %v5342 = vpop.f32.mrb[0].mxu0
  %v5343 = vadd.f32 0.0, %v5342
  %v5344 = vpop.f32.mrb[0].mxu0
  %v5345 = vpop.f32.mrb[0].mxu0
  %v5346 = vadd.f32 0.0, %v5345
  %v5347 = vpop.f32.mrb[0].mxu0
  %5348 = vmatprep.mubr.bf16.mxu0 0
  %5349 = vmatmul.mubr.bf16.gmra.mrb[0].mxu0 %v4920
  %v5350 = vpop.f32.mrb[0].mxu0
  %v5351 = vadd.f32 0.0, %v5350
  %v5352 = vpop.f32.mrb[0].mxu0
  %v5353 = vpop.f32.mrb[0].mxu0
  %v5354 = vadd.f32 0.0, %v5353
  %v5355 = vpop.f32.mrb[0].mxu0
  %5356 = vmatprep.mubr.bf16.mxu0 0
  %5357 = vmatmul.mubr.bf16.gmra.mrb[0].mxu0 %v4923
  %v5358 = vpop.f32.mrb[0].mxu0
  %v5359 = vadd.f32 0.0, %v5358
  %v5360 = vpop.f32.mrb[0].mxu0
  %v5361 = vpop.f32.mrb[0].mxu0
  %v5362 = vadd.f32 0.0, %v5361
  %v5363 = vpop.f32.mrb[0].mxu0
  %5364 = vmatprep.mubr.bf16.mxu0 0
  %5365 = vmatmul.mubr.bf16.gmra.mrb[0].mxu0 %v4926
  %v5366 = vpop.f32.mrb[0].mxu0
  %v5367 = vadd.f32 0.0, %v5366
  %v5368 = vpop.f32.mrb[0].mxu0
  %v5369 = vpop.f32.mrb[0].mxu0
  %v5370 = vadd.f32 0.0, %v5369
  %v5371 = vpop.f32.mrb[0].mxu0
  %5372 = vmatprep.mubr.bf16.mxu0 0
  %5373 = vmatmul.mubr.bf16.gmra.mrb[0].mxu0 %v4929
  %v5374 = vpop.f32.mrb[0].mxu0
  %v5375 = vadd.f32 0.0, %v5374
  %v5376 = vpop.f32.mrb[0].mxu0
  %v5377 = vpop.f32.mrb[0].mxu0
  %v5378 = vadd.f32 0.0, %v5377
  %v5379 = vpop.f32.mrb[0].mxu0
  %5380 = vmatprep.mubr.bf16.mxu0 0
  %5381 = vmatmul.mubr.bf16.gmra.mrb[0].mxu0 %v4932
  %v5382 = vpop.f32.mrb[0].mxu0
  %v5383 = vadd.f32 0.0, %v5382
  %v5384 = vpop.f32.mrb[0].mxu0
  %v5385 = vpop.f32.mrb[0].mxu0
  %v5386 = vadd.f32 0.0, %v5385
  %v5387 = vpop.f32.mrb[0].mxu0
  %5388 = vmatprep.mubr.bf16.mxu0 0
  %5389 = vmatmul.mubr.bf16.gmra.mrb[0].mxu0 %v4935
  %v5390 = vpop.f32.mrb[0].mxu0
  %v5391 = vadd.f32 0.0, %v5390
  %v5392 = vpop.f32.mrb[0].mxu0
  %v5393 = vpop.f32.mrb[0].mxu0
  %v5394 = vadd.f32 0.0, %v5393
  %v5395 = vpop.f32.mrb[0].mxu0
  %5396 = vmatprep.mubr.bf16.mxu0 0
  %5397 = vmatmul.mubr.bf16.gmra.mrb[0].mxu0 %v4938
  %v5398 = vpop.f32.mrb[0].mxu0
  %v5399 = vadd.f32 0.0, %v5398
  %v5400 = vpop.f32.mrb[0].mxu0
  %v5401 = vpop.f32.mrb[0].mxu0
  %v5402 = vadd.f32 0.0, %v5401
  %v5403 = vpop.f32.mrb[0].mxu0
  %5404 = vmatprep.mubr.bf16.mxu0 0
  %5405 = vmatmul.mubr.bf16.gmra.mrb[0].mxu0 %v4941
  %v5406 = vpop.f32.mrb[0].mxu0
  %v5407 = vadd.f32 0.0, %v5406
  %v5408 = vpop.f32.mrb[0].mxu0
  %v5409 = vpop.f32.mrb[0].mxu0
  %v5410 = vadd.f32 0.0, %v5409
  %v5411 = vpop.f32.mrb[0].mxu0
  %5412 = vmatprep.mubr.bf16.mxu0 0
  %5413 = vmatmul.mubr.bf16.gmra.mrb[0].mxu0 %v4944
  %v5414 = vpop.f32.mrb[0].mxu0
  %v5415 = vadd.f32 0.0, %v5414
  %v5416 = vpop.f32.mrb[0].mxu0
  %v5417 = vpop.f32.mrb[0].mxu0
  %v5418 = vadd.f32 0.0, %v5417
  %v5419 = vpop.f32.mrb[0].mxu0
  %5420 = vmatprep.mubr.bf16.mxu0 0
  %5421 = vmatmul.mubr.bf16.gmra.mrb[0].mxu0 %v4947
  %v5422 = vpop.f32.mrb[0].mxu0
  %v5423 = vadd.f32 0.0, %v5422
  %v5424 = vpop.f32.mrb[0].mxu0
  %v5425 = vpop.f32.mrb[0].mxu0
  %v5426 = vadd.f32 0.0, %v5425
  %v5427 = vpop.f32.mrb[0].mxu0
  %5428 = vmatprep.mubr.bf16.mxu0 0
  %5429 = vmatmul.mubr.bf16.gmra.mrb[0].mxu0 %v4950
  %v5430 = vpop.f32.mrb[0].mxu0
  %v5431 = vadd.f32 0.0, %v5430
  %v5432 = vpop.f32.mrb[0].mxu0
  %v5433 = vpop.f32.mrb[0].mxu0
  %v5434 = vadd.f32 0.0, %v5433
  %v5435 = vpop.f32.mrb[0].mxu0
  %5436 = vmatprep.mubr.bf16.mxu0 0
  %5437 = vmatmul.mubr.bf16.gmra.mrb[0].mxu0 %v4953
  %v5438 = vpop.f32.mrb[0].mxu0
  %v5439 = vadd.f32 0.0, %v5438
  %v5440 = vpop.f32.mrb[0].mxu0
  %v5441 = vpop.f32.mrb[0].mxu0
  %v5442 = vadd.f32 0.0, %v5441
  %v5443 = vpop.f32.mrb[0].mxu0
  %5444 = vmatprep.mubr.bf16.mxu0 0
  %5445 = vmatmul.mubr.bf16.gmra.mrb[0].mxu0 %v4956
  %v5446 = vpop.f32.mrb[0].mxu0
  %v5447 = vadd.f32 0.0, %v5446
  %v5448 = vpop.f32.mrb[0].mxu0
  %v5449 = vpop.f32.mrb[0].mxu0
  %v5450 = vadd.f32 0.0, %v5449
  %v5451 = vpop.f32.mrb[0].mxu0
  %5452 = vmatprep.mubr.bf16.mxu0 0
  %5453 = vmatmul.mubr.bf16.gmra.mrb[0].mxu0 %v4959
  %v5454 = vpop.f32.mrb[0].mxu0
  %v5455 = vadd.f32 0.0, %v5454
  %v5456 = vpop.f32.mrb[0].mxu0
  %v5457 = vpop.f32.mrb[0].mxu0
  %v5458 = vadd.f32 0.0, %v5457
  %v5459 = vpop.f32.mrb[0].mxu0
  %5460 = vmatprep.mubr.bf16.mxu0 0
  %5461 = vmatmul.mubr.bf16.gmra.mrb[0].mxu0 %v4962
  %v5462 = vpop.f32.mrb[0].mxu0
  %v5463 = vadd.f32 0.0, %v5462
  %v5464 = vpop.f32.mrb[0].mxu0
  %v5465 = vpop.f32.mrb[0].mxu0
  %v5466 = vadd.f32 0.0, %v5465
  %v5467 = vpop.f32.mrb[0].mxu0
  %5468 = vmatprep.mubr.bf16.mxu0 0
  %5469 = vmatmul.mubr.bf16.gmra.mrb[0].mxu0 %v4965
  %v5470 = vpop.f32.mrb[0].mxu0
  %v5471 = vadd.f32 0.0, %v5470
  %v5472 = vpop.f32.mrb[0].mxu0
  %v5473 = vpop.f32.mrb[0].mxu0
  %v5474 = vadd.f32 0.0, %v5473
  %v5475 = vpop.f32.mrb[0].mxu0
  %5476 = vmatprep.mubr.bf16.mxu0 0
  %5477 = vmatmul.mubr.bf16.gmra.mrb[0].mxu0 %v4968
  %v5478 = vpop.f32.mrb[0].mxu0
  %v5479 = vadd.f32 0.0, %v5478
  %v5480 = vpop.f32.mrb[0].mxu0
  %v5481 = vpop.f32.mrb[0].mxu0
  %v5482 = vadd.f32 0.0, %v5481
  %v5483 = vpop.f32.mrb[0].mxu0
  %5484 = vmatprep.mubr.bf16.mxu0 0
  %5485 = vmatmul.mubr.bf16.gmra.mrb[0].mxu0 %v4971
  %v5486 = vpop.f32.mrb[0].mxu0
  %v5487 = vadd.f32 0.0, %v5486
  %v5488 = vpop.f32.mrb[0].mxu0
  %v5489 = vpop.f32.mrb[0].mxu0
  %v5490 = vadd.f32 0.0, %v5489
  %v5491 = vpop.f32.mrb[0].mxu0
  %5492 = vmatprep.mubr.bf16.mxu0 0
  %5493 = vmatmul.mubr.bf16.gmra.mrb[0].mxu0 %v4974
  %v5494 = vpop.f32.mrb[0].mxu0
  %v5495 = vadd.f32 0.0, %v5494
  %v5496 = vpop.f32.mrb[0].mxu0
  %v5497 = vpop.f32.mrb[0].mxu0
  %v5498 = vadd.f32 0.0, %v5497
  %v5499 = vpop.f32.mrb[0].mxu0
  %5500 = vmatprep.mubr.bf16.mxu0 0
  %5501 = vmatmul.mubr.bf16.gmra.mrb[0].mxu0 %v4977
  %v5502 = vpop.f32.mrb[0].mxu0
  %v5503 = vadd.f32 0.0, %v5502
  %v5504 = vpop.f32.mrb[0].mxu0
  %v5505 = vpop.f32.mrb[0].mxu0
  %v5506 = vadd.f32 0.0, %v5505
  %v5507 = vpop.f32.mrb[0].mxu0
  %5508 = vmatprep.mubr.bf16.mxu0 0
  %5509 = vmatmul.mubr.bf16.gmra.mrb[0].mxu0 %v4980
  %v5510 = vpop.f32.mrb[0].mxu0
  %v5511 = vadd.f32 0.0, %v5510
  %v5512 = vpop.f32.mrb[0].mxu0
  %v5513 = vpop.f32.mrb[0].mxu0
  %v5514 = vadd.f32 0.0, %v5513
  %v5515 = vpop.f32.mrb[0].mxu0
  %5516 = vmatprep.mubr.bf16.mxu0 0
  %5517 = vmatmul.mubr.bf16.gmra.mrb[0].mxu0 %v4983
  %v5518 = vpop.f32.mrb[0].mxu0
  %v5519 = vadd.f32 0.0, %v5518
  %v5520 = vpop.f32.mrb[0].mxu0
  %v5521 = vpop.f32.mrb[0].mxu0
  %v5522 = vadd.f32 0.0, %v5521
  %v5523 = vpop.f32.mrb[0].mxu0
  %5524 = vmatprep.mubr.bf16.mxu0 0
  %5525 = vmatmul.mubr.bf16.gmra.mrb[0].mxu0 %v4986
  %v5526 = vpop.f32.mrb[0].mxu0
  %v5527 = vadd.f32 0.0, %v5526
  %v5528 = vpop.f32.mrb[0].mxu0
  %v5529 = vpop.f32.mrb[0].mxu0
  %v5530 = vadd.f32 0.0, %v5529
  %v5531 = vpop.f32.mrb[0].mxu0
  %5532 = vdwg.mxu0
  %s5533 = scalar_lea.vmem %s3, 8
  %v5534 = vld [vmem:[%s5533] sm:$0x1]
  %v5535 = vld [vmem:[%s5533 + $0x1] sm:$0x1]
  %v5536 = vld [vmem:[%s5533 + $0x2] sm:$0x1]
  %v5537 = vsel %vm1235, %v5023, 0.0
  %v5538 = vsel %vm1235, %v5026, 0.0
  %v5539 = vadd.f32 %v5537, %v5538
  %v5540 = vsel %vm1235, %v5031, 0.0
  %v5541 = vadd.f32 %v5539, %v5540
  %v5542 = vsel %vm1235, %v5034, 0.0
  %v5543 = vadd.f32 %v5541, %v5542
  %v5544 = vsel %vm1235, %v5039, 0.0
  %v5545 = vadd.f32 %v5543, %v5544
  %v5546 = vsel %vm1235, %v5042, 0.0
  %v5547 = vadd.f32 %v5545, %v5546
  %v5548 = vsel %vm1235, %v5047, 0.0
  %v5549 = vadd.f32 %v5547, %v5548
  %v5550 = vsel %vm1235, %v5050, 0.0
  %v5551 = vadd.f32 %v5549, %v5550
  %v5552 = vsel %vm1235, %v5055, 0.0
  %v5553 = vadd.f32 %v5551, %v5552
  %v5554 = vsel %vm1235, %v5058, 0.0
  %v5555 = vadd.f32 %v5553, %v5554
  %v5556 = vsel %vm1235, %v5063, 0.0
  %v5557 = vadd.f32 %v5555, %v5556
  %v5558 = vsel %vm1235, %v5066, 0.0
  %v5559 = vadd.f32 %v5557, %v5558
  %v5560 = vsel %vm1235, %v5071, 0.0
  %v5561 = vadd.f32 %v5559, %v5560
  %v5562 = vsel %vm1235, %v5074, 0.0
  %v5563 = vadd.f32 %v5561, %v5562
  %v5564 = vsel %vm1235, %v5079, 0.0
  %v5565 = vadd.f32 %v5563, %v5564
  %v5566 = vsel %vm1235, %v5082, 0.0
  %v5567 = vadd.f32 %v5565, %v5566
  %v5568 = vsel %vm1235, %v5087, 0.0
  %v5569 = vadd.f32 %v5567, %v5568
  %v5570 = vsel %vm1235, %v5090, 0.0
  %v5571 = vadd.f32 %v5569, %v5570
  %v5572 = vsel %vm1235, %v5095, 0.0
  %v5573 = vadd.f32 %v5571, %v5572
  %v5574 = vsel %vm1235, %v5098, 0.0
  %v5575 = vadd.f32 %v5573, %v5574
  %v5576 = vsel %vm1235, %v5103, 0.0
  %v5577 = vadd.f32 %v5575, %v5576
  %v5578 = vsel %vm1235, %v5106, 0.0
  %v5579 = vadd.f32 %v5577, %v5578
  %v5580 = vsel %vm1235, %v5111, 0.0
  %v5581 = vadd.f32 %v5579, %v5580
  %v5582 = vsel %vm1235, %v5114, 0.0
  %v5583 = vadd.f32 %v5581, %v5582
  %v5584 = vsel %vm1235, %v5119, 0.0
  %v5585 = vadd.f32 %v5583, %v5584
  %v5586 = vsel %vm1235, %v5122, 0.0
  %v5587 = vadd.f32 %v5585, %v5586
  %v5588 = vsel %vm1235, %v5127, 0.0
  %v5589 = vadd.f32 %v5587, %v5588
  %v5590 = vsel %vm1235, %v5130, 0.0
  %v5591 = vadd.f32 %v5589, %v5590
  %v5592 = vsel %vm1235, %v5135, 0.0
  %v5593 = vadd.f32 %v5591, %v5592
  %v5594 = vsel %vm1235, %v5138, 0.0
  %v5595 = vadd.f32 %v5593, %v5594
  %v5596 = vsel %vm1235, %v5143, 0.0
  %v5597 = vadd.f32 %v5595, %v5596
  %v5598 = vsel %vm1235, %v5146, 0.0
  %v5599 = vadd.f32 %v5597, %v5598
  %v5600 = vsel %vm1235, %v5151, 0.0
  %v5601 = vadd.f32 %v5599, %v5600
  %v5602 = vsel %vm1235, %v5154, 0.0
  %v5603 = vadd.f32 %v5601, %v5602
  %v5604 = vsel %vm1235, %v5159, 0.0
  %v5605 = vadd.f32 %v5603, %v5604
  %v5606 = vsel %vm1235, %v5162, 0.0
  %v5607 = vadd.f32 %v5605, %v5606
  %v5608 = vsel %vm1235, %v5167, 0.0
  %v5609 = vadd.f32 %v5607, %v5608
  %v5610 = vsel %vm1235, %v5170, 0.0
  %v5611 = vadd.f32 %v5609, %v5610
  %v5612 = vsel %vm1235, %v5175, 0.0
  %v5613 = vadd.f32 %v5611, %v5612
  %v5614 = vsel %vm1235, %v5178, 0.0
  %v5615 = vadd.f32 %v5613, %v5614
  %v5616 = vsel %vm1235, %v5183, 0.0
  %v5617 = vadd.f32 %v5615, %v5616
  %v5618 = vsel %vm1235, %v5186, 0.0
  %v5619 = vadd.f32 %v5617, %v5618
  %v5620 = vsel %vm1235, %v5191, 0.0
  %v5621 = vadd.f32 %v5619, %v5620
  %v5622 = vsel %vm1235, %v5194, 0.0
  %v5623 = vadd.f32 %v5621, %v5622
  %v5624 = vsel %vm1235, %v5199, 0.0
  %v5625 = vadd.f32 %v5623, %v5624
  %v5626 = vsel %vm1235, %v5202, 0.0
  %v5627 = vadd.f32 %v5625, %v5626
  %v5628 = vsel %vm1235, %v5207, 0.0
  %v5629 = vadd.f32 %v5627, %v5628
  %v5630 = vsel %vm1235, %v5210, 0.0
  %v5631 = vadd.f32 %v5629, %v5630
  %v5632 = vsel %vm1235, %v5215, 0.0
  %v5633 = vadd.f32 %v5631, %v5632
  %v5634 = vsel %vm1235, %v5218, 0.0
  %v5635 = vadd.f32 %v5633, %v5634
  %v5636 = vsel %vm1235, %v5223, 0.0
  %v5637 = vadd.f32 %v5635, %v5636
  %v5638 = vsel %vm1235, %v5226, 0.0
  %v5639 = vadd.f32 %v5637, %v5638
  %v5640 = vsel %vm1235, %v5231, 0.0
  %v5641 = vadd.f32 %v5639, %v5640
  %v5642 = vsel %vm1235, %v5234, 0.0
  %v5643 = vadd.f32 %v5641, %v5642
  %v5644 = vsel %vm1235, %v5239, 0.0
  %v5645 = vadd.f32 %v5643, %v5644
  %v5646 = vsel %vm1235, %v5242, 0.0
  %v5647 = vadd.f32 %v5645, %v5646
  %v5648 = vsel %vm1235, %v5247, 0.0
  %v5649 = vadd.f32 %v5647, %v5648
  %v5650 = vsel %vm1235, %v5250, 0.0
  %v5651 = vadd.f32 %v5649, %v5650
  %v5652 = vsel %vm1235, %v5255, 0.0
  %v5653 = vadd.f32 %v5651, %v5652
  %v5654 = vsel %vm1235, %v5258, 0.0
  %v5655 = vadd.f32 %v5653, %v5654
  %v5656 = vsel %vm1235, %v5263, 0.0
  %v5657 = vadd.f32 %v5655, %v5656
  %v5658 = vsel %vm1235, %v5266, 0.0
  %v5659 = vadd.f32 %v5657, %v5658
  %v5660 = vsel %vm1235, %v5271, 0.0
  %v5661 = vadd.f32 %v5659, %v5660
  %v5662 = vsel %vm1235, %v5274, 0.0
  %v5663 = vadd.f32 %v5661, %v5662
  %v5664 = vrot.slane %v5663, 4
  %v5665 = vadd.f32 %v5663, %v5664
  %v5666 = vrot.slane %v5665, 2
  %v5667 = vadd.f32 %v5665, %v5666
  %v5668 = vrot.slane %v5667, 1
  %v5669 = vadd.f32 %v5667, %v5668
  %v5670 = vsel %vm1235, %v5279, 0.0
  %v5671 = vsel %vm1235, %v5282, 0.0
  %v5672 = vadd.f32 %v5670, %v5671
  %v5673 = vsel %vm1235, %v5287, 0.0
  %v5674 = vadd.f32 %v5672, %v5673
  %v5675 = vsel %vm1235, %v5290, 0.0
  %v5676 = vadd.f32 %v5674, %v5675
  %v5677 = vsel %vm1235, %v5295, 0.0
  %v5678 = vadd.f32 %v5676, %v5677
  %v5679 = vsel %vm1235, %v5298, 0.0
  %v5680 = vadd.f32 %v5678, %v5679
  %v5681 = vsel %vm1235, %v5303, 0.0
  %v5682 = vadd.f32 %v5680, %v5681
  %v5683 = vsel %vm1235, %v5306, 0.0
  %v5684 = vadd.f32 %v5682, %v5683
  %v5685 = vsel %vm1235, %v5311, 0.0
  %v5686 = vadd.f32 %v5684, %v5685
  %v5687 = vsel %vm1235, %v5314, 0.0
  %v5688 = vadd.f32 %v5686, %v5687
  %v5689 = vsel %vm1235, %v5319, 0.0
  %v5690 = vadd.f32 %v5688, %v5689
  %v5691 = vsel %vm1235, %v5322, 0.0
  %v5692 = vadd.f32 %v5690, %v5691
  %v5693 = vsel %vm1235, %v5327, 0.0
  %v5694 = vadd.f32 %v5692, %v5693
  %v5695 = vsel %vm1235, %v5330, 0.0
  %v5696 = vadd.f32 %v5694, %v5695
  %v5697 = vsel %vm1235, %v5335, 0.0
  %v5698 = vadd.f32 %v5696, %v5697
  %v5699 = vsel %vm1235, %v5338, 0.0
  %v5700 = vadd.f32 %v5698, %v5699
  %v5701 = vsel %vm1235, %v5343, 0.0
  %v5702 = vadd.f32 %v5700, %v5701
  %v5703 = vsel %vm1235, %v5346, 0.0
  %v5704 = vadd.f32 %v5702, %v5703
  %v5705 = vsel %vm1235, %v5351, 0.0
  %v5706 = vadd.f32 %v5704, %v5705
  %v5707 = vsel %vm1235, %v5354, 0.0
  %v5708 = vadd.f32 %v5706, %v5707
  %v5709 = vsel %vm1235, %v5359, 0.0
  %v5710 = vadd.f32 %v5708, %v5709
  %v5711 = vsel %vm1235, %v5362, 0.0
  %v5712 = vadd.f32 %v5710, %v5711
  %v5713 = vsel %vm1235, %v5367, 0.0
  %v5714 = vadd.f32 %v5712, %v5713
  %v5715 = vsel %vm1235, %v5370, 0.0
  %v5716 = vadd.f32 %v5714, %v5715
  %v5717 = vsel %vm1235, %v5375, 0.0
  %v5718 = vadd.f32 %v5716, %v5717
  %v5719 = vsel %vm1235, %v5378, 0.0
  %v5720 = vadd.f32 %v5718, %v5719
  %v5721 = vsel %vm1235, %v5383, 0.0
  %v5722 = vadd.f32 %v5720, %v5721
  %v5723 = vsel %vm1235, %v5386, 0.0
  %v5724 = vadd.f32 %v5722, %v5723
  %v5725 = vsel %vm1235, %v5391, 0.0
  %v5726 = vadd.f32 %v5724, %v5725
  %v5727 = vsel %vm1235, %v5394, 0.0
  %v5728 = vadd.f32 %v5726, %v5727
  %v5729 = vsel %vm1235, %v5399, 0.0
  %v5730 = vadd.f32 %v5728, %v5729
  %v5731 = vsel %vm1235, %v5402, 0.0
  %v5732 = vadd.f32 %v5730, %v5731
  %v5733 = vsel %vm1235, %v5407, 0.0
  %v5734 = vadd.f32 %v5732, %v5733
  %v5735 = vsel %vm1235, %v5410, 0.0
  %v5736 = vadd.f32 %v5734, %v5735
  %v5737 = vsel %vm1235, %v5415, 0.0
  %v5738 = vadd.f32 %v5736, %v5737
  %v5739 = vsel %vm1235, %v5418, 0.0
  %v5740 = vadd.f32 %v5738, %v5739
  %v5741 = vsel %vm1235, %v5423, 0.0
  %v5742 = vadd.f32 %v5740, %v5741
  %v5743 = vsel %vm1235, %v5426, 0.0
  %v5744 = vadd.f32 %v5742, %v5743
  %v5745 = vsel %vm1235, %v5431, 0.0
  %v5746 = vadd.f32 %v5744, %v5745
  %v5747 = vsel %vm1235, %v5434, 0.0
  %v5748 = vadd.f32 %v5746, %v5747
  %v5749 = vsel %vm1235, %v5439, 0.0
  %v5750 = vadd.f32 %v5748, %v5749
  %v5751 = vsel %vm1235, %v5442, 0.0
  %v5752 = vadd.f32 %v5750, %v5751
  %v5753 = vsel %vm1235, %v5447, 0.0
  %v5754 = vadd.f32 %v5752, %v5753
  %v5755 = vsel %vm1235, %v5450, 0.0
  %v5756 = vadd.f32 %v5754, %v5755
  %v5757 = vsel %vm1235, %v5455, 0.0
  %v5758 = vadd.f32 %v5756, %v5757
  %v5759 = vsel %vm1235, %v5458, 0.0
  %v5760 = vadd.f32 %v5758, %v5759
  %v5761 = vsel %vm1235, %v5463, 0.0
  %v5762 = vadd.f32 %v5760, %v5761
  %v5763 = vsel %vm1235, %v5466, 0.0
  %v5764 = vadd.f32 %v5762, %v5763
  %v5765 = vsel %vm1235, %v5471, 0.0
  %v5766 = vadd.f32 %v5764, %v5765
  %v5767 = vsel %vm1235, %v5474, 0.0
  %v5768 = vadd.f32 %v5766, %v5767
  %v5769 = vsel %vm1235, %v5479, 0.0
  %v5770 = vadd.f32 %v5768, %v5769
  %v5771 = vsel %vm1235, %v5482, 0.0
  %v5772 = vadd.f32 %v5770, %v5771
  %v5773 = vsel %vm1235, %v5487, 0.0
  %v5774 = vadd.f32 %v5772, %v5773
  %v5775 = vsel %vm1235, %v5490, 0.0
  %v5776 = vadd.f32 %v5774, %v5775
  %v5777 = vsel %vm1235, %v5495, 0.0
  %v5778 = vadd.f32 %v5776, %v5777
  %v5779 = vsel %vm1235, %v5498, 0.0
  %v5780 = vadd.f32 %v5778, %v5779
  %v5781 = vsel %vm1235, %v5503, 0.0
  %v5782 = vadd.f32 %v5780, %v5781
  %v5783 = vsel %vm1235, %v5506, 0.0
  %v5784 = vadd.f32 %v5782, %v5783
  %v5785 = vsel %vm1235, %v5511, 0.0
  %v5786 = vadd.f32 %v5784, %v5785
  %v5787 = vsel %vm1235, %v5514, 0.0
  %v5788 = vadd.f32 %v5786, %v5787
  %v5789 = vsel %vm1235, %v5519, 0.0
  %v5790 = vadd.f32 %v5788, %v5789
  %v5791 = vsel %vm1235, %v5522, 0.0
  %v5792 = vadd.f32 %v5790, %v5791
  %v5793 = vsel %vm1235, %v5527, 0.0
  %v5794 = vadd.f32 %v5792, %v5793
  %v5795 = vsel %vm1235, %v5530, 0.0
  %v5796 = vadd.f32 %v5794, %v5795
  %v5797 = vrot.slane %v5796, 4
  %v5798 = vadd.f32 %v5796, %v5797
  %v5799 = vrot.slane %v5798, 2
  %v5800 = vadd.f32 %v5798, %v5799
  %v5801 = vrot.slane %v5800, 1
  %v5802 = vadd.f32 %v5800, %v5801
  %v5803 = vmul.f32 %v5669, %v1502
  %v5804 = vmul.f32 %v5802, %v1502
  %v5805 = vmul.f32 %v5023, %v5023
  %v5806 = vmul.f32 %v5026, %v5026
  %v5807 = vmul.f32 %v5031, %v5031
  %v5808 = vmul.f32 %v5034, %v5034
  %v5809 = vmul.f32 %v5039, %v5039
  %v5810 = vmul.f32 %v5042, %v5042
  %v5811 = vmul.f32 %v5047, %v5047
  %v5812 = vmul.f32 %v5050, %v5050
  %v5813 = vmul.f32 %v5055, %v5055
  %v5814 = vmul.f32 %v5058, %v5058
  %v5815 = vmul.f32 %v5063, %v5063
  %v5816 = vmul.f32 %v5066, %v5066
  %v5817 = vmul.f32 %v5071, %v5071
  %v5818 = vmul.f32 %v5074, %v5074
  %v5819 = vmul.f32 %v5079, %v5079
  %v5820 = vmul.f32 %v5082, %v5082
  %v5821 = vmul.f32 %v5087, %v5087
  %v5822 = vmul.f32 %v5090, %v5090
  %v5823 = vmul.f32 %v5095, %v5095
  %v5824 = vmul.f32 %v5098, %v5098
  %v5825 = vmul.f32 %v5103, %v5103
  %v5826 = vmul.f32 %v5106, %v5106
  %v5827 = vmul.f32 %v5111, %v5111
  %v5828 = vmul.f32 %v5114, %v5114
  %v5829 = vmul.f32 %v5119, %v5119
  %v5830 = vmul.f32 %v5122, %v5122
  %v5831 = vmul.f32 %v5127, %v5127
  %v5832 = vmul.f32 %v5130, %v5130
  %v5833 = vmul.f32 %v5135, %v5135
  %v5834 = vmul.f32 %v5138, %v5138
  %v5835 = vmul.f32 %v5143, %v5143
  %v5836 = vmul.f32 %v5146, %v5146
  %v5837 = vmul.f32 %v5151, %v5151
  %v5838 = vmul.f32 %v5154, %v5154
  %v5839 = vmul.f32 %v5159, %v5159
  %v5840 = vmul.f32 %v5162, %v5162
  %v5841 = vmul.f32 %v5167, %v5167
  %v5842 = vmul.f32 %v5170, %v5170
  %v5843 = vmul.f32 %v5175, %v5175
  %v5844 = vmul.f32 %v5178, %v5178
  %v5845 = vmul.f32 %v5183, %v5183
  %v5846 = vmul.f32 %v5186, %v5186
  %v5847 = vmul.f32 %v5191, %v5191
  %v5848 = vmul.f32 %v5194, %v5194
  %v5849 = vmul.f32 %v5199, %v5199
  %v5850 = vmul.f32 %v5202, %v5202
  %v5851 = vmul.f32 %v5207, %v5207
  %v5852 = vmul.f32 %v5210, %v5210
  %v5853 = vmul.f32 %v5215, %v5215
  %v5854 = vmul.f32 %v5218, %v5218
  %v5855 = vmul.f32 %v5223, %v5223
  %v5856 = vmul.f32 %v5226, %v5226
  %v5857 = vmul.f32 %v5231, %v5231
  %v5858 = vmul.f32 %v5234, %v5234
  %v5859 = vmul.f32 %v5239, %v5239
  %v5860 = vmul.f32 %v5242, %v5242
  %v5861 = vmul.f32 %v5247, %v5247
  %v5862 = vmul.f32 %v5250, %v5250
  %v5863 = vmul.f32 %v5255, %v5255
  %v5864 = vmul.f32 %v5258, %v5258
  %v5865 = vmul.f32 %v5263, %v5263
  %v5866 = vmul.f32 %v5266, %v5266
  %v5867 = vmul.f32 %v5271, %v5271
  %v5868 = vmul.f32 %v5274, %v5274
  %v5869 = vmul.f32 %v5279, %v5279
  %v5870 = vmul.f32 %v5282, %v5282
  %v5871 = vmul.f32 %v5287, %v5287
  %v5872 = vmul.f32 %v5290, %v5290
  %v5873 = vmul.f32 %v5295, %v5295
  %v5874 = vmul.f32 %v5298, %v5298
  %v5875 = vmul.f32 %v5303, %v5303
  %v5876 = vmul.f32 %v5306, %v5306
  %v5877 = vmul.f32 %v5311, %v5311
  %v5878 = vmul.f32 %v5314, %v5314
  %v5879 = vmul.f32 %v5319, %v5319
  %v5880 = vmul.f32 %v5322, %v5322
  %v5881 = vmul.f32 %v5327, %v5327
  %v5882 = vmul.f32 %v5330, %v5330
  %v5883 = vmul.f32 %v5335, %v5335
  %v5884 = vmul.f32 %v5338, %v5338
  %v5885 = vmul.f32 %v5343, %v5343
  %v5886 = vmul.f32 %v5346, %v5346
  %v5887 = vmul.f32 %v5351, %v5351
  %v5888 = vmul.f32 %v5354, %v5354
  %v5889 = vmul.f32 %v5359, %v5359
  %v5890 = vmul.f32 %v5362, %v5362
  %v5891 = vmul.f32 %v5367, %v5367
  %v5892 = vmul.f32 %v5370, %v5370
  %v5893 = vmul.f32 %v5375, %v5375
  %v5894 = vmul.f32 %v5378, %v5378
  %v5895 = vmul.f32 %v5383, %v5383
  %v5896 = vmul.f32 %v5386, %v5386
  %v5897 = vmul.f32 %v5391, %v5391
  %v5898 = vmul.f32 %v5394, %v5394
  %v5899 = vmul.f32 %v5399, %v5399
  %v5900 = vmul.f32 %v5402, %v5402
  %v5901 = vmul.f32 %v5407, %v5407
  %v5902 = vmul.f32 %v5410, %v5410
  %v5903 = vmul.f32 %v5415, %v5415
  %v5904 = vmul.f32 %v5418, %v5418
  %v5905 = vmul.f32 %v5423, %v5423
  %v5906 = vmul.f32 %v5426, %v5426
  %v5907 = vmul.f32 %v5431, %v5431
  %v5908 = vmul.f32 %v5434, %v5434
  %v5909 = vmul.f32 %v5439, %v5439
  %v5910 = vmul.f32 %v5442, %v5442
  %v5911 = vmul.f32 %v5447, %v5447
  %v5912 = vmul.f32 %v5450, %v5450
  %v5913 = vmul.f32 %v5455, %v5455
  %v5914 = vmul.f32 %v5458, %v5458
  %v5915 = vmul.f32 %v5463, %v5463
  %v5916 = vmul.f32 %v5466, %v5466
  %v5917 = vmul.f32 %v5471, %v5471
  %v5918 = vmul.f32 %v5474, %v5474
  %v5919 = vmul.f32 %v5479, %v5479
  %v5920 = vmul.f32 %v5482, %v5482
  %v5921 = vmul.f32 %v5487, %v5487
  %v5922 = vmul.f32 %v5490, %v5490
  %v5923 = vmul.f32 %v5495, %v5495
  %v5924 = vmul.f32 %v5498, %v5498
  %v5925 = vmul.f32 %v5503, %v5503
  %v5926 = vmul.f32 %v5506, %v5506
  %v5927 = vmul.f32 %v5511, %v5511
  %v5928 = vmul.f32 %v5514, %v5514
  %v5929 = vmul.f32 %v5519, %v5519
  %v5930 = vmul.f32 %v5522, %v5522
  %v5931 = vmul.f32 %v5527, %v5527
  %v5932 = vmul.f32 %v5530, %v5530
  %v5933 = vsel %vm1235, %v5805, 0.0
  %v5934 = vsel %vm1235, %v5806, 0.0
  %v5935 = vadd.f32 %v5933, %v5934
  %v5936 = vsel %vm1235, %v5807, 0.0
  %v5937 = vadd.f32 %v5935, %v5936
  %v5938 = vsel %vm1235, %v5808, 0.0
  %v5939 = vadd.f32 %v5937, %v5938
  %v5940 = vsel %vm1235, %v5809, 0.0
  %v5941 = vadd.f32 %v5939, %v5940
  %v5942 = vsel %vm1235, %v5810, 0.0
  %v5943 = vadd.f32 %v5941, %v5942
  %v5944 = vsel %vm1235, %v5811, 0.0
  %v5945 = vadd.f32 %v5943, %v5944
  %v5946 = vsel %vm1235, %v5812, 0.0
  %v5947 = vadd.f32 %v5945, %v5946
  %v5948 = vsel %vm1235, %v5813, 0.0
  %v5949 = vadd.f32 %v5947, %v5948
  %v5950 = vsel %vm1235, %v5814, 0.0
  %v5951 = vadd.f32 %v5949, %v5950
  %v5952 = vsel %vm1235, %v5815, 0.0
  %v5953 = vadd.f32 %v5951, %v5952
  %v5954 = vsel %vm1235, %v5816, 0.0
  %v5955 = vadd.f32 %v5953, %v5954
  %v5956 = vsel %vm1235, %v5817, 0.0
  %v5957 = vadd.f32 %v5955, %v5956
  %v5958 = vsel %vm1235, %v5818, 0.0
  %v5959 = vadd.f32 %v5957, %v5958
  %v5960 = vsel %vm1235, %v5819, 0.0
  %v5961 = vadd.f32 %v5959, %v5960
  %v5962 = vsel %vm1235, %v5820, 0.0
  %v5963 = vadd.f32 %v5961, %v5962
  %v5964 = vsel %vm1235, %v5821, 0.0
  %v5965 = vadd.f32 %v5963, %v5964
  %v5966 = vsel %vm1235, %v5822, 0.0
  %v5967 = vadd.f32 %v5965, %v5966
  %v5968 = vsel %vm1235, %v5823, 0.0
  %v5969 = vadd.f32 %v5967, %v5968
  %v5970 = vsel %vm1235, %v5824, 0.0
  %v5971 = vadd.f32 %v5969, %v5970
  %v5972 = vsel %vm1235, %v5825, 0.0
  %v5973 = vadd.f32 %v5971, %v5972
  %v5974 = vsel %vm1235, %v5826, 0.0
  %v5975 = vadd.f32 %v5973, %v5974
  %v5976 = vsel %vm1235, %v5827, 0.0
  %v5977 = vadd.f32 %v5975, %v5976
  %v5978 = vsel %vm1235, %v5828, 0.0
  %v5979 = vadd.f32 %v5977, %v5978
  %v5980 = vsel %vm1235, %v5829, 0.0
  %v5981 = vadd.f32 %v5979, %v5980
  %v5982 = vsel %vm1235, %v5830, 0.0
  %v5983 = vadd.f32 %v5981, %v5982
  %v5984 = vsel %vm1235, %v5831, 0.0
  %v5985 = vadd.f32 %v5983, %v5984
  %v5986 = vsel %vm1235, %v5832, 0.0
  %v5987 = vadd.f32 %v5985, %v5986
  %v5988 = vsel %vm1235, %v5833, 0.0
  %v5989 = vadd.f32 %v5987, %v5988
  %v5990 = vsel %vm1235, %v5834, 0.0
  %v5991 = vadd.f32 %v5989, %v5990
  %v5992 = vsel %vm1235, %v5835, 0.0
  %v5993 = vadd.f32 %v5991, %v5992
  %v5994 = vsel %vm1235, %v5836, 0.0
  %v5995 = vadd.f32 %v5993, %v5994
  %v5996 = vsel %vm1235, %v5837, 0.0
  %v5997 = vadd.f32 %v5995, %v5996
  %v5998 = vsel %vm1235, %v5838, 0.0
  %v5999 = vadd.f32 %v5997, %v5998
  %v6000 = vsel %vm1235, %v5839, 0.0
  %v6001 = vadd.f32 %v5999, %v6000
  %v6002 = vsel %vm1235, %v5840, 0.0
  %v6003 = vadd.f32 %v6001, %v6002
  %v6004 = vsel %vm1235, %v5841, 0.0
  %v6005 = vadd.f32 %v6003, %v6004
  %v6006 = vsel %vm1235, %v5842, 0.0
  %v6007 = vadd.f32 %v6005, %v6006
  %v6008 = vsel %vm1235, %v5843, 0.0
  %v6009 = vadd.f32 %v6007, %v6008
  %v6010 = vsel %vm1235, %v5844, 0.0
  %v6011 = vadd.f32 %v6009, %v6010
  %v6012 = vsel %vm1235, %v5845, 0.0
  %v6013 = vadd.f32 %v6011, %v6012
  %v6014 = vsel %vm1235, %v5846, 0.0
  %v6015 = vadd.f32 %v6013, %v6014
  %v6016 = vsel %vm1235, %v5847, 0.0
  %v6017 = vadd.f32 %v6015, %v6016
  %v6018 = vsel %vm1235, %v5848, 0.0
  %v6019 = vadd.f32 %v6017, %v6018
  %v6020 = vsel %vm1235, %v5849, 0.0
  %v6021 = vadd.f32 %v6019, %v6020
  %v6022 = vsel %vm1235, %v5850, 0.0
  %v6023 = vadd.f32 %v6021, %v6022
  %v6024 = vsel %vm1235, %v5851, 0.0
  %v6025 = vadd.f32 %v6023, %v6024
  %v6026 = vsel %vm1235, %v5852, 0.0
  %v6027 = vadd.f32 %v6025, %v6026
  %v6028 = vsel %vm1235, %v5853, 0.0
  %v6029 = vadd.f32 %v6027, %v6028
  %v6030 = vsel %vm1235, %v5854, 0.0
  %v6031 = vadd.f32 %v6029, %v6030
  %v6032 = vsel %vm1235, %v5855, 0.0
  %v6033 = vadd.f32 %v6031, %v6032
  %v6034 = vsel %vm1235, %v5856, 0.0
  %v6035 = vadd.f32 %v6033, %v6034
  %v6036 = vsel %vm1235, %v5857, 0.0
  %v6037 = vadd.f32 %v6035, %v6036
  %v6038 = vsel %vm1235, %v5858, 0.0
  %v6039 = vadd.f32 %v6037, %v6038
  %v6040 = vsel %vm1235, %v5859, 0.0
  %v6041 = vadd.f32 %v6039, %v6040
  %v6042 = vsel %vm1235, %v5860, 0.0
  %v6043 = vadd.f32 %v6041, %v6042
  %v6044 = vsel %vm1235, %v5861, 0.0
  %v6045 = vadd.f32 %v6043, %v6044
  %v6046 = vsel %vm1235, %v5862, 0.0
  %v6047 = vadd.f32 %v6045, %v6046
  %v6048 = vsel %vm1235, %v5863, 0.0
  %v6049 = vadd.f32 %v6047, %v6048
  %v6050 = vsel %vm1235, %v5864, 0.0
  %v6051 = vadd.f32 %v6049, %v6050
  %v6052 = vsel %vm1235, %v5865, 0.0
  %v6053 = vadd.f32 %v6051, %v6052
  %v6054 = vsel %vm1235, %v5866, 0.0
  %v6055 = vadd.f32 %v6053, %v6054
  %v6056 = vsel %vm1235, %v5867, 0.0
  %v6057 = vadd.f32 %v6055, %v6056
  %v6058 = vsel %vm1235, %v5868, 0.0
  %v6059 = vadd.f32 %v6057, %v6058
  %v6060 = vrot.slane %v6059, 4
  %v6061 = vadd.f32 %v6059, %v6060
  %v6062 = vrot.slane %v6061, 2
  %v6063 = vadd.f32 %v6061, %v6062
  %v6064 = vrot.slane %v6063, 1
  %v6065 = vadd.f32 %v6063, %v6064
  %v6066 = vsel %vm1235, %v5869, 0.0
  %v6067 = vsel %vm1235, %v5870, 0.0
  %v6068 = vadd.f32 %v6066, %v6067
  %v6069 = vsel %vm1235, %v5871, 0.0
  %v6070 = vadd.f32 %v6068, %v6069
  %v6071 = vsel %vm1235, %v5872, 0.0
  %v6072 = vadd.f32 %v6070, %v6071
  %v6073 = vsel %vm1235, %v5873, 0.0
  %v6074 = vadd.f32 %v6072, %v6073
  %v6075 = vsel %vm1235, %v5874, 0.0
  %v6076 = vadd.f32 %v6074, %v6075
  %v6077 = vsel %vm1235, %v5875, 0.0
  %v6078 = vadd.f32 %v6076, %v6077
  %v6079 = vsel %vm1235, %v5876, 0.0
  %v6080 = vadd.f32 %v6078, %v6079
  %v6081 = vsel %vm1235, %v5877, 0.0
  %v6082 = vadd.f32 %v6080, %v6081
  %v6083 = vsel %vm1235, %v5878, 0.0
  %v6084 = vadd.f32 %v6082, %v6083
  %v6085 = vsel %vm1235, %v5879, 0.0
  %v6086 = vadd.f32 %v6084, %v6085
  %v6087 = vsel %vm1235, %v5880, 0.0
  %v6088 = vadd.f32 %v6086, %v6087
  %v6089 = vsel %vm1235, %v5881, 0.0
  %v6090 = vadd.f32 %v6088, %v6089
  %v6091 = vsel %vm1235, %v5882, 0.0
  %v6092 = vadd.f32 %v6090, %v6091
  %v6093 = vsel %vm1235, %v5883, 0.0
  %v6094 = vadd.f32 %v6092, %v6093
  %v6095 = vsel %vm1235, %v5884, 0.0
  %v6096 = vadd.f32 %v6094, %v6095
  %v6097 = vsel %vm1235, %v5885, 0.0
  %v6098 = vadd.f32 %v6096, %v6097
  %v6099 = vsel %vm1235, %v5886, 0.0
  %v6100 = vadd.f32 %v6098, %v6099
  %v6101 = vsel %vm1235, %v5887, 0.0
  %v6102 = vadd.f32 %v6100, %v6101
  %v6103 = vsel %vm1235, %v5888, 0.0
  %v6104 = vadd.f32 %v6102, %v6103
  %v6105 = vsel %vm1235, %v5889, 0.0
  %v6106 = vadd.f32 %v6104, %v6105
  %v6107 = vsel %vm1235, %v5890, 0.0
  %v6108 = vadd.f32 %v6106, %v6107
  %v6109 = vsel %vm1235, %v5891, 0.0
  %v6110 = vadd.f32 %v6108, %v6109
  %v6111 = vsel %vm1235, %v5892, 0.0
  %v6112 = vadd.f32 %v6110, %v6111
  %v6113 = vsel %vm1235, %v5893, 0.0
  %v6114 = vadd.f32 %v6112, %v6113
  %v6115 = vsel %vm1235, %v5894, 0.0
  %v6116 = vadd.f32 %v6114, %v6115
  %v6117 = vsel %vm1235, %v5895, 0.0
  %v6118 = vadd.f32 %v6116, %v6117
  %v6119 = vsel %vm1235, %v5896, 0.0
  %v6120 = vadd.f32 %v6118, %v6119
  %v6121 = vsel %vm1235, %v5897, 0.0
  %v6122 = vadd.f32 %v6120, %v6121
  %v6123 = vsel %vm1235, %v5898, 0.0
  %v6124 = vadd.f32 %v6122, %v6123
  %v6125 = vsel %vm1235, %v5899, 0.0
  %v6126 = vadd.f32 %v6124, %v6125
  %v6127 = vsel %vm1235, %v5900, 0.0
  %v6128 = vadd.f32 %v6126, %v6127
  %v6129 = vsel %vm1235, %v5901, 0.0
  %v6130 = vadd.f32 %v6128, %v6129
  %v6131 = vsel %vm1235, %v5902, 0.0
  %v6132 = vadd.f32 %v6130, %v6131
  %v6133 = vsel %vm1235, %v5903, 0.0
  %v6134 = vadd.f32 %v6132, %v6133
  %v6135 = vsel %vm1235, %v5904, 0.0
  %v6136 = vadd.f32 %v6134, %v6135
  %v6137 = vsel %vm1235, %v5905, 0.0
  %v6138 = vadd.f32 %v6136, %v6137
  %v6139 = vsel %vm1235, %v5906, 0.0
  %v6140 = vadd.f32 %v6138, %v6139
  %v6141 = vsel %vm1235, %v5907, 0.0
  %v6142 = vadd.f32 %v6140, %v6141
  %v6143 = vsel %vm1235, %v5908, 0.0
  %v6144 = vadd.f32 %v6142, %v6143
  %v6145 = vsel %vm1235, %v5909, 0.0
  %v6146 = vadd.f32 %v6144, %v6145
  %v6147 = vsel %vm1235, %v5910, 0.0
  %v6148 = vadd.f32 %v6146, %v6147
  %v6149 = vsel %vm1235, %v5911, 0.0
  %v6150 = vadd.f32 %v6148, %v6149
  %v6151 = vsel %vm1235, %v5912, 0.0
  %v6152 = vadd.f32 %v6150, %v6151
  %v6153 = vsel %vm1235, %v5913, 0.0
  %v6154 = vadd.f32 %v6152, %v6153
  %v6155 = vsel %vm1235, %v5914, 0.0
  %v6156 = vadd.f32 %v6154, %v6155
  %v6157 = vsel %vm1235, %v5915, 0.0
  %v6158 = vadd.f32 %v6156, %v6157
  %v6159 = vsel %vm1235, %v5916, 0.0
  %v6160 = vadd.f32 %v6158, %v6159
  %v6161 = vsel %vm1235, %v5917, 0.0
  %v6162 = vadd.f32 %v6160, %v6161
  %v6163 = vsel %vm1235, %v5918, 0.0
  %v6164 = vadd.f32 %v6162, %v6163
  %v6165 = vsel %vm1235, %v5919, 0.0
  %v6166 = vadd.f32 %v6164, %v6165
  %v6167 = vsel %vm1235, %v5920, 0.0
  %v6168 = vadd.f32 %v6166, %v6167
  %v6169 = vsel %vm1235, %v5921, 0.0
  %v6170 = vadd.f32 %v6168, %v6169
  %v6171 = vsel %vm1235, %v5922, 0.0
  %v6172 = vadd.f32 %v6170, %v6171
  %v6173 = vsel %vm1235, %v5923, 0.0
  %v6174 = vadd.f32 %v6172, %v6173
  %v6175 = vsel %vm1235, %v5924, 0.0
  %v6176 = vadd.f32 %v6174, %v6175
  %v6177 = vsel %vm1235, %v5925, 0.0
  %v6178 = vadd.f32 %v6176, %v6177
  %v6179 = vsel %vm1235, %v5926, 0.0
  %v6180 = vadd.f32 %v6178, %v6179
  %v6181 = vsel %vm1235, %v5927, 0.0
  %v6182 = vadd.f32 %v6180, %v6181
  %v6183 = vsel %vm1235, %v5928, 0.0
  %v6184 = vadd.f32 %v6182, %v6183
  %v6185 = vsel %vm1235, %v5929, 0.0
  %v6186 = vadd.f32 %v6184, %v6185
  %v6187 = vsel %vm1235, %v5930, 0.0
  %v6188 = vadd.f32 %v6186, %v6187
  %v6189 = vsel %vm1235, %v5931, 0.0
  %v6190 = vadd.f32 %v6188, %v6189
  %v6191 = vsel %vm1235, %v5932, 0.0
  %v6192 = vadd.f32 %v6190, %v6191
  %v6193 = vrot.slane %v6192, 4
  %v6194 = vadd.f32 %v6192, %v6193
  %v6195 = vrot.slane %v6194, 2
  %v6196 = vadd.f32 %v6194, %v6195
  %v6197 = vrot.slane %v6196, 1
  %v6198 = vadd.f32 %v6196, %v6197
  %v6199 = vmul.f32 %v6065, %v1502
  %v6200 = vmul.f32 %v6198, %v1502
  %v6201 = vlaneseq
  %v6202 = vshrl.u32 %v6201, 7
  %v6203 = vsub.s32 0, %v6202
  %v6204 = vrot.slane %v5534, %v6203
  %v6205 = vadd.f32 %v5803, %v6204
  %v6206 = vadd.f32 %v5804, %v6204
  %v6207 = vmul.f32 %v5534, 2.0
  %v6208 = vlaneseq
  %v6209 = vshrl.u32 %v6208, 7
  %v6210 = vsub.s32 0, %v6209
  %v6211 = vrot.slane %v6207, %v6210
  %v6214 = vsel %vm1914, %v5804, %v5803
  %v6216 = vmul.f32 %v6211, %v6214
  %v6218 = vrot.slane %v6216, 1
  %v6221 = vadd.f32 %v6199, %v6216
  %v6222 = vadd.f32 %v6200, %v6218
  %v6223 = vmul.f32 %v5534, %v5534
  %v6224 = vlaneseq
  %v6225 = vshrl.u32 %v6224, 7
  %v6226 = vsub.s32 0, %v6225
  %v6227 = vrot.slane %v6223, %v6226
  %v6228 = vadd.f32 %v6221, %v6227
  %v6229 = vadd.f32 %v6222, %v6227
  %v6232 = vrot.slane %v6206, 7
  %v6233 = vsel %vm1914, %v6232, %v6205
  %v6234 = vsel %vm1235, %v6233, 0
  %6236 = vmatprep.subr.mxu0 0.0
  %6237 = vmatpush1.msra.mxu0 %v30
  %6238 = vmatprep.subr.mxu0 0.0
  %6239 = vmatpush1.msra.mxu0 %v31
  %6240 = vmatprep.subr.mxu0 0.0
  %6241 = vmatpush1.msra.mxu0 %v32
  %6242 = vmatprep.subr.mxu0 0.0
  %6243 = vmatpush1.msra.mxu0 %v33
  %6244 = vmatprep.subr.mxu0 0.0
  %6245 = vmatpush1.msra.mxu0 %v34
  %6246 = vmatprep.subr.mxu0 0.0
  %6247 = vmatpush1.msra.mxu0 %v35
  %6248 = vmatprep.subr.mxu0 0.0
  %6249 = vmatpush1.msra.mxu0 %v36
  %6250 = vmatprep.subr.mxu0 0.0
  %6251 = vmatpush1.msra.mxu0 %v37
  %6252 = vmatprep.subr.mxu0 0.0
  %6253 = vmatpush1.msra.mxu0 0.0
  %6254 = vmatprep.subr.mxu0 0.0
  %6255 = vmatpush1.msra.mxu0 0.0
  %6256 = vmatprep.subr.mxu0 0.0
  %6257 = vmatpush1.msra.mxu0 0.0
  %6258 = vmatprep.subr.mxu0 0.0
  %6259 = vmatpush1.msra.mxu0 0.0
  %6260 = vmatprep.subr.mxu0 0.0
  %6261 = vmatpush1.msra.mxu0 0.0
  %6262 = vmatprep.subr.mxu0 0.0
  %6263 = vmatpush1.msra.mxu0 0.0
  %6264 = vmatprep.subr.mxu0 0.0
  %6265 = vmatpush1.msra.mxu0 0.0
  %6266 = vmatprep.subr.mxu0 0.0
  %6267 = vmatpush1.msra.mxu0 0.0
  %6268 = vmatprep.subr.mxu0 0.0
  %6269 = vmatpush1.msra.mxu0 0.0
  %6270 = vmatprep.subr.mxu0 0.0
  %6271 = vmatpush1.msra.mxu0 0.0
  %6272 = vmatprep.subr.mxu0 0.0
  %6273 = vmatpush1.msra.mxu0 0.0
  %6274 = vmatprep.subr.mxu0 0.0
  %6275 = vmatpush1.msra.mxu0 0.0
  %6276 = vmatprep.subr.mxu0 0.0
  %6277 = vmatpush1.msra.mxu0 0.0
  %6278 = vmatprep.subr.mxu0 0.0
  %6279 = vmatpush1.msra.mxu0 0.0
  %6280 = vmatprep.subr.mxu0 0.0
  %6281 = vmatpush1.msra.mxu0 0.0
  %6282 = vmatprep.subr.mxu0 0.0
  %6283 = vmatpush1.msra.mxu0 0.0
  %6284 = vmatprep.subr.mxu0 0.0
  %6285 = vmatpush1.msra.mxu0 0.0
  %6286 = vmatprep.subr.mxu0 0.0
  %6287 = vmatpush1.msra.mxu0 0.0
  %6288 = vmatprep.subr.mxu0 0.0
  %6289 = vmatpush1.msra.mxu0 0.0
  %6290 = vmatprep.subr.mxu0 0.0
  %6291 = vmatpush1.msra.mxu0 0.0
  %6292 = vmatprep.subr.mxu0 0.0
  %6293 = vmatpush1.msra.mxu0 0.0
  %6294 = vmatprep.subr.mxu0 0.0
  %6295 = vmatpush1.msra.mxu0 0.0
  %6296 = vmatprep.subr.mxu0 0.0
  %6297 = vmatpush1.msra.mxu0 0.0
  %6298 = vmatprep.subr.mxu0 0.0
  %6299 = vmatpush1.msra.mxu0 0.0
  %6300 = vmatprep.mubr.f32.mxu0 0.0
  %6301 = vmatmul.mubr.f32.gmra.mrb[0].mxu0 %v6234
  %v6302 = vpop.f32.mrb[0].mxu0
  %v6303 = vadd.f32 0.0, %v6302
  %v6304 = vpop.f32.mrb[0].mxu0
  %6305 = vdwg.mxu0
  %v6308 = vrot.slane %v6229, 7
  %v6309 = vsel %vm1914, %v6308, %v6228
  %v6310 = vsel %vm1235, %v6309, 0
  %6312 = vmatprep.subr.mxu0 0.0
  %6313 = vmatpush1.msra.mxu0 %v30
  %6314 = vmatprep.subr.mxu0 0.0
  %6315 = vmatpush1.msra.mxu0 %v31
  %6316 = vmatprep.subr.mxu0 0.0
  %6317 = vmatpush1.msra.mxu0 %v32
  %6318 = vmatprep.subr.mxu0 0.0
  %6319 = vmatpush1.msra.mxu0 %v33
  %6320 = vmatprep.subr.mxu0 0.0
  %6321 = vmatpush1.msra.mxu0 %v34
  %6322 = vmatprep.subr.mxu0 0.0
  %6323 = vmatpush1.msra.mxu0 %v35
  %6324 = vmatprep.subr.mxu0 0.0
  %6325 = vmatpush1.msra.mxu0 %v36
  %6326 = vmatprep.subr.mxu0 0.0
  %6327 = vmatpush1.msra.mxu0 %v37
  %6328 = vmatprep.subr.mxu0 0.0
  %6329 = vmatpush1.msra.mxu0 0.0
  %6330 = vmatprep.subr.mxu0 0.0
  %6331 = vmatpush1.msra.mxu0 0.0
  %6332 = vmatprep.subr.mxu0 0.0
  %6333 = vmatpush1.msra.mxu0 0.0
  %6334 = vmatprep.subr.mxu0 0.0
  %6335 = vmatpush1.msra.mxu0 0.0
  %6336 = vmatprep.subr.mxu0 0.0
  %6337 = vmatpush1.msra.mxu0 0.0
  %6338 = vmatprep.subr.mxu0 0.0
  %6339 = vmatpush1.msra.mxu0 0.0
  %6340 = vmatprep.subr.mxu0 0.0
  %6341 = vmatpush1.msra.mxu0 0.0
  %6342 = vmatprep.subr.mxu0 0.0
  %6343 = vmatpush1.msra.mxu0 0.0
  %6344 = vmatprep.subr.mxu0 0.0
  %6345 = vmatpush1.msra.mxu0 0.0
  %6346 = vmatprep.subr.mxu0 0.0
  %6347 = vmatpush1.msra.mxu0 0.0
  %6348 = vmatprep.subr.mxu0 0.0
  %6349 = vmatpush1.msra.mxu0 0.0
  %6350 = vmatprep.subr.mxu0 0.0
  %6351 = vmatpush1.msra.mxu0 0.0
  %6352 = vmatprep.subr.mxu0 0.0
  %6353 = vmatpush1.msra.mxu0 0.0
  %6354 = vmatprep.subr.mxu0 0.0
  %6355 = vmatpush1.msra.mxu0 0.0
  %6356 = vmatprep.subr.mxu0 0.0
  %6357 = vmatpush1.msra.mxu0 0.0
  %6358 = vmatprep.subr.mxu0 0.0
  %6359 = vmatpush1.msra.mxu0 0.0
  %6360 = vmatprep.subr.mxu0 0.0
  %6361 = vmatpush1.msra.mxu0 0.0
  %6362 = vmatprep.subr.mxu0 0.0
  %6363 = vmatpush1.msra.mxu0 0.0
  %6364 = vmatprep.subr.mxu0 0.0
  %6365 = vmatpush1.msra.mxu0 0.0
  %6366 = vmatprep.subr.mxu0 0.0
  %6367 = vmatpush1.msra.mxu0 0.0
  %6368 = vmatprep.subr.mxu0 0.0
  %6369 = vmatpush1.msra.mxu0 0.0
  %6370 = vmatprep.subr.mxu0 0.0
  %6371 = vmatpush1.msra.mxu0 0.0
  %6372 = vmatprep.subr.mxu0 0.0
  %6373 = vmatpush1.msra.mxu0 0.0
  %6374 = vmatprep.subr.mxu0 0.0
  %6375 = vmatpush1.msra.mxu0 0.0
  %6376 = vmatprep.mubr.f32.mxu0 0.0
  %6377 = vmatmul.mubr.f32.gmra.mrb[0].mxu0 %v6310
  %v6378 = vpop.f32.mrb[0].mxu0
  %v6379 = vadd.f32 0.0, %v6378
  %v6380 = vpop.f32.mrb[0].mxu0
  %6381 = vdwg.mxu0
  %v6382 = vmul.f32 %v6303, %v6303
  %v6383 = vsub.f32 %v6379, %v6382
  %v6384 = vmax.f32 %v6383, 0.0
  %v6385 = vadd.f32 %v6384, 1e-05
  %v6386 = vrsqrt.pop %v6385
  %v6387 = vlaneseq
  %v6388 = vshrl.u32 %v6387, 7
  %v6389 = vsub.s32 0, %v6388
  %v6390 = vrot.slane %v5535, %v6389
  %v6391 = vmul.f32 %v6386, %v6390
  %v6392 = vsub.f32 %v6204, %v6303
  %v6393 = vmul.f32 %v6392, %v6391
  %v6394 = vlaneseq
  %v6395 = vshrl.u32 %v6394, 7
  %v6396 = vsub.s32 0, %v6395
  %v6397 = vrot.slane %v5536, %v6396
  %v6398 = vadd.f32 %v6393, %v6397
  %v6401 = vunpack.c.l.s4 1966171168
  %v6402 = vunpack.c.0.s8 %v6401
  %v6403 = vlaneseq
  %v6404 = vshrl.u32 %v6403, 7
  %v6405 = vsub.s32 %v6402, %v6404
  %v6406 = vrot.slane %v6391, %v6405
  %v6407 = vcombine.high %v6406, %v6406
  %v6409 = vunpack.c.l.s4 1966171168
  %v6410 = vunpack.c.0.s8 %v6409
  %v6411 = vlaneseq
  %v6412 = vshrl.u32 %v6411, 7
  %v6413 = vsub.s32 %v6410, %v6412
  %v6414 = vrot.slane %v6406, %v6413
  %v6416 = vunpack.c.l.s4 1966171168
  %v6417 = vunpack.c.0.s8 %v6416
  %v6418 = vlaneseq
  %v6419 = vshrl.u32 %v6418, 7
  %v6420 = vsub.s32 %v6417, %v6419
  %v6421 = vrot.slane %v6407, %v6420
  %v6422 = vlaneseq
  %v6423 = vshrl.u32 %v6422, 7
  %v6424 = vsub.s32 0, %v6423
  %v6425 = vrot.slane %v6414, %v6424
  %v6426 = vlaneseq
  %v6427 = vshrl.u32 %v6426, 7
  %v6428 = vsub.s32 0, %v6427
  %v6429 = vrot.slane %v6421, %v6428
  %v6432 = vmul.f32 %v5023, %v6425
  %v6433 = vmul.f32 %v5026, %v6425
  %v6434 = vmul.f32 %v5031, %v6425
  %v6435 = vmul.f32 %v5034, %v6425
  %v6436 = vmul.f32 %v5039, %v6425
  %v6437 = vmul.f32 %v5042, %v6425
  %v6438 = vmul.f32 %v5047, %v6425
  %v6439 = vmul.f32 %v5050, %v6425
  %v6440 = vmul.f32 %v5055, %v6425
  %v6441 = vmul.f32 %v5058, %v6425
  %v6442 = vmul.f32 %v5063, %v6425
  %v6443 = vmul.f32 %v5066, %v6425
  %v6444 = vmul.f32 %v5071, %v6425
  %v6445 = vmul.f32 %v5074, %v6425
  %v6446 = vmul.f32 %v5079, %v6425
  %v6447 = vmul.f32 %v5082, %v6425
  %v6448 = vmul.f32 %v5087, %v6425
  %v6449 = vmul.f32 %v5090, %v6425
  %v6450 = vmul.f32 %v5095, %v6425
  %v6451 = vmul.f32 %v5098, %v6425
  %v6452 = vmul.f32 %v5103, %v6425
  %v6453 = vmul.f32 %v5106, %v6425
  %v6454 = vmul.f32 %v5111, %v6425
  %v6455 = vmul.f32 %v5114, %v6425
  %v6456 = vmul.f32 %v5119, %v6425
  %v6457 = vmul.f32 %v5122, %v6425
  %v6458 = vmul.f32 %v5127, %v6425
  %v6459 = vmul.f32 %v5130, %v6425
  %v6460 = vmul.f32 %v5135, %v6425
  %v6461 = vmul.f32 %v5138, %v6425
  %v6462 = vmul.f32 %v5143, %v6425
  %v6463 = vmul.f32 %v5146, %v6425
  %v6464 = vmul.f32 %v5151, %v6425
  %v6465 = vmul.f32 %v5154, %v6425
  %v6466 = vmul.f32 %v5159, %v6425
  %v6467 = vmul.f32 %v5162, %v6425
  %v6468 = vmul.f32 %v5167, %v6425
  %v6469 = vmul.f32 %v5170, %v6425
  %v6470 = vmul.f32 %v5175, %v6425
  %v6471 = vmul.f32 %v5178, %v6425
  %v6472 = vmul.f32 %v5183, %v6425
  %v6473 = vmul.f32 %v5186, %v6425
  %v6474 = vmul.f32 %v5191, %v6425
  %v6475 = vmul.f32 %v5194, %v6425
  %v6476 = vmul.f32 %v5199, %v6425
  %v6477 = vmul.f32 %v5202, %v6425
  %v6478 = vmul.f32 %v5207, %v6425
  %v6479 = vmul.f32 %v5210, %v6425
  %v6480 = vmul.f32 %v5215, %v6425
  %v6481 = vmul.f32 %v5218, %v6425
  %v6482 = vmul.f32 %v5223, %v6425
  %v6483 = vmul.f32 %v5226, %v6425
  %v6484 = vmul.f32 %v5231, %v6425
  %v6485 = vmul.f32 %v5234, %v6425
  %v6486 = vmul.f32 %v5239, %v6425
  %v6487 = vmul.f32 %v5242, %v6425
  %v6488 = vmul.f32 %v5247, %v6425
  %v6489 = vmul.f32 %v5250, %v6425
  %v6490 = vmul.f32 %v5255, %v6425
  %v6491 = vmul.f32 %v5258, %v6425
  %v6492 = vmul.f32 %v5263, %v6425
  %v6493 = vmul.f32 %v5266, %v6425
  %v6494 = vmul.f32 %v5271, %v6425
  %v6495 = vmul.f32 %v5274, %v6425
  %v6496 = vmul.f32 %v5279, %v6429
  %v6497 = vmul.f32 %v5282, %v6429
  %v6498 = vmul.f32 %v5287, %v6429
  %v6499 = vmul.f32 %v5290, %v6429
  %v6500 = vmul.f32 %v5295, %v6429
  %v6501 = vmul.f32 %v5298, %v6429
  %v6502 = vmul.f32 %v5303, %v6429
  %v6503 = vmul.f32 %v5306, %v6429
  %v6504 = vmul.f32 %v5311, %v6429
  %v6505 = vmul.f32 %v5314, %v6429
  %v6506 = vmul.f32 %v5319, %v6429
  %v6507 = vmul.f32 %v5322, %v6429
  %v6508 = vmul.f32 %v5327, %v6429
  %v6509 = vmul.f32 %v5330, %v6429
  %v6510 = vmul.f32 %v5335, %v6429
  %v6511 = vmul.f32 %v5338, %v6429
  %v6512 = vmul.f32 %v5343, %v6429
  %v6513 = vmul.f32 %v5346, %v6429
  %v6514 = vmul.f32 %v5351, %v6429
  %v6515 = vmul.f32 %v5354, %v6429
  %v6516 = vmul.f32 %v5359, %v6429
  %v6517 = vmul.f32 %v5362, %v6429
  %v6518 = vmul.f32 %v5367, %v6429
  %v6519 = vmul.f32 %v5370, %v6429
  %v6520 = vmul.f32 %v5375, %v6429
  %v6521 = vmul.f32 %v5378, %v6429
  %v6522 = vmul.f32 %v5383, %v6429
  %v6523 = vmul.f32 %v5386, %v6429
  %v6524 = vmul.f32 %v5391, %v6429
  %v6525 = vmul.f32 %v5394, %v6429
  %v6526 = vmul.f32 %v5399, %v6429
  %v6527 = vmul.f32 %v5402, %v6429
  %v6528 = vmul.f32 %v5407, %v6429
  %v6529 = vmul.f32 %v5410, %v6429
  %v6530 = vmul.f32 %v5415, %v6429
  %v6531 = vmul.f32 %v5418, %v6429
  %v6532 = vmul.f32 %v5423, %v6429
  %v6533 = vmul.f32 %v5426, %v6429
  %v6534 = vmul.f32 %v5431, %v6429
  %v6535 = vmul.f32 %v5434, %v6429
  %v6536 = vmul.f32 %v5439, %v6429
  %v6537 = vmul.f32 %v5442, %v6429
  %v6538 = vmul.f32 %v5447, %v6429
  %v6539 = vmul.f32 %v5450, %v6429
  %v6540 = vmul.f32 %v5455, %v6429
  %v6541 = vmul.f32 %v5458, %v6429
  %v6542 = vmul.f32 %v5463, %v6429
  %v6543 = vmul.f32 %v5466, %v6429
  %v6544 = vmul.f32 %v5471, %v6429
  %v6545 = vmul.f32 %v5474, %v6429
  %v6546 = vmul.f32 %v5479, %v6429
  %v6547 = vmul.f32 %v5482, %v6429
  %v6548 = vmul.f32 %v5487, %v6429
  %v6549 = vmul.f32 %v5490, %v6429
  %v6550 = vmul.f32 %v5495, %v6429
  %v6551 = vmul.f32 %v5498, %v6429
  %v6552 = vmul.f32 %v5503, %v6429
  %v6553 = vmul.f32 %v5506, %v6429
  %v6554 = vmul.f32 %v5511, %v6429
  %v6555 = vmul.f32 %v5514, %v6429
  %v6556 = vmul.f32 %v5519, %v6429
  %v6557 = vmul.f32 %v5522, %v6429
  %v6558 = vmul.f32 %v5527, %v6429
  %v6559 = vmul.f32 %v5530, %v6429
  %v6562 = vunpack.c.l.s4 1966171168
  %v6563 = vunpack.c.0.s8 %v6562
  %v6564 = vlaneseq
  %v6565 = vshrl.u32 %v6564, 7
  %v6566 = vsub.s32 %v6563, %v6565
  %v6567 = vrot.slane %v6398, %v6566
  %v6568 = vcombine.high %v6567, %v6567
  %v6570 = vunpack.c.l.s4 1966171168
  %v6571 = vunpack.c.0.s8 %v6570
  %v6572 = vlaneseq
  %v6573 = vshrl.u32 %v6572, 7
  %v6574 = vsub.s32 %v6571, %v6573
  %v6575 = vrot.slane %v6567, %v6574
  %v6577 = vunpack.c.l.s4 1966171168
  %v6578 = vunpack.c.0.s8 %v6577
  %v6579 = vlaneseq
  %v6580 = vshrl.u32 %v6579, 7
  %v6581 = vsub.s32 %v6578, %v6580
  %v6582 = vrot.slane %v6568, %v6581
  %v6583 = vlaneseq
  %v6584 = vshrl.u32 %v6583, 7
  %v6585 = vsub.s32 0, %v6584
  %v6586 = vrot.slane %v6575, %v6585
  %v6587 = vlaneseq
  %v6588 = vshrl.u32 %v6587, 7
  %v6589 = vsub.s32 0, %v6588
  %v6590 = vrot.slane %v6582, %v6589
  %v6593 = vadd.f32 %v6432, %v6586
  %v6594 = vadd.f32 %v6433, %v6586
  %v6595 = vadd.f32 %v6434, %v6586
  %v6596 = vadd.f32 %v6435, %v6586
  %v6597 = vadd.f32 %v6436, %v6586
  %v6598 = vadd.f32 %v6437, %v6586
  %v6599 = vadd.f32 %v6438, %v6586
  %v6600 = vadd.f32 %v6439, %v6586
  %v6601 = vadd.f32 %v6440, %v6586
  %v6602 = vadd.f32 %v6441, %v6586
  %v6603 = vadd.f32 %v6442, %v6586
  %v6604 = vadd.f32 %v6443, %v6586
  %v6605 = vadd.f32 %v6444, %v6586
  %v6606 = vadd.f32 %v6445, %v6586
  %v6607 = vadd.f32 %v6446, %v6586
  %v6608 = vadd.f32 %v6447, %v6586
  %v6609 = vadd.f32 %v6448, %v6586
  %v6610 = vadd.f32 %v6449, %v6586
  %v6611 = vadd.f32 %v6450, %v6586
  %v6612 = vadd.f32 %v6451, %v6586
  %v6613 = vadd.f32 %v6452, %v6586
  %v6614 = vadd.f32 %v6453, %v6586
  %v6615 = vadd.f32 %v6454, %v6586
  %v6616 = vadd.f32 %v6455, %v6586
  %v6617 = vadd.f32 %v6456, %v6586
  %v6618 = vadd.f32 %v6457, %v6586
  %v6619 = vadd.f32 %v6458, %v6586
  %v6620 = vadd.f32 %v6459, %v6586
  %v6621 = vadd.f32 %v6460, %v6586
  %v6622 = vadd.f32 %v6461, %v6586
  %v6623 = vadd.f32 %v6462, %v6586
  %v6624 = vadd.f32 %v6463, %v6586
  %v6625 = vadd.f32 %v6464, %v6586
  %v6626 = vadd.f32 %v6465, %v6586
  %v6627 = vadd.f32 %v6466, %v6586
  %v6628 = vadd.f32 %v6467, %v6586
  %v6629 = vadd.f32 %v6468, %v6586
  %v6630 = vadd.f32 %v6469, %v6586
  %v6631 = vadd.f32 %v6470, %v6586
  %v6632 = vadd.f32 %v6471, %v6586
  %v6633 = vadd.f32 %v6472, %v6586
  %v6634 = vadd.f32 %v6473, %v6586
  %v6635 = vadd.f32 %v6474, %v6586
  %v6636 = vadd.f32 %v6475, %v6586
  %v6637 = vadd.f32 %v6476, %v6586
  %v6638 = vadd.f32 %v6477, %v6586
  %v6639 = vadd.f32 %v6478, %v6586
  %v6640 = vadd.f32 %v6479, %v6586
  %v6641 = vadd.f32 %v6480, %v6586
  %v6642 = vadd.f32 %v6481, %v6586
  %v6643 = vadd.f32 %v6482, %v6586
  %v6644 = vadd.f32 %v6483, %v6586
  %v6645 = vadd.f32 %v6484, %v6586
  %v6646 = vadd.f32 %v6485, %v6586
  %v6647 = vadd.f32 %v6486, %v6586
  %v6648 = vadd.f32 %v6487, %v6586
  %v6649 = vadd.f32 %v6488, %v6586
  %v6650 = vadd.f32 %v6489, %v6586
  %v6651 = vadd.f32 %v6490, %v6586
  %v6652 = vadd.f32 %v6491, %v6586
  %v6653 = vadd.f32 %v6492, %v6586
  %v6654 = vadd.f32 %v6493, %v6586
  %v6655 = vadd.f32 %v6494, %v6586
  %v6656 = vadd.f32 %v6495, %v6586
  %v6657 = vadd.f32 %v6496, %v6590
  %v6658 = vadd.f32 %v6497, %v6590
  %v6659 = vadd.f32 %v6498, %v6590
  %v6660 = vadd.f32 %v6499, %v6590
  %v6661 = vadd.f32 %v6500, %v6590
  %v6662 = vadd.f32 %v6501, %v6590
  %v6663 = vadd.f32 %v6502, %v6590
  %v6664 = vadd.f32 %v6503, %v6590
  %v6665 = vadd.f32 %v6504, %v6590
  %v6666 = vadd.f32 %v6505, %v6590
  %v6667 = vadd.f32 %v6506, %v6590
  %v6668 = vadd.f32 %v6507, %v6590
  %v6669 = vadd.f32 %v6508, %v6590
  %v6670 = vadd.f32 %v6509, %v6590
  %v6671 = vadd.f32 %v6510, %v6590
  %v6672 = vadd.f32 %v6511, %v6590
  %v6673 = vadd.f32 %v6512, %v6590
  %v6674 = vadd.f32 %v6513, %v6590
  %v6675 = vadd.f32 %v6514, %v6590
  %v6676 = vadd.f32 %v6515, %v6590
  %v6677 = vadd.f32 %v6516, %v6590
  %v6678 = vadd.f32 %v6517, %v6590
  %v6679 = vadd.f32 %v6518, %v6590
  %v6680 = vadd.f32 %v6519, %v6590
  %v6681 = vadd.f32 %v6520, %v6590
  %v6682 = vadd.f32 %v6521, %v6590
  %v6683 = vadd.f32 %v6522, %v6590
  %v6684 = vadd.f32 %v6523, %v6590
  %v6685 = vadd.f32 %v6524, %v6590
  %v6686 = vadd.f32 %v6525, %v6590
  %v6687 = vadd.f32 %v6526, %v6590
  %v6688 = vadd.f32 %v6527, %v6590
  %v6689 = vadd.f32 %v6528, %v6590
  %v6690 = vadd.f32 %v6529, %v6590
  %v6691 = vadd.f32 %v6530, %v6590
  %v6692 = vadd.f32 %v6531, %v6590
  %v6693 = vadd.f32 %v6532, %v6590
  %v6694 = vadd.f32 %v6533, %v6590
  %v6695 = vadd.f32 %v6534, %v6590
  %v6696 = vadd.f32 %v6535, %v6590
  %v6697 = vadd.f32 %v6536, %v6590
  %v6698 = vadd.f32 %v6537, %v6590
  %v6699 = vadd.f32 %v6538, %v6590
  %v6700 = vadd.f32 %v6539, %v6590
  %v6701 = vadd.f32 %v6540, %v6590
  %v6702 = vadd.f32 %v6541, %v6590
  %v6703 = vadd.f32 %v6542, %v6590
  %v6704 = vadd.f32 %v6543, %v6590
  %v6705 = vadd.f32 %v6544, %v6590
  %v6706 = vadd.f32 %v6545, %v6590
  %v6707 = vadd.f32 %v6546, %v6590
  %v6708 = vadd.f32 %v6547, %v6590
  %v6709 = vadd.f32 %v6548, %v6590
  %v6710 = vadd.f32 %v6549, %v6590
  %v6711 = vadd.f32 %v6550, %v6590
  %v6712 = vadd.f32 %v6551, %v6590
  %v6713 = vadd.f32 %v6552, %v6590
  %v6714 = vadd.f32 %v6553, %v6590
  %v6715 = vadd.f32 %v6554, %v6590
  %v6716 = vadd.f32 %v6555, %v6590
  %v6717 = vadd.f32 %v6556, %v6590
  %v6718 = vadd.f32 %v6557, %v6590
  %v6719 = vadd.f32 %v6558, %v6590
  %v6720 = vadd.f32 %v6559, %v6590
  %v6721 = vmax.f32 %v6593, 0.0
  %v6722 = vmax.f32 %v6594, 0.0
  %v6723 = vmax.f32 %v6595, 0.0
  %v6724 = vmax.f32 %v6596, 0.0
  %v6725 = vmax.f32 %v6597, 0.0
  %v6726 = vmax.f32 %v6598, 0.0
  %v6727 = vmax.f32 %v6599, 0.0
  %v6728 = vmax.f32 %v6600, 0.0
  %v6729 = vmax.f32 %v6601, 0.0
  %v6730 = vmax.f32 %v6602, 0.0
  %v6731 = vmax.f32 %v6603, 0.0
  %v6732 = vmax.f32 %v6604, 0.0
  %v6733 = vmax.f32 %v6605, 0.0
  %v6734 = vmax.f32 %v6606, 0.0
  %v6735 = vmax.f32 %v6607, 0.0
  %v6736 = vmax.f32 %v6608, 0.0
  %v6737 = vmax.f32 %v6609, 0.0
  %v6738 = vmax.f32 %v6610, 0.0
  %v6739 = vmax.f32 %v6611, 0.0
  %v6740 = vmax.f32 %v6612, 0.0
  %v6741 = vmax.f32 %v6613, 0.0
  %v6742 = vmax.f32 %v6614, 0.0
  %v6743 = vmax.f32 %v6615, 0.0
  %v6744 = vmax.f32 %v6616, 0.0
  %v6745 = vmax.f32 %v6617, 0.0
  %v6746 = vmax.f32 %v6618, 0.0
  %v6747 = vmax.f32 %v6619, 0.0
  %v6748 = vmax.f32 %v6620, 0.0
  %v6749 = vmax.f32 %v6621, 0.0
  %v6750 = vmax.f32 %v6622, 0.0
  %v6751 = vmax.f32 %v6623, 0.0
  %v6752 = vmax.f32 %v6624, 0.0
  %v6753 = vmax.f32 %v6625, 0.0
  %v6754 = vmax.f32 %v6626, 0.0
  %v6755 = vmax.f32 %v6627, 0.0
  %v6756 = vmax.f32 %v6628, 0.0
  %v6757 = vmax.f32 %v6629, 0.0
  %v6758 = vmax.f32 %v6630, 0.0
  %v6759 = vmax.f32 %v6631, 0.0
  %v6760 = vmax.f32 %v6632, 0.0
  %v6761 = vmax.f32 %v6633, 0.0
  %v6762 = vmax.f32 %v6634, 0.0
  %v6763 = vmax.f32 %v6635, 0.0
  %v6764 = vmax.f32 %v6636, 0.0
  %v6765 = vmax.f32 %v6637, 0.0
  %v6766 = vmax.f32 %v6638, 0.0
  %v6767 = vmax.f32 %v6639, 0.0
  %v6768 = vmax.f32 %v6640, 0.0
  %v6769 = vmax.f32 %v6641, 0.0
  %v6770 = vmax.f32 %v6642, 0.0
  %v6771 = vmax.f32 %v6643, 0.0
  %v6772 = vmax.f32 %v6644, 0.0
  %v6773 = vmax.f32 %v6645, 0.0
  %v6774 = vmax.f32 %v6646, 0.0
  %v6775 = vmax.f32 %v6647, 0.0
  %v6776 = vmax.f32 %v6648, 0.0
  %v6777 = vmax.f32 %v6649, 0.0
  %v6778 = vmax.f32 %v6650, 0.0
  %v6779 = vmax.f32 %v6651, 0.0
  %v6780 = vmax.f32 %v6652, 0.0
  %v6781 = vmax.f32 %v6653, 0.0
  %v6782 = vmax.f32 %v6654, 0.0
  %v6783 = vmax.f32 %v6655, 0.0
  %v6784 = vmax.f32 %v6656, 0.0
  %v6785 = vmax.f32 %v6657, 0.0
  %v6786 = vmax.f32 %v6658, 0.0
  %v6787 = vmax.f32 %v6659, 0.0
  %v6788 = vmax.f32 %v6660, 0.0
  %v6789 = vmax.f32 %v6661, 0.0
  %v6790 = vmax.f32 %v6662, 0.0
  %v6791 = vmax.f32 %v6663, 0.0
  %v6792 = vmax.f32 %v6664, 0.0
  %v6793 = vmax.f32 %v6665, 0.0
  %v6794 = vmax.f32 %v6666, 0.0
  %v6795 = vmax.f32 %v6667, 0.0
  %v6796 = vmax.f32 %v6668, 0.0
  %v6797 = vmax.f32 %v6669, 0.0
  %v6798 = vmax.f32 %v6670, 0.0
  %v6799 = vmax.f32 %v6671, 0.0
  %v6800 = vmax.f32 %v6672, 0.0
  %v6801 = vmax.f32 %v6673, 0.0
  %v6802 = vmax.f32 %v6674, 0.0
  %v6803 = vmax.f32 %v6675, 0.0
  %v6804 = vmax.f32 %v6676, 0.0
  %v6805 = vmax.f32 %v6677, 0.0
  %v6806 = vmax.f32 %v6678, 0.0
  %v6807 = vmax.f32 %v6679, 0.0
  %v6808 = vmax.f32 %v6680, 0.0
  %v6809 = vmax.f32 %v6681, 0.0
  %v6810 = vmax.f32 %v6682, 0.0
  %v6811 = vmax.f32 %v6683, 0.0
  %v6812 = vmax.f32 %v6684, 0.0
  %v6813 = vmax.f32 %v6685, 0.0
  %v6814 = vmax.f32 %v6686, 0.0
  %v6815 = vmax.f32 %v6687, 0.0
  %v6816 = vmax.f32 %v6688, 0.0
  %v6817 = vmax.f32 %v6689, 0.0
  %v6818 = vmax.f32 %v6690, 0.0
  %v6819 = vmax.f32 %v6691, 0.0
  %v6820 = vmax.f32 %v6692, 0.0
  %v6821 = vmax.f32 %v6693, 0.0
  %v6822 = vmax.f32 %v6694, 0.0
  %v6823 = vmax.f32 %v6695, 0.0
  %v6824 = vmax.f32 %v6696, 0.0
  %v6825 = vmax.f32 %v6697, 0.0
  %v6826 = vmax.f32 %v6698, 0.0
  %v6827 = vmax.f32 %v6699, 0.0
  %v6828 = vmax.f32 %v6700, 0.0
  %v6829 = vmax.f32 %v6701, 0.0
  %v6830 = vmax.f32 %v6702, 0.0
  %v6831 = vmax.f32 %v6703, 0.0
  %v6832 = vmax.f32 %v6704, 0.0
  %v6833 = vmax.f32 %v6705, 0.0
  %v6834 = vmax.f32 %v6706, 0.0
  %v6835 = vmax.f32 %v6707, 0.0
  %v6836 = vmax.f32 %v6708, 0.0
  %v6837 = vmax.f32 %v6709, 0.0
  %v6838 = vmax.f32 %v6710, 0.0
  %v6839 = vmax.f32 %v6711, 0.0
  %v6840 = vmax.f32 %v6712, 0.0
  %v6841 = vmax.f32 %v6713, 0.0
  %v6842 = vmax.f32 %v6714, 0.0
  %v6843 = vmax.f32 %v6715, 0.0
  %v6844 = vmax.f32 %v6716, 0.0
  %v6845 = vmax.f32 %v6717, 0.0
  %v6846 = vmax.f32 %v6718, 0.0
  %v6847 = vmax.f32 %v6719, 0.0
  %v6848 = vmax.f32 %v6720, 0.0
  %v6849 = vsel %vm1235, %v6721, -inf
  %v6850 = vrot.slane %v6849, 4
  %v6851 = vmax.f32 %v6849, %v6850
  %v6852 = vrot.slane %v6851, 2
  %v6853 = vmax.f32 %v6851, %v6852
  %v6854 = vrot.slane %v6853, 1
  %v6855 = vmax.f32 %v6853, %v6854
  %v6856 = vsel %vm1235, %v6722, -inf
  %v6857 = vrot.slane %v6856, 4
  %v6858 = vmax.f32 %v6856, %v6857
  %v6859 = vrot.slane %v6858, 2
  %v6860 = vmax.f32 %v6858, %v6859
  %v6861 = vrot.slane %v6860, 1
  %v6862 = vmax.f32 %v6860, %v6861
  %v6863 = vsel %vm1235, %v6723, -inf
  %v6864 = vrot.slane %v6863, 4
  %v6865 = vmax.f32 %v6863, %v6864
  %v6866 = vrot.slane %v6865, 2
  %v6867 = vmax.f32 %v6865, %v6866
  %v6868 = vrot.slane %v6867, 1
  %v6869 = vmax.f32 %v6867, %v6868
  %v6870 = vsel %vm1235, %v6724, -inf
  %v6871 = vrot.slane %v6870, 4
  %v6872 = vmax.f32 %v6870, %v6871
  %v6873 = vrot.slane %v6872, 2
  %v6874 = vmax.f32 %v6872, %v6873
  %v6875 = vrot.slane %v6874, 1
  %v6876 = vmax.f32 %v6874, %v6875
  %v6877 = vsel %vm1235, %v6725, -inf
  %v6878 = vrot.slane %v6877, 4
  %v6879 = vmax.f32 %v6877, %v6878
  %v6880 = vrot.slane %v6879, 2
  %v6881 = vmax.f32 %v6879, %v6880
  %v6882 = vrot.slane %v6881, 1
  %v6883 = vmax.f32 %v6881, %v6882
  %v6884 = vsel %vm1235, %v6726, -inf
  %v6885 = vrot.slane %v6884, 4
  %v6886 = vmax.f32 %v6884, %v6885
  %v6887 = vrot.slane %v6886, 2
  %v6888 = vmax.f32 %v6886, %v6887
  %v6889 = vrot.slane %v6888, 1
  %v6890 = vmax.f32 %v6888, %v6889
  %v6891 = vsel %vm1235, %v6727, -inf
  %v6892 = vrot.slane %v6891, 4
  %v6893 = vmax.f32 %v6891, %v6892
  %v6894 = vrot.slane %v6893, 2
  %v6895 = vmax.f32 %v6893, %v6894
  %v6896 = vrot.slane %v6895, 1
  %v6897 = vmax.f32 %v6895, %v6896
  %v6898 = vsel %vm1235, %v6728, -inf
  %v6899 = vrot.slane %v6898, 4
  %v6900 = vmax.f32 %v6898, %v6899
  %v6901 = vrot.slane %v6900, 2
  %v6902 = vmax.f32 %v6900, %v6901
  %v6903 = vrot.slane %v6902, 1
  %v6904 = vmax.f32 %v6902, %v6903
  %v6905 = vsel %vm1235, %v6729, -inf
  %v6906 = vrot.slane %v6905, 4
  %v6907 = vmax.f32 %v6905, %v6906
  %v6908 = vrot.slane %v6907, 2
  %v6909 = vmax.f32 %v6907, %v6908
  %v6910 = vrot.slane %v6909, 1
  %v6911 = vmax.f32 %v6909, %v6910
  %v6912 = vsel %vm1235, %v6730, -inf
  %v6913 = vrot.slane %v6912, 4
  %v6914 = vmax.f32 %v6912, %v6913
  %v6915 = vrot.slane %v6914, 2
  %v6916 = vmax.f32 %v6914, %v6915
  %v6917 = vrot.slane %v6916, 1
  %v6918 = vmax.f32 %v6916, %v6917
  %v6919 = vsel %vm1235, %v6731, -inf
  %v6920 = vrot.slane %v6919, 4
  %v6921 = vmax.f32 %v6919, %v6920
  %v6922 = vrot.slane %v6921, 2
  %v6923 = vmax.f32 %v6921, %v6922
  %v6924 = vrot.slane %v6923, 1
  %v6925 = vmax.f32 %v6923, %v6924
  %v6926 = vsel %vm1235, %v6732, -inf
  %v6927 = vrot.slane %v6926, 4
  %v6928 = vmax.f32 %v6926, %v6927
  %v6929 = vrot.slane %v6928, 2
  %v6930 = vmax.f32 %v6928, %v6929
  %v6931 = vrot.slane %v6930, 1
  %v6932 = vmax.f32 %v6930, %v6931
  %v6933 = vsel %vm1235, %v6733, -inf
  %v6934 = vrot.slane %v6933, 4
  %v6935 = vmax.f32 %v6933, %v6934
  %v6936 = vrot.slane %v6935, 2
  %v6937 = vmax.f32 %v6935, %v6936
  %v6938 = vrot.slane %v6937, 1
  %v6939 = vmax.f32 %v6937, %v6938
  %v6940 = vsel %vm1235, %v6734, -inf
  %v6941 = vrot.slane %v6940, 4
  %v6942 = vmax.f32 %v6940, %v6941
  %v6943 = vrot.slane %v6942, 2
  %v6944 = vmax.f32 %v6942, %v6943
  %v6945 = vrot.slane %v6944, 1
  %v6946 = vmax.f32 %v6944, %v6945
  %v6947 = vsel %vm1235, %v6735, -inf
  %v6948 = vrot.slane %v6947, 4
  %v6949 = vmax.f32 %v6947, %v6948
  %v6950 = vrot.slane %v6949, 2
  %v6951 = vmax.f32 %v6949, %v6950
  %v6952 = vrot.slane %v6951, 1
  %v6953 = vmax.f32 %v6951, %v6952
  %v6954 = vsel %vm1235, %v6736, -inf
  %v6955 = vrot.slane %v6954, 4
  %v6956 = vmax.f32 %v6954, %v6955
  %v6957 = vrot.slane %v6956, 2
  %v6958 = vmax.f32 %v6956, %v6957
  %v6959 = vrot.slane %v6958, 1
  %v6960 = vmax.f32 %v6958, %v6959
  %v6961 = vsel %vm1235, %v6737, -inf
  %v6962 = vrot.slane %v6961, 4
  %v6963 = vmax.f32 %v6961, %v6962
  %v6964 = vrot.slane %v6963, 2
  %v6965 = vmax.f32 %v6963, %v6964
  %v6966 = vrot.slane %v6965, 1
  %v6967 = vmax.f32 %v6965, %v6966
  %v6968 = vsel %vm1235, %v6738, -inf
  %v6969 = vrot.slane %v6968, 4
  %v6970 = vmax.f32 %v6968, %v6969
  %v6971 = vrot.slane %v6970, 2
  %v6972 = vmax.f32 %v6970, %v6971
  %v6973 = vrot.slane %v6972, 1
  %v6974 = vmax.f32 %v6972, %v6973
  %v6975 = vsel %vm1235, %v6739, -inf
  %v6976 = vrot.slane %v6975, 4
  %v6977 = vmax.f32 %v6975, %v6976
  %v6978 = vrot.slane %v6977, 2
  %v6979 = vmax.f32 %v6977, %v6978
  %v6980 = vrot.slane %v6979, 1
  %v6981 = vmax.f32 %v6979, %v6980
  %v6982 = vsel %vm1235, %v6740, -inf
  %v6983 = vrot.slane %v6982, 4
  %v6984 = vmax.f32 %v6982, %v6983
  %v6985 = vrot.slane %v6984, 2
  %v6986 = vmax.f32 %v6984, %v6985
  %v6987 = vrot.slane %v6986, 1
  %v6988 = vmax.f32 %v6986, %v6987
  %v6989 = vsel %vm1235, %v6741, -inf
  %v6990 = vrot.slane %v6989, 4
  %v6991 = vmax.f32 %v6989, %v6990
  %v6992 = vrot.slane %v6991, 2
  %v6993 = vmax.f32 %v6991, %v6992
  %v6994 = vrot.slane %v6993, 1
  %v6995 = vmax.f32 %v6993, %v6994
  %v6996 = vsel %vm1235, %v6742, -inf
  %v6997 = vrot.slane %v6996, 4
  %v6998 = vmax.f32 %v6996, %v6997
  %v6999 = vrot.slane %v6998, 2
  %v7000 = vmax.f32 %v6998, %v6999
  %v7001 = vrot.slane %v7000, 1
  %v7002 = vmax.f32 %v7000, %v7001
  %v7003 = vsel %vm1235, %v6743, -inf
  %v7004 = vrot.slane %v7003, 4
  %v7005 = vmax.f32 %v7003, %v7004
  %v7006 = vrot.slane %v7005, 2
  %v7007 = vmax.f32 %v7005, %v7006
  %v7008 = vrot.slane %v7007, 1
  %v7009 = vmax.f32 %v7007, %v7008
  %v7010 = vsel %vm1235, %v6744, -inf
  %v7011 = vrot.slane %v7010, 4
  %v7012 = vmax.f32 %v7010, %v7011
  %v7013 = vrot.slane %v7012, 2
  %v7014 = vmax.f32 %v7012, %v7013
  %v7015 = vrot.slane %v7014, 1
  %v7016 = vmax.f32 %v7014, %v7015
  %v7017 = vsel %vm1235, %v6745, -inf
  %v7018 = vrot.slane %v7017, 4
  %v7019 = vmax.f32 %v7017, %v7018
  %v7020 = vrot.slane %v7019, 2
  %v7021 = vmax.f32 %v7019, %v7020
  %v7022 = vrot.slane %v7021, 1
  %v7023 = vmax.f32 %v7021, %v7022
  %v7024 = vsel %vm1235, %v6746, -inf
  %v7025 = vrot.slane %v7024, 4
  %v7026 = vmax.f32 %v7024, %v7025
  %v7027 = vrot.slane %v7026, 2
  %v7028 = vmax.f32 %v7026, %v7027
  %v7029 = vrot.slane %v7028, 1
  %v7030 = vmax.f32 %v7028, %v7029
  %v7031 = vsel %vm1235, %v6747, -inf
  %v7032 = vrot.slane %v7031, 4
  %v7033 = vmax.f32 %v7031, %v7032
  %v7034 = vrot.slane %v7033, 2
  %v7035 = vmax.f32 %v7033, %v7034
  %v7036 = vrot.slane %v7035, 1
  %v7037 = vmax.f32 %v7035, %v7036
  %v7038 = vsel %vm1235, %v6748, -inf
  %v7039 = vrot.slane %v7038, 4
  %v7040 = vmax.f32 %v7038, %v7039
  %v7041 = vrot.slane %v7040, 2
  %v7042 = vmax.f32 %v7040, %v7041
  %v7043 = vrot.slane %v7042, 1
  %v7044 = vmax.f32 %v7042, %v7043
  %v7045 = vsel %vm1235, %v6749, -inf
  %v7046 = vrot.slane %v7045, 4
  %v7047 = vmax.f32 %v7045, %v7046
  %v7048 = vrot.slane %v7047, 2
  %v7049 = vmax.f32 %v7047, %v7048
  %v7050 = vrot.slane %v7049, 1
  %v7051 = vmax.f32 %v7049, %v7050
  %v7052 = vsel %vm1235, %v6750, -inf
  %v7053 = vrot.slane %v7052, 4
  %v7054 = vmax.f32 %v7052, %v7053
  %v7055 = vrot.slane %v7054, 2
  %v7056 = vmax.f32 %v7054, %v7055
  %v7057 = vrot.slane %v7056, 1
  %v7058 = vmax.f32 %v7056, %v7057
  %v7059 = vsel %vm1235, %v6751, -inf
  %v7060 = vrot.slane %v7059, 4
  %v7061 = vmax.f32 %v7059, %v7060
  %v7062 = vrot.slane %v7061, 2
  %v7063 = vmax.f32 %v7061, %v7062
  %v7064 = vrot.slane %v7063, 1
  %v7065 = vmax.f32 %v7063, %v7064
  %v7066 = vsel %vm1235, %v6752, -inf
  %v7067 = vrot.slane %v7066, 4
  %v7068 = vmax.f32 %v7066, %v7067
  %v7069 = vrot.slane %v7068, 2
  %v7070 = vmax.f32 %v7068, %v7069
  %v7071 = vrot.slane %v7070, 1
  %v7072 = vmax.f32 %v7070, %v7071
  %v7073 = vsel %vm1235, %v6753, -inf
  %v7074 = vrot.slane %v7073, 4
  %v7075 = vmax.f32 %v7073, %v7074
  %v7076 = vrot.slane %v7075, 2
  %v7077 = vmax.f32 %v7075, %v7076
  %v7078 = vrot.slane %v7077, 1
  %v7079 = vmax.f32 %v7077, %v7078
  %v7080 = vsel %vm1235, %v6754, -inf
  %v7081 = vrot.slane %v7080, 4
  %v7082 = vmax.f32 %v7080, %v7081
  %v7083 = vrot.slane %v7082, 2
  %v7084 = vmax.f32 %v7082, %v7083
  %v7085 = vrot.slane %v7084, 1
  %v7086 = vmax.f32 %v7084, %v7085
  %v7087 = vsel %vm1235, %v6755, -inf
  %v7088 = vrot.slane %v7087, 4
  %v7089 = vmax.f32 %v7087, %v7088
  %v7090 = vrot.slane %v7089, 2
  %v7091 = vmax.f32 %v7089, %v7090
  %v7092 = vrot.slane %v7091, 1
  %v7093 = vmax.f32 %v7091, %v7092
  %v7094 = vsel %vm1235, %v6756, -inf
  %v7095 = vrot.slane %v7094, 4
  %v7096 = vmax.f32 %v7094, %v7095
  %v7097 = vrot.slane %v7096, 2
  %v7098 = vmax.f32 %v7096, %v7097
  %v7099 = vrot.slane %v7098, 1
  %v7100 = vmax.f32 %v7098, %v7099
  %v7101 = vsel %vm1235, %v6757, -inf
  %v7102 = vrot.slane %v7101, 4
  %v7103 = vmax.f32 %v7101, %v7102
  %v7104 = vrot.slane %v7103, 2
  %v7105 = vmax.f32 %v7103, %v7104
  %v7106 = vrot.slane %v7105, 1
  %v7107 = vmax.f32 %v7105, %v7106
  %v7108 = vsel %vm1235, %v6758, -inf
  %v7109 = vrot.slane %v7108, 4
  %v7110 = vmax.f32 %v7108, %v7109
  %v7111 = vrot.slane %v7110, 2
  %v7112 = vmax.f32 %v7110, %v7111
  %v7113 = vrot.slane %v7112, 1
  %v7114 = vmax.f32 %v7112, %v7113
  %v7115 = vsel %vm1235, %v6759, -inf
  %v7116 = vrot.slane %v7115, 4
  %v7117 = vmax.f32 %v7115, %v7116
  %v7118 = vrot.slane %v7117, 2
  %v7119 = vmax.f32 %v7117, %v7118
  %v7120 = vrot.slane %v7119, 1
  %v7121 = vmax.f32 %v7119, %v7120
  %v7122 = vsel %vm1235, %v6760, -inf
  %v7123 = vrot.slane %v7122, 4
  %v7124 = vmax.f32 %v7122, %v7123
  %v7125 = vrot.slane %v7124, 2
  %v7126 = vmax.f32 %v7124, %v7125
  %v7127 = vrot.slane %v7126, 1
  %v7128 = vmax.f32 %v7126, %v7127
  %v7129 = vsel %vm1235, %v6761, -inf
  %v7130 = vrot.slane %v7129, 4
  %v7131 = vmax.f32 %v7129, %v7130
  %v7132 = vrot.slane %v7131, 2
  %v7133 = vmax.f32 %v7131, %v7132
  %v7134 = vrot.slane %v7133, 1
  %v7135 = vmax.f32 %v7133, %v7134
  %v7136 = vsel %vm1235, %v6762, -inf
  %v7137 = vrot.slane %v7136, 4
  %v7138 = vmax.f32 %v7136, %v7137
  %v7139 = vrot.slane %v7138, 2
  %v7140 = vmax.f32 %v7138, %v7139
  %v7141 = vrot.slane %v7140, 1
  %v7142 = vmax.f32 %v7140, %v7141
  %v7143 = vsel %vm1235, %v6763, -inf
  %v7144 = vrot.slane %v7143, 4
  %v7145 = vmax.f32 %v7143, %v7144
  %v7146 = vrot.slane %v7145, 2
  %v7147 = vmax.f32 %v7145, %v7146
  %v7148 = vrot.slane %v7147, 1
  %v7149 = vmax.f32 %v7147, %v7148
  %v7150 = vsel %vm1235, %v6764, -inf
  %v7151 = vrot.slane %v7150, 4
  %v7152 = vmax.f32 %v7150, %v7151
  %v7153 = vrot.slane %v7152, 2
  %v7154 = vmax.f32 %v7152, %v7153
  %v7155 = vrot.slane %v7154, 1
  %v7156 = vmax.f32 %v7154, %v7155
  %v7157 = vsel %vm1235, %v6765, -inf
  %v7158 = vrot.slane %v7157, 4
  %v7159 = vmax.f32 %v7157, %v7158
  %v7160 = vrot.slane %v7159, 2
  %v7161 = vmax.f32 %v7159, %v7160
  %v7162 = vrot.slane %v7161, 1
  %v7163 = vmax.f32 %v7161, %v7162
  %v7164 = vsel %vm1235, %v6766, -inf
  %v7165 = vrot.slane %v7164, 4
  %v7166 = vmax.f32 %v7164, %v7165
  %v7167 = vrot.slane %v7166, 2
  %v7168 = vmax.f32 %v7166, %v7167
  %v7169 = vrot.slane %v7168, 1
  %v7170 = vmax.f32 %v7168, %v7169
  %v7171 = vsel %vm1235, %v6767, -inf
  %v7172 = vrot.slane %v7171, 4
  %v7173 = vmax.f32 %v7171, %v7172
  %v7174 = vrot.slane %v7173, 2
  %v7175 = vmax.f32 %v7173, %v7174
  %v7176 = vrot.slane %v7175, 1
  %v7177 = vmax.f32 %v7175, %v7176
  %v7178 = vsel %vm1235, %v6768, -inf
  %v7179 = vrot.slane %v7178, 4
  %v7180 = vmax.f32 %v7178, %v7179
  %v7181 = vrot.slane %v7180, 2
  %v7182 = vmax.f32 %v7180, %v7181
  %v7183 = vrot.slane %v7182, 1
  %v7184 = vmax.f32 %v7182, %v7183
  %v7185 = vsel %vm1235, %v6769, -inf
  %v7186 = vrot.slane %v7185, 4
  %v7187 = vmax.f32 %v7185, %v7186
  %v7188 = vrot.slane %v7187, 2
  %v7189 = vmax.f32 %v7187, %v7188
  %v7190 = vrot.slane %v7189, 1
  %v7191 = vmax.f32 %v7189, %v7190
  %v7192 = vsel %vm1235, %v6770, -inf
  %v7193 = vrot.slane %v7192, 4
  %v7194 = vmax.f32 %v7192, %v7193
  %v7195 = vrot.slane %v7194, 2
  %v7196 = vmax.f32 %v7194, %v7195
  %v7197 = vrot.slane %v7196, 1
  %v7198 = vmax.f32 %v7196, %v7197
  %v7199 = vsel %vm1235, %v6771, -inf
  %v7200 = vrot.slane %v7199, 4
  %v7201 = vmax.f32 %v7199, %v7200
  %v7202 = vrot.slane %v7201, 2
  %v7203 = vmax.f32 %v7201, %v7202
  %v7204 = vrot.slane %v7203, 1
  %v7205 = vmax.f32 %v7203, %v7204
  %v7206 = vsel %vm1235, %v6772, -inf
  %v7207 = vrot.slane %v7206, 4
  %v7208 = vmax.f32 %v7206, %v7207
  %v7209 = vrot.slane %v7208, 2
  %v7210 = vmax.f32 %v7208, %v7209
  %v7211 = vrot.slane %v7210, 1
  %v7212 = vmax.f32 %v7210, %v7211
  %v7213 = vsel %vm1235, %v6773, -inf
  %v7214 = vrot.slane %v7213, 4
  %v7215 = vmax.f32 %v7213, %v7214
  %v7216 = vrot.slane %v7215, 2
  %v7217 = vmax.f32 %v7215, %v7216
  %v7218 = vrot.slane %v7217, 1
  %v7219 = vmax.f32 %v7217, %v7218
  %v7220 = vsel %vm1235, %v6774, -inf
  %v7221 = vrot.slane %v7220, 4
  %v7222 = vmax.f32 %v7220, %v7221
  %v7223 = vrot.slane %v7222, 2
  %v7224 = vmax.f32 %v7222, %v7223
  %v7225 = vrot.slane %v7224, 1
  %v7226 = vmax.f32 %v7224, %v7225
  %v7227 = vsel %vm1235, %v6775, -inf
  %v7228 = vrot.slane %v7227, 4
  %v7229 = vmax.f32 %v7227, %v7228
  %v7230 = vrot.slane %v7229, 2
  %v7231 = vmax.f32 %v7229, %v7230
  %v7232 = vrot.slane %v7231, 1
  %v7233 = vmax.f32 %v7231, %v7232
  %v7234 = vsel %vm1235, %v6776, -inf
  %v7235 = vrot.slane %v7234, 4
  %v7236 = vmax.f32 %v7234, %v7235
  %v7237 = vrot.slane %v7236, 2
  %v7238 = vmax.f32 %v7236, %v7237
  %v7239 = vrot.slane %v7238, 1
  %v7240 = vmax.f32 %v7238, %v7239
  %v7241 = vsel %vm1235, %v6777, -inf
  %v7242 = vrot.slane %v7241, 4
  %v7243 = vmax.f32 %v7241, %v7242
  %v7244 = vrot.slane %v7243, 2
  %v7245 = vmax.f32 %v7243, %v7244
  %v7246 = vrot.slane %v7245, 1
  %v7247 = vmax.f32 %v7245, %v7246
  %v7248 = vsel %vm1235, %v6778, -inf
  %v7249 = vrot.slane %v7248, 4
  %v7250 = vmax.f32 %v7248, %v7249
  %v7251 = vrot.slane %v7250, 2
  %v7252 = vmax.f32 %v7250, %v7251
  %v7253 = vrot.slane %v7252, 1
  %v7254 = vmax.f32 %v7252, %v7253
  %v7255 = vsel %vm1235, %v6779, -inf
  %v7256 = vrot.slane %v7255, 4
  %v7257 = vmax.f32 %v7255, %v7256
  %v7258 = vrot.slane %v7257, 2
  %v7259 = vmax.f32 %v7257, %v7258
  %v7260 = vrot.slane %v7259, 1
  %v7261 = vmax.f32 %v7259, %v7260
  %v7262 = vsel %vm1235, %v6780, -inf
  %v7263 = vrot.slane %v7262, 4
  %v7264 = vmax.f32 %v7262, %v7263
  %v7265 = vrot.slane %v7264, 2
  %v7266 = vmax.f32 %v7264, %v7265
  %v7267 = vrot.slane %v7266, 1
  %v7268 = vmax.f32 %v7266, %v7267
  %v7269 = vsel %vm1235, %v6781, -inf
  %v7270 = vrot.slane %v7269, 4
  %v7271 = vmax.f32 %v7269, %v7270
  %v7272 = vrot.slane %v7271, 2
  %v7273 = vmax.f32 %v7271, %v7272
  %v7274 = vrot.slane %v7273, 1
  %v7275 = vmax.f32 %v7273, %v7274
  %v7276 = vsel %vm1235, %v6782, -inf
  %v7277 = vrot.slane %v7276, 4
  %v7278 = vmax.f32 %v7276, %v7277
  %v7279 = vrot.slane %v7278, 2
  %v7280 = vmax.f32 %v7278, %v7279
  %v7281 = vrot.slane %v7280, 1
  %v7282 = vmax.f32 %v7280, %v7281
  %v7283 = vsel %vm1235, %v6783, -inf
  %v7284 = vrot.slane %v7283, 4
  %v7285 = vmax.f32 %v7283, %v7284
  %v7286 = vrot.slane %v7285, 2
  %v7287 = vmax.f32 %v7285, %v7286
  %v7288 = vrot.slane %v7287, 1
  %v7289 = vmax.f32 %v7287, %v7288
  %v7290 = vsel %vm1235, %v6784, -inf
  %v7291 = vrot.slane %v7290, 4
  %v7292 = vmax.f32 %v7290, %v7291
  %v7293 = vrot.slane %v7292, 2
  %v7294 = vmax.f32 %v7292, %v7293
  %v7295 = vrot.slane %v7294, 1
  %v7296 = vmax.f32 %v7294, %v7295
  %v7297 = vsel %vm1235, %v6785, -inf
  %v7298 = vrot.slane %v7297, 4
  %v7299 = vmax.f32 %v7297, %v7298
  %v7300 = vrot.slane %v7299, 2
  %v7301 = vmax.f32 %v7299, %v7300
  %v7302 = vrot.slane %v7301, 1
  %v7303 = vmax.f32 %v7301, %v7302
  %v7304 = vsel %vm1235, %v6786, -inf
  %v7305 = vrot.slane %v7304, 4
  %v7306 = vmax.f32 %v7304, %v7305
  %v7307 = vrot.slane %v7306, 2
  %v7308 = vmax.f32 %v7306, %v7307
  %v7309 = vrot.slane %v7308, 1
  %v7310 = vmax.f32 %v7308, %v7309
  %v7311 = vsel %vm1235, %v6787, -inf
  %v7312 = vrot.slane %v7311, 4
  %v7313 = vmax.f32 %v7311, %v7312
  %v7314 = vrot.slane %v7313, 2
  %v7315 = vmax.f32 %v7313, %v7314
  %v7316 = vrot.slane %v7315, 1
  %v7317 = vmax.f32 %v7315, %v7316
  %v7318 = vsel %vm1235, %v6788, -inf
  %v7319 = vrot.slane %v7318, 4
  %v7320 = vmax.f32 %v7318, %v7319
  %v7321 = vrot.slane %v7320, 2
  %v7322 = vmax.f32 %v7320, %v7321
  %v7323 = vrot.slane %v7322, 1
  %v7324 = vmax.f32 %v7322, %v7323
  %v7325 = vsel %vm1235, %v6789, -inf
  %v7326 = vrot.slane %v7325, 4
  %v7327 = vmax.f32 %v7325, %v7326
  %v7328 = vrot.slane %v7327, 2
  %v7329 = vmax.f32 %v7327, %v7328
  %v7330 = vrot.slane %v7329, 1
  %v7331 = vmax.f32 %v7329, %v7330
  %v7332 = vsel %vm1235, %v6790, -inf
  %v7333 = vrot.slane %v7332, 4
  %v7334 = vmax.f32 %v7332, %v7333
  %v7335 = vrot.slane %v7334, 2
  %v7336 = vmax.f32 %v7334, %v7335
  %v7337 = vrot.slane %v7336, 1
  %v7338 = vmax.f32 %v7336, %v7337
  %v7339 = vsel %vm1235, %v6791, -inf
  %v7340 = vrot.slane %v7339, 4
  %v7341 = vmax.f32 %v7339, %v7340
  %v7342 = vrot.slane %v7341, 2
  %v7343 = vmax.f32 %v7341, %v7342
  %v7344 = vrot.slane %v7343, 1
  %v7345 = vmax.f32 %v7343, %v7344
  %v7346 = vsel %vm1235, %v6792, -inf
  %v7347 = vrot.slane %v7346, 4
  %v7348 = vmax.f32 %v7346, %v7347
  %v7349 = vrot.slane %v7348, 2
  %v7350 = vmax.f32 %v7348, %v7349
  %v7351 = vrot.slane %v7350, 1
  %v7352 = vmax.f32 %v7350, %v7351
  %v7353 = vsel %vm1235, %v6793, -inf
  %v7354 = vrot.slane %v7353, 4
  %v7355 = vmax.f32 %v7353, %v7354
  %v7356 = vrot.slane %v7355, 2
  %v7357 = vmax.f32 %v7355, %v7356
  %v7358 = vrot.slane %v7357, 1
  %v7359 = vmax.f32 %v7357, %v7358
  %v7360 = vsel %vm1235, %v6794, -inf
  %v7361 = vrot.slane %v7360, 4
  %v7362 = vmax.f32 %v7360, %v7361
  %v7363 = vrot.slane %v7362, 2
  %v7364 = vmax.f32 %v7362, %v7363
  %v7365 = vrot.slane %v7364, 1
  %v7366 = vmax.f32 %v7364, %v7365
  %v7367 = vsel %vm1235, %v6795, -inf
  %v7368 = vrot.slane %v7367, 4
  %v7369 = vmax.f32 %v7367, %v7368
  %v7370 = vrot.slane %v7369, 2
  %v7371 = vmax.f32 %v7369, %v7370
  %v7372 = vrot.slane %v7371, 1
  %v7373 = vmax.f32 %v7371, %v7372
  %v7374 = vsel %vm1235, %v6796, -inf
  %v7375 = vrot.slane %v7374, 4
  %v7376 = vmax.f32 %v7374, %v7375
  %v7377 = vrot.slane %v7376, 2
  %v7378 = vmax.f32 %v7376, %v7377
  %v7379 = vrot.slane %v7378, 1
  %v7380 = vmax.f32 %v7378, %v7379
  %v7381 = vsel %vm1235, %v6797, -inf
  %v7382 = vrot.slane %v7381, 4
  %v7383 = vmax.f32 %v7381, %v7382
  %v7384 = vrot.slane %v7383, 2
  %v7385 = vmax.f32 %v7383, %v7384
  %v7386 = vrot.slane %v7385, 1
  %v7387 = vmax.f32 %v7385, %v7386
  %v7388 = vsel %vm1235, %v6798, -inf
  %v7389 = vrot.slane %v7388, 4
  %v7390 = vmax.f32 %v7388, %v7389
  %v7391 = vrot.slane %v7390, 2
  %v7392 = vmax.f32 %v7390, %v7391
  %v7393 = vrot.slane %v7392, 1
  %v7394 = vmax.f32 %v7392, %v7393
  %v7395 = vsel %vm1235, %v6799, -inf
  %v7396 = vrot.slane %v7395, 4
  %v7397 = vmax.f32 %v7395, %v7396
  %v7398 = vrot.slane %v7397, 2
  %v7399 = vmax.f32 %v7397, %v7398
  %v7400 = vrot.slane %v7399, 1
  %v7401 = vmax.f32 %v7399, %v7400
  %v7402 = vsel %vm1235, %v6800, -inf
  %v7403 = vrot.slane %v7402, 4
  %v7404 = vmax.f32 %v7402, %v7403
  %v7405 = vrot.slane %v7404, 2
  %v7406 = vmax.f32 %v7404, %v7405
  %v7407 = vrot.slane %v7406, 1
  %v7408 = vmax.f32 %v7406, %v7407
  %v7409 = vsel %vm1235, %v6801, -inf
  %v7410 = vrot.slane %v7409, 4
  %v7411 = vmax.f32 %v7409, %v7410
  %v7412 = vrot.slane %v7411, 2
  %v7413 = vmax.f32 %v7411, %v7412
  %v7414 = vrot.slane %v7413, 1
  %v7415 = vmax.f32 %v7413, %v7414
  %v7416 = vsel %vm1235, %v6802, -inf
  %v7417 = vrot.slane %v7416, 4
  %v7418 = vmax.f32 %v7416, %v7417
  %v7419 = vrot.slane %v7418, 2
  %v7420 = vmax.f32 %v7418, %v7419
  %v7421 = vrot.slane %v7420, 1
  %v7422 = vmax.f32 %v7420, %v7421
  %v7423 = vsel %vm1235, %v6803, -inf
  %v7424 = vrot.slane %v7423, 4
  %v7425 = vmax.f32 %v7423, %v7424
  %v7426 = vrot.slane %v7425, 2
  %v7427 = vmax.f32 %v7425, %v7426
  %v7428 = vrot.slane %v7427, 1
  %v7429 = vmax.f32 %v7427, %v7428
  %v7430 = vsel %vm1235, %v6804, -inf
  %v7431 = vrot.slane %v7430, 4
  %v7432 = vmax.f32 %v7430, %v7431
  %v7433 = vrot.slane %v7432, 2
  %v7434 = vmax.f32 %v7432, %v7433
  %v7435 = vrot.slane %v7434, 1
  %v7436 = vmax.f32 %v7434, %v7435
  %v7437 = vsel %vm1235, %v6805, -inf
  %v7438 = vrot.slane %v7437, 4
  %v7439 = vmax.f32 %v7437, %v7438
  %v7440 = vrot.slane %v7439, 2
  %v7441 = vmax.f32 %v7439, %v7440
  %v7442 = vrot.slane %v7441, 1
  %v7443 = vmax.f32 %v7441, %v7442
  %v7444 = vsel %vm1235, %v6806, -inf
  %v7445 = vrot.slane %v7444, 4
  %v7446 = vmax.f32 %v7444, %v7445
  %v7447 = vrot.slane %v7446, 2
  %v7448 = vmax.f32 %v7446, %v7447
  %v7449 = vrot.slane %v7448, 1
  %v7450 = vmax.f32 %v7448, %v7449
  %v7451 = vsel %vm1235, %v6807, -inf
  %v7452 = vrot.slane %v7451, 4
  %v7453 = vmax.f32 %v7451, %v7452
  %v7454 = vrot.slane %v7453, 2
  %v7455 = vmax.f32 %v7453, %v7454
  %v7456 = vrot.slane %v7455, 1
  %v7457 = vmax.f32 %v7455, %v7456
  %v7458 = vsel %vm1235, %v6808, -inf
  %v7459 = vrot.slane %v7458, 4
  %v7460 = vmax.f32 %v7458, %v7459
  %v7461 = vrot.slane %v7460, 2
  %v7462 = vmax.f32 %v7460, %v7461
  %v7463 = vrot.slane %v7462, 1
  %v7464 = vmax.f32 %v7462, %v7463
  %v7465 = vsel %vm1235, %v6809, -inf
  %v7466 = vrot.slane %v7465, 4
  %v7467 = vmax.f32 %v7465, %v7466
  %v7468 = vrot.slane %v7467, 2
  %v7469 = vmax.f32 %v7467, %v7468
  %v7470 = vrot.slane %v7469, 1
  %v7471 = vmax.f32 %v7469, %v7470
  %v7472 = vsel %vm1235, %v6810, -inf
  %v7473 = vrot.slane %v7472, 4
  %v7474 = vmax.f32 %v7472, %v7473
  %v7475 = vrot.slane %v7474, 2
  %v7476 = vmax.f32 %v7474, %v7475
  %v7477 = vrot.slane %v7476, 1
  %v7478 = vmax.f32 %v7476, %v7477
  %v7479 = vsel %vm1235, %v6811, -inf
  %v7480 = vrot.slane %v7479, 4
  %v7481 = vmax.f32 %v7479, %v7480
  %v7482 = vrot.slane %v7481, 2
  %v7483 = vmax.f32 %v7481, %v7482
  %v7484 = vrot.slane %v7483, 1
  %v7485 = vmax.f32 %v7483, %v7484
  %v7486 = vsel %vm1235, %v6812, -inf
  %v7487 = vrot.slane %v7486, 4
  %v7488 = vmax.f32 %v7486, %v7487
  %v7489 = vrot.slane %v7488, 2
  %v7490 = vmax.f32 %v7488, %v7489
  %v7491 = vrot.slane %v7490, 1
  %v7492 = vmax.f32 %v7490, %v7491
  %v7493 = vsel %vm1235, %v6813, -inf
  %v7494 = vrot.slane %v7493, 4
  %v7495 = vmax.f32 %v7493, %v7494
  %v7496 = vrot.slane %v7495, 2
  %v7497 = vmax.f32 %v7495, %v7496
  %v7498 = vrot.slane %v7497, 1
  %v7499 = vmax.f32 %v7497, %v7498
  %v7500 = vsel %vm1235, %v6814, -inf
  %v7501 = vrot.slane %v7500, 4
  %v7502 = vmax.f32 %v7500, %v7501
  %v7503 = vrot.slane %v7502, 2
  %v7504 = vmax.f32 %v7502, %v7503
  %v7505 = vrot.slane %v7504, 1
  %v7506 = vmax.f32 %v7504, %v7505
  %v7507 = vsel %vm1235, %v6815, -inf
  %v7508 = vrot.slane %v7507, 4
  %v7509 = vmax.f32 %v7507, %v7508
  %v7510 = vrot.slane %v7509, 2
  %v7511 = vmax.f32 %v7509, %v7510
  %v7512 = vrot.slane %v7511, 1
  %v7513 = vmax.f32 %v7511, %v7512
  %v7514 = vsel %vm1235, %v6816, -inf
  %v7515 = vrot.slane %v7514, 4
  %v7516 = vmax.f32 %v7514, %v7515
  %v7517 = vrot.slane %v7516, 2
  %v7518 = vmax.f32 %v7516, %v7517
  %v7519 = vrot.slane %v7518, 1
  %v7520 = vmax.f32 %v7518, %v7519
  %v7521 = vsel %vm1235, %v6817, -inf
  %v7522 = vrot.slane %v7521, 4
  %v7523 = vmax.f32 %v7521, %v7522
  %v7524 = vrot.slane %v7523, 2
  %v7525 = vmax.f32 %v7523, %v7524
  %v7526 = vrot.slane %v7525, 1
  %v7527 = vmax.f32 %v7525, %v7526
  %v7528 = vsel %vm1235, %v6818, -inf
  %v7529 = vrot.slane %v7528, 4
  %v7530 = vmax.f32 %v7528, %v7529
  %v7531 = vrot.slane %v7530, 2
  %v7532 = vmax.f32 %v7530, %v7531
  %v7533 = vrot.slane %v7532, 1
  %v7534 = vmax.f32 %v7532, %v7533
  %v7535 = vsel %vm1235, %v6819, -inf
  %v7536 = vrot.slane %v7535, 4
  %v7537 = vmax.f32 %v7535, %v7536
  %v7538 = vrot.slane %v7537, 2
  %v7539 = vmax.f32 %v7537, %v7538
  %v7540 = vrot.slane %v7539, 1
  %v7541 = vmax.f32 %v7539, %v7540
  %v7542 = vsel %vm1235, %v6820, -inf
  %v7543 = vrot.slane %v7542, 4
  %v7544 = vmax.f32 %v7542, %v7543
  %v7545 = vrot.slane %v7544, 2
  %v7546 = vmax.f32 %v7544, %v7545
  %v7547 = vrot.slane %v7546, 1
  %v7548 = vmax.f32 %v7546, %v7547
  %v7549 = vsel %vm1235, %v6821, -inf
  %v7550 = vrot.slane %v7549, 4
  %v7551 = vmax.f32 %v7549, %v7550
  %v7552 = vrot.slane %v7551, 2
  %v7553 = vmax.f32 %v7551, %v7552
  %v7554 = vrot.slane %v7553, 1
  %v7555 = vmax.f32 %v7553, %v7554
  %v7556 = vsel %vm1235, %v6822, -inf
  %v7557 = vrot.slane %v7556, 4
  %v7558 = vmax.f32 %v7556, %v7557
  %v7559 = vrot.slane %v7558, 2
  %v7560 = vmax.f32 %v7558, %v7559
  %v7561 = vrot.slane %v7560, 1
  %v7562 = vmax.f32 %v7560, %v7561
  %v7563 = vsel %vm1235, %v6823, -inf
  %v7564 = vrot.slane %v7563, 4
  %v7565 = vmax.f32 %v7563, %v7564
  %v7566 = vrot.slane %v7565, 2
  %v7567 = vmax.f32 %v7565, %v7566
  %v7568 = vrot.slane %v7567, 1
  %v7569 = vmax.f32 %v7567, %v7568
  %v7570 = vsel %vm1235, %v6824, -inf
  %v7571 = vrot.slane %v7570, 4
  %v7572 = vmax.f32 %v7570, %v7571
  %v7573 = vrot.slane %v7572, 2
  %v7574 = vmax.f32 %v7572, %v7573
  %v7575 = vrot.slane %v7574, 1
  %v7576 = vmax.f32 %v7574, %v7575
  %v7577 = vsel %vm1235, %v6825, -inf
  %v7578 = vrot.slane %v7577, 4
  %v7579 = vmax.f32 %v7577, %v7578
  %v7580 = vrot.slane %v7579, 2
  %v7581 = vmax.f32 %v7579, %v7580
  %v7582 = vrot.slane %v7581, 1
  %v7583 = vmax.f32 %v7581, %v7582
  %v7584 = vsel %vm1235, %v6826, -inf
  %v7585 = vrot.slane %v7584, 4
  %v7586 = vmax.f32 %v7584, %v7585
  %v7587 = vrot.slane %v7586, 2
  %v7588 = vmax.f32 %v7586, %v7587
  %v7589 = vrot.slane %v7588, 1
  %v7590 = vmax.f32 %v7588, %v7589
  %v7591 = vsel %vm1235, %v6827, -inf
  %v7592 = vrot.slane %v7591, 4
  %v7593 = vmax.f32 %v7591, %v7592
  %v7594 = vrot.slane %v7593, 2
  %v7595 = vmax.f32 %v7593, %v7594
  %v7596 = vrot.slane %v7595, 1
  %v7597 = vmax.f32 %v7595, %v7596
  %v7598 = vsel %vm1235, %v6828, -inf
  %v7599 = vrot.slane %v7598, 4
  %v7600 = vmax.f32 %v7598, %v7599
  %v7601 = vrot.slane %v7600, 2
  %v7602 = vmax.f32 %v7600, %v7601
  %v7603 = vrot.slane %v7602, 1
  %v7604 = vmax.f32 %v7602, %v7603
  %v7605 = vsel %vm1235, %v6829, -inf
  %v7606 = vrot.slane %v7605, 4
  %v7607 = vmax.f32 %v7605, %v7606
  %v7608 = vrot.slane %v7607, 2
  %v7609 = vmax.f32 %v7607, %v7608
  %v7610 = vrot.slane %v7609, 1
  %v7611 = vmax.f32 %v7609, %v7610
  %v7612 = vsel %vm1235, %v6830, -inf
  %v7613 = vrot.slane %v7612, 4
  %v7614 = vmax.f32 %v7612, %v7613
  %v7615 = vrot.slane %v7614, 2
  %v7616 = vmax.f32 %v7614, %v7615
  %v7617 = vrot.slane %v7616, 1
  %v7618 = vmax.f32 %v7616, %v7617
  %v7619 = vsel %vm1235, %v6831, -inf
  %v7620 = vrot.slane %v7619, 4
  %v7621 = vmax.f32 %v7619, %v7620
  %v7622 = vrot.slane %v7621, 2
  %v7623 = vmax.f32 %v7621, %v7622
  %v7624 = vrot.slane %v7623, 1
  %v7625 = vmax.f32 %v7623, %v7624
  %v7626 = vsel %vm1235, %v6832, -inf
  %v7627 = vrot.slane %v7626, 4
  %v7628 = vmax.f32 %v7626, %v7627
  %v7629 = vrot.slane %v7628, 2
  %v7630 = vmax.f32 %v7628, %v7629
  %v7631 = vrot.slane %v7630, 1
  %v7632 = vmax.f32 %v7630, %v7631
  %v7633 = vsel %vm1235, %v6833, -inf
  %v7634 = vrot.slane %v7633, 4
  %v7635 = vmax.f32 %v7633, %v7634
  %v7636 = vrot.slane %v7635, 2
  %v7637 = vmax.f32 %v7635, %v7636
  %v7638 = vrot.slane %v7637, 1
  %v7639 = vmax.f32 %v7637, %v7638
  %v7640 = vsel %vm1235, %v6834, -inf
  %v7641 = vrot.slane %v7640, 4
  %v7642 = vmax.f32 %v7640, %v7641
  %v7643 = vrot.slane %v7642, 2
  %v7644 = vmax.f32 %v7642, %v7643
  %v7645 = vrot.slane %v7644, 1
  %v7646 = vmax.f32 %v7644, %v7645
  %v7647 = vsel %vm1235, %v6835, -inf
  %v7648 = vrot.slane %v7647, 4
  %v7649 = vmax.f32 %v7647, %v7648
  %v7650 = vrot.slane %v7649, 2
  %v7651 = vmax.f32 %v7649, %v7650
  %v7652 = vrot.slane %v7651, 1
  %v7653 = vmax.f32 %v7651, %v7652
  %v7654 = vsel %vm1235, %v6836, -inf
  %v7655 = vrot.slane %v7654, 4
  %v7656 = vmax.f32 %v7654, %v7655
  %v7657 = vrot.slane %v7656, 2
  %v7658 = vmax.f32 %v7656, %v7657
  %v7659 = vrot.slane %v7658, 1
  %v7660 = vmax.f32 %v7658, %v7659
  %v7661 = vsel %vm1235, %v6837, -inf
  %v7662 = vrot.slane %v7661, 4
  %v7663 = vmax.f32 %v7661, %v7662
  %v7664 = vrot.slane %v7663, 2
  %v7665 = vmax.f32 %v7663, %v7664
  %v7666 = vrot.slane %v7665, 1
  %v7667 = vmax.f32 %v7665, %v7666
  %v7668 = vsel %vm1235, %v6838, -inf
  %v7669 = vrot.slane %v7668, 4
  %v7670 = vmax.f32 %v7668, %v7669
  %v7671 = vrot.slane %v7670, 2
  %v7672 = vmax.f32 %v7670, %v7671
  %v7673 = vrot.slane %v7672, 1
  %v7674 = vmax.f32 %v7672, %v7673
  %v7675 = vsel %vm1235, %v6839, -inf
  %v7676 = vrot.slane %v7675, 4
  %v7677 = vmax.f32 %v7675, %v7676
  %v7678 = vrot.slane %v7677, 2
  %v7679 = vmax.f32 %v7677, %v7678
  %v7680 = vrot.slane %v7679, 1
  %v7681 = vmax.f32 %v7679, %v7680
  %v7682 = vsel %vm1235, %v6840, -inf
  %v7683 = vrot.slane %v7682, 4
  %v7684 = vmax.f32 %v7682, %v7683
  %v7685 = vrot.slane %v7684, 2
  %v7686 = vmax.f32 %v7684, %v7685
  %v7687 = vrot.slane %v7686, 1
  %v7688 = vmax.f32 %v7686, %v7687
  %v7689 = vsel %vm1235, %v6841, -inf
  %v7690 = vrot.slane %v7689, 4
  %v7691 = vmax.f32 %v7689, %v7690
  %v7692 = vrot.slane %v7691, 2
  %v7693 = vmax.f32 %v7691, %v7692
  %v7694 = vrot.slane %v7693, 1
  %v7695 = vmax.f32 %v7693, %v7694
  %v7696 = vsel %vm1235, %v6842, -inf
  %v7697 = vrot.slane %v7696, 4
  %v7698 = vmax.f32 %v7696, %v7697
  %v7699 = vrot.slane %v7698, 2
  %v7700 = vmax.f32 %v7698, %v7699
  %v7701 = vrot.slane %v7700, 1
  %v7702 = vmax.f32 %v7700, %v7701
  %v7703 = vsel %vm1235, %v6843, -inf
  %v7704 = vrot.slane %v7703, 4
  %v7705 = vmax.f32 %v7703, %v7704
  %v7706 = vrot.slane %v7705, 2
  %v7707 = vmax.f32 %v7705, %v7706
  %v7708 = vrot.slane %v7707, 1
  %v7709 = vmax.f32 %v7707, %v7708
  %v7710 = vsel %vm1235, %v6844, -inf
  %v7711 = vrot.slane %v7710, 4
  %v7712 = vmax.f32 %v7710, %v7711
  %v7713 = vrot.slane %v7712, 2
  %v7714 = vmax.f32 %v7712, %v7713
  %v7715 = vrot.slane %v7714, 1
  %v7716 = vmax.f32 %v7714, %v7715
  %v7717 = vsel %vm1235, %v6845, -inf
  %v7718 = vrot.slane %v7717, 4
  %v7719 = vmax.f32 %v7717, %v7718
  %v7720 = vrot.slane %v7719, 2
  %v7721 = vmax.f32 %v7719, %v7720
  %v7722 = vrot.slane %v7721, 1
  %v7723 = vmax.f32 %v7721, %v7722
  %v7724 = vsel %vm1235, %v6846, -inf
  %v7725 = vrot.slane %v7724, 4
  %v7726 = vmax.f32 %v7724, %v7725
  %v7727 = vrot.slane %v7726, 2
  %v7728 = vmax.f32 %v7726, %v7727
  %v7729 = vrot.slane %v7728, 1
  %v7730 = vmax.f32 %v7728, %v7729
  %v7731 = vsel %vm1235, %v6847, -inf
  %v7732 = vrot.slane %v7731, 4
  %v7733 = vmax.f32 %v7731, %v7732
  %v7734 = vrot.slane %v7733, 2
  %v7735 = vmax.f32 %v7733, %v7734
  %v7736 = vrot.slane %v7735, 1
  %v7737 = vmax.f32 %v7735, %v7736
  %v7738 = vsel %vm1235, %v6848, -inf
  %v7739 = vrot.slane %v7738, 4
  %v7740 = vmax.f32 %v7738, %v7739
  %v7741 = vrot.slane %v7740, 2
  %v7742 = vmax.f32 %v7740, %v7741
  %v7743 = vrot.slane %v7742, 1
  %v7744 = vmax.f32 %v7742, %v7743
  %v7745 = vpack.c.bf16 %v6855, %v6855
  %v7746 = vpack.c.bf16 %v6862, %v6862
  %v7747 = vpack.c.bf16 %v6869, %v6869
  %v7748 = vpack.c.bf16 %v6876, %v6876
  %v7749 = vpack.c.bf16 %v6883, %v6883
  %v7750 = vpack.c.bf16 %v6890, %v6890
  %v7751 = vpack.c.bf16 %v6897, %v6897
  %v7752 = vpack.c.bf16 %v6904, %v6904
  %v7753 = vpack.c.bf16 %v6911, %v6911
  %v7754 = vpack.c.bf16 %v6918, %v6918
  %v7755 = vpack.c.bf16 %v6925, %v6925
  %v7756 = vpack.c.bf16 %v6932, %v6932
  %v7757 = vpack.c.bf16 %v6939, %v6939
  %v7758 = vpack.c.bf16 %v6946, %v6946
  %v7759 = vpack.c.bf16 %v6953, %v6953
  %v7760 = vpack.c.bf16 %v6960, %v6960
  %v7761 = vpack.c.bf16 %v6967, %v6967
  %v7762 = vpack.c.bf16 %v6974, %v6974
  %v7763 = vpack.c.bf16 %v6981, %v6981
  %v7764 = vpack.c.bf16 %v6988, %v6988
  %v7765 = vpack.c.bf16 %v6995, %v6995
  %v7766 = vpack.c.bf16 %v7002, %v7002
  %v7767 = vpack.c.bf16 %v7009, %v7009
  %v7768 = vpack.c.bf16 %v7016, %v7016
  %v7769 = vpack.c.bf16 %v7023, %v7023
  %v7770 = vpack.c.bf16 %v7030, %v7030
  %v7771 = vpack.c.bf16 %v7037, %v7037
  %v7772 = vpack.c.bf16 %v7044, %v7044
  %v7773 = vpack.c.bf16 %v7051, %v7051
  %v7774 = vpack.c.bf16 %v7058, %v7058
  %v7775 = vpack.c.bf16 %v7065, %v7065
  %v7776 = vpack.c.bf16 %v7072, %v7072
  %v7777 = vpack.c.bf16 %v7079, %v7079
  %v7778 = vpack.c.bf16 %v7086, %v7086
  %v7779 = vpack.c.bf16 %v7093, %v7093
  %v7780 = vpack.c.bf16 %v7100, %v7100
  %v7781 = vpack.c.bf16 %v7107, %v7107
  %v7782 = vpack.c.bf16 %v7114, %v7114
  %v7783 = vpack.c.bf16 %v7121, %v7121
  %v7784 = vpack.c.bf16 %v7128, %v7128
  %v7785 = vpack.c.bf16 %v7135, %v7135
  %v7786 = vpack.c.bf16 %v7142, %v7142
  %v7787 = vpack.c.bf16 %v7149, %v7149
  %v7788 = vpack.c.bf16 %v7156, %v7156
  %v7789 = vpack.c.bf16 %v7163, %v7163
  %v7790 = vpack.c.bf16 %v7170, %v7170
  %v7791 = vpack.c.bf16 %v7177, %v7177
  %v7792 = vpack.c.bf16 %v7184, %v7184
  %v7793 = vpack.c.bf16 %v7191, %v7191
  %v7794 = vpack.c.bf16 %v7198, %v7198
  %v7795 = vpack.c.bf16 %v7205, %v7205
  %v7796 = vpack.c.bf16 %v7212, %v7212
  %v7797 = vpack.c.bf16 %v7219, %v7219
  %v7798 = vpack.c.bf16 %v7226, %v7226
  %v7799 = vpack.c.bf16 %v7233, %v7233
  %v7800 = vpack.c.bf16 %v7240, %v7240
  %v7801 = vpack.c.bf16 %v7247, %v7247
  %v7802 = vpack.c.bf16 %v7254, %v7254
  %v7803 = vpack.c.bf16 %v7261, %v7261
  %v7804 = vpack.c.bf16 %v7268, %v7268
  %v7805 = vpack.c.bf16 %v7275, %v7275
  %v7806 = vpack.c.bf16 %v7282, %v7282
  %v7807 = vpack.c.bf16 %v7289, %v7289
  %v7808 = vpack.c.bf16 %v7296, %v7296
  %v7809 = vpack.c.bf16 %v7303, %v7303
  %v7810 = vpack.c.bf16 %v7310, %v7310
  %v7811 = vpack.c.bf16 %v7317, %v7317
  %v7812 = vpack.c.bf16 %v7324, %v7324
  %v7813 = vpack.c.bf16 %v7331, %v7331
  %v7814 = vpack.c.bf16 %v7338, %v7338
  %v7815 = vpack.c.bf16 %v7345, %v7345
  %v7816 = vpack.c.bf16 %v7352, %v7352
  %v7817 = vpack.c.bf16 %v7359, %v7359
  %v7818 = vpack.c.bf16 %v7366, %v7366
  %v7819 = vpack.c.bf16 %v7373, %v7373
  %v7820 = vpack.c.bf16 %v7380, %v7380
  %v7821 = vpack.c.bf16 %v7387, %v7387
  %v7822 = vpack.c.bf16 %v7394, %v7394
  %v7823 = vpack.c.bf16 %v7401, %v7401
  %v7824 = vpack.c.bf16 %v7408, %v7408
  %v7825 = vpack.c.bf16 %v7415, %v7415
  %v7826 = vpack.c.bf16 %v7422, %v7422
  %v7827 = vpack.c.bf16 %v7429, %v7429
  %v7828 = vpack.c.bf16 %v7436, %v7436
  %v7829 = vpack.c.bf16 %v7443, %v7443
  %v7830 = vpack.c.bf16 %v7450, %v7450
  %v7831 = vpack.c.bf16 %v7457, %v7457
  %v7832 = vpack.c.bf16 %v7464, %v7464
  %v7833 = vpack.c.bf16 %v7471, %v7471
  %v7834 = vpack.c.bf16 %v7478, %v7478
  %v7835 = vpack.c.bf16 %v7485, %v7485
  %v7836 = vpack.c.bf16 %v7492, %v7492
  %v7837 = vpack.c.bf16 %v7499, %v7499
  %v7838 = vpack.c.bf16 %v7506, %v7506
  %v7839 = vpack.c.bf16 %v7513, %v7513
  %v7840 = vpack.c.bf16 %v7520, %v7520
  %v7841 = vpack.c.bf16 %v7527, %v7527
  %v7842 = vpack.c.bf16 %v7534, %v7534
  %v7843 = vpack.c.bf16 %v7541, %v7541
  %v7844 = vpack.c.bf16 %v7548, %v7548
  %v7845 = vpack.c.bf16 %v7555, %v7555
  %v7846 = vpack.c.bf16 %v7562, %v7562
  %v7847 = vpack.c.bf16 %v7569, %v7569
  %v7848 = vpack.c.bf16 %v7576, %v7576
  %v7849 = vpack.c.bf16 %v7583, %v7583
  %v7850 = vpack.c.bf16 %v7590, %v7590
  %v7851 = vpack.c.bf16 %v7597, %v7597
  %v7852 = vpack.c.bf16 %v7604, %v7604
  %v7853 = vpack.c.bf16 %v7611, %v7611
  %v7854 = vpack.c.bf16 %v7618, %v7618
  %v7855 = vpack.c.bf16 %v7625, %v7625
  %v7856 = vpack.c.bf16 %v7632, %v7632
  %v7857 = vpack.c.bf16 %v7639, %v7639
  %v7858 = vpack.c.bf16 %v7646, %v7646
  %v7859 = vpack.c.bf16 %v7653, %v7653
  %v7860 = vpack.c.bf16 %v7660, %v7660
  %v7861 = vpack.c.bf16 %v7667, %v7667
  %v7862 = vpack.c.bf16 %v7674, %v7674
  %v7863 = vpack.c.bf16 %v7681, %v7681
  %v7864 = vpack.c.bf16 %v7688, %v7688
  %v7865 = vpack.c.bf16 %v7695, %v7695
  %v7866 = vpack.c.bf16 %v7702, %v7702
  %v7867 = vpack.c.bf16 %v7709, %v7709
  %v7868 = vpack.c.bf16 %v7716, %v7716
  %v7869 = vpack.c.bf16 %v7723, %v7723
  %v7870 = vpack.c.bf16 %v7730, %v7730
  %v7871 = vpack.c.bf16 %v7737, %v7737
  %v7872 = vpack.c.bf16 %v7744, %v7744
  %s7873 = scalar_lea.vmem %s2, 64
  %v7874 = vld [vmem:[%s7873] sm:$0xf]
  %v7875 = vld [vmem:[%s7873 + $0x4] sm:$0xf]
  %v7876 = vld [vmem:[%s7873 + $0x8] sm:$0xf]
  %v7877 = vld [vmem:[%s7873 + $0xc] sm:$0xf]
  %v7878 = vld [vmem:[%s7873 + $0x10] sm:$0xf]
  %v7879 = vld [vmem:[%s7873 + $0x14] sm:$0xf]
  %v7880 = vld [vmem:[%s7873 + $0x18] sm:$0xf]
  %v7881 = vld [vmem:[%s7873 + $0x1c] sm:$0xf]
  %v8010 = vunpack.c.l.b16 %v7745
  %v8011 = vunpack.c.l.b16 %v7746
  %v8012 = vunpack.c.l.b16 %v7747
  %v8013 = vunpack.c.l.b16 %v7748
  %v8014 = vunpack.c.l.b16 %v7749
  %v8015 = vunpack.c.l.b16 %v7750
  %v8016 = vunpack.c.l.b16 %v7751
  %v8017 = vunpack.c.l.b16 %v7752
  %v8018 = vunpack.c.l.b16 %v7753
  %v8019 = vunpack.c.l.b16 %v7754
  %v8020 = vunpack.c.l.b16 %v7755
  %v8021 = vunpack.c.l.b16 %v7756
  %v8022 = vunpack.c.l.b16 %v7757
  %v8023 = vunpack.c.l.b16 %v7758
  %v8024 = vunpack.c.l.b16 %v7759
  %v8025 = vunpack.c.l.b16 %v7760
  %v8026 = vunpack.c.l.b16 %v7761
  %v8027 = vunpack.c.l.b16 %v7762
  %v8028 = vunpack.c.l.b16 %v7763
  %v8029 = vunpack.c.l.b16 %v7764
  %v8030 = vunpack.c.l.b16 %v7765
  %v8031 = vunpack.c.l.b16 %v7766
  %v8032 = vunpack.c.l.b16 %v7767
  %v8033 = vunpack.c.l.b16 %v7768
  %v8034 = vunpack.c.l.b16 %v7769
  %v8035 = vunpack.c.l.b16 %v7770
  %v8036 = vunpack.c.l.b16 %v7771
  %v8037 = vunpack.c.l.b16 %v7772
  %v8038 = vunpack.c.l.b16 %v7773
  %v8039 = vunpack.c.l.b16 %v7774
  %v8040 = vunpack.c.l.b16 %v7775
  %v8041 = vunpack.c.l.b16 %v7776
  %v8042 = vunpack.c.l.b16 %v7777
  %v8043 = vunpack.c.l.b16 %v7778
  %v8044 = vunpack.c.l.b16 %v7779
  %v8045 = vunpack.c.l.b16 %v7780
  %v8046 = vunpack.c.l.b16 %v7781
  %v8047 = vunpack.c.l.b16 %v7782
  %v8048 = vunpack.c.l.b16 %v7783
  %v8049 = vunpack.c.l.b16 %v7784
  %v8050 = vunpack.c.l.b16 %v7785
  %v8051 = vunpack.c.l.b16 %v7786
  %v8052 = vunpack.c.l.b16 %v7787
  %v8053 = vunpack.c.l.b16 %v7788
  %v8054 = vunpack.c.l.b16 %v7789
  %v8055 = vunpack.c.l.b16 %v7790
  %v8056 = vunpack.c.l.b16 %v7791
  %v8057 = vunpack.c.l.b16 %v7792
  %v8058 = vunpack.c.l.b16 %v7793
  %v8059 = vunpack.c.l.b16 %v7794
  %v8060 = vunpack.c.l.b16 %v7795
  %v8061 = vunpack.c.l.b16 %v7796
  %v8062 = vunpack.c.l.b16 %v7797
  %v8063 = vunpack.c.l.b16 %v7798
  %v8064 = vunpack.c.l.b16 %v7799
  %v8065 = vunpack.c.l.b16 %v7800
  %v8066 = vunpack.c.l.b16 %v7801
  %v8067 = vunpack.c.l.b16 %v7802
  %v8068 = vunpack.c.l.b16 %v7803
  %v8069 = vunpack.c.l.b16 %v7804
  %v8070 = vunpack.c.l.b16 %v7805
  %v8071 = vunpack.c.l.b16 %v7806
  %v8072 = vunpack.c.l.b16 %v7807
  %v8073 = vunpack.c.l.b16 %v7808
  %v8074 = vunpack.c.l.b16 %v7809
  %v8075 = vunpack.c.l.b16 %v7810
  %v8076 = vunpack.c.l.b16 %v7811
  %v8077 = vunpack.c.l.b16 %v7812
  %v8078 = vunpack.c.l.b16 %v7813
  %v8079 = vunpack.c.l.b16 %v7814
  %v8080 = vunpack.c.l.b16 %v7815
  %v8081 = vunpack.c.l.b16 %v7816
  %v8082 = vunpack.c.l.b16 %v7817
  %v8083 = vunpack.c.l.b16 %v7818
  %v8084 = vunpack.c.l.b16 %v7819
  %v8085 = vunpack.c.l.b16 %v7820
  %v8086 = vunpack.c.l.b16 %v7821
  %v8087 = vunpack.c.l.b16 %v7822
  %v8088 = vunpack.c.l.b16 %v7823
  %v8089 = vunpack.c.l.b16 %v7824
  %v8090 = vunpack.c.l.b16 %v7825
  %v8091 = vunpack.c.l.b16 %v7826
  %v8092 = vunpack.c.l.b16 %v7827
  %v8093 = vunpack.c.l.b16 %v7828
  %v8094 = vunpack.c.l.b16 %v7829
  %v8095 = vunpack.c.l.b16 %v7830
  %v8096 = vunpack.c.l.b16 %v7831
  %v8097 = vunpack.c.l.b16 %v7832
  %v8098 = vunpack.c.l.b16 %v7833
  %v8099 = vunpack.c.l.b16 %v7834
  %v8100 = vunpack.c.l.b16 %v7835
  %v8101 = vunpack.c.l.b16 %v7836
  %v8102 = vunpack.c.l.b16 %v7837
  %v8103 = vunpack.c.l.b16 %v7838
  %v8104 = vunpack.c.l.b16 %v7839
  %v8105 = vunpack.c.l.b16 %v7840
  %v8106 = vunpack.c.l.b16 %v7841
  %v8107 = vunpack.c.l.b16 %v7842
  %v8108 = vunpack.c.l.b16 %v7843
  %v8109 = vunpack.c.l.b16 %v7844
  %v8110 = vunpack.c.l.b16 %v7845
  %v8111 = vunpack.c.l.b16 %v7846
  %v8112 = vunpack.c.l.b16 %v7847
  %v8113 = vunpack.c.l.b16 %v7848
  %v8114 = vunpack.c.l.b16 %v7849
  %v8115 = vunpack.c.l.b16 %v7850
  %v8116 = vunpack.c.l.b16 %v7851
  %v8117 = vunpack.c.l.b16 %v7852
  %v8118 = vunpack.c.l.b16 %v7853
  %v8119 = vunpack.c.l.b16 %v7854
  %v8120 = vunpack.c.l.b16 %v7855
  %v8121 = vunpack.c.l.b16 %v7856
  %v8122 = vunpack.c.l.b16 %v7857
  %v8123 = vunpack.c.l.b16 %v7858
  %v8124 = vunpack.c.l.b16 %v7859
  %v8125 = vunpack.c.l.b16 %v7860
  %v8126 = vunpack.c.l.b16 %v7861
  %v8127 = vunpack.c.l.b16 %v7862
  %v8128 = vunpack.c.l.b16 %v7863
  %v8129 = vunpack.c.l.b16 %v7864
  %v8130 = vunpack.c.l.b16 %v7865
  %v8131 = vunpack.c.l.b16 %v7866
  %v8132 = vunpack.c.l.b16 %v7867
  %v8133 = vunpack.c.l.b16 %v7868
  %v8134 = vunpack.c.l.b16 %v7869
  %v8135 = vunpack.c.l.b16 %v7870
  %v8136 = vunpack.c.l.b16 %v7871
  %v8137 = vunpack.c.l.b16 %v7872
  %v8138 = vsel %vm1914, %v8011, %v8010
  %vm8139 = vcmask 1042434
  %v8140 = vsel %vm8139, %v8012, %v8138
  %vm8141 = vcmask 1043459
  %v8142 = vsel %vm8141, %v8013, %v8140
  %vm8143 = vcmask 1044484
  %v8144 = vsel %vm8143, %v8014, %v8142
  %vm8145 = vcmask 1045509
  %v8146 = vsel %vm8145, %v8015, %v8144
  %vm8147 = vcmask 1046534
  %v8148 = vsel %vm8147, %v8016, %v8146
  %vm8149 = vcmask 1047559
  %v8150 = vsel %vm8149, %v8017, %v8148
  %v8151 = vsel %vm1914, %v8019, %v8018
  %v8152 = vsel %vm8139, %v8020, %v8151
  %v8153 = vsel %vm8141, %v8021, %v8152
  %v8154 = vsel %vm8143, %v8022, %v8153
  %v8155 = vsel %vm8145, %v8023, %v8154
  %v8156 = vsel %vm8147, %v8024, %v8155
  %v8157 = vsel %vm8149, %v8025, %v8156
  %v8158 = vsel %vm1914, %v8027, %v8026
  %v8159 = vsel %vm8139, %v8028, %v8158
  %v8160 = vsel %vm8141, %v8029, %v8159
  %v8161 = vsel %vm8143, %v8030, %v8160
  %v8162 = vsel %vm8145, %v8031, %v8161
  %v8163 = vsel %vm8147, %v8032, %v8162
  %v8164 = vsel %vm8149, %v8033, %v8163
  %v8165 = vsel %vm1914, %v8035, %v8034
  %v8166 = vsel %vm8139, %v8036, %v8165
  %v8167 = vsel %vm8141, %v8037, %v8166
  %v8168 = vsel %vm8143, %v8038, %v8167
  %v8169 = vsel %vm8145, %v8039, %v8168
  %v8170 = vsel %vm8147, %v8040, %v8169
  %v8171 = vsel %vm8149, %v8041, %v8170
  %v8172 = vsel %vm1914, %v8043, %v8042
  %v8173 = vsel %vm8139, %v8044, %v8172
  %v8174 = vsel %vm8141, %v8045, %v8173
  %v8175 = vsel %vm8143, %v8046, %v8174
  %v8176 = vsel %vm8145, %v8047, %v8175
  %v8177 = vsel %vm8147, %v8048, %v8176
  %v8178 = vsel %vm8149, %v8049, %v8177
  %v8179 = vsel %vm1914, %v8051, %v8050
  %v8180 = vsel %vm8139, %v8052, %v8179
  %v8181 = vsel %vm8141, %v8053, %v8180
  %v8182 = vsel %vm8143, %v8054, %v8181
  %v8183 = vsel %vm8145, %v8055, %v8182
  %v8184 = vsel %vm8147, %v8056, %v8183
  %v8185 = vsel %vm8149, %v8057, %v8184
  %v8186 = vsel %vm1914, %v8059, %v8058
  %v8187 = vsel %vm8139, %v8060, %v8186
  %v8188 = vsel %vm8141, %v8061, %v8187
  %v8189 = vsel %vm8143, %v8062, %v8188
  %v8190 = vsel %vm8145, %v8063, %v8189
  %v8191 = vsel %vm8147, %v8064, %v8190
  %v8192 = vsel %vm8149, %v8065, %v8191
  %v8193 = vsel %vm1914, %v8067, %v8066
  %v8194 = vsel %vm8139, %v8068, %v8193
  %v8195 = vsel %vm8141, %v8069, %v8194
  %v8196 = vsel %vm8143, %v8070, %v8195
  %v8197 = vsel %vm8145, %v8071, %v8196
  %v8198 = vsel %vm8147, %v8072, %v8197
  %v8199 = vsel %vm8149, %v8073, %v8198
  %v8200 = vsel %vm1914, %v8075, %v8074
  %v8201 = vsel %vm8139, %v8076, %v8200
  %v8202 = vsel %vm8141, %v8077, %v8201
  %v8203 = vsel %vm8143, %v8078, %v8202
  %v8204 = vsel %vm8145, %v8079, %v8203
  %v8205 = vsel %vm8147, %v8080, %v8204
  %v8206 = vsel %vm8149, %v8081, %v8205
  %v8207 = vsel %vm1914, %v8083, %v8082
  %v8208 = vsel %vm8139, %v8084, %v8207
  %v8209 = vsel %vm8141, %v8085, %v8208
  %v8210 = vsel %vm8143, %v8086, %v8209
  %v8211 = vsel %vm8145, %v8087, %v8210
  %v8212 = vsel %vm8147, %v8088, %v8211
  %v8213 = vsel %vm8149, %v8089, %v8212
  %v8214 = vsel %vm1914, %v8091, %v8090
  %v8215 = vsel %vm8139, %v8092, %v8214
  %v8216 = vsel %vm8141, %v8093, %v8215
  %v8217 = vsel %vm8143, %v8094, %v8216
  %v8218 = vsel %vm8145, %v8095, %v8217
  %v8219 = vsel %vm8147, %v8096, %v8218
  %v8220 = vsel %vm8149, %v8097, %v8219
  %v8221 = vsel %vm1914, %v8099, %v8098
  %v8222 = vsel %vm8139, %v8100, %v8221
  %v8223 = vsel %vm8141, %v8101, %v8222
  %v8224 = vsel %vm8143, %v8102, %v8223
  %v8225 = vsel %vm8145, %v8103, %v8224
  %v8226 = vsel %vm8147, %v8104, %v8225
  %v8227 = vsel %vm8149, %v8105, %v8226
  %v8228 = vsel %vm1914, %v8107, %v8106
  %v8229 = vsel %vm8139, %v8108, %v8228
  %v8230 = vsel %vm8141, %v8109, %v8229
  %v8231 = vsel %vm8143, %v8110, %v8230
  %v8232 = vsel %vm8145, %v8111, %v8231
  %v8233 = vsel %vm8147, %v8112, %v8232
  %v8234 = vsel %vm8149, %v8113, %v8233
  %v8235 = vsel %vm1914, %v8115, %v8114
  %v8236 = vsel %vm8139, %v8116, %v8235
  %v8237 = vsel %vm8141, %v8117, %v8236
  %v8238 = vsel %vm8143, %v8118, %v8237
  %v8239 = vsel %vm8145, %v8119, %v8238
  %v8240 = vsel %vm8147, %v8120, %v8239
  %v8241 = vsel %vm8149, %v8121, %v8240
  %v8242 = vsel %vm1914, %v8123, %v8122
  %v8243 = vsel %vm8139, %v8124, %v8242
  %v8244 = vsel %vm8141, %v8125, %v8243
  %v8245 = vsel %vm8143, %v8126, %v8244
  %v8246 = vsel %vm8145, %v8127, %v8245
  %v8247 = vsel %vm8147, %v8128, %v8246
  %v8248 = vsel %vm8149, %v8129, %v8247
  %v8249 = vsel %vm1914, %v8131, %v8130
  %v8250 = vsel %vm8139, %v8132, %v8249
  %v8251 = vsel %vm8141, %v8133, %v8250
  %v8252 = vsel %vm8143, %v8134, %v8251
  %v8253 = vsel %vm8145, %v8135, %v8252
  %v8254 = vsel %vm8147, %v8136, %v8253
  %v8255 = vsel %vm8149, %v8137, %v8254
  %v8256 = vpack.c.b16 %v8157, %v8150
  %v8257 = vpack.c.b16 %v8171, %v8164
  %v8258 = vpack.c.b16 %v8185, %v8178
  %v8259 = vpack.c.b16 %v8199, %v8192
  %v8260 = vpack.c.b16 %v8213, %v8206
  %v8261 = vpack.c.b16 %v8227, %v8220
  %v8262 = vpack.c.b16 %v8241, %v8234
  %v8263 = vpack.c.b16 %v8255, %v8248
  %v8272 = vunpack.c.l.b16 %v7874
  %v8273 = vunpack.c.l.b16 %v7875
  %v8274 = vunpack.c.l.b16 %v7876
  %v8275 = vunpack.c.l.b16 %v7877
  %v8276 = vunpack.c.l.b16 %v7878
  %v8277 = vunpack.c.l.b16 %v7879
  %v8278 = vunpack.c.l.b16 %v7880
  %v8279 = vunpack.c.l.b16 %v7881
  %v8280 = vpack.c.b16 %v8273, %v8272
  %v8281 = vpack.c.b16 %v8275, %v8274
  %v8282 = vpack.c.b16 %v8277, %v8276
  %v8283 = vpack.c.b16 %v8279, %v8278
  %v8289 = vsel %vm1235, %v8256, 0
  %v8292 = vsel %vm1235, %v8257, 0
  %v8295 = vsel %vm1235, %v8258, 0
  %v8298 = vsel %vm1235, %v8259, 0
  %v8301 = vsel %vm1235, %v8260, 0
  %v8304 = vsel %vm1235, %v8261, 0
  %v8307 = vsel %vm1235, %v8262, 0
  %v8310 = vsel %vm1235, %v8263, 0
  %8312 = vmatprep.subr.bf16.mxu0 0
  %8313 = vmatpush1.bf16.msra.mxu0 %v8280
  %8314 = vmatprep.subr.bf16.mxu0 0
  %8315 = vmatpush1.bf16.msra.mxu0 %v8281
  %8316 = vmatprep.subr.bf16.mxu0 0
  %8317 = vmatpush1.bf16.msra.mxu0 %v8282
  %8318 = vmatprep.subr.bf16.mxu0 0
  %8319 = vmatpush1.bf16.msra.mxu0 %v8283
  %8320 = vmatprep.subr.bf16.mxu0 0
  %8321 = vmatpush1.bf16.msra.mxu0 0
  %8322 = vmatprep.subr.bf16.mxu0 0
  %8323 = vmatpush1.bf16.msra.mxu0 0
  %8324 = vmatprep.subr.bf16.mxu0 0
  %8325 = vmatpush1.bf16.msra.mxu0 0
  %8326 = vmatprep.subr.bf16.mxu0 0
  %8327 = vmatpush1.bf16.msra.mxu0 0
  %8328 = vmatprep.subr.bf16.mxu0 0
  %8329 = vmatpush1.bf16.msra.mxu0 0
  %8330 = vmatprep.subr.bf16.mxu0 0
  %8331 = vmatpush1.bf16.msra.mxu0 0
  %8332 = vmatprep.subr.bf16.mxu0 0
  %8333 = vmatpush1.bf16.msra.mxu0 0
  %8334 = vmatprep.subr.bf16.mxu0 0
  %8335 = vmatpush1.bf16.msra.mxu0 0
  %8336 = vmatprep.subr.bf16.mxu0 0
  %8337 = vmatpush1.bf16.msra.mxu0 0
  %8338 = vmatprep.subr.bf16.mxu0 0
  %8339 = vmatpush1.bf16.msra.mxu0 0
  %8340 = vmatprep.subr.bf16.mxu0 0
  %8341 = vmatpush1.bf16.msra.mxu0 0
  %8342 = vmatprep.subr.bf16.mxu0 0
  %8343 = vmatpush1.bf16.msra.mxu0 0
  %8344 = vmatprep.mubr.bf16.mxu0 0
  %8345 = vmatmul.mubr.bf16.gmra.mrb[0].mxu0 %v8289
  %v8346 = vpop.f32.mrb[0].mxu0
  %v8347 = vadd.f32 0.0, %v8346
  %v8348 = vpop.f32.mrb[0].mxu0
  %v8349 = vpop.f32.mrb[0].mxu0
  %v8350 = vadd.f32 0.0, %v8349
  %v8351 = vpop.f32.mrb[0].mxu0
  %8352 = vmatprep.mubr.bf16.mxu0 0
  %8353 = vmatmul.mubr.bf16.gmra.mrb[0].mxu0 %v8292
  %v8354 = vpop.f32.mrb[0].mxu0
  %v8355 = vadd.f32 0.0, %v8354
  %v8356 = vpop.f32.mrb[0].mxu0
  %v8357 = vpop.f32.mrb[0].mxu0
  %v8358 = vadd.f32 0.0, %v8357
  %v8359 = vpop.f32.mrb[0].mxu0
  %8360 = vmatprep.mubr.bf16.mxu0 0
  %8361 = vmatmul.mubr.bf16.gmra.mrb[0].mxu0 %v8295
  %v8362 = vpop.f32.mrb[0].mxu0
  %v8363 = vadd.f32 0.0, %v8362
  %v8364 = vpop.f32.mrb[0].mxu0
  %v8365 = vpop.f32.mrb[0].mxu0
  %v8366 = vadd.f32 0.0, %v8365
  %v8367 = vpop.f32.mrb[0].mxu0
  %8368 = vmatprep.mubr.bf16.mxu0 0
  %8369 = vmatmul.mubr.bf16.gmra.mrb[0].mxu0 %v8298
  %v8370 = vpop.f32.mrb[0].mxu0
  %v8371 = vadd.f32 0.0, %v8370
  %v8372 = vpop.f32.mrb[0].mxu0
  %v8373 = vpop.f32.mrb[0].mxu0
  %v8374 = vadd.f32 0.0, %v8373
  %v8375 = vpop.f32.mrb[0].mxu0
  %8376 = vmatprep.mubr.bf16.mxu0 0
  %8377 = vmatmul.mubr.bf16.gmra.mrb[0].mxu0 %v8301
  %v8378 = vpop.f32.mrb[0].mxu0
  %v8379 = vadd.f32 0.0, %v8378
  %v8380 = vpop.f32.mrb[0].mxu0
  %v8381 = vpop.f32.mrb[0].mxu0
  %v8382 = vadd.f32 0.0, %v8381
  %v8383 = vpop.f32.mrb[0].mxu0
  %8384 = vmatprep.mubr.bf16.mxu0 0
  %8385 = vmatmul.mubr.bf16.gmra.mrb[0].mxu0 %v8304
  %v8386 = vpop.f32.mrb[0].mxu0
  %v8387 = vadd.f32 0.0, %v8386
  %v8388 = vpop.f32.mrb[0].mxu0
  %v8389 = vpop.f32.mrb[0].mxu0
  %v8390 = vadd.f32 0.0, %v8389
  %v8391 = vpop.f32.mrb[0].mxu0
  %8392 = vmatprep.mubr.bf16.mxu0 0
  %8393 = vmatmul.mubr.bf16.gmra.mrb[0].mxu0 %v8307
  %v8394 = vpop.f32.mrb[0].mxu0
  %v8395 = vadd.f32 0.0, %v8394
  %v8396 = vpop.f32.mrb[0].mxu0
  %v8397 = vpop.f32.mrb[0].mxu0
  %v8398 = vadd.f32 0.0, %v8397
  %v8399 = vpop.f32.mrb[0].mxu0
  %8400 = vmatprep.mubr.bf16.mxu0 0
  %8401 = vmatmul.mubr.bf16.gmra.mrb[0].mxu0 %v8310
  %v8402 = vpop.f32.mrb[0].mxu0
  %v8403 = vadd.f32 0.0, %v8402
  %v8404 = vpop.f32.mrb[0].mxu0
  %v8405 = vpop.f32.mrb[0].mxu0
  %v8406 = vadd.f32 0.0, %v8405
  %v8407 = vpop.f32.mrb[0].mxu0
  %8408 = vdwg.mxu0
  %s8409 = scalar_lea.vmem %s3, 12
  %v8410 = vld [vmem:[%s8409] sm:$0x1]
  %v8411 = vld [vmem:[%s8409 + $0x1] sm:$0x1]
  %v8412 = vld [vmem:[%s8409 + $0x2] sm:$0x1]
  %v8413 = vsel %vm1235, %v8347, 0.0
  %v8414 = vsel %vm1235, %v8350, 0.0
  %v8415 = vadd.f32 %v8413, %v8414
  %v8416 = vsel %vm1235, %v8355, 0.0
  %v8417 = vadd.f32 %v8415, %v8416
  %v8418 = vsel %vm1235, %v8358, 0.0
  %v8419 = vadd.f32 %v8417, %v8418
  %v8420 = vsel %vm1235, %v8363, 0.0
  %v8421 = vadd.f32 %v8419, %v8420
  %v8422 = vsel %vm1235, %v8366, 0.0
  %v8423 = vadd.f32 %v8421, %v8422
  %v8424 = vsel %vm1235, %v8371, 0.0
  %v8425 = vadd.f32 %v8423, %v8424
  %v8426 = vsel %vm1235, %v8374, 0.0
  %v8427 = vadd.f32 %v8425, %v8426
  %v8428 = vrot.slane %v8427, 4
  %v8429 = vadd.f32 %v8427, %v8428
  %v8430 = vrot.slane %v8429, 2
  %v8431 = vadd.f32 %v8429, %v8430
  %v8432 = vrot.slane %v8431, 1
  %v8433 = vadd.f32 %v8431, %v8432
  %v8434 = vsel %vm1235, %v8379, 0.0
  %v8435 = vsel %vm1235, %v8382, 0.0
  %v8436 = vadd.f32 %v8434, %v8435
  %v8437 = vsel %vm1235, %v8387, 0.0
  %v8438 = vadd.f32 %v8436, %v8437
  %v8439 = vsel %vm1235, %v8390, 0.0
  %v8440 = vadd.f32 %v8438, %v8439
  %v8441 = vsel %vm1235, %v8395, 0.0
  %v8442 = vadd.f32 %v8440, %v8441
  %v8443 = vsel %vm1235, %v8398, 0.0
  %v8444 = vadd.f32 %v8442, %v8443
  %v8445 = vsel %vm1235, %v8403, 0.0
  %v8446 = vadd.f32 %v8444, %v8445
  %v8447 = vsel %vm1235, %v8406, 0.0
  %v8448 = vadd.f32 %v8446, %v8447
  %v8449 = vrot.slane %v8448, 4
  %v8450 = vadd.f32 %v8448, %v8449
  %v8451 = vrot.slane %v8450, 2
  %v8452 = vadd.f32 %v8450, %v8451
  %v8453 = vrot.slane %v8452, 1
  %v8454 = vadd.f32 %v8452, %v8453
  %v8455 = vrcp.pop 64.0
  %v8456 = vmul.f32 %v8433, %v8455
  %v8457 = vmul.f32 %v8454, %v8455
  %v8458 = vmul.f32 %v8347, %v8347
  %v8459 = vmul.f32 %v8350, %v8350
  %v8460 = vmul.f32 %v8355, %v8355
  %v8461 = vmul.f32 %v8358, %v8358
  %v8462 = vmul.f32 %v8363, %v8363
  %v8463 = vmul.f32 %v8366, %v8366
  %v8464 = vmul.f32 %v8371, %v8371
  %v8465 = vmul.f32 %v8374, %v8374
  %v8466 = vmul.f32 %v8379, %v8379
  %v8467 = vmul.f32 %v8382, %v8382
  %v8468 = vmul.f32 %v8387, %v8387
  %v8469 = vmul.f32 %v8390, %v8390
  %v8470 = vmul.f32 %v8395, %v8395
  %v8471 = vmul.f32 %v8398, %v8398
  %v8472 = vmul.f32 %v8403, %v8403
  %v8473 = vmul.f32 %v8406, %v8406
  %v8474 = vsel %vm1235, %v8458, 0.0
  %v8475 = vsel %vm1235, %v8459, 0.0
  %v8476 = vadd.f32 %v8474, %v8475
  %v8477 = vsel %vm1235, %v8460, 0.0
  %v8478 = vadd.f32 %v8476, %v8477
  %v8479 = vsel %vm1235, %v8461, 0.0
  %v8480 = vadd.f32 %v8478, %v8479
  %v8481 = vsel %vm1235, %v8462, 0.0
  %v8482 = vadd.f32 %v8480, %v8481
  %v8483 = vsel %vm1235, %v8463, 0.0
  %v8484 = vadd.f32 %v8482, %v8483
  %v8485 = vsel %vm1235, %v8464, 0.0
  %v8486 = vadd.f32 %v8484, %v8485
  %v8487 = vsel %vm1235, %v8465, 0.0
  %v8488 = vadd.f32 %v8486, %v8487
  %v8489 = vrot.slane %v8488, 4
  %v8490 = vadd.f32 %v8488, %v8489
  %v8491 = vrot.slane %v8490, 2
  %v8492 = vadd.f32 %v8490, %v8491
  %v8493 = vrot.slane %v8492, 1
  %v8494 = vadd.f32 %v8492, %v8493
  %v8495 = vsel %vm1235, %v8466, 0.0
  %v8496 = vsel %vm1235, %v8467, 0.0
  %v8497 = vadd.f32 %v8495, %v8496
  %v8498 = vsel %vm1235, %v8468, 0.0
  %v8499 = vadd.f32 %v8497, %v8498
  %v8500 = vsel %vm1235, %v8469, 0.0
  %v8501 = vadd.f32 %v8499, %v8500
  %v8502 = vsel %vm1235, %v8470, 0.0
  %v8503 = vadd.f32 %v8501, %v8502
  %v8504 = vsel %vm1235, %v8471, 0.0
  %v8505 = vadd.f32 %v8503, %v8504
  %v8506 = vsel %vm1235, %v8472, 0.0
  %v8507 = vadd.f32 %v8505, %v8506
  %v8508 = vsel %vm1235, %v8473, 0.0
  %v8509 = vadd.f32 %v8507, %v8508
  %v8510 = vrot.slane %v8509, 4
  %v8511 = vadd.f32 %v8509, %v8510
  %v8512 = vrot.slane %v8511, 2
  %v8513 = vadd.f32 %v8511, %v8512
  %v8514 = vrot.slane %v8513, 1
  %v8515 = vadd.f32 %v8513, %v8514
  %v8516 = vmul.f32 %v8494, %v8455
  %v8517 = vmul.f32 %v8515, %v8455
  %v8518 = vlaneseq
  %v8519 = vshrl.u32 %v8518, 7
  %v8520 = vsub.s32 0, %v8519
  %v8521 = vrot.slane %v8410, %v8520
  %v8522 = vadd.f32 %v8456, %v8521
  %v8523 = vadd.f32 %v8457, %v8521
  %v8524 = vmul.f32 %v8410, 2.0
  %v8525 = vlaneseq
  %v8526 = vshrl.u32 %v8525, 7
  %v8527 = vsub.s32 0, %v8526
  %v8528 = vrot.slane %v8524, %v8527
  %v8531 = vsel %vm1914, %v8457, %v8456
  %v8533 = vmul.f32 %v8528, %v8531
  %v8535 = vrot.slane %v8533, 1
  %v8538 = vadd.f32 %v8516, %v8533
  %v8539 = vadd.f32 %v8517, %v8535
  %v8540 = vmul.f32 %v8410, %v8410
  %v8541 = vlaneseq
  %v8542 = vshrl.u32 %v8541, 7
  %v8543 = vsub.s32 0, %v8542
  %v8544 = vrot.slane %v8540, %v8543
  %v8545 = vadd.f32 %v8538, %v8544
  %v8546 = vadd.f32 %v8539, %v8544
  %v8549 = vrot.slane %v8523, 7
  %v8550 = vsel %vm1914, %v8549, %v8522
  %v8551 = vsel %vm1235, %v8550, 0
  %8553 = vmatprep.subr.mxu0 0.0
  %8554 = vmatpush1.msra.mxu0 %v30
  %8555 = vmatprep.subr.mxu0 0.0
  %8556 = vmatpush1.msra.mxu0 %v31
  %8557 = vmatprep.subr.mxu0 0.0
  %8558 = vmatpush1.msra.mxu0 %v32
  %8559 = vmatprep.subr.mxu0 0.0
  %8560 = vmatpush1.msra.mxu0 %v33
  %8561 = vmatprep.subr.mxu0 0.0
  %8562 = vmatpush1.msra.mxu0 %v34
  %8563 = vmatprep.subr.mxu0 0.0
  %8564 = vmatpush1.msra.mxu0 %v35
  %8565 = vmatprep.subr.mxu0 0.0
  %8566 = vmatpush1.msra.mxu0 %v36
  %8567 = vmatprep.subr.mxu0 0.0
  %8568 = vmatpush1.msra.mxu0 %v37
  %8569 = vmatprep.subr.mxu0 0.0
  %8570 = vmatpush1.msra.mxu0 0.0
  %8571 = vmatprep.subr.mxu0 0.0
  %8572 = vmatpush1.msra.mxu0 0.0
  %8573 = vmatprep.subr.mxu0 0.0
  %8574 = vmatpush1.msra.mxu0 0.0
  %8575 = vmatprep.subr.mxu0 0.0
  %8576 = vmatpush1.msra.mxu0 0.0
  %8577 = vmatprep.subr.mxu0 0.0
  %8578 = vmatpush1.msra.mxu0 0.0
  %8579 = vmatprep.subr.mxu0 0.0
  %8580 = vmatpush1.msra.mxu0 0.0
  %8581 = vmatprep.subr.mxu0 0.0
  %8582 = vmatpush1.msra.mxu0 0.0
  %8583 = vmatprep.subr.mxu0 0.0
  %8584 = vmatpush1.msra.mxu0 0.0
  %8585 = vmatprep.subr.mxu0 0.0
  %8586 = vmatpush1.msra.mxu0 0.0
  %8587 = vmatprep.subr.mxu0 0.0
  %8588 = vmatpush1.msra.mxu0 0.0
  %8589 = vmatprep.subr.mxu0 0.0
  %8590 = vmatpush1.msra.mxu0 0.0
  %8591 = vmatprep.subr.mxu0 0.0
  %8592 = vmatpush1.msra.mxu0 0.0
  %8593 = vmatprep.subr.mxu0 0.0
  %8594 = vmatpush1.msra.mxu0 0.0
  %8595 = vmatprep.subr.mxu0 0.0
  %8596 = vmatpush1.msra.mxu0 0.0
  %8597 = vmatprep.subr.mxu0 0.0
  %8598 = vmatpush1.msra.mxu0 0.0
  %8599 = vmatprep.subr.mxu0 0.0
  %8600 = vmatpush1.msra.mxu0 0.0
  %8601 = vmatprep.subr.mxu0 0.0
  %8602 = vmatpush1.msra.mxu0 0.0
  %8603 = vmatprep.subr.mxu0 0.0
  %8604 = vmatpush1.msra.mxu0 0.0
  %8605 = vmatprep.subr.mxu0 0.0
  %8606 = vmatpush1.msra.mxu0 0.0
  %8607 = vmatprep.subr.mxu0 0.0
  %8608 = vmatpush1.msra.mxu0 0.0
  %8609 = vmatprep.subr.mxu0 0.0
  %8610 = vmatpush1.msra.mxu0 0.0
  %8611 = vmatprep.subr.mxu0 0.0
  %8612 = vmatpush1.msra.mxu0 0.0
  %8613 = vmatprep.subr.mxu0 0.0
  %8614 = vmatpush1.msra.mxu0 0.0
  %8615 = vmatprep.subr.mxu0 0.0
  %8616 = vmatpush1.msra.mxu0 0.0
  %8617 = vmatprep.mubr.f32.mxu0 0.0
  %8618 = vmatmul.mubr.f32.gmra.mrb[0].mxu0 %v8551
  %v8619 = vpop.f32.mrb[0].mxu0
  %v8620 = vadd.f32 0.0, %v8619
  %v8621 = vpop.f32.mrb[0].mxu0
  %8622 = vdwg.mxu0
  %v8625 = vrot.slane %v8546, 7
  %v8626 = vsel %vm1914, %v8625, %v8545
  %v8627 = vsel %vm1235, %v8626, 0
  %8629 = vmatprep.subr.mxu0 0.0
  %8630 = vmatpush1.msra.mxu0 %v30
  %8631 = vmatprep.subr.mxu0 0.0
  %8632 = vmatpush1.msra.mxu0 %v31
  %8633 = vmatprep.subr.mxu0 0.0
  %8634 = vmatpush1.msra.mxu0 %v32
  %8635 = vmatprep.subr.mxu0 0.0
  %8636 = vmatpush1.msra.mxu0 %v33
  %8637 = vmatprep.subr.mxu0 0.0
  %8638 = vmatpush1.msra.mxu0 %v34
  %8639 = vmatprep.subr.mxu0 0.0
  %8640 = vmatpush1.msra.mxu0 %v35
  %8641 = vmatprep.subr.mxu0 0.0
  %8642 = vmatpush1.msra.mxu0 %v36
  %8643 = vmatprep.subr.mxu0 0.0
  %8644 = vmatpush1.msra.mxu0 %v37
  %8645 = vmatprep.subr.mxu0 0.0
  %8646 = vmatpush1.msra.mxu0 0.0
  %8647 = vmatprep.subr.mxu0 0.0
  %8648 = vmatpush1.msra.mxu0 0.0
  %8649 = vmatprep.subr.mxu0 0.0
  %8650 = vmatpush1.msra.mxu0 0.0
  %8651 = vmatprep.subr.mxu0 0.0
  %8652 = vmatpush1.msra.mxu0 0.0
  %8653 = vmatprep.subr.mxu0 0.0
  %8654 = vmatpush1.msra.mxu0 0.0
  %8655 = vmatprep.subr.mxu0 0.0
  %8656 = vmatpush1.msra.mxu0 0.0
  %8657 = vmatprep.subr.mxu0 0.0
  %8658 = vmatpush1.msra.mxu0 0.0
  %8659 = vmatprep.subr.mxu0 0.0
  %8660 = vmatpush1.msra.mxu0 0.0
  %8661 = vmatprep.subr.mxu0 0.0
  %8662 = vmatpush1.msra.mxu0 0.0
  %8663 = vmatprep.subr.mxu0 0.0
  %8664 = vmatpush1.msra.mxu0 0.0
  %8665 = vmatprep.subr.mxu0 0.0
  %8666 = vmatpush1.msra.mxu0 0.0
  %8667 = vmatprep.subr.mxu0 0.0
  %8668 = vmatpush1.msra.mxu0 0.0
  %8669 = vmatprep.subr.mxu0 0.0
  %8670 = vmatpush1.msra.mxu0 0.0
  %8671 = vmatprep.subr.mxu0 0.0
  %8672 = vmatpush1.msra.mxu0 0.0
  %8673 = vmatprep.subr.mxu0 0.0
  %8674 = vmatpush1.msra.mxu0 0.0
  %8675 = vmatprep.subr.mxu0 0.0
  %8676 = vmatpush1.msra.mxu0 0.0
  %8677 = vmatprep.subr.mxu0 0.0
  %8678 = vmatpush1.msra.mxu0 0.0
  %8679 = vmatprep.subr.mxu0 0.0
  %8680 = vmatpush1.msra.mxu0 0.0
  %8681 = vmatprep.subr.mxu0 0.0
  %8682 = vmatpush1.msra.mxu0 0.0
  %8683 = vmatprep.subr.mxu0 0.0
  %8684 = vmatpush1.msra.mxu0 0.0
  %8685 = vmatprep.subr.mxu0 0.0
  %8686 = vmatpush1.msra.mxu0 0.0
  %8687 = vmatprep.subr.mxu0 0.0
  %8688 = vmatpush1.msra.mxu0 0.0
  %8689 = vmatprep.subr.mxu0 0.0
  %8690 = vmatpush1.msra.mxu0 0.0
  %8691 = vmatprep.subr.mxu0 0.0
  %8692 = vmatpush1.msra.mxu0 0.0
  %8693 = vmatprep.mubr.f32.mxu0 0.0
  %8694 = vmatmul.mubr.f32.gmra.mrb[0].mxu0 %v8627
  %v8695 = vpop.f32.mrb[0].mxu0
  %v8696 = vadd.f32 0.0, %v8695
  %v8697 = vpop.f32.mrb[0].mxu0
  %8698 = vdwg.mxu0
  %v8699 = vmul.f32 %v8620, %v8620
  %v8700 = vsub.f32 %v8696, %v8699
  %v8701 = vmax.f32 %v8700, 0.0
  %v8702 = vadd.f32 %v8701, 1e-05
  %v8703 = vrsqrt.pop %v8702
  %v8704 = vlaneseq
  %v8705 = vshrl.u32 %v8704, 7
  %v8706 = vsub.s32 0, %v8705
  %v8707 = vrot.slane %v8411, %v8706
  %v8708 = vmul.f32 %v8703, %v8707
  %v8709 = vsub.f32 %v8521, %v8620
  %v8710 = vmul.f32 %v8709, %v8708
  %v8711 = vlaneseq
  %v8712 = vshrl.u32 %v8711, 7
  %v8713 = vsub.s32 0, %v8712
  %v8714 = vrot.slane %v8412, %v8713
  %v8715 = vadd.f32 %v8710, %v8714
  %v8718 = vunpack.c.l.s4 1966171168
  %v8719 = vunpack.c.0.s8 %v8718
  %v8720 = vlaneseq
  %v8721 = vshrl.u32 %v8720, 7
  %v8722 = vsub.s32 %v8719, %v8721
  %v8723 = vrot.slane %v8708, %v8722
  %v8724 = vcombine.high %v8723, %v8723
  %v8726 = vunpack.c.l.s4 1966171168
  %v8727 = vunpack.c.0.s8 %v8726
  %v8728 = vlaneseq
  %v8729 = vshrl.u32 %v8728, 7
  %v8730 = vsub.s32 %v8727, %v8729
  %v8731 = vrot.slane %v8723, %v8730
  %v8733 = vunpack.c.l.s4 1966171168
  %v8734 = vunpack.c.0.s8 %v8733
  %v8735 = vlaneseq
  %v8736 = vshrl.u32 %v8735, 7
  %v8737 = vsub.s32 %v8734, %v8736
  %v8738 = vrot.slane %v8724, %v8737
  %v8739 = vlaneseq
  %v8740 = vshrl.u32 %v8739, 7
  %v8741 = vsub.s32 0, %v8740
  %v8742 = vrot.slane %v8731, %v8741
  %v8743 = vlaneseq
  %v8744 = vshrl.u32 %v8743, 7
  %v8745 = vsub.s32 0, %v8744
  %v8746 = vrot.slane %v8738, %v8745
  %v8749 = vmul.f32 %v8347, %v8742
  %v8750 = vmul.f32 %v8350, %v8742
  %v8751 = vmul.f32 %v8355, %v8742
  %v8752 = vmul.f32 %v8358, %v8742
  %v8753 = vmul.f32 %v8363, %v8742
  %v8754 = vmul.f32 %v8366, %v8742
  %v8755 = vmul.f32 %v8371, %v8742
  %v8756 = vmul.f32 %v8374, %v8742
  %v8757 = vmul.f32 %v8379, %v8746
  %v8758 = vmul.f32 %v8382, %v8746
  %v8759 = vmul.f32 %v8387, %v8746
  %v8760 = vmul.f32 %v8390, %v8746
  %v8761 = vmul.f32 %v8395, %v8746
  %v8762 = vmul.f32 %v8398, %v8746
  %v8763 = vmul.f32 %v8403, %v8746
  %v8764 = vmul.f32 %v8406, %v8746
  %v8767 = vunpack.c.l.s4 1966171168
  %v8768 = vunpack.c.0.s8 %v8767
  %v8769 = vlaneseq
  %v8770 = vshrl.u32 %v8769, 7
  %v8771 = vsub.s32 %v8768, %v8770
  %v8772 = vrot.slane %v8715, %v8771
  %v8773 = vcombine.high %v8772, %v8772
  %v8775 = vunpack.c.l.s4 1966171168
  %v8776 = vunpack.c.0.s8 %v8775
  %v8777 = vlaneseq
  %v8778 = vshrl.u32 %v8777, 7
  %v8779 = vsub.s32 %v8776, %v8778
  %v8780 = vrot.slane %v8772, %v8779
  %v8782 = vunpack.c.l.s4 1966171168
  %v8783 = vunpack.c.0.s8 %v8782
  %v8784 = vlaneseq
  %v8785 = vshrl.u32 %v8784, 7
  %v8786 = vsub.s32 %v8783, %v8785
  %v8787 = vrot.slane %v8773, %v8786
  %v8788 = vlaneseq
  %v8789 = vshrl.u32 %v8788, 7
  %v8790 = vsub.s32 0, %v8789
  %v8791 = vrot.slane %v8780, %v8790
  %v8792 = vlaneseq
  %v8793 = vshrl.u32 %v8792, 7
  %v8794 = vsub.s32 0, %v8793
  %v8795 = vrot.slane %v8787, %v8794
  %v8798 = vadd.f32 %v8749, %v8791
  %v8799 = vadd.f32 %v8750, %v8791
  %v8800 = vadd.f32 %v8751, %v8791
  %v8801 = vadd.f32 %v8752, %v8791
  %v8802 = vadd.f32 %v8753, %v8791
  %v8803 = vadd.f32 %v8754, %v8791
  %v8804 = vadd.f32 %v8755, %v8791
  %v8805 = vadd.f32 %v8756, %v8791
  %v8806 = vadd.f32 %v8757, %v8795
  %v8807 = vadd.f32 %v8758, %v8795
  %v8808 = vadd.f32 %v8759, %v8795
  %v8809 = vadd.f32 %v8760, %v8795
  %v8810 = vadd.f32 %v8761, %v8795
  %v8811 = vadd.f32 %v8762, %v8795
  %v8812 = vadd.f32 %v8763, %v8795
  %v8813 = vadd.f32 %v8764, %v8795
  %v8814 = vmax.f32 %v8798, 0.0
  %v8815 = vmax.f32 %v8799, 0.0
  %v8816 = vmax.f32 %v8800, 0.0
  %v8817 = vmax.f32 %v8801, 0.0
  %v8818 = vmax.f32 %v8802, 0.0
  %v8819 = vmax.f32 %v8803, 0.0
  %v8820 = vmax.f32 %v8804, 0.0
  %v8821 = vmax.f32 %v8805, 0.0
  %v8822 = vmax.f32 %v8806, 0.0
  %v8823 = vmax.f32 %v8807, 0.0
  %v8824 = vmax.f32 %v8808, 0.0
  %v8825 = vmax.f32 %v8809, 0.0
  %v8826 = vmax.f32 %v8810, 0.0
  %v8827 = vmax.f32 %v8811, 0.0
  %v8828 = vmax.f32 %v8812, 0.0
  %v8829 = vmax.f32 %v8813, 0.0
  %v8830 = vpack.c.bf16 %v8815, %v8814
  %v8831 = vpack.c.bf16 %v8817, %v8816
  %v8832 = vpack.c.bf16 %v8819, %v8818
  %v8833 = vpack.c.bf16 %v8821, %v8820
  %v8834 = vpack.c.bf16 %v8823, %v8822
  %v8835 = vpack.c.bf16 %v8825, %v8824
  %v8836 = vpack.c.bf16 %v8827, %v8826
  %v8837 = vpack.c.bf16 %v8829, %v8828
  %s8838 = scalar_lea.vmem %s2, 96
  %v8839 = vld [vmem:[%s8838] sm:$0xf]
  %v8840 = vld [vmem:[%s8838 + $0x4] sm:$0xf]
  %v8841 = vld [vmem:[%s8838 + $0x8] sm:$0xf]
  %v8842 = vld [vmem:[%s8838 + $0xc] sm:$0xf]
  %v8843 = vld [vmem:[%s8838 + $0x10] sm:$0xf]
  %v8844 = vld [vmem:[%s8838 + $0x14] sm:$0xf]
  %v8845 = vld [vmem:[%s8838 + $0x18] sm:$0xf]
  %v8846 = vld [vmem:[%s8838 + $0x1c] sm:$0xf]
  %v8855 = vunpack.c.l.b16 %v8839
  %v8856 = vunpack.c.l.b16 %v8840
  %v8857 = vunpack.c.l.b16 %v8841
  %v8858 = vunpack.c.l.b16 %v8842
  %v8859 = vunpack.c.l.b16 %v8843
  %v8860 = vunpack.c.l.b16 %v8844
  %v8861 = vunpack.c.l.b16 %v8845
  %v8862 = vunpack.c.l.b16 %v8846
  %v8863 = vpack.c.b16 %v8856, %v8855
  %v8864 = vpack.c.b16 %v8858, %v8857
  %v8865 = vpack.c.b16 %v8860, %v8859
  %v8866 = vpack.c.b16 %v8862, %v8861
  %v8872 = vsel %vm1235, %v8830, 0
  %v8875 = vsel %vm1235, %v8831, 0
  %v8878 = vsel %vm1235, %v8832, 0
  %v8881 = vsel %vm1235, %v8833, 0
  %v8884 = vsel %vm1235, %v8834, 0
  %v8887 = vsel %vm1235, %v8835, 0
  %v8890 = vsel %vm1235, %v8836, 0
  %v8893 = vsel %vm1235, %v8837, 0
  %8895 = vmatprep.subr.bf16.mxu0 0
  %8896 = vmatpush1.bf16.msra.mxu0 %v8863
  %8897 = vmatprep.subr.bf16.mxu0 0
  %8898 = vmatpush1.bf16.msra.mxu0 %v8864
  %8899 = vmatprep.subr.bf16.mxu0 0
  %8900 = vmatpush1.bf16.msra.mxu0 %v8865
  %8901 = vmatprep.subr.bf16.mxu0 0
  %8902 = vmatpush1.bf16.msra.mxu0 %v8866
  %8903 = vmatprep.subr.bf16.mxu0 0
  %8904 = vmatpush1.bf16.msra.mxu0 0
  %8905 = vmatprep.subr.bf16.mxu0 0
  %8906 = vmatpush1.bf16.msra.mxu0 0
  %8907 = vmatprep.subr.bf16.mxu0 0
  %8908 = vmatpush1.bf16.msra.mxu0 0
  %8909 = vmatprep.subr.bf16.mxu0 0
  %8910 = vmatpush1.bf16.msra.mxu0 0
  %8911 = vmatprep.subr.bf16.mxu0 0
  %8912 = vmatpush1.bf16.msra.mxu0 0
  %8913 = vmatprep.subr.bf16.mxu0 0
  %8914 = vmatpush1.bf16.msra.mxu0 0
  %8915 = vmatprep.subr.bf16.mxu0 0
  %8916 = vmatpush1.bf16.msra.mxu0 0
  %8917 = vmatprep.subr.bf16.mxu0 0
  %8918 = vmatpush1.bf16.msra.mxu0 0
  %8919 = vmatprep.subr.bf16.mxu0 0
  %8920 = vmatpush1.bf16.msra.mxu0 0
  %8921 = vmatprep.subr.bf16.mxu0 0
  %8922 = vmatpush1.bf16.msra.mxu0 0
  %8923 = vmatprep.subr.bf16.mxu0 0
  %8924 = vmatpush1.bf16.msra.mxu0 0
  %8925 = vmatprep.subr.bf16.mxu0 0
  %8926 = vmatpush1.bf16.msra.mxu0 0
  %8927 = vmatprep.mubr.bf16.mxu0 0
  %8928 = vmatmul.mubr.bf16.gmra.mrb[0].mxu0 %v8872
  %v8929 = vpop.f32.mrb[0].mxu0
  %v8930 = vadd.f32 0.0, %v8929
  %v8931 = vpop.f32.mrb[0].mxu0
  %v8932 = vpop.f32.mrb[0].mxu0
  %v8933 = vadd.f32 0.0, %v8932
  %v8934 = vpop.f32.mrb[0].mxu0
  %8935 = vmatprep.mubr.bf16.mxu0 0
  %8936 = vmatmul.mubr.bf16.gmra.mrb[0].mxu0 %v8875
  %v8937 = vpop.f32.mrb[0].mxu0
  %v8938 = vadd.f32 0.0, %v8937
  %v8939 = vpop.f32.mrb[0].mxu0
  %v8940 = vpop.f32.mrb[0].mxu0
  %v8941 = vadd.f32 0.0, %v8940
  %v8942 = vpop.f32.mrb[0].mxu0
  %8943 = vmatprep.mubr.bf16.mxu0 0
  %8944 = vmatmul.mubr.bf16.gmra.mrb[0].mxu0 %v8878
  %v8945 = vpop.f32.mrb[0].mxu0
  %v8946 = vadd.f32 0.0, %v8945
  %v8947 = vpop.f32.mrb[0].mxu0
  %v8948 = vpop.f32.mrb[0].mxu0
  %v8949 = vadd.f32 0.0, %v8948
  %v8950 = vpop.f32.mrb[0].mxu0
  %8951 = vmatprep.mubr.bf16.mxu0 0
  %8952 = vmatmul.mubr.bf16.gmra.mrb[0].mxu0 %v8881
  %v8953 = vpop.f32.mrb[0].mxu0
  %v8954 = vadd.f32 0.0, %v8953
  %v8955 = vpop.f32.mrb[0].mxu0
  %v8956 = vpop.f32.mrb[0].mxu0
  %v8957 = vadd.f32 0.0, %v8956
  %v8958 = vpop.f32.mrb[0].mxu0
  %8959 = vmatprep.mubr.bf16.mxu0 0
  %8960 = vmatmul.mubr.bf16.gmra.mrb[0].mxu0 %v8884
  %v8961 = vpop.f32.mrb[0].mxu0
  %v8962 = vadd.f32 0.0, %v8961
  %v8963 = vpop.f32.mrb[0].mxu0
  %v8964 = vpop.f32.mrb[0].mxu0
  %v8965 = vadd.f32 0.0, %v8964
  %v8966 = vpop.f32.mrb[0].mxu0
  %8967 = vmatprep.mubr.bf16.mxu0 0
  %8968 = vmatmul.mubr.bf16.gmra.mrb[0].mxu0 %v8887
  %v8969 = vpop.f32.mrb[0].mxu0
  %v8970 = vadd.f32 0.0, %v8969
  %v8971 = vpop.f32.mrb[0].mxu0
  %v8972 = vpop.f32.mrb[0].mxu0
  %v8973 = vadd.f32 0.0, %v8972
  %v8974 = vpop.f32.mrb[0].mxu0
  %8975 = vmatprep.mubr.bf16.mxu0 0
  %8976 = vmatmul.mubr.bf16.gmra.mrb[0].mxu0 %v8890
  %v8977 = vpop.f32.mrb[0].mxu0
  %v8978 = vadd.f32 0.0, %v8977
  %v8979 = vpop.f32.mrb[0].mxu0
  %v8980 = vpop.f32.mrb[0].mxu0
  %v8981 = vadd.f32 0.0, %v8980
  %v8982 = vpop.f32.mrb[0].mxu0
  %8983 = vmatprep.mubr.bf16.mxu0 0
  %8984 = vmatmul.mubr.bf16.gmra.mrb[0].mxu0 %v8893
  %v8985 = vpop.f32.mrb[0].mxu0
  %v8986 = vadd.f32 0.0, %v8985
  %v8987 = vpop.f32.mrb[0].mxu0
  %v8988 = vpop.f32.mrb[0].mxu0
  %v8989 = vadd.f32 0.0, %v8988
  %v8990 = vpop.f32.mrb[0].mxu0
  %8991 = vdwg.mxu0
  %s8992 = scalar_lea.vmem %s3, 16
  %v8993 = vld [vmem:[%s8992] sm:$0x1]
  %v8994 = vld [vmem:[%s8992 + $0x1] sm:$0x1]
  %v8995 = vld [vmem:[%s8992 + $0x2] sm:$0x1]
  %v8996 = vsel %vm1235, %v8930, 0.0
  %v8997 = vsel %vm1235, %v8933, 0.0
  %v8998 = vadd.f32 %v8996, %v8997
  %v8999 = vsel %vm1235, %v8938, 0.0
  %v9000 = vadd.f32 %v8998, %v8999
  %v9001 = vsel %vm1235, %v8941, 0.0
  %v9002 = vadd.f32 %v9000, %v9001
  %v9003 = vsel %vm1235, %v8946, 0.0
  %v9004 = vadd.f32 %v9002, %v9003
  %v9005 = vsel %vm1235, %v8949, 0.0
  %v9006 = vadd.f32 %v9004, %v9005
  %v9007 = vsel %vm1235, %v8954, 0.0
  %v9008 = vadd.f32 %v9006, %v9007
  %v9009 = vsel %vm1235, %v8957, 0.0
  %v9010 = vadd.f32 %v9008, %v9009
  %v9011 = vrot.slane %v9010, 4
  %v9012 = vadd.f32 %v9010, %v9011
  %v9013 = vrot.slane %v9012, 2
  %v9014 = vadd.f32 %v9012, %v9013
  %v9015 = vrot.slane %v9014, 1
  %v9016 = vadd.f32 %v9014, %v9015
  %v9017 = vsel %vm1235, %v8962, 0.0
  %v9018 = vsel %vm1235, %v8965, 0.0
  %v9019 = vadd.f32 %v9017, %v9018
  %v9020 = vsel %vm1235, %v8970, 0.0
  %v9021 = vadd.f32 %v9019, %v9020
  %v9022 = vsel %vm1235, %v8973, 0.0
  %v9023 = vadd.f32 %v9021, %v9022
  %v9024 = vsel %vm1235, %v8978, 0.0
  %v9025 = vadd.f32 %v9023, %v9024
  %v9026 = vsel %vm1235, %v8981, 0.0
  %v9027 = vadd.f32 %v9025, %v9026
  %v9028 = vsel %vm1235, %v8986, 0.0
  %v9029 = vadd.f32 %v9027, %v9028
  %v9030 = vsel %vm1235, %v8989, 0.0
  %v9031 = vadd.f32 %v9029, %v9030
  %v9032 = vrot.slane %v9031, 4
  %v9033 = vadd.f32 %v9031, %v9032
  %v9034 = vrot.slane %v9033, 2
  %v9035 = vadd.f32 %v9033, %v9034
  %v9036 = vrot.slane %v9035, 1
  %v9037 = vadd.f32 %v9035, %v9036
  %v9038 = vmul.f32 %v9016, %v8455
  %v9039 = vmul.f32 %v9037, %v8455
  %v9040 = vmul.f32 %v8930, %v8930
  %v9041 = vmul.f32 %v8933, %v8933
  %v9042 = vmul.f32 %v8938, %v8938
  %v9043 = vmul.f32 %v8941, %v8941
  %v9044 = vmul.f32 %v8946, %v8946
  %v9045 = vmul.f32 %v8949, %v8949
  %v9046 = vmul.f32 %v8954, %v8954
  %v9047 = vmul.f32 %v8957, %v8957
  %v9048 = vmul.f32 %v8962, %v8962
  %v9049 = vmul.f32 %v8965, %v8965
  %v9050 = vmul.f32 %v8970, %v8970
  %v9051 = vmul.f32 %v8973, %v8973
  %v9052 = vmul.f32 %v8978, %v8978
  %v9053 = vmul.f32 %v8981, %v8981
  %v9054 = vmul.f32 %v8986, %v8986
  %v9055 = vmul.f32 %v8989, %v8989
  %v9056 = vsel %vm1235, %v9040, 0.0
  %v9057 = vsel %vm1235, %v9041, 0.0
  %v9058 = vadd.f32 %v9056, %v9057
  %v9059 = vsel %vm1235, %v9042, 0.0
  %v9060 = vadd.f32 %v9058, %v9059
  %v9061 = vsel %vm1235, %v9043, 0.0
  %v9062 = vadd.f32 %v9060, %v9061
  %v9063 = vsel %vm1235, %v9044, 0.0
  %v9064 = vadd.f32 %v9062, %v9063
  %v9065 = vsel %vm1235, %v9045, 0.0
  %v9066 = vadd.f32 %v9064, %v9065
  %v9067 = vsel %vm1235, %v9046, 0.0
  %v9068 = vadd.f32 %v9066, %v9067
  %v9069 = vsel %vm1235, %v9047, 0.0
  %v9070 = vadd.f32 %v9068, %v9069
  %v9071 = vrot.slane %v9070, 4
  %v9072 = vadd.f32 %v9070, %v9071
  %v9073 = vrot.slane %v9072, 2
  %v9074 = vadd.f32 %v9072, %v9073
  %v9075 = vrot.slane %v9074, 1
  %v9076 = vadd.f32 %v9074, %v9075
  %v9077 = vsel %vm1235, %v9048, 0.0
  %v9078 = vsel %vm1235, %v9049, 0.0
  %v9079 = vadd.f32 %v9077, %v9078
  %v9080 = vsel %vm1235, %v9050, 0.0
  %v9081 = vadd.f32 %v9079, %v9080
  %v9082 = vsel %vm1235, %v9051, 0.0
  %v9083 = vadd.f32 %v9081, %v9082
  %v9084 = vsel %vm1235, %v9052, 0.0
  %v9085 = vadd.f32 %v9083, %v9084
  %v9086 = vsel %vm1235, %v9053, 0.0
  %v9087 = vadd.f32 %v9085, %v9086
  %v9088 = vsel %vm1235, %v9054, 0.0
  %v9089 = vadd.f32 %v9087, %v9088
  %v9090 = vsel %vm1235, %v9055, 0.0
  %v9091 = vadd.f32 %v9089, %v9090
  %v9092 = vrot.slane %v9091, 4
  %v9093 = vadd.f32 %v9091, %v9092
  %v9094 = vrot.slane %v9093, 2
  %v9095 = vadd.f32 %v9093, %v9094
  %v9096 = vrot.slane %v9095, 1
  %v9097 = vadd.f32 %v9095, %v9096
  %v9098 = vmul.f32 %v9076, %v8455
  %v9099 = vmul.f32 %v9097, %v8455
  %v9100 = vlaneseq
  %v9101 = vshrl.u32 %v9100, 7
  %v9102 = vsub.s32 0, %v9101
  %v9103 = vrot.slane %v8993, %v9102
  %v9104 = vadd.f32 %v9038, %v9103
  %v9105 = vadd.f32 %v9039, %v9103
  %v9106 = vmul.f32 %v8993, 2.0
  %v9107 = vlaneseq
  %v9108 = vshrl.u32 %v9107, 7
  %v9109 = vsub.s32 0, %v9108
  %v9110 = vrot.slane %v9106, %v9109
  %v9113 = vsel %vm1914, %v9039, %v9038
  %v9115 = vmul.f32 %v9110, %v9113
  %v9117 = vrot.slane %v9115, 1
  %v9120 = vadd.f32 %v9098, %v9115
  %v9121 = vadd.f32 %v9099, %v9117
  %v9122 = vmul.f32 %v8993, %v8993
  %v9123 = vlaneseq
  %v9124 = vshrl.u32 %v9123, 7
  %v9125 = vsub.s32 0, %v9124
  %v9126 = vrot.slane %v9122, %v9125
  %v9127 = vadd.f32 %v9120, %v9126
  %v9128 = vadd.f32 %v9121, %v9126
  %v9131 = vrot.slane %v9105, 7
  %v9132 = vsel %vm1914, %v9131, %v9104
  %v9133 = vsel %vm1235, %v9132, 0
  %9135 = vmatprep.subr.mxu0 0.0
  %9136 = vmatpush1.msra.mxu0 %v21
  %9137 = vmatprep.subr.mxu0 0.0
  %9138 = vmatpush1.msra.mxu0 %v22
  %9139 = vmatprep.subr.mxu0 0.0
  %9140 = vmatpush1.msra.mxu0 %v23
  %9141 = vmatprep.subr.mxu0 0.0
  %9142 = vmatpush1.msra.mxu0 %v24
  %9143 = vmatprep.subr.mxu0 0.0
  %9144 = vmatpush1.msra.mxu0 %v25
  %9145 = vmatprep.subr.mxu0 0.0
  %9146 = vmatpush1.msra.mxu0 %v26
  %9147 = vmatprep.subr.mxu0 0.0
  %9148 = vmatpush1.msra.mxu0 %v27
  %9149 = vmatprep.subr.mxu0 0.0
  %9150 = vmatpush1.msra.mxu0 %v28
  %9151 = vmatprep.subr.mxu0 0.0
  %9152 = vmatpush1.msra.mxu0 0.0
  %9153 = vmatprep.subr.mxu0 0.0
  %9154 = vmatpush1.msra.mxu0 0.0
  %9155 = vmatprep.subr.mxu0 0.0
  %9156 = vmatpush1.msra.mxu0 0.0
  %9157 = vmatprep.subr.mxu0 0.0
  %9158 = vmatpush1.msra.mxu0 0.0
  %9159 = vmatprep.subr.mxu0 0.0
  %9160 = vmatpush1.msra.mxu0 0.0
  %9161 = vmatprep.subr.mxu0 0.0
  %9162 = vmatpush1.msra.mxu0 0.0
  %9163 = vmatprep.subr.mxu0 0.0
  %9164 = vmatpush1.msra.mxu0 0.0
  %9165 = vmatprep.subr.mxu0 0.0
  %9166 = vmatpush1.msra.mxu0 0.0
  %9167 = vmatprep.subr.mxu0 0.0
  %9168 = vmatpush1.msra.mxu0 0.0
  %9169 = vmatprep.subr.mxu0 0.0
  %9170 = vmatpush1.msra.mxu0 0.0
  %9171 = vmatprep.subr.mxu0 0.0
  %9172 = vmatpush1.msra.mxu0 0.0
  %9173 = vmatprep.subr.mxu0 0.0
  %9174 = vmatpush1.msra.mxu0 0.0
  %9175 = vmatprep.subr.mxu0 0.0
  %9176 = vmatpush1.msra.mxu0 0.0
  %9177 = vmatprep.subr.mxu0 0.0
  %9178 = vmatpush1.msra.mxu0 0.0
  %9179 = vmatprep.subr.mxu0 0.0
  %9180 = vmatpush1.msra.mxu0 0.0
  %9181 = vmatprep.subr.mxu0 0.0
  %9182 = vmatpush1.msra.mxu0 0.0
  %9183 = vmatprep.subr.mxu0 0.0
  %9184 = vmatpush1.msra.mxu0 0.0
  %9185 = vmatprep.subr.mxu0 0.0
  %9186 = vmatpush1.msra.mxu0 0.0
  %9187 = vmatprep.subr.mxu0 0.0
  %9188 = vmatpush1.msra.mxu0 0.0
  %9189 = vmatprep.subr.mxu0 0.0
  %9190 = vmatpush1.msra.mxu0 0.0
  %9191 = vmatprep.subr.mxu0 0.0
  %9192 = vmatpush1.msra.mxu0 0.0
  %9193 = vmatprep.subr.mxu0 0.0
  %9194 = vmatpush1.msra.mxu0 0.0
  %9195 = vmatprep.subr.mxu0 0.0
  %9196 = vmatpush1.msra.mxu0 0.0
  %9197 = vmatprep.subr.mxu0 0.0
  %9198 = vmatpush1.msra.mxu0 0.0
  %9199 = vmatprep.mubr.f32.mxu0 0.0
  %9200 = vmatmul.mubr.f32.gmra.mrb[0].mxu0 %v9133
  %v9201 = vpop.f32.mrb[0].mxu0
  %v9202 = vadd.f32 0.0, %v9201
  %v9203 = vpop.f32.mrb[0].mxu0
  %9204 = vdwg.mxu0
  %v9207 = vrot.slane %v9128, 7
  %v9208 = vsel %vm1914, %v9207, %v9127
  %v9209 = vsel %vm1235, %v9208, 0
  %9211 = vmatprep.subr.mxu0 0.0
  %9212 = vmatpush1.msra.mxu0 %v21
  %9213 = vmatprep.subr.mxu0 0.0
  %9214 = vmatpush1.msra.mxu0 %v22
  %9215 = vmatprep.subr.mxu0 0.0
  %9216 = vmatpush1.msra.mxu0 %v23
  %9217 = vmatprep.subr.mxu0 0.0
  %9218 = vmatpush1.msra.mxu0 %v24
  %9219 = vmatprep.subr.mxu0 0.0
  %9220 = vmatpush1.msra.mxu0 %v25
  %9221 = vmatprep.subr.mxu0 0.0
  %9222 = vmatpush1.msra.mxu0 %v26
  %9223 = vmatprep.subr.mxu0 0.0
  %9224 = vmatpush1.msra.mxu0 %v27
  %9225 = vmatprep.subr.mxu0 0.0
  %9226 = vmatpush1.msra.mxu0 %v28
  %9227 = vmatprep.subr.mxu0 0.0
  %9228 = vmatpush1.msra.mxu0 0.0
  %9229 = vmatprep.subr.mxu0 0.0
  %9230 = vmatpush1.msra.mxu0 0.0
  %9231 = vmatprep.subr.mxu0 0.0
  %9232 = vmatpush1.msra.mxu0 0.0
  %9233 = vmatprep.subr.mxu0 0.0
  %9234 = vmatpush1.msra.mxu0 0.0
  %9235 = vmatprep.subr.mxu0 0.0
  %9236 = vmatpush1.msra.mxu0 0.0
  %9237 = vmatprep.subr.mxu0 0.0
  %9238 = vmatpush1.msra.mxu0 0.0
  %9239 = vmatprep.subr.mxu0 0.0
  %9240 = vmatpush1.msra.mxu0 0.0
  %9241 = vmatprep.subr.mxu0 0.0
  %9242 = vmatpush1.msra.mxu0 0.0
  %9243 = vmatprep.subr.mxu0 0.0
  %9244 = vmatpush1.msra.mxu0 0.0
  %9245 = vmatprep.subr.mxu0 0.0
  %9246 = vmatpush1.msra.mxu0 0.0
  %9247 = vmatprep.subr.mxu0 0.0
  %9248 = vmatpush1.msra.mxu0 0.0
  %9249 = vmatprep.subr.mxu0 0.0
  %9250 = vmatpush1.msra.mxu0 0.0
  %9251 = vmatprep.subr.mxu0 0.0
  %9252 = vmatpush1.msra.mxu0 0.0
  %9253 = vmatprep.subr.mxu0 0.0
  %9254 = vmatpush1.msra.mxu0 0.0
  %9255 = vmatprep.subr.mxu0 0.0
  %9256 = vmatpush1.msra.mxu0 0.0
  %9257 = vmatprep.subr.mxu0 0.0
  %9258 = vmatpush1.msra.mxu0 0.0
  %9259 = vmatprep.subr.mxu0 0.0
  %9260 = vmatpush1.msra.mxu0 0.0
  %9261 = vmatprep.subr.mxu0 0.0
  %9262 = vmatpush1.msra.mxu0 0.0
  %9263 = vmatprep.subr.mxu0 0.0
  %9264 = vmatpush1.msra.mxu0 0.0
  %9265 = vmatprep.subr.mxu0 0.0
  %9266 = vmatpush1.msra.mxu0 0.0
  %9267 = vmatprep.subr.mxu0 0.0
  %9268 = vmatpush1.msra.mxu0 0.0
  %9269 = vmatprep.subr.mxu0 0.0
  %9270 = vmatpush1.msra.mxu0 0.0
  %9271 = vmatprep.subr.mxu0 0.0
  %9272 = vmatpush1.msra.mxu0 0.0
  %9273 = vmatprep.subr.mxu0 0.0
  %9274 = vmatpush1.msra.mxu0 0.0
  %9275 = vmatprep.mubr.f32.mxu0 0.0
  %9276 = vmatmul.mubr.f32.gmra.mrb[0].mxu0 %v9209
  %v9277 = vpop.f32.mrb[0].mxu0
  %v9278 = vadd.f32 0.0, %v9277
  %v9279 = vpop.f32.mrb[0].mxu0
  %9280 = vdwg.mxu0
  %v9281 = vmul.f32 %v9202, %v9202
  %v9282 = vsub.f32 %v9278, %v9281
  %v9283 = vmax.f32 %v9282, 0.0
  %v9284 = vadd.f32 %v9283, 1e-05
  %v9285 = vrsqrt.pop %v9284
  %v9286 = vlaneseq
  %v9287 = vshrl.u32 %v9286, 7
  %v9288 = vsub.s32 0, %v9287
  %v9289 = vrot.slane %v8994, %v9288
  %v9290 = vmul.f32 %v9285, %v9289
  %v9291 = vsub.f32 %v9103, %v9202
  %v9292 = vmul.f32 %v9291, %v9290
  %v9293 = vlaneseq
  %v9294 = vshrl.u32 %v9293, 7
  %v9295 = vsub.s32 0, %v9294
  %v9296 = vrot.slane %v8995, %v9295
  %v9297 = vadd.f32 %v9292, %v9296
  %v9300 = vunpack.c.l.s4 1966171168
  %v9301 = vunpack.c.0.s8 %v9300
  %v9302 = vlaneseq
  %v9303 = vshrl.u32 %v9302, 7
  %v9304 = vsub.s32 %v9301, %v9303
  %v9305 = vrot.slane %v9290, %v9304
  %v9306 = vcombine.high %v9305, %v9305
  %v9308 = vunpack.c.l.s4 1966171168
  %v9309 = vunpack.c.0.s8 %v9308
  %v9310 = vlaneseq
  %v9311 = vshrl.u32 %v9310, 7
  %v9312 = vsub.s32 %v9309, %v9311
  %v9313 = vrot.slane %v9305, %v9312
  %v9315 = vunpack.c.l.s4 1966171168
  %v9316 = vunpack.c.0.s8 %v9315
  %v9317 = vlaneseq
  %v9318 = vshrl.u32 %v9317, 7
  %v9319 = vsub.s32 %v9316, %v9318
  %v9320 = vrot.slane %v9306, %v9319
  %v9321 = vlaneseq
  %v9322 = vshrl.u32 %v9321, 7
  %v9323 = vsub.s32 0, %v9322
  %v9324 = vrot.slane %v9313, %v9323
  %v9325 = vlaneseq
  %v9326 = vshrl.u32 %v9325, 7
  %v9327 = vsub.s32 0, %v9326
  %v9328 = vrot.slane %v9320, %v9327
  %v9331 = vmul.f32 %v8930, %v9324
  %v9332 = vmul.f32 %v8933, %v9324
  %v9333 = vmul.f32 %v8938, %v9324
  %v9334 = vmul.f32 %v8941, %v9324
  %v9335 = vmul.f32 %v8946, %v9324
  %v9336 = vmul.f32 %v8949, %v9324
  %v9337 = vmul.f32 %v8954, %v9324
  %v9338 = vmul.f32 %v8957, %v9324
  %v9339 = vmul.f32 %v8962, %v9328
  %v9340 = vmul.f32 %v8965, %v9328
  %v9341 = vmul.f32 %v8970, %v9328
  %v9342 = vmul.f32 %v8973, %v9328
  %v9343 = vmul.f32 %v8978, %v9328
  %v9344 = vmul.f32 %v8981, %v9328
  %v9345 = vmul.f32 %v8986, %v9328
  %v9346 = vmul.f32 %v8989, %v9328
  %v9349 = vunpack.c.l.s4 1966171168
  %v9350 = vunpack.c.0.s8 %v9349
  %v9351 = vlaneseq
  %v9352 = vshrl.u32 %v9351, 7
  %v9353 = vsub.s32 %v9350, %v9352
  %v9354 = vrot.slane %v9297, %v9353
  %v9355 = vcombine.high %v9354, %v9354
  %v9357 = vunpack.c.l.s4 1966171168
  %v9358 = vunpack.c.0.s8 %v9357
  %v9359 = vlaneseq
  %v9360 = vshrl.u32 %v9359, 7
  %v9361 = vsub.s32 %v9358, %v9360
  %v9362 = vrot.slane %v9354, %v9361
  %v9364 = vunpack.c.l.s4 1966171168
  %v9365 = vunpack.c.0.s8 %v9364
  %v9366 = vlaneseq
  %v9367 = vshrl.u32 %v9366, 7
  %v9368 = vsub.s32 %v9365, %v9367
  %v9369 = vrot.slane %v9355, %v9368
  %v9370 = vlaneseq
  %v9371 = vshrl.u32 %v9370, 7
  %v9372 = vsub.s32 0, %v9371
  %v9373 = vrot.slane %v9362, %v9372
  %v9374 = vlaneseq
  %v9375 = vshrl.u32 %v9374, 7
  %v9376 = vsub.s32 0, %v9375
  %v9377 = vrot.slane %v9369, %v9376
  %v9380 = vadd.f32 %v9331, %v9373
  %v9381 = vadd.f32 %v9332, %v9373
  %v9382 = vadd.f32 %v9333, %v9373
  %v9383 = vadd.f32 %v9334, %v9373
  %v9384 = vadd.f32 %v9335, %v9373
  %v9385 = vadd.f32 %v9336, %v9373
  %v9386 = vadd.f32 %v9337, %v9373
  %v9387 = vadd.f32 %v9338, %v9373
  %v9388 = vadd.f32 %v9339, %v9377
  %v9389 = vadd.f32 %v9340, %v9377
  %v9390 = vadd.f32 %v9341, %v9377
  %v9391 = vadd.f32 %v9342, %v9377
  %v9392 = vadd.f32 %v9343, %v9377
  %v9393 = vadd.f32 %v9344, %v9377
  %v9394 = vadd.f32 %v9345, %v9377
  %v9395 = vadd.f32 %v9346, %v9377
  %v9396 = vmax.f32 %v9380, 0.0
  %v9397 = vmax.f32 %v9381, 0.0
  %v9398 = vmax.f32 %v9382, 0.0
  %v9399 = vmax.f32 %v9383, 0.0
  %v9400 = vmax.f32 %v9384, 0.0
  %v9401 = vmax.f32 %v9385, 0.0
  %v9402 = vmax.f32 %v9386, 0.0
  %v9403 = vmax.f32 %v9387, 0.0
  %v9404 = vmax.f32 %v9388, 0.0
  %v9405 = vmax.f32 %v9389, 0.0
  %v9406 = vmax.f32 %v9390, 0.0
  %v9407 = vmax.f32 %v9391, 0.0
  %v9408 = vmax.f32 %v9392, 0.0
  %v9409 = vmax.f32 %v9393, 0.0
  %v9410 = vmax.f32 %v9394, 0.0
  %v9411 = vmax.f32 %v9395, 0.0
  %v9412 = vpack.c.bf16 %v9397, %v9396
  %v9413 = vpack.c.bf16 %v9399, %v9398
  %v9414 = vpack.c.bf16 %v9401, %v9400
  %v9415 = vpack.c.bf16 %v9403, %v9402
  %v9416 = vpack.c.bf16 %v9405, %v9404
  %v9417 = vpack.c.bf16 %v9407, %v9406
  %v9418 = vpack.c.bf16 %v9409, %v9408
  %v9419 = vpack.c.bf16 %v9411, %v9410
  %s9420 = scalar_lea.vmem %s2, 128
  %v9421 = vld [vmem:[%s9420] sm:$0xf]
  %v9422 = vld [vmem:[%s9420 + $0x4] sm:$0xf]
  %v9423 = vld [vmem:[%s9420 + $0x8] sm:$0xf]
  %v9424 = vld [vmem:[%s9420 + $0xc] sm:$0xf]
  %v9425 = vld [vmem:[%s9420 + $0x10] sm:$0xf]
  %v9426 = vld [vmem:[%s9420 + $0x14] sm:$0xf]
  %v9427 = vld [vmem:[%s9420 + $0x18] sm:$0xf]
  %v9428 = vld [vmem:[%s9420 + $0x1c] sm:$0xf]
  %s9429 = scalar_lea.vmem %s3, 20
  %v9430 = vld [vmem:[%s9429] sm:$0x1]
  %v9431 = vlaneseq
  %v9432 = vshrl.u32 %v9431, 7
  %v9433 = vsub.s32 0, %v9432
  %v9434 = vrot.slane %v9430, %v9433
  %v9443 = vunpack.c.l.b16 %v9421
  %v9444 = vunpack.c.l.b16 %v9422
  %v9445 = vunpack.c.l.b16 %v9423
  %v9446 = vunpack.c.l.b16 %v9424
  %v9447 = vunpack.c.l.b16 %v9425
  %v9448 = vunpack.c.l.b16 %v9426
  %v9449 = vunpack.c.l.b16 %v9427
  %v9450 = vunpack.c.l.b16 %v9428
  %v9451 = vpack.c.b16 %v9444, %v9443
  %v9452 = vpack.c.b16 %v9446, %v9445
  %v9453 = vpack.c.b16 %v9448, %v9447
  %v9454 = vpack.c.b16 %v9450, %v9449
  %v9460 = vsel %vm1235, %v9412, 0
  %v9463 = vsel %vm1235, %v9413, 0
  %v9466 = vsel %vm1235, %v9414, 0
  %v9469 = vsel %vm1235, %v9415, 0
  %v9472 = vsel %vm1235, %v9416, 0
  %v9475 = vsel %vm1235, %v9417, 0
  %v9478 = vsel %vm1235, %v9418, 0
  %v9481 = vsel %vm1235, %v9419, 0
  %9483 = vmatprep.subr.bf16.mxu0 0
  %9484 = vmatpush1.bf16.msra.mxu0 %v9451
  %9485 = vmatprep.subr.bf16.mxu0 0
  %9486 = vmatpush1.bf16.msra.mxu0 %v9452
  %9487 = vmatprep.subr.bf16.mxu0 0
  %9488 = vmatpush1.bf16.msra.mxu0 %v9453
  %9489 = vmatprep.subr.bf16.mxu0 0
  %9490 = vmatpush1.bf16.msra.mxu0 %v9454
  %9491 = vmatprep.subr.bf16.mxu0 0
  %9492 = vmatpush1.bf16.msra.mxu0 0
  %9493 = vmatprep.subr.bf16.mxu0 0
  %9494 = vmatpush1.bf16.msra.mxu0 0
  %9495 = vmatprep.subr.bf16.mxu0 0
  %9496 = vmatpush1.bf16.msra.mxu0 0
  %9497 = vmatprep.subr.bf16.mxu0 0
  %9498 = vmatpush1.bf16.msra.mxu0 0
  %9499 = vmatprep.subr.bf16.mxu0 0
  %9500 = vmatpush1.bf16.msra.mxu0 0
  %9501 = vmatprep.subr.bf16.mxu0 0
  %9502 = vmatpush1.bf16.msra.mxu0 0
  %9503 = vmatprep.subr.bf16.mxu0 0
  %9504 = vmatpush1.bf16.msra.mxu0 0
  %9505 = vmatprep.subr.bf16.mxu0 0
  %9506 = vmatpush1.bf16.msra.mxu0 0
  %9507 = vmatprep.subr.bf16.mxu0 0
  %9508 = vmatpush1.bf16.msra.mxu0 0
  %9509 = vmatprep.subr.bf16.mxu0 0
  %9510 = vmatpush1.bf16.msra.mxu0 0
  %9511 = vmatprep.subr.bf16.mxu0 0
  %9512 = vmatpush1.bf16.msra.mxu0 0
  %9513 = vmatprep.subr.bf16.mxu0 0
  %9514 = vmatpush1.bf16.msra.mxu0 0
  %9515 = vmatprep.mubr.bf16.mxu0 0
  %9516 = vmatmul.mubr.bf16.gmra.mrb[0].mxu0 %v9460
  %v9517 = vpop.f32.mrb[0].mxu0
  %v9518 = vadd.f32 %v9434, %v9517
  %v9519 = vpop.f32.mrb[0].mxu0
  %v9520 = vpop.f32.mrb[0].mxu0
  %v9521 = vadd.f32 %v9434, %v9520
  %v9522 = vpop.f32.mrb[0].mxu0
  %9523 = vmatprep.mubr.bf16.mxu0 0
  %9524 = vmatmul.mubr.bf16.gmra.mrb[0].mxu0 %v9463
  %v9525 = vpop.f32.mrb[0].mxu0
  %v9526 = vadd.f32 %v9434, %v9525
  %v9527 = vpop.f32.mrb[0].mxu0
  %v9528 = vpop.f32.mrb[0].mxu0
  %v9529 = vadd.f32 %v9434, %v9528
  %v9530 = vpop.f32.mrb[0].mxu0
  %9531 = vmatprep.mubr.bf16.mxu0 0
  %9532 = vmatmul.mubr.bf16.gmra.mrb[0].mxu0 %v9466
  %v9533 = vpop.f32.mrb[0].mxu0
  %v9534 = vadd.f32 %v9434, %v9533
  %v9535 = vpop.f32.mrb[0].mxu0
  %v9536 = vpop.f32.mrb[0].mxu0
  %v9537 = vadd.f32 %v9434, %v9536
  %v9538 = vpop.f32.mrb[0].mxu0
  %9539 = vmatprep.mubr.bf16.mxu0 0
  %9540 = vmatmul.mubr.bf16.gmra.mrb[0].mxu0 %v9469
  %v9541 = vpop.f32.mrb[0].mxu0
  %v9542 = vadd.f32 %v9434, %v9541
  %v9543 = vpop.f32.mrb[0].mxu0
  %v9544 = vpop.f32.mrb[0].mxu0
  %v9545 = vadd.f32 %v9434, %v9544
  %v9546 = vpop.f32.mrb[0].mxu0
  %9547 = vmatprep.mubr.bf16.mxu0 0
  %9548 = vmatmul.mubr.bf16.gmra.mrb[0].mxu0 %v9472
  %v9549 = vpop.f32.mrb[0].mxu0
  %v9550 = vadd.f32 %v9434, %v9549
  %v9551 = vpop.f32.mrb[0].mxu0
  %v9552 = vpop.f32.mrb[0].mxu0
  %v9553 = vadd.f32 %v9434, %v9552
  %v9554 = vpop.f32.mrb[0].mxu0
  %9555 = vmatprep.mubr.bf16.mxu0 0
  %9556 = vmatmul.mubr.bf16.gmra.mrb[0].mxu0 %v9475
  %v9557 = vpop.f32.mrb[0].mxu0
  %v9558 = vadd.f32 %v9434, %v9557
  %v9559 = vpop.f32.mrb[0].mxu0
  %v9560 = vpop.f32.mrb[0].mxu0
  %v9561 = vadd.f32 %v9434, %v9560
  %v9562 = vpop.f32.mrb[0].mxu0
  %9563 = vmatprep.mubr.bf16.mxu0 0
  %9564 = vmatmul.mubr.bf16.gmra.mrb[0].mxu0 %v9478
  %v9565 = vpop.f32.mrb[0].mxu0
  %v9566 = vadd.f32 %v9434, %v9565
  %v9567 = vpop.f32.mrb[0].mxu0
  %v9568 = vpop.f32.mrb[0].mxu0
  %v9569 = vadd.f32 %v9434, %v9568
  %v9570 = vpop.f32.mrb[0].mxu0
  %9571 = vmatprep.mubr.bf16.mxu0 0
  %9572 = vmatmul.mubr.bf16.gmra.mrb[0].mxu0 %v9481
  %v9573 = vpop.f32.mrb[0].mxu0
  %v9574 = vadd.f32 %v9434, %v9573
  %v9575 = vpop.f32.mrb[0].mxu0
  %v9576 = vpop.f32.mrb[0].mxu0
  %v9577 = vadd.f32 %v9434, %v9576
  %v9578 = vpop.f32.mrb[0].mxu0
  %9579 = vdwg.mxu0
  %v9580 = vmul.f32 %v9518, %v9518
  %v9581 = vmul.f32 %v9521, %v9521
  %v9582 = vmul.f32 %v9526, %v9526
  %v9583 = vmul.f32 %v9529, %v9529
  %v9584 = vmul.f32 %v9534, %v9534
  %v9585 = vmul.f32 %v9537, %v9537
  %v9586 = vmul.f32 %v9542, %v9542
  %v9587 = vmul.f32 %v9545, %v9545
  %v9588 = vmul.f32 %v9550, %v9550
  %v9589 = vmul.f32 %v9553, %v9553
  %v9590 = vmul.f32 %v9558, %v9558
  %v9591 = vmul.f32 %v9561, %v9561
  %v9592 = vmul.f32 %v9566, %v9566
  %v9593 = vmul.f32 %v9569, %v9569
  %v9594 = vmul.f32 %v9574, %v9574
  %v9595 = vmul.f32 %v9577, %v9577
  %v9596 = vsel %vm1235, %v9580, 0.0
  %9597 = vadd.xlane.f32.xlu0 %v9596
  %v9598 = vpop.xlane.xlu0 %9597
  %v9599 = vsel %vm1235, %v9581, 0.0
  %9600 = vadd.xlane.f32.xlu0 %v9599
  %v9601 = vpop.xlane.xlu0 %9600
  %v9602 = vsel %vm1235, %v9582, 0.0
  %9603 = vadd.xlane.f32.xlu0 %v9602
  %v9604 = vpop.xlane.xlu0 %9603
  %v9605 = vsel %vm1235, %v9583, 0.0
  %9606 = vadd.xlane.f32.xlu0 %v9605
  %v9607 = vpop.xlane.xlu0 %9606
  %v9608 = vsel %vm1235, %v9584, 0.0
  %9609 = vadd.xlane.f32.xlu0 %v9608
  %v9610 = vpop.xlane.xlu0 %9609
  %v9611 = vsel %vm1235, %v9585, 0.0
  %9612 = vadd.xlane.f32.xlu0 %v9611
  %v9613 = vpop.xlane.xlu0 %9612
  %v9614 = vsel %vm1235, %v9586, 0.0
  %9615 = vadd.xlane.f32.xlu0 %v9614
  %v9616 = vpop.xlane.xlu0 %9615
  %v9617 = vsel %vm1235, %v9587, 0.0
  %9618 = vadd.xlane.f32.xlu0 %v9617
  %v9619 = vpop.xlane.xlu0 %9618
  %v9620 = vsel %vm1235, %v9588, 0.0
  %9621 = vadd.xlane.f32.xlu0 %v9620
  %v9622 = vpop.xlane.xlu0 %9621
  %v9623 = vsel %vm1235, %v9589, 0.0
  %9624 = vadd.xlane.f32.xlu0 %v9623
  %v9625 = vpop.xlane.xlu0 %9624
  %v9626 = vsel %vm1235, %v9590, 0.0
  %9627 = vadd.xlane.f32.xlu0 %v9626
  %v9628 = vpop.xlane.xlu0 %9627
  %v9629 = vsel %vm1235, %v9591, 0.0
  %9630 = vadd.xlane.f32.xlu0 %v9629
  %v9631 = vpop.xlane.xlu0 %9630
  %v9632 = vsel %vm1235, %v9592, 0.0
  %9633 = vadd.xlane.f32.xlu0 %v9632
  %v9634 = vpop.xlane.xlu0 %9633
  %v9635 = vsel %vm1235, %v9593, 0.0
  %9636 = vadd.xlane.f32.xlu0 %v9635
  %v9637 = vpop.xlane.xlu0 %9636
  %v9638 = vsel %vm1235, %v9594, 0.0
  %9639 = vadd.xlane.f32.xlu0 %v9638
  %v9640 = vpop.xlane.xlu0 %9639
  %v9641 = vsel %vm1235, %v9595, 0.0
  %9642 = vadd.xlane.f32.xlu0 %v9641
  %v9643 = vpop.xlane.xlu0 %9642
  %v9644 = vadd.f32 %v9598, 1e-12
  %v9645 = vadd.f32 %v9601, 1e-12
  %v9646 = vadd.f32 %v9604, 1e-12
  %v9647 = vadd.f32 %v9607, 1e-12
  %v9648 = vadd.f32 %v9610, 1e-12
  %v9649 = vadd.f32 %v9613, 1e-12
  %v9650 = vadd.f32 %v9616, 1e-12
  %v9651 = vadd.f32 %v9619, 1e-12
  %v9652 = vadd.f32 %v9622, 1e-12
  %v9653 = vadd.f32 %v9625, 1e-12
  %v9654 = vadd.f32 %v9628, 1e-12
  %v9655 = vadd.f32 %v9631, 1e-12
  %v9656 = vadd.f32 %v9634, 1e-12
  %v9657 = vadd.f32 %v9637, 1e-12
  %v9658 = vadd.f32 %v9640, 1e-12
  %v9659 = vadd.f32 %v9643, 1e-12
  %v9660 = vrsqrt.pop %v9644
  %v9661 = vrsqrt.pop %v9645
  %v9662 = vrsqrt.pop %v9646
  %v9663 = vrsqrt.pop %v9647
  %v9664 = vrsqrt.pop %v9648
  %v9665 = vrsqrt.pop %v9649
  %v9666 = vrsqrt.pop %v9650
  %v9667 = vrsqrt.pop %v9651
  %v9668 = vrsqrt.pop %v9652
  %v9669 = vrsqrt.pop %v9653
  %v9670 = vrsqrt.pop %v9654
  %v9671 = vrsqrt.pop %v9655
  %v9672 = vrsqrt.pop %v9656
  %v9673 = vrsqrt.pop %v9657
  %v9674 = vrsqrt.pop %v9658
  %v9675 = vrsqrt.pop %v9659
  %v9676 = vmul.f32 %v9518, %v9660
  %v9677 = vmul.f32 %v9521, %v9661
  %v9678 = vmul.f32 %v9526, %v9662
  %v9679 = vmul.f32 %v9529, %v9663
  %v9680 = vmul.f32 %v9534, %v9664
  %v9681 = vmul.f32 %v9537, %v9665
  %v9682 = vmul.f32 %v9542, %v9666
  %v9683 = vmul.f32 %v9545, %v9667
  %v9684 = vmul.f32 %v9550, %v9668
  %v9685 = vmul.f32 %v9553, %v9669
  %v9686 = vmul.f32 %v9558, %v9670
  %v9687 = vmul.f32 %v9561, %v9671
  %v9688 = vmul.f32 %v9566, %v9672
  %v9689 = vmul.f32 %v9569, %v9673
  %v9690 = vmul.f32 %v9574, %v9674
  %v9691 = vmul.f32 %v9577, %v9675
  %vm9692 = vcmask 261120
  %9693 = vst.msk [vmem:[%s5] sm:$0xff] %vm9692, %v9676
  %9694 = vst.msk [vmem:[%s5 + $0x8] sm:$0xff] %vm9692, %v9677
  %9695 = vst.msk [vmem:[%s5 + $0x10] sm:$0xff] %vm9692, %v9678
  %9696 = vst.msk [vmem:[%s5 + $0x18] sm:$0xff] %vm9692, %v9679
  %9697 = vst.msk [vmem:[%s5 + $0x20] sm:$0xff] %vm9692, %v9680
  %9698 = vst.msk [vmem:[%s5 + $0x28] sm:$0xff] %vm9692, %v9681
  %9699 = vst.msk [vmem:[%s5 + $0x30] sm:$0xff] %vm9692, %v9682
  %9700 = vst.msk [vmem:[%s5 + $0x38] sm:$0xff] %vm9692, %v9683
  %9701 = vst.msk [vmem:[%s5 + $0x40] sm:$0xff] %vm9692, %v9684
  %9702 = vst.msk [vmem:[%s5 + $0x48] sm:$0xff] %vm9692, %v9685
  %9703 = vst.msk [vmem:[%s5 + $0x50] sm:$0xff] %vm9692, %v9686
  %9704 = vst.msk [vmem:[%s5 + $0x58] sm:$0xff] %vm9692, %v9687
  %9705 = vst.msk [vmem:[%s5 + $0x60] sm:$0xff] %vm9692, %v9688
  %9706 = vst.msk [vmem:[%s5 + $0x68] sm:$0xff] %vm9692, %v9689
  %9707 = vst.msk [vmem:[%s5 + $0x70] sm:$0xff] %vm9692, %v9690
  %9708 = vst.msk [vmem:[%s5 + $0x78] sm:$0xff] %vm9692, %v9691
  // Predicated region
  $region22: #{forward.1} parent=0 // pred_check
    _
  $region23: #{forward.1} parent=0 // pred_check_branch
    %9710 = sbr.rel (0) target = $region25
  $region24: #{forward.1} parent=0 // pred_region
    _
  $region25: #{forward.1} parent=0 // pred_fallthru
    _
  // Predicated region
  $region26: #{forward.1} parent=0 // pred_check
    _
  $region27: #{forward.1} parent=0 // pred_check_branch
    %9712 = sbr.rel (0) target = $region29
  $region28: #{forward.1} parent=0 // pred_region
    _
  $region29: #{forward.1} parent=0 // pred_fallthru
    _

</llo_original>
